<compile_context>
chip_gen: v6e
topology: v6e:2x2x1
jax: 0.10.0
libtpu: 0.0.40
codegen_flags: <defaults>
</compile_context>

<pallas_src>
import math
from functools import partial

import jax
import jax.numpy as jnp
from jax.experimental import pallas as pl
from jax.experimental.pallas import tpu as pltpu

LANE_W = 512   # lane-axis width of a point tile (multiple of 128 -> unmasked vst)
TILE_R = 16    # sublane rows per grid step -> 8192 points / grid step


# ----------------------------------------------------------------------------- #
# Real-SH basis values, ordered l = 0..lmax, m = -l..l (same order as SHneuron's
# coeff_index loop).  Plain jnp, so it is used both INSIDE the Pallas kernel and
# as the pure-JAX reference.
# ----------------------------------------------------------------------------- #
def _sh_terms(theta, phi, lmax):
    assert lmax <= 2, "explicit real-SH formulas implemented up to lmax=2"
    st, ct = jnp.sin(theta), jnp.cos(theta)
    sp, cp = jnp.sin(phi), jnp.cos(phi)
    ys = [jnp.full_like(theta, 0.5 * math.sqrt(1.0 / math.pi))]        # l=0, m=0
    if lmax >= 1:
        c1 = math.sqrt(3.0 / (4.0 * math.pi))
        ys += [c1 * sp * st,                                           # l=1, m=-1
               c1 * ct,                                                # l=1, m= 0
               c1 * cp * st]                                           # l=1, m=+1
    if lmax >= 2:
        c2a = 0.5 * math.sqrt(15.0 / math.pi)
        c2b = 0.25 * math.sqrt(5.0 / math.pi)
        c2c = 0.25 * math.sqrt(15.0 / math.pi)
        ys += [c2a * sp * cp * st * st,                                # l=2, m=-2
               c2a * sp * st * ct,                                     # l=2, m=-1
               c2b * (3.0 * ct * ct - 1.0),                            # l=2, m= 0
               c2a * cp * st * ct,                                     # l=2, m=+1
               c2c * (cp * cp - sp * sp) * st * st]                    # l=2, m=+2
    return ys


# ----------------------------------------------------------------------------- #
# Kernel: per (TILE_R, LANE_W) block of points
#   basis (in-kernel)  ->  SHlayer  ->  H hidden layers  ->  final Linear(., 1)
# All layers are scalar(SMEM-weight)-broadcast VPU FMAs; no MXU.
# ----------------------------------------------------------------------------- #
def _spherical_siren_kernel(theta_ref, phi_ref, c_ref, wh_ref, wf_ref, bf_ref,
                            out_ref, *, lmax, neurons, n_hidden, use_sine):
    if use_sine:
        gofx = jnp.sin
    else:
        gofx = lambda v: 1.0 - jnp.square(v) * 0.5

    ys = _sh_terms(theta_ref[...], phi_ref[...], lmax)      # list of (TILE_R, LANE_W)
    n_basis = (lmax + 1) ** 2

    # SHlayer: x_j = gofx( sum_k shcoeffs[k, j] * Y_k )
    x = []
    for j in range(neurons):
        acc = c_ref[0, j] * ys[0]
        for k in range(1, n_basis):
            acc = acc + c_ref[k, j] * ys[k]
        x.append(gofx(acc))

    # Hidden layers (bias-free): x_j = gofx( sum_k W_h[j, k] * x_k )
    for h in range(n_hidden):
        xn = []
        for j in range(neurons):
            acc = wh_ref[h * neurons + j, 0] * x[0]
            for k in range(1, neurons):
                acc = acc + wh_ref[h * neurons + j, k] * x[k]
            xn.append(gofx(acc))
        x = xn

    # Final Linear(neurons, 1)
    out = wf_ref[0] * x[0]
    for j in range(1, neurons):
        out = out + wf_ref[j] * x[j]
    out_ref[...] = out + bf_ref[0]


# ----------------------------------------------------------------------------- #
# Wrapper: pad/reshape points to a lane-dense slab, run the gridded kernel,
# reshape back to (N, 1).
# ----------------------------------------------------------------------------- #
def spherical_siren_forward(coords, params, lmax, use_sine=False):
    n = coords.shape[0]
    neurons = params["sh_coeffs"].shape[1]
    n_hidden = params["hidden_w"].shape[0]
    n_basis = (lmax + 1) ** 2

    rows = -(-n // LANE_W)
    grid = max(1, -(-rows // TILE_R))
    rows_padded = grid * TILE_R
    n_padded = rows_padded * LANE_W
    pad = n_padded - n

    theta2d = jnp.pad(coords[:, 0].astype(jnp.float32), (0, pad)).reshape(
        rows_padded, LANE_W)
    phi2d = jnp.pad(coords[:, 1].astype(jnp.float32), (0, pad)).reshape(
        rows_padded, LANE_W)

    c = params["sh_coeffs"].astype(jnp.float32)                     # (n_basis, neurons)
    if n_hidden > 0:
        wh2d = params["hidden_w"].astype(jnp.float32).reshape(
            n_hidden * neurons, neurons)                            # (H*neurons, neurons)
    else:
        wh2d = jnp.zeros((1, neurons), jnp.float32)                 # placeholder (unread)
    wf = params["final_w"].astype(jnp.float32).reshape(neurons)     # (neurons,)
    bf = params["final_b"].astype(jnp.float32).reshape(1)           # (1,)

    flops = 2 * n_padded * (n_basis * neurons + n_hidden * neurons * neurons + neurons)
    transc = n_padded * (4 + (neurons * (n_hidden + 1) if use_sine else 0))
    bytes_acc = 3 * 4 * n_padded + 4 * (c.size + wh2d.size + wf.size + bf.size)

    tile_spec = pl.BlockSpec((TILE_R, LANE_W), lambda i: (i, 0))
    smem_spec = pl.BlockSpec(memory_space=pltpu.MemorySpace.SMEM)

    out2d = pl.pallas_call(
        partial(_spherical_siren_kernel, lmax=lmax, neurons=neurons,
                n_hidden=n_hidden, use_sine=use_sine),
        out_shape=jax.ShapeDtypeStruct((rows_padded, LANE_W), jnp.float32),
        grid=(grid,),
        in_specs=[tile_spec, tile_spec, smem_spec, smem_spec, smem_spec, smem_spec],
        out_specs=pl.BlockSpec((TILE_R, LANE_W), lambda i: (i, 0)),
        compiler_params=pltpu.CompilerParams(
            dimension_semantics=("parallel",),          # megacore sharding on v7x
            vmem_limit_bytes=32 * 1024 * 1024),
        cost_estimate=pl.CostEstimate(flops=flops, transcendentals=transc,
                                      bytes_accessed=bytes_acc),
    )(theta2d, phi2d, c, wh2d, wf, bf)

    out = out2d.reshape(-1)[:n][:, None]
    # PyTorch module returns (network(coords), coords) where coords requires grad.
    return out, coords


# ----------------------------------------------------------------------------- #
# Deterministic parameter construction mirroring the PyTorch __init__.
# ----------------------------------------------------------------------------- #
def init_params(key, lmax, neurons, hidden_layers):
    nb = (lmax + 1) ** 2
    k_sh_w, k_sh_b, k_h, k_fw, k_fb = jax.random.split(key, 5)

    # SHneuron: Linear(nb, nb) weight ~ N(0, 1), rows of degree l scaled by l^-2.
    w = jax.random.normal(k_sh_w, (neurons, nb, nb), dtype=jnp.float32)
    scales = []
    for l in range(lmax + 1):
        power = 1.0 if l == 0 else float(l) ** (-2)
        scales += [power] * (2 * l + 1)
    w = w * jnp.asarray(scales, dtype=jnp.float32)[None, :, None]
    bound = 1.0 / math.sqrt(nb)                      # default nn.Linear bias init
    b = jax.random.uniform(k_sh_b, (neurons, nb), minval=-bound, maxval=bound,
                           dtype=jnp.float32)
    shcoeffs = w.sum(axis=-1) + b                    # SHneuron.forward: W @ ones + b
    sh_coeffs = shcoeffs.T                           # (nb, neurons)

    # HiddenLayer: Linear(neurons, neurons, bias=False), weight ~ N(0, 0.01)
    hidden_w = 0.01 * jax.random.normal(k_h, (hidden_layers, neurons, neurons),
                                        dtype=jnp.float32)   # (out, in) per layer

    # Final Linear(neurons, 1): weight ~ N(0, 0.01), bias ~ N(0, 0.01)
    final_w = 0.01 * jax.random.normal(k_fw, (neurons,), dtype=jnp.float32)
    final_b = 0.01 * jax.random.normal(k_fb, (1,), dtype=jnp.float32)

    return {"sh_coeffs": sh_coeffs, "hidden_w": hidden_w,
            "final_w": final_w, "final_b": final_b}


if __name__ == "__main__":
    lmax, neurons, hidden_layers, use_sine = 2, 8, 2, False
    n_points = 20_000        # rows=40 -> padded to 48 rows -> grid of 3 tiles

    key = jax.random.PRNGKey(0)
    k_coord, k_param = jax.random.split(key)
    theta = jax.random.uniform(k_coord, (n_points,), minval=0.0, maxval=math.pi)
    phi = jax.random.uniform(jax.random.fold_in(k_coord, 1), (n_points,),
                             minval=0.0, maxval=2.0 * math.pi)
    coords = jnp.stack([theta, phi], axis=-1).astype(jnp.float32)   # (N, 2)

    params = init_params(k_param, lmax, neurons, hidden_layers)

    out, coords_out = spherical_siren_forward(coords, params, lmax, use_sine)
    jax.block_until_ready(out)

    # Pure-JAX reference of the same forward pass.
    gofx = jnp.sin if use_sine else (lambda v: 1.0 - jnp.square(v) * 0.5)
    basis = jnp.stack(_sh_terms(coords[:, 0], coords[:, 1], lmax), axis=-1)
    x = gofx(basis @ params["sh_coeffs"])
    for h in range(hidden_layers):
        x = gofx(x @ params["hidden_w"][h].T)
    ref = x @ params["final_w"][:, None] + params["final_b"][0]

    assert out.shape == (n_points, 1) and coords_out.shape == (n_points, 2)
    assert jnp.allclose(out, ref, rtol=1e-4, atol=1e-4), \
        float(jnp.max(jnp.abs(out - ref)))

    print("KERNEL_OK")
</pallas_src>

<mosaic_0001>
module attributes {stable_mosaic.version = 11 : i64} {
  func.func @_spherical_siren_kernel(%arg0: i32, %arg1: memref<16x512xf32, #tpu.memory_space<vmem>>, %arg2: memref<16x512xf32, #tpu.memory_space<vmem>>, %arg3: memref<9x8xf32, #tpu.memory_space<smem>>, %arg4: memref<16x8xf32, #tpu.memory_space<smem>>, %arg5: memref<8xf32, #tpu.memory_space<smem>>, %arg6: memref<1xf32, #tpu.memory_space<smem>>, %arg7: memref<16x512xf32, #tpu.memory_space<vmem>>) attributes {dimension_semantics = [#tpu.dimension_semantics<parallel>], iteration_bounds = array<i64: 3>, scalar_prefetch = 0 : i64, scratch_operands = 0 : i64, tpu.core_type = #tpu.core_type<tc>, window_params = [{transform_indices = @transform_0, window_bounds = array<i64: 16, 512>}, {transform_indices = @transform_1, window_bounds = array<i64: 16, 512>}, {transform_indices = @transform_2, window_bounds = array<i64: 9, 8>}, {transform_indices = @transform_3, window_bounds = array<i64: 16, 8>}, {transform_indices = @transform_4, window_bounds = array<i64: 8>}, {transform_indices = @transform_5, window_bounds = array<i64: 1>}, {transform_indices = @transform_6, window_bounds = array<i64: 16, 512>}]} {
    %c0 = arith.constant 0 : index
    %c0_0 = arith.constant 0 : index
    %0 = vector.load %arg1[%c0, %c0_0] : memref<16x512xf32, #tpu.memory_space<vmem>>, vector<16x512xf32>
    %c0_1 = arith.constant 0 : index
    %c0_2 = arith.constant 0 : index
    %1 = vector.load %arg2[%c0_1, %c0_2] : memref<16x512xf32, #tpu.memory_space<vmem>>, vector<16x512xf32>
    %2 = math.sin %0 : vector<16x512xf32>
    %3 = math.cos %0 : vector<16x512xf32>
    %4 = math.sin %1 : vector<16x512xf32>
    %5 = math.cos %1 : vector<16x512xf32>
    %cst = arith.constant 0.282094806 : f32
    %6 = vector.broadcast %cst : f32 to vector<16x512xf32>
    %cst_3 = arith.constant 0.488602519 : f32
    %7 = vector.broadcast %cst_3 : f32 to vector<16x512xf32>
    %8 = arith.mulf %7, %4 : vector<16x512xf32>
    %9 = arith.mulf %8, %2 : vector<16x512xf32>
    %cst_4 = arith.constant 0.488602519 : f32
    %10 = vector.broadcast %cst_4 : f32 to vector<16x512xf32>
    %11 = arith.mulf %10, %3 : vector<16x512xf32>
    %cst_5 = arith.constant 0.488602519 : f32
    %12 = vector.broadcast %cst_5 : f32 to vector<16x512xf32>
    %13 = arith.mulf %12, %5 : vector<16x512xf32>
    %14 = arith.mulf %13, %2 : vector<16x512xf32>
    %cst_6 = arith.constant 1.09254849 : f32
    %15 = vector.broadcast %cst_6 : f32 to vector<16x512xf32>
    %16 = arith.mulf %15, %4 : vector<16x512xf32>
    %17 = arith.mulf %16, %5 : vector<16x512xf32>
    %18 = arith.mulf %17, %2 : vector<16x512xf32>
    %19 = arith.mulf %18, %2 : vector<16x512xf32>
    %cst_7 = arith.constant 1.09254849 : f32
    %20 = vector.broadcast %cst_7 : f32 to vector<16x512xf32>
    %21 = arith.mulf %20, %4 : vector<16x512xf32>
    %22 = arith.mulf %21, %2 : vector<16x512xf32>
    %23 = arith.mulf %22, %3 : vector<16x512xf32>
    %cst_8 = arith.constant 3.000000e+00 : f32
    %24 = vector.broadcast %cst_8 : f32 to vector<16x512xf32>
    %25 = arith.mulf %24, %3 : vector<16x512xf32>
    %26 = arith.mulf %25, %3 : vector<16x512xf32>
    %cst_9 = arith.constant 1.000000e+00 : f32
    %27 = vector.broadcast %cst_9 : f32 to vector<16x512xf32>
    %28 = arith.subf %26, %27 : vector<16x512xf32>
    %cst_10 = arith.constant 0.31539157 : f32
    %29 = vector.broadcast %cst_10 : f32 to vector<16x512xf32>
    %30 = arith.mulf %29, %28 : vector<16x512xf32>
    %cst_11 = arith.constant 1.09254849 : f32
    %31 = vector.broadcast %cst_11 : f32 to vector<16x512xf32>
    %32 = arith.mulf %31, %5 : vector<16x512xf32>
    %33 = arith.mulf %32, %2 : vector<16x512xf32>
    %34 = arith.mulf %33, %3 : vector<16x512xf32>
    %35 = arith.mulf %5, %5 : vector<16x512xf32>
    %36 = arith.mulf %4, %4 : vector<16x512xf32>
    %37 = arith.subf %35, %36 : vector<16x512xf32>
    %cst_12 = arith.constant 0.546274245 : f32
    %38 = vector.broadcast %cst_12 : f32 to vector<16x512xf32>
    %39 = arith.mulf %38, %37 : vector<16x512xf32>
    %40 = arith.mulf %39, %2 : vector<16x512xf32>
    %41 = arith.mulf %40, %2 : vector<16x512xf32>
    %c0_13 = arith.constant 0 : index
    %c0_14 = arith.constant 0 : index
    %42 = memref.load %arg3[%c0_13, %c0_14] : memref<9x8xf32, #tpu.memory_space<smem>>
    %43 = vector.broadcast %42 : f32 to vector<16x512xf32>
    %44 = arith.mulf %43, %6 : vector<16x512xf32>
    %c1 = arith.constant 1 : index
    %c0_15 = arith.constant 0 : index
    %45 = memref.load %arg3[%c1, %c0_15] : memref<9x8xf32, #tpu.memory_space<smem>>
    %46 = vector.broadcast %45 : f32 to vector<16x512xf32>
    %47 = arith.mulf %46, %9 : vector<16x512xf32>
    %48 = arith.addf %44, %47 : vector<16x512xf32>
    %c2 = arith.constant 2 : index
    %c0_16 = arith.constant 0 : index
    %49 = memref.load %arg3[%c2, %c0_16] : memref<9x8xf32, #tpu.memory_space<smem>>
    %50 = vector.broadcast %49 : f32 to vector<16x512xf32>
    %51 = arith.mulf %50, %11 : vector<16x512xf32>
    %52 = arith.addf %48, %51 : vector<16x512xf32>
    %c3 = arith.constant 3 : index
    %c0_17 = arith.constant 0 : index
    %53 = memref.load %arg3[%c3, %c0_17] : memref<9x8xf32, #tpu.memory_space<smem>>
    %54 = vector.broadcast %53 : f32 to vector<16x512xf32>
    %55 = arith.mulf %54, %14 : vector<16x512xf32>
    %56 = arith.addf %52, %55 : vector<16x512xf32>
    %c4 = arith.constant 4 : index
    %c0_18 = arith.constant 0 : index
    %57 = memref.load %arg3[%c4, %c0_18] : memref<9x8xf32, #tpu.memory_space<smem>>
    %58 = vector.broadcast %57 : f32 to vector<16x512xf32>
    %59 = arith.mulf %58, %19 : vector<16x512xf32>
    %60 = arith.addf %56, %59 : vector<16x512xf32>
    %c5 = arith.constant 5 : index
    %c0_19 = arith.constant 0 : index
    %61 = memref.load %arg3[%c5, %c0_19] : memref<9x8xf32, #tpu.memory_space<smem>>
    %62 = vector.broadcast %61 : f32 to vector<16x512xf32>
    %63 = arith.mulf %62, %23 : vector<16x512xf32>
    %64 = arith.addf %60, %63 : vector<16x512xf32>
    %c6 = arith.constant 6 : index
    %c0_20 = arith.constant 0 : index
    %65 = memref.load %arg3[%c6, %c0_20] : memref<9x8xf32, #tpu.memory_space<smem>>
    %66 = vector.broadcast %65 : f32 to vector<16x512xf32>
    %67 = arith.mulf %66, %30 : vector<16x512xf32>
    %68 = arith.addf %64, %67 : vector<16x512xf32>
    %c7 = arith.constant 7 : index
    %c0_21 = arith.constant 0 : index
    %69 = memref.load %arg3[%c7, %c0_21] : memref<9x8xf32, #tpu.memory_space<smem>>
    %70 = vector.broadcast %69 : f32 to vector<16x512xf32>
    %71 = arith.mulf %70, %34 : vector<16x512xf32>
    %72 = arith.addf %68, %71 : vector<16x512xf32>
    %c8 = arith.constant 8 : index
    %c0_22 = arith.constant 0 : index
    %73 = memref.load %arg3[%c8, %c0_22] : memref<9x8xf32, #tpu.memory_space<smem>>
    %74 = vector.broadcast %73 : f32 to vector<16x512xf32>
    %75 = arith.mulf %74, %41 : vector<16x512xf32>
    %76 = arith.addf %72, %75 : vector<16x512xf32>
    %77 = arith.mulf %76, %76 : vector<16x512xf32>
    %cst_23 = arith.constant 5.000000e-01 : f32
    %78 = vector.broadcast %cst_23 : f32 to vector<16x512xf32>
    %79 = arith.mulf %77, %78 : vector<16x512xf32>
    %cst_24 = arith.constant 1.000000e+00 : f32
    %80 = vector.broadcast %cst_24 : f32 to vector<16x512xf32>
    %81 = arith.subf %80, %79 : vector<16x512xf32>
    %c0_25 = arith.constant 0 : index
    %c1_26 = arith.constant 1 : index
    %82 = memref.load %arg3[%c0_25, %c1_26] : memref<9x8xf32, #tpu.memory_space<smem>>
    %83 = vector.broadcast %82 : f32 to vector<16x512xf32>
    %84 = arith.mulf %83, %6 : vector<16x512xf32>
    %c1_27 = arith.constant 1 : index
    %c1_28 = arith.constant 1 : index
    %85 = memref.load %arg3[%c1_27, %c1_28] : memref<9x8xf32, #tpu.memory_space<smem>>
    %86 = vector.broadcast %85 : f32 to vector<16x512xf32>
    %87 = arith.mulf %86, %9 : vector<16x512xf32>
    %88 = arith.addf %84, %87 : vector<16x512xf32>
    %c2_29 = arith.constant 2 : index
    %c1_30 = arith.constant 1 : index
    %89 = memref.load %arg3[%c2_29, %c1_30] : memref<9x8xf32, #tpu.memory_space<smem>>
    %90 = vector.broadcast %89 : f32 to vector<16x512xf32>
    %91 = arith.mulf %90, %11 : vector<16x512xf32>
    %92 = arith.addf %88, %91 : vector<16x512xf32>
    %c3_31 = arith.constant 3 : index
    %c1_32 = arith.constant 1 : index
    %93 = memref.load %arg3[%c3_31, %c1_32] : memref<9x8xf32, #tpu.memory_space<smem>>
    %94 = vector.broadcast %93 : f32 to vector<16x512xf32>
    %95 = arith.mulf %94, %14 : vector<16x512xf32>
    %96 = arith.addf %92, %95 : vector<16x512xf32>
    %c4_33 = arith.constant 4 : index
    %c1_34 = arith.constant 1 : index
    %97 = memref.load %arg3[%c4_33, %c1_34] : memref<9x8xf32, #tpu.memory_space<smem>>
    %98 = vector.broadcast %97 : f32 to vector<16x512xf32>
    %99 = arith.mulf %98, %19 : vector<16x512xf32>
    %100 = arith.addf %96, %99 : vector<16x512xf32>
    %c5_35 = arith.constant 5 : index
    %c1_36 = arith.constant 1 : index
    %101 = memref.load %arg3[%c5_35, %c1_36] : memref<9x8xf32, #tpu.memory_space<smem>>
    %102 = vector.broadcast %101 : f32 to vector<16x512xf32>
    %103 = arith.mulf %102, %23 : vector<16x512xf32>
    %104 = arith.addf %100, %103 : vector<16x512xf32>
    %c6_37 = arith.constant 6 : index
    %c1_38 = arith.constant 1 : index
    %105 = memref.load %arg3[%c6_37, %c1_38] : memref<9x8xf32, #tpu.memory_space<smem>>
    %106 = vector.broadcast %105 : f32 to vector<16x512xf32>
    %107 = arith.mulf %106, %30 : vector<16x512xf32>
    %108 = arith.addf %104, %107 : vector<16x512xf32>
    %c7_39 = arith.constant 7 : index
    %c1_40 = arith.constant 1 : index
    %109 = memref.load %arg3[%c7_39, %c1_40] : memref<9x8xf32, #tpu.memory_space<smem>>
    %110 = vector.broadcast %109 : f32 to vector<16x512xf32>
    %111 = arith.mulf %110, %34 : vector<16x512xf32>
    %112 = arith.addf %108, %111 : vector<16x512xf32>
    %c8_41 = arith.constant 8 : index
    %c1_42 = arith.constant 1 : index
    %113 = memref.load %arg3[%c8_41, %c1_42] : memref<9x8xf32, #tpu.memory_space<smem>>
    %114 = vector.broadcast %113 : f32 to vector<16x512xf32>
    %115 = arith.mulf %114, %41 : vector<16x512xf32>
    %116 = arith.addf %112, %115 : vector<16x512xf32>
    %117 = arith.mulf %116, %116 : vector<16x512xf32>
    %cst_43 = arith.constant 5.000000e-01 : f32
    %118 = vector.broadcast %cst_43 : f32 to vector<16x512xf32>
    %119 = arith.mulf %117, %118 : vector<16x512xf32>
    %cst_44 = arith.constant 1.000000e+00 : f32
    %120 = vector.broadcast %cst_44 : f32 to vector<16x512xf32>
    %121 = arith.subf %120, %119 : vector<16x512xf32>
    %c0_45 = arith.constant 0 : index
    %c2_46 = arith.constant 2 : index
    %122 = memref.load %arg3[%c0_45, %c2_46] : memref<9x8xf32, #tpu.memory_space<smem>>
    %123 = vector.broadcast %122 : f32 to vector<16x512xf32>
    %124 = arith.mulf %123, %6 : vector<16x512xf32>
    %c1_47 = arith.constant 1 : index
    %c2_48 = arith.constant 2 : index
    %125 = memref.load %arg3[%c1_47, %c2_48] : memref<9x8xf32, #tpu.memory_space<smem>>
    %126 = vector.broadcast %125 : f32 to vector<16x512xf32>
    %127 = arith.mulf %126, %9 : vector<16x512xf32>
    %128 = arith.addf %124, %127 : vector<16x512xf32>
    %c2_49 = arith.constant 2 : index
    %c2_50 = arith.constant 2 : index
    %129 = memref.load %arg3[%c2_49, %c2_50] : memref<9x8xf32, #tpu.memory_space<smem>>
    %130 = vector.broadcast %129 : f32 to vector<16x512xf32>
    %131 = arith.mulf %130, %11 : vector<16x512xf32>
    %132 = arith.addf %128, %131 : vector<16x512xf32>
    %c3_51 = arith.constant 3 : index
    %c2_52 = arith.constant 2 : index
    %133 = memref.load %arg3[%c3_51, %c2_52] : memref<9x8xf32, #tpu.memory_space<smem>>
    %134 = vector.broadcast %133 : f32 to vector<16x512xf32>
    %135 = arith.mulf %134, %14 : vector<16x512xf32>
    %136 = arith.addf %132, %135 : vector<16x512xf32>
    %c4_53 = arith.constant 4 : index
    %c2_54 = arith.constant 2 : index
    %137 = memref.load %arg3[%c4_53, %c2_54] : memref<9x8xf32, #tpu.memory_space<smem>>
    %138 = vector.broadcast %137 : f32 to vector<16x512xf32>
    %139 = arith.mulf %138, %19 : vector<16x512xf32>
    %140 = arith.addf %136, %139 : vector<16x512xf32>
    %c5_55 = arith.constant 5 : index
    %c2_56 = arith.constant 2 : index
    %141 = memref.load %arg3[%c5_55, %c2_56] : memref<9x8xf32, #tpu.memory_space<smem>>
    %142 = vector.broadcast %141 : f32 to vector<16x512xf32>
    %143 = arith.mulf %142, %23 : vector<16x512xf32>
    %144 = arith.addf %140, %143 : vector<16x512xf32>
    %c6_57 = arith.constant 6 : index
    %c2_58 = arith.constant 2 : index
    %145 = memref.load %arg3[%c6_57, %c2_58] : memref<9x8xf32, #tpu.memory_space<smem>>
    %146 = vector.broadcast %145 : f32 to vector<16x512xf32>
    %147 = arith.mulf %146, %30 : vector<16x512xf32>
    %148 = arith.addf %144, %147 : vector<16x512xf32>
    %c7_59 = arith.constant 7 : index
    %c2_60 = arith.constant 2 : index
    %149 = memref.load %arg3[%c7_59, %c2_60] : memref<9x8xf32, #tpu.memory_space<smem>>
    %150 = vector.broadcast %149 : f32 to vector<16x512xf32>
    %151 = arith.mulf %150, %34 : vector<16x512xf32>
    %152 = arith.addf %148, %151 : vector<16x512xf32>
    %c8_61 = arith.constant 8 : index
    %c2_62 = arith.constant 2 : index
    %153 = memref.load %arg3[%c8_61, %c2_62] : memref<9x8xf32, #tpu.memory_space<smem>>
    %154 = vector.broadcast %153 : f32 to vector<16x512xf32>
    %155 = arith.mulf %154, %41 : vector<16x512xf32>
    %156 = arith.addf %152, %155 : vector<16x512xf32>
    %157 = arith.mulf %156, %156 : vector<16x512xf32>
    %cst_63 = arith.constant 5.000000e-01 : f32
    %158 = vector.broadcast %cst_63 : f32 to vector<16x512xf32>
    %159 = arith.mulf %157, %158 : vector<16x512xf32>
    %cst_64 = arith.constant 1.000000e+00 : f32
    %160 = vector.broadcast %cst_64 : f32 to vector<16x512xf32>
    %161 = arith.subf %160, %159 : vector<16x512xf32>
    %c0_65 = arith.constant 0 : index
    %c3_66 = arith.constant 3 : index
    %162 = memref.load %arg3[%c0_65, %c3_66] : memref<9x8xf32, #tpu.memory_space<smem>>
    %163 = vector.broadcast %162 : f32 to vector<16x512xf32>
    %164 = arith.mulf %163, %6 : vector<16x512xf32>
    %c1_67 = arith.constant 1 : index
    %c3_68 = arith.constant 3 : index
    %165 = memref.load %arg3[%c1_67, %c3_68] : memref<9x8xf32, #tpu.memory_space<smem>>
    %166 = vector.broadcast %165 : f32 to vector<16x512xf32>
    %167 = arith.mulf %166, %9 : vector<16x512xf32>
    %168 = arith.addf %164, %167 : vector<16x512xf32>
    %c2_69 = arith.constant 2 : index
    %c3_70 = arith.constant 3 : index
    %169 = memref.load %arg3[%c2_69, %c3_70] : memref<9x8xf32, #tpu.memory_space<smem>>
    %170 = vector.broadcast %169 : f32 to vector<16x512xf32>
    %171 = arith.mulf %170, %11 : vector<16x512xf32>
    %172 = arith.addf %168, %171 : vector<16x512xf32>
    %c3_71 = arith.constant 3 : index
    %c3_72 = arith.constant 3 : index
    %173 = memref.load %arg3[%c3_71, %c3_72] : memref<9x8xf32, #tpu.memory_space<smem>>
    %174 = vector.broadcast %173 : f32 to vector<16x512xf32>
    %175 = arith.mulf %174, %14 : vector<16x512xf32>
    %176 = arith.addf %172, %175 : vector<16x512xf32>
    %c4_73 = arith.constant 4 : index
    %c3_74 = arith.constant 3 : index
    %177 = memref.load %arg3[%c4_73, %c3_74] : memref<9x8xf32, #tpu.memory_space<smem>>
    %178 = vector.broadcast %177 : f32 to vector<16x512xf32>
    %179 = arith.mulf %178, %19 : vector<16x512xf32>
    %180 = arith.addf %176, %179 : vector<16x512xf32>
    %c5_75 = arith.constant 5 : index
    %c3_76 = arith.constant 3 : index
    %181 = memref.load %arg3[%c5_75, %c3_76] : memref<9x8xf32, #tpu.memory_space<smem>>
    %182 = vector.broadcast %181 : f32 to vector<16x512xf32>
    %183 = arith.mulf %182, %23 : vector<16x512xf32>
    %184 = arith.addf %180, %183 : vector<16x512xf32>
    %c6_77 = arith.constant 6 : index
    %c3_78 = arith.constant 3 : index
    %185 = memref.load %arg3[%c6_77, %c3_78] : memref<9x8xf32, #tpu.memory_space<smem>>
    %186 = vector.broadcast %185 : f32 to vector<16x512xf32>
    %187 = arith.mulf %186, %30 : vector<16x512xf32>
    %188 = arith.addf %184, %187 : vector<16x512xf32>
    %c7_79 = arith.constant 7 : index
    %c3_80 = arith.constant 3 : index
    %189 = memref.load %arg3[%c7_79, %c3_80] : memref<9x8xf32, #tpu.memory_space<smem>>
    %190 = vector.broadcast %189 : f32 to vector<16x512xf32>
    %191 = arith.mulf %190, %34 : vector<16x512xf32>
    %192 = arith.addf %188, %191 : vector<16x512xf32>
    %c8_81 = arith.constant 8 : index
    %c3_82 = arith.constant 3 : index
    %193 = memref.load %arg3[%c8_81, %c3_82] : memref<9x8xf32, #tpu.memory_space<smem>>
    %194 = vector.broadcast %193 : f32 to vector<16x512xf32>
    %195 = arith.mulf %194, %41 : vector<16x512xf32>
    %196 = arith.addf %192, %195 : vector<16x512xf32>
    %197 = arith.mulf %196, %196 : vector<16x512xf32>
    %cst_83 = arith.constant 5.000000e-01 : f32
    %198 = vector.broadcast %cst_83 : f32 to vector<16x512xf32>
    %199 = arith.mulf %197, %198 : vector<16x512xf32>
    %cst_84 = arith.constant 1.000000e+00 : f32
    %200 = vector.broadcast %cst_84 : f32 to vector<16x512xf32>
    %201 = arith.subf %200, %199 : vector<16x512xf32>
    %c0_85 = arith.constant 0 : index
    %c4_86 = arith.constant 4 : index
    %202 = memref.load %arg3[%c0_85, %c4_86] : memref<9x8xf32, #tpu.memory_space<smem>>
    %203 = vector.broadcast %202 : f32 to vector<16x512xf32>
    %204 = arith.mulf %203, %6 : vector<16x512xf32>
    %c1_87 = arith.constant 1 : index
    %c4_88 = arith.constant 4 : index
    %205 = memref.load %arg3[%c1_87, %c4_88] : memref<9x8xf32, #tpu.memory_space<smem>>
    %206 = vector.broadcast %205 : f32 to vector<16x512xf32>
    %207 = arith.mulf %206, %9 : vector<16x512xf32>
    %208 = arith.addf %204, %207 : vector<16x512xf32>
    %c2_89 = arith.constant 2 : index
    %c4_90 = arith.constant 4 : index
    %209 = memref.load %arg3[%c2_89, %c4_90] : memref<9x8xf32, #tpu.memory_space<smem>>
    %210 = vector.broadcast %209 : f32 to vector<16x512xf32>
    %211 = arith.mulf %210, %11 : vector<16x512xf32>
    %212 = arith.addf %208, %211 : vector<16x512xf32>
    %c3_91 = arith.constant 3 : index
    %c4_92 = arith.constant 4 : index
    %213 = memref.load %arg3[%c3_91, %c4_92] : memref<9x8xf32, #tpu.memory_space<smem>>
    %214 = vector.broadcast %213 : f32 to vector<16x512xf32>
    %215 = arith.mulf %214, %14 : vector<16x512xf32>
    %216 = arith.addf %212, %215 : vector<16x512xf32>
    %c4_93 = arith.constant 4 : index
    %c4_94 = arith.constant 4 : index
    %217 = memref.load %arg3[%c4_93, %c4_94] : memref<9x8xf32, #tpu.memory_space<smem>>
    %218 = vector.broadcast %217 : f32 to vector<16x512xf32>
    %219 = arith.mulf %218, %19 : vector<16x512xf32>
    %220 = arith.addf %216, %219 : vector<16x512xf32>
    %c5_95 = arith.constant 5 : index
    %c4_96 = arith.constant 4 : index
    %221 = memref.load %arg3[%c5_95, %c4_96] : memref<9x8xf32, #tpu.memory_space<smem>>
    %222 = vector.broadcast %221 : f32 to vector<16x512xf32>
    %223 = arith.mulf %222, %23 : vector<16x512xf32>
    %224 = arith.addf %220, %223 : vector<16x512xf32>
    %c6_97 = arith.constant 6 : index
    %c4_98 = arith.constant 4 : index
    %225 = memref.load %arg3[%c6_97, %c4_98] : memref<9x8xf32, #tpu.memory_space<smem>>
    %226 = vector.broadcast %225 : f32 to vector<16x512xf32>
    %227 = arith.mulf %226, %30 : vector<16x512xf32>
    %228 = arith.addf %224, %227 : vector<16x512xf32>
    %c7_99 = arith.constant 7 : index
    %c4_100 = arith.constant 4 : index
    %229 = memref.load %arg3[%c7_99, %c4_100] : memref<9x8xf32, #tpu.memory_space<smem>>
    %230 = vector.broadcast %229 : f32 to vector<16x512xf32>
    %231 = arith.mulf %230, %34 : vector<16x512xf32>
    %232 = arith.addf %228, %231 : vector<16x512xf32>
    %c8_101 = arith.constant 8 : index
    %c4_102 = arith.constant 4 : index
    %233 = memref.load %arg3[%c8_101, %c4_102] : memref<9x8xf32, #tpu.memory_space<smem>>
    %234 = vector.broadcast %233 : f32 to vector<16x512xf32>
    %235 = arith.mulf %234, %41 : vector<16x512xf32>
    %236 = arith.addf %232, %235 : vector<16x512xf32>
    %237 = arith.mulf %236, %236 : vector<16x512xf32>
    %cst_103 = arith.constant 5.000000e-01 : f32
    %238 = vector.broadcast %cst_103 : f32 to vector<16x512xf32>
    %239 = arith.mulf %237, %238 : vector<16x512xf32>
    %cst_104 = arith.constant 1.000000e+00 : f32
    %240 = vector.broadcast %cst_104 : f32 to vector<16x512xf32>
    %241 = arith.subf %240, %239 : vector<16x512xf32>
    %c0_105 = arith.constant 0 : index
    %c5_106 = arith.constant 5 : index
    %242 = memref.load %arg3[%c0_105, %c5_106] : memref<9x8xf32, #tpu.memory_space<smem>>
    %243 = vector.broadcast %242 : f32 to vector<16x512xf32>
    %244 = arith.mulf %243, %6 : vector<16x512xf32>
    %c1_107 = arith.constant 1 : index
    %c5_108 = arith.constant 5 : index
    %245 = memref.load %arg3[%c1_107, %c5_108] : memref<9x8xf32, #tpu.memory_space<smem>>
    %246 = vector.broadcast %245 : f32 to vector<16x512xf32>
    %247 = arith.mulf %246, %9 : vector<16x512xf32>
    %248 = arith.addf %244, %247 : vector<16x512xf32>
    %c2_109 = arith.constant 2 : index
    %c5_110 = arith.constant 5 : index
    %249 = memref.load %arg3[%c2_109, %c5_110] : memref<9x8xf32, #tpu.memory_space<smem>>
    %250 = vector.broadcast %249 : f32 to vector<16x512xf32>
    %251 = arith.mulf %250, %11 : vector<16x512xf32>
    %252 = arith.addf %248, %251 : vector<16x512xf32>
    %c3_111 = arith.constant 3 : index
    %c5_112 = arith.constant 5 : index
    %253 = memref.load %arg3[%c3_111, %c5_112] : memref<9x8xf32, #tpu.memory_space<smem>>
    %254 = vector.broadcast %253 : f32 to vector<16x512xf32>
    %255 = arith.mulf %254, %14 : vector<16x512xf32>
    %256 = arith.addf %252, %255 : vector<16x512xf32>
    %c4_113 = arith.constant 4 : index
    %c5_114 = arith.constant 5 : index
    %257 = memref.load %arg3[%c4_113, %c5_114] : memref<9x8xf32, #tpu.memory_space<smem>>
    %258 = vector.broadcast %257 : f32 to vector<16x512xf32>
    %259 = arith.mulf %258, %19 : vector<16x512xf32>
    %260 = arith.addf %256, %259 : vector<16x512xf32>
    %c5_115 = arith.constant 5 : index
    %c5_116 = arith.constant 5 : index
    %261 = memref.load %arg3[%c5_115, %c5_116] : memref<9x8xf32, #tpu.memory_space<smem>>
    %262 = vector.broadcast %261 : f32 to vector<16x512xf32>
    %263 = arith.mulf %262, %23 : vector<16x512xf32>
    %264 = arith.addf %260, %263 : vector<16x512xf32>
    %c6_117 = arith.constant 6 : index
    %c5_118 = arith.constant 5 : index
    %265 = memref.load %arg3[%c6_117, %c5_118] : memref<9x8xf32, #tpu.memory_space<smem>>
    %266 = vector.broadcast %265 : f32 to vector<16x512xf32>
    %267 = arith.mulf %266, %30 : vector<16x512xf32>
    %268 = arith.addf %264, %267 : vector<16x512xf32>
    %c7_119 = arith.constant 7 : index
    %c5_120 = arith.constant 5 : index
    %269 = memref.load %arg3[%c7_119, %c5_120] : memref<9x8xf32, #tpu.memory_space<smem>>
    %270 = vector.broadcast %269 : f32 to vector<16x512xf32>
    %271 = arith.mulf %270, %34 : vector<16x512xf32>
    %272 = arith.addf %268, %271 : vector<16x512xf32>
    %c8_121 = arith.constant 8 : index
    %c5_122 = arith.constant 5 : index
    %273 = memref.load %arg3[%c8_121, %c5_122] : memref<9x8xf32, #tpu.memory_space<smem>>
    %274 = vector.broadcast %273 : f32 to vector<16x512xf32>
    %275 = arith.mulf %274, %41 : vector<16x512xf32>
    %276 = arith.addf %272, %275 : vector<16x512xf32>
    %277 = arith.mulf %276, %276 : vector<16x512xf32>
    %cst_123 = arith.constant 5.000000e-01 : f32
    %278 = vector.broadcast %cst_123 : f32 to vector<16x512xf32>
    %279 = arith.mulf %277, %278 : vector<16x512xf32>
    %cst_124 = arith.constant 1.000000e+00 : f32
    %280 = vector.broadcast %cst_124 : f32 to vector<16x512xf32>
    %281 = arith.subf %280, %279 : vector<16x512xf32>
    %c0_125 = arith.constant 0 : index
    %c6_126 = arith.constant 6 : index
    %282 = memref.load %arg3[%c0_125, %c6_126] : memref<9x8xf32, #tpu.memory_space<smem>>
    %283 = vector.broadcast %282 : f32 to vector<16x512xf32>
    %284 = arith.mulf %283, %6 : vector<16x512xf32>
    %c1_127 = arith.constant 1 : index
    %c6_128 = arith.constant 6 : index
    %285 = memref.load %arg3[%c1_127, %c6_128] : memref<9x8xf32, #tpu.memory_space<smem>>
    %286 = vector.broadcast %285 : f32 to vector<16x512xf32>
    %287 = arith.mulf %286, %9 : vector<16x512xf32>
    %288 = arith.addf %284, %287 : vector<16x512xf32>
    %c2_129 = arith.constant 2 : index
    %c6_130 = arith.constant 6 : index
    %289 = memref.load %arg3[%c2_129, %c6_130] : memref<9x8xf32, #tpu.memory_space<smem>>
    %290 = vector.broadcast %289 : f32 to vector<16x512xf32>
    %291 = arith.mulf %290, %11 : vector<16x512xf32>
    %292 = arith.addf %288, %291 : vector<16x512xf32>
    %c3_131 = arith.constant 3 : index
    %c6_132 = arith.constant 6 : index
    %293 = memref.load %arg3[%c3_131, %c6_132] : memref<9x8xf32, #tpu.memory_space<smem>>
    %294 = vector.broadcast %293 : f32 to vector<16x512xf32>
    %295 = arith.mulf %294, %14 : vector<16x512xf32>
    %296 = arith.addf %292, %295 : vector<16x512xf32>
    %c4_133 = arith.constant 4 : index
    %c6_134 = arith.constant 6 : index
    %297 = memref.load %arg3[%c4_133, %c6_134] : memref<9x8xf32, #tpu.memory_space<smem>>
    %298 = vector.broadcast %297 : f32 to vector<16x512xf32>
    %299 = arith.mulf %298, %19 : vector<16x512xf32>
    %300 = arith.addf %296, %299 : vector<16x512xf32>
    %c5_135 = arith.constant 5 : index
    %c6_136 = arith.constant 6 : index
    %301 = memref.load %arg3[%c5_135, %c6_136] : memref<9x8xf32, #tpu.memory_space<smem>>
    %302 = vector.broadcast %301 : f32 to vector<16x512xf32>
    %303 = arith.mulf %302, %23 : vector<16x512xf32>
    %304 = arith.addf %300, %303 : vector<16x512xf32>
    %c6_137 = arith.constant 6 : index
    %c6_138 = arith.constant 6 : index
    %305 = memref.load %arg3[%c6_137, %c6_138] : memref<9x8xf32, #tpu.memory_space<smem>>
    %306 = vector.broadcast %305 : f32 to vector<16x512xf32>
    %307 = arith.mulf %306, %30 : vector<16x512xf32>
    %308 = arith.addf %304, %307 : vector<16x512xf32>
    %c7_139 = arith.constant 7 : index
    %c6_140 = arith.constant 6 : index
    %309 = memref.load %arg3[%c7_139, %c6_140] : memref<9x8xf32, #tpu.memory_space<smem>>
    %310 = vector.broadcast %309 : f32 to vector<16x512xf32>
    %311 = arith.mulf %310, %34 : vector<16x512xf32>
    %312 = arith.addf %308, %311 : vector<16x512xf32>
    %c8_141 = arith.constant 8 : index
    %c6_142 = arith.constant 6 : index
    %313 = memref.load %arg3[%c8_141, %c6_142] : memref<9x8xf32, #tpu.memory_space<smem>>
    %314 = vector.broadcast %313 : f32 to vector<16x512xf32>
    %315 = arith.mulf %314, %41 : vector<16x512xf32>
    %316 = arith.addf %312, %315 : vector<16x512xf32>
    %317 = arith.mulf %316, %316 : vector<16x512xf32>
    %cst_143 = arith.constant 5.000000e-01 : f32
    %318 = vector.broadcast %cst_143 : f32 to vector<16x512xf32>
    %319 = arith.mulf %317, %318 : vector<16x512xf32>
    %cst_144 = arith.constant 1.000000e+00 : f32
    %320 = vector.broadcast %cst_144 : f32 to vector<16x512xf32>
    %321 = arith.subf %320, %319 : vector<16x512xf32>
    %c0_145 = arith.constant 0 : index
    %c7_146 = arith.constant 7 : index
    %322 = memref.load %arg3[%c0_145, %c7_146] : memref<9x8xf32, #tpu.memory_space<smem>>
    %323 = vector.broadcast %322 : f32 to vector<16x512xf32>
    %324 = arith.mulf %323, %6 : vector<16x512xf32>
    %c1_147 = arith.constant 1 : index
    %c7_148 = arith.constant 7 : index
    %325 = memref.load %arg3[%c1_147, %c7_148] : memref<9x8xf32, #tpu.memory_space<smem>>
    %326 = vector.broadcast %325 : f32 to vector<16x512xf32>
    %327 = arith.mulf %326, %9 : vector<16x512xf32>
    %328 = arith.addf %324, %327 : vector<16x512xf32>
    %c2_149 = arith.constant 2 : index
    %c7_150 = arith.constant 7 : index
    %329 = memref.load %arg3[%c2_149, %c7_150] : memref<9x8xf32, #tpu.memory_space<smem>>
    %330 = vector.broadcast %329 : f32 to vector<16x512xf32>
    %331 = arith.mulf %330, %11 : vector<16x512xf32>
    %332 = arith.addf %328, %331 : vector<16x512xf32>
    %c3_151 = arith.constant 3 : index
    %c7_152 = arith.constant 7 : index
    %333 = memref.load %arg3[%c3_151, %c7_152] : memref<9x8xf32, #tpu.memory_space<smem>>
    %334 = vector.broadcast %333 : f32 to vector<16x512xf32>
    %335 = arith.mulf %334, %14 : vector<16x512xf32>
    %336 = arith.addf %332, %335 : vector<16x512xf32>
    %c4_153 = arith.constant 4 : index
    %c7_154 = arith.constant 7 : index
    %337 = memref.load %arg3[%c4_153, %c7_154] : memref<9x8xf32, #tpu.memory_space<smem>>
    %338 = vector.broadcast %337 : f32 to vector<16x512xf32>
    %339 = arith.mulf %338, %19 : vector<16x512xf32>
    %340 = arith.addf %336, %339 : vector<16x512xf32>
    %c5_155 = arith.constant 5 : index
    %c7_156 = arith.constant 7 : index
    %341 = memref.load %arg3[%c5_155, %c7_156] : memref<9x8xf32, #tpu.memory_space<smem>>
    %342 = vector.broadcast %341 : f32 to vector<16x512xf32>
    %343 = arith.mulf %342, %23 : vector<16x512xf32>
    %344 = arith.addf %340, %343 : vector<16x512xf32>
    %c6_157 = arith.constant 6 : index
    %c7_158 = arith.constant 7 : index
    %345 = memref.load %arg3[%c6_157, %c7_158] : memref<9x8xf32, #tpu.memory_space<smem>>
    %346 = vector.broadcast %345 : f32 to vector<16x512xf32>
    %347 = arith.mulf %346, %30 : vector<16x512xf32>
    %348 = arith.addf %344, %347 : vector<16x512xf32>
    %c7_159 = arith.constant 7 : index
    %c7_160 = arith.constant 7 : index
    %349 = memref.load %arg3[%c7_159, %c7_160] : memref<9x8xf32, #tpu.memory_space<smem>>
    %350 = vector.broadcast %349 : f32 to vector<16x512xf32>
    %351 = arith.mulf %350, %34 : vector<16x512xf32>
    %352 = arith.addf %348, %351 : vector<16x512xf32>
    %c8_161 = arith.constant 8 : index
    %c7_162 = arith.constant 7 : index
    %353 = memref.load %arg3[%c8_161, %c7_162] : memref<9x8xf32, #tpu.memory_space<smem>>
    %354 = vector.broadcast %353 : f32 to vector<16x512xf32>
    %355 = arith.mulf %354, %41 : vector<16x512xf32>
    %356 = arith.addf %352, %355 : vector<16x512xf32>
    %357 = arith.mulf %356, %356 : vector<16x512xf32>
    %cst_163 = arith.constant 5.000000e-01 : f32
    %358 = vector.broadcast %cst_163 : f32 to vector<16x512xf32>
    %359 = arith.mulf %357, %358 : vector<16x512xf32>
    %cst_164 = arith.constant 1.000000e+00 : f32
    %360 = vector.broadcast %cst_164 : f32 to vector<16x512xf32>
    %361 = arith.subf %360, %359 : vector<16x512xf32>
    %c0_165 = arith.constant 0 : index
    %c0_166 = arith.constant 0 : index
    %362 = memref.load %arg4[%c0_165, %c0_166] : memref<16x8xf32, #tpu.memory_space<smem>>
    %363 = vector.broadcast %362 : f32 to vector<16x512xf32>
    %364 = arith.mulf %363, %81 : vector<16x512xf32>
    %c0_167 = arith.constant 0 : index
    %c1_168 = arith.constant 1 : index
    %365 = memref.load %arg4[%c0_167, %c1_168] : memref<16x8xf32, #tpu.memory_space<smem>>
    %366 = vector.broadcast %365 : f32 to vector<16x512xf32>
    %367 = arith.mulf %366, %121 : vector<16x512xf32>
    %368 = arith.addf %364, %367 : vector<16x512xf32>
    %c0_169 = arith.constant 0 : index
    %c2_170 = arith.constant 2 : index
    %369 = memref.load %arg4[%c0_169, %c2_170] : memref<16x8xf32, #tpu.memory_space<smem>>
    %370 = vector.broadcast %369 : f32 to vector<16x512xf32>
    %371 = arith.mulf %370, %161 : vector<16x512xf32>
    %372 = arith.addf %368, %371 : vector<16x512xf32>
    %c0_171 = arith.constant 0 : index
    %c3_172 = arith.constant 3 : index
    %373 = memref.load %arg4[%c0_171, %c3_172] : memref<16x8xf32, #tpu.memory_space<smem>>
    %374 = vector.broadcast %373 : f32 to vector<16x512xf32>
    %375 = arith.mulf %374, %201 : vector<16x512xf32>
    %376 = arith.addf %372, %375 : vector<16x512xf32>
    %c0_173 = arith.constant 0 : index
    %c4_174 = arith.constant 4 : index
    %377 = memref.load %arg4[%c0_173, %c4_174] : memref<16x8xf32, #tpu.memory_space<smem>>
    %378 = vector.broadcast %377 : f32 to vector<16x512xf32>
    %379 = arith.mulf %378, %241 : vector<16x512xf32>
    %380 = arith.addf %376, %379 : vector<16x512xf32>
    %c0_175 = arith.constant 0 : index
    %c5_176 = arith.constant 5 : index
    %381 = memref.load %arg4[%c0_175, %c5_176] : memref<16x8xf32, #tpu.memory_space<smem>>
    %382 = vector.broadcast %381 : f32 to vector<16x512xf32>
    %383 = arith.mulf %382, %281 : vector<16x512xf32>
    %384 = arith.addf %380, %383 : vector<16x512xf32>
    %c0_177 = arith.constant 0 : index
    %c6_178 = arith.constant 6 : index
    %385 = memref.load %arg4[%c0_177, %c6_178] : memref<16x8xf32, #tpu.memory_space<smem>>
    %386 = vector.broadcast %385 : f32 to vector<16x512xf32>
    %387 = arith.mulf %386, %321 : vector<16x512xf32>
    %388 = arith.addf %384, %387 : vector<16x512xf32>
    %c0_179 = arith.constant 0 : index
    %c7_180 = arith.constant 7 : index
    %389 = memref.load %arg4[%c0_179, %c7_180] : memref<16x8xf32, #tpu.memory_space<smem>>
    %390 = vector.broadcast %389 : f32 to vector<16x512xf32>
    %391 = arith.mulf %390, %361 : vector<16x512xf32>
    %392 = arith.addf %388, %391 : vector<16x512xf32>
    %393 = arith.mulf %392, %392 : vector<16x512xf32>
    %cst_181 = arith.constant 5.000000e-01 : f32
    %394 = vector.broadcast %cst_181 : f32 to vector<16x512xf32>
    %395 = arith.mulf %393, %394 : vector<16x512xf32>
    %cst_182 = arith.constant 1.000000e+00 : f32
    %396 = vector.broadcast %cst_182 : f32 to vector<16x512xf32>
    %397 = arith.subf %396, %395 : vector<16x512xf32>
    %c1_183 = arith.constant 1 : index
    %c0_184 = arith.constant 0 : index
    %398 = memref.load %arg4[%c1_183, %c0_184] : memref<16x8xf32, #tpu.memory_space<smem>>
    %399 = vector.broadcast %398 : f32 to vector<16x512xf32>
    %400 = arith.mulf %399, %81 : vector<16x512xf32>
    %c1_185 = arith.constant 1 : index
    %c1_186 = arith.constant 1 : index
    %401 = memref.load %arg4[%c1_185, %c1_186] : memref<16x8xf32, #tpu.memory_space<smem>>
    %402 = vector.broadcast %401 : f32 to vector<16x512xf32>
    %403 = arith.mulf %402, %121 : vector<16x512xf32>
    %404 = arith.addf %400, %403 : vector<16x512xf32>
    %c1_187 = arith.constant 1 : index
    %c2_188 = arith.constant 2 : index
    %405 = memref.load %arg4[%c1_187, %c2_188] : memref<16x8xf32, #tpu.memory_space<smem>>
    %406 = vector.broadcast %405 : f32 to vector<16x512xf32>
    %407 = arith.mulf %406, %161 : vector<16x512xf32>
    %408 = arith.addf %404, %407 : vector<16x512xf32>
    %c1_189 = arith.constant 1 : index
    %c3_190 = arith.constant 3 : index
    %409 = memref.load %arg4[%c1_189, %c3_190] : memref<16x8xf32, #tpu.memory_space<smem>>
    %410 = vector.broadcast %409 : f32 to vector<16x512xf32>
    %411 = arith.mulf %410, %201 : vector<16x512xf32>
    %412 = arith.addf %408, %411 : vector<16x512xf32>
    %c1_191 = arith.constant 1 : index
    %c4_192 = arith.constant 4 : index
    %413 = memref.load %arg4[%c1_191, %c4_192] : memref<16x8xf32, #tpu.memory_space<smem>>
    %414 = vector.broadcast %413 : f32 to vector<16x512xf32>
    %415 = arith.mulf %414, %241 : vector<16x512xf32>
    %416 = arith.addf %412, %415 : vector<16x512xf32>
    %c1_193 = arith.constant 1 : index
    %c5_194 = arith.constant 5 : index
    %417 = memref.load %arg4[%c1_193, %c5_194] : memref<16x8xf32, #tpu.memory_space<smem>>
    %418 = vector.broadcast %417 : f32 to vector<16x512xf32>
    %419 = arith.mulf %418, %281 : vector<16x512xf32>
    %420 = arith.addf %416, %419 : vector<16x512xf32>
    %c1_195 = arith.constant 1 : index
    %c6_196 = arith.constant 6 : index
    %421 = memref.load %arg4[%c1_195, %c6_196] : memref<16x8xf32, #tpu.memory_space<smem>>
    %422 = vector.broadcast %421 : f32 to vector<16x512xf32>
    %423 = arith.mulf %422, %321 : vector<16x512xf32>
    %424 = arith.addf %420, %423 : vector<16x512xf32>
    %c1_197 = arith.constant 1 : index
    %c7_198 = arith.constant 7 : index
    %425 = memref.load %arg4[%c1_197, %c7_198] : memref<16x8xf32, #tpu.memory_space<smem>>
    %426 = vector.broadcast %425 : f32 to vector<16x512xf32>
    %427 = arith.mulf %426, %361 : vector<16x512xf32>
    %428 = arith.addf %424, %427 : vector<16x512xf32>
    %429 = arith.mulf %428, %428 : vector<16x512xf32>
    %cst_199 = arith.constant 5.000000e-01 : f32
    %430 = vector.broadcast %cst_199 : f32 to vector<16x512xf32>
    %431 = arith.mulf %429, %430 : vector<16x512xf32>
    %cst_200 = arith.constant 1.000000e+00 : f32
    %432 = vector.broadcast %cst_200 : f32 to vector<16x512xf32>
    %433 = arith.subf %432, %431 : vector<16x512xf32>
    %c2_201 = arith.constant 2 : index
    %c0_202 = arith.constant 0 : index
    %434 = memref.load %arg4[%c2_201, %c0_202] : memref<16x8xf32, #tpu.memory_space<smem>>
    %435 = vector.broadcast %434 : f32 to vector<16x512xf32>
    %436 = arith.mulf %435, %81 : vector<16x512xf32>
    %c2_203 = arith.constant 2 : index
    %c1_204 = arith.constant 1 : index
    %437 = memref.load %arg4[%c2_203, %c1_204] : memref<16x8xf32, #tpu.memory_space<smem>>
    %438 = vector.broadcast %437 : f32 to vector<16x512xf32>
    %439 = arith.mulf %438, %121 : vector<16x512xf32>
    %440 = arith.addf %436, %439 : vector<16x512xf32>
    %c2_205 = arith.constant 2 : index
    %c2_206 = arith.constant 2 : index
    %441 = memref.load %arg4[%c2_205, %c2_206] : memref<16x8xf32, #tpu.memory_space<smem>>
    %442 = vector.broadcast %441 : f32 to vector<16x512xf32>
    %443 = arith.mulf %442, %161 : vector<16x512xf32>
    %444 = arith.addf %440, %443 : vector<16x512xf32>
    %c2_207 = arith.constant 2 : index
    %c3_208 = arith.constant 3 : index
    %445 = memref.load %arg4[%c2_207, %c3_208] : memref<16x8xf32, #tpu.memory_space<smem>>
    %446 = vector.broadcast %445 : f32 to vector<16x512xf32>
    %447 = arith.mulf %446, %201 : vector<16x512xf32>
    %448 = arith.addf %444, %447 : vector<16x512xf32>
    %c2_209 = arith.constant 2 : index
    %c4_210 = arith.constant 4 : index
    %449 = memref.load %arg4[%c2_209, %c4_210] : memref<16x8xf32, #tpu.memory_space<smem>>
    %450 = vector.broadcast %449 : f32 to vector<16x512xf32>
    %451 = arith.mulf %450, %241 : vector<16x512xf32>
    %452 = arith.addf %448, %451 : vector<16x512xf32>
    %c2_211 = arith.constant 2 : index
    %c5_212 = arith.constant 5 : index
    %453 = memref.load %arg4[%c2_211, %c5_212] : memref<16x8xf32, #tpu.memory_space<smem>>
    %454 = vector.broadcast %453 : f32 to vector<16x512xf32>
    %455 = arith.mulf %454, %281 : vector<16x512xf32>
    %456 = arith.addf %452, %455 : vector<16x512xf32>
    %c2_213 = arith.constant 2 : index
    %c6_214 = arith.constant 6 : index
    %457 = memref.load %arg4[%c2_213, %c6_214] : memref<16x8xf32, #tpu.memory_space<smem>>
    %458 = vector.broadcast %457 : f32 to vector<16x512xf32>
    %459 = arith.mulf %458, %321 : vector<16x512xf32>
    %460 = arith.addf %456, %459 : vector<16x512xf32>
    %c2_215 = arith.constant 2 : index
    %c7_216 = arith.constant 7 : index
    %461 = memref.load %arg4[%c2_215, %c7_216] : memref<16x8xf32, #tpu.memory_space<smem>>
    %462 = vector.broadcast %461 : f32 to vector<16x512xf32>
    %463 = arith.mulf %462, %361 : vector<16x512xf32>
    %464 = arith.addf %460, %463 : vector<16x512xf32>
    %465 = arith.mulf %464, %464 : vector<16x512xf32>
    %cst_217 = arith.constant 5.000000e-01 : f32
    %466 = vector.broadcast %cst_217 : f32 to vector<16x512xf32>
    %467 = arith.mulf %465, %466 : vector<16x512xf32>
    %cst_218 = arith.constant 1.000000e+00 : f32
    %468 = vector.broadcast %cst_218 : f32 to vector<16x512xf32>
    %469 = arith.subf %468, %467 : vector<16x512xf32>
    %c3_219 = arith.constant 3 : index
    %c0_220 = arith.constant 0 : index
    %470 = memref.load %arg4[%c3_219, %c0_220] : memref<16x8xf32, #tpu.memory_space<smem>>
    %471 = vector.broadcast %470 : f32 to vector<16x512xf32>
    %472 = arith.mulf %471, %81 : vector<16x512xf32>
    %c3_221 = arith.constant 3 : index
    %c1_222 = arith.constant 1 : index
    %473 = memref.load %arg4[%c3_221, %c1_222] : memref<16x8xf32, #tpu.memory_space<smem>>
    %474 = vector.broadcast %473 : f32 to vector<16x512xf32>
    %475 = arith.mulf %474, %121 : vector<16x512xf32>
    %476 = arith.addf %472, %475 : vector<16x512xf32>
    %c3_223 = arith.constant 3 : index
    %c2_224 = arith.constant 2 : index
    %477 = memref.load %arg4[%c3_223, %c2_224] : memref<16x8xf32, #tpu.memory_space<smem>>
    %478 = vector.broadcast %477 : f32 to vector<16x512xf32>
    %479 = arith.mulf %478, %161 : vector<16x512xf32>
    %480 = arith.addf %476, %479 : vector<16x512xf32>
    %c3_225 = arith.constant 3 : index
    %c3_226 = arith.constant 3 : index
    %481 = memref.load %arg4[%c3_225, %c3_226] : memref<16x8xf32, #tpu.memory_space<smem>>
    %482 = vector.broadcast %481 : f32 to vector<16x512xf32>
    %483 = arith.mulf %482, %201 : vector<16x512xf32>
    %484 = arith.addf %480, %483 : vector<16x512xf32>
    %c3_227 = arith.constant 3 : index
    %c4_228 = arith.constant 4 : index
    %485 = memref.load %arg4[%c3_227, %c4_228] : memref<16x8xf32, #tpu.memory_space<smem>>
    %486 = vector.broadcast %485 : f32 to vector<16x512xf32>
    %487 = arith.mulf %486, %241 : vector<16x512xf32>
    %488 = arith.addf %484, %487 : vector<16x512xf32>
    %c3_229 = arith.constant 3 : index
    %c5_230 = arith.constant 5 : index
    %489 = memref.load %arg4[%c3_229, %c5_230] : memref<16x8xf32, #tpu.memory_space<smem>>
    %490 = vector.broadcast %489 : f32 to vector<16x512xf32>
    %491 = arith.mulf %490, %281 : vector<16x512xf32>
    %492 = arith.addf %488, %491 : vector<16x512xf32>
    %c3_231 = arith.constant 3 : index
    %c6_232 = arith.constant 6 : index
    %493 = memref.load %arg4[%c3_231, %c6_232] : memref<16x8xf32, #tpu.memory_space<smem>>
    %494 = vector.broadcast %493 : f32 to vector<16x512xf32>
    %495 = arith.mulf %494, %321 : vector<16x512xf32>
    %496 = arith.addf %492, %495 : vector<16x512xf32>
    %c3_233 = arith.constant 3 : index
    %c7_234 = arith.constant 7 : index
    %497 = memref.load %arg4[%c3_233, %c7_234] : memref<16x8xf32, #tpu.memory_space<smem>>
    %498 = vector.broadcast %497 : f32 to vector<16x512xf32>
    %499 = arith.mulf %498, %361 : vector<16x512xf32>
    %500 = arith.addf %496, %499 : vector<16x512xf32>
    %501 = arith.mulf %500, %500 : vector<16x512xf32>
    %cst_235 = arith.constant 5.000000e-01 : f32
    %502 = vector.broadcast %cst_235 : f32 to vector<16x512xf32>
    %503 = arith.mulf %501, %502 : vector<16x512xf32>
    %cst_236 = arith.constant 1.000000e+00 : f32
    %504 = vector.broadcast %cst_236 : f32 to vector<16x512xf32>
    %505 = arith.subf %504, %503 : vector<16x512xf32>
    %c4_237 = arith.constant 4 : index
    %c0_238 = arith.constant 0 : index
    %506 = memref.load %arg4[%c4_237, %c0_238] : memref<16x8xf32, #tpu.memory_space<smem>>
    %507 = vector.broadcast %506 : f32 to vector<16x512xf32>
    %508 = arith.mulf %507, %81 : vector<16x512xf32>
    %c4_239 = arith.constant 4 : index
    %c1_240 = arith.constant 1 : index
    %509 = memref.load %arg4[%c4_239, %c1_240] : memref<16x8xf32, #tpu.memory_space<smem>>
    %510 = vector.broadcast %509 : f32 to vector<16x512xf32>
    %511 = arith.mulf %510, %121 : vector<16x512xf32>
    %512 = arith.addf %508, %511 : vector<16x512xf32>
    %c4_241 = arith.constant 4 : index
    %c2_242 = arith.constant 2 : index
    %513 = memref.load %arg4[%c4_241, %c2_242] : memref<16x8xf32, #tpu.memory_space<smem>>
    %514 = vector.broadcast %513 : f32 to vector<16x512xf32>
    %515 = arith.mulf %514, %161 : vector<16x512xf32>
    %516 = arith.addf %512, %515 : vector<16x512xf32>
    %c4_243 = arith.constant 4 : index
    %c3_244 = arith.constant 3 : index
    %517 = memref.load %arg4[%c4_243, %c3_244] : memref<16x8xf32, #tpu.memory_space<smem>>
    %518 = vector.broadcast %517 : f32 to vector<16x512xf32>
    %519 = arith.mulf %518, %201 : vector<16x512xf32>
    %520 = arith.addf %516, %519 : vector<16x512xf32>
    %c4_245 = arith.constant 4 : index
    %c4_246 = arith.constant 4 : index
    %521 = memref.load %arg4[%c4_245, %c4_246] : memref<16x8xf32, #tpu.memory_space<smem>>
    %522 = vector.broadcast %521 : f32 to vector<16x512xf32>
    %523 = arith.mulf %522, %241 : vector<16x512xf32>
    %524 = arith.addf %520, %523 : vector<16x512xf32>
    %c4_247 = arith.constant 4 : index
    %c5_248 = arith.constant 5 : index
    %525 = memref.load %arg4[%c4_247, %c5_248] : memref<16x8xf32, #tpu.memory_space<smem>>
    %526 = vector.broadcast %525 : f32 to vector<16x512xf32>
    %527 = arith.mulf %526, %281 : vector<16x512xf32>
    %528 = arith.addf %524, %527 : vector<16x512xf32>
    %c4_249 = arith.constant 4 : index
    %c6_250 = arith.constant 6 : index
    %529 = memref.load %arg4[%c4_249, %c6_250] : memref<16x8xf32, #tpu.memory_space<smem>>
    %530 = vector.broadcast %529 : f32 to vector<16x512xf32>
    %531 = arith.mulf %530, %321 : vector<16x512xf32>
    %532 = arith.addf %528, %531 : vector<16x512xf32>
    %c4_251 = arith.constant 4 : index
    %c7_252 = arith.constant 7 : index
    %533 = memref.load %arg4[%c4_251, %c7_252] : memref<16x8xf32, #tpu.memory_space<smem>>
    %534 = vector.broadcast %533 : f32 to vector<16x512xf32>
    %535 = arith.mulf %534, %361 : vector<16x512xf32>
    %536 = arith.addf %532, %535 : vector<16x512xf32>
    %537 = arith.mulf %536, %536 : vector<16x512xf32>
    %cst_253 = arith.constant 5.000000e-01 : f32
    %538 = vector.broadcast %cst_253 : f32 to vector<16x512xf32>
    %539 = arith.mulf %537, %538 : vector<16x512xf32>
    %cst_254 = arith.constant 1.000000e+00 : f32
    %540 = vector.broadcast %cst_254 : f32 to vector<16x512xf32>
    %541 = arith.subf %540, %539 : vector<16x512xf32>
    %c5_255 = arith.constant 5 : index
    %c0_256 = arith.constant 0 : index
    %542 = memref.load %arg4[%c5_255, %c0_256] : memref<16x8xf32, #tpu.memory_space<smem>>
    %543 = vector.broadcast %542 : f32 to vector<16x512xf32>
    %544 = arith.mulf %543, %81 : vector<16x512xf32>
    %c5_257 = arith.constant 5 : index
    %c1_258 = arith.constant 1 : index
    %545 = memref.load %arg4[%c5_257, %c1_258] : memref<16x8xf32, #tpu.memory_space<smem>>
    %546 = vector.broadcast %545 : f32 to vector<16x512xf32>
    %547 = arith.mulf %546, %121 : vector<16x512xf32>
    %548 = arith.addf %544, %547 : vector<16x512xf32>
    %c5_259 = arith.constant 5 : index
    %c2_260 = arith.constant 2 : index
    %549 = memref.load %arg4[%c5_259, %c2_260] : memref<16x8xf32, #tpu.memory_space<smem>>
    %550 = vector.broadcast %549 : f32 to vector<16x512xf32>
    %551 = arith.mulf %550, %161 : vector<16x512xf32>
    %552 = arith.addf %548, %551 : vector<16x512xf32>
    %c5_261 = arith.constant 5 : index
    %c3_262 = arith.constant 3 : index
    %553 = memref.load %arg4[%c5_261, %c3_262] : memref<16x8xf32, #tpu.memory_space<smem>>
    %554 = vector.broadcast %553 : f32 to vector<16x512xf32>
    %555 = arith.mulf %554, %201 : vector<16x512xf32>
    %556 = arith.addf %552, %555 : vector<16x512xf32>
    %c5_263 = arith.constant 5 : index
    %c4_264 = arith.constant 4 : index
    %557 = memref.load %arg4[%c5_263, %c4_264] : memref<16x8xf32, #tpu.memory_space<smem>>
    %558 = vector.broadcast %557 : f32 to vector<16x512xf32>
    %559 = arith.mulf %558, %241 : vector<16x512xf32>
    %560 = arith.addf %556, %559 : vector<16x512xf32>
    %c5_265 = arith.constant 5 : index
    %c5_266 = arith.constant 5 : index
    %561 = memref.load %arg4[%c5_265, %c5_266] : memref<16x8xf32, #tpu.memory_space<smem>>
    %562 = vector.broadcast %561 : f32 to vector<16x512xf32>
    %563 = arith.mulf %562, %281 : vector<16x512xf32>
    %564 = arith.addf %560, %563 : vector<16x512xf32>
    %c5_267 = arith.constant 5 : index
    %c6_268 = arith.constant 6 : index
    %565 = memref.load %arg4[%c5_267, %c6_268] : memref<16x8xf32, #tpu.memory_space<smem>>
    %566 = vector.broadcast %565 : f32 to vector<16x512xf32>
    %567 = arith.mulf %566, %321 : vector<16x512xf32>
    %568 = arith.addf %564, %567 : vector<16x512xf32>
    %c5_269 = arith.constant 5 : index
    %c7_270 = arith.constant 7 : index
    %569 = memref.load %arg4[%c5_269, %c7_270] : memref<16x8xf32, #tpu.memory_space<smem>>
    %570 = vector.broadcast %569 : f32 to vector<16x512xf32>
    %571 = arith.mulf %570, %361 : vector<16x512xf32>
    %572 = arith.addf %568, %571 : vector<16x512xf32>
    %573 = arith.mulf %572, %572 : vector<16x512xf32>
    %cst_271 = arith.constant 5.000000e-01 : f32
    %574 = vector.broadcast %cst_271 : f32 to vector<16x512xf32>
    %575 = arith.mulf %573, %574 : vector<16x512xf32>
    %cst_272 = arith.constant 1.000000e+00 : f32
    %576 = vector.broadcast %cst_272 : f32 to vector<16x512xf32>
    %577 = arith.subf %576, %575 : vector<16x512xf32>
    %c6_273 = arith.constant 6 : index
    %c0_274 = arith.constant 0 : index
    %578 = memref.load %arg4[%c6_273, %c0_274] : memref<16x8xf32, #tpu.memory_space<smem>>
    %579 = vector.broadcast %578 : f32 to vector<16x512xf32>
    %580 = arith.mulf %579, %81 : vector<16x512xf32>
    %c6_275 = arith.constant 6 : index
    %c1_276 = arith.constant 1 : index
    %581 = memref.load %arg4[%c6_275, %c1_276] : memref<16x8xf32, #tpu.memory_space<smem>>
    %582 = vector.broadcast %581 : f32 to vector<16x512xf32>
    %583 = arith.mulf %582, %121 : vector<16x512xf32>
    %584 = arith.addf %580, %583 : vector<16x512xf32>
    %c6_277 = arith.constant 6 : index
    %c2_278 = arith.constant 2 : index
    %585 = memref.load %arg4[%c6_277, %c2_278] : memref<16x8xf32, #tpu.memory_space<smem>>
    %586 = vector.broadcast %585 : f32 to vector<16x512xf32>
    %587 = arith.mulf %586, %161 : vector<16x512xf32>
    %588 = arith.addf %584, %587 : vector<16x512xf32>
    %c6_279 = arith.constant 6 : index
    %c3_280 = arith.constant 3 : index
    %589 = memref.load %arg4[%c6_279, %c3_280] : memref<16x8xf32, #tpu.memory_space<smem>>
    %590 = vector.broadcast %589 : f32 to vector<16x512xf32>
    %591 = arith.mulf %590, %201 : vector<16x512xf32>
    %592 = arith.addf %588, %591 : vector<16x512xf32>
    %c6_281 = arith.constant 6 : index
    %c4_282 = arith.constant 4 : index
    %593 = memref.load %arg4[%c6_281, %c4_282] : memref<16x8xf32, #tpu.memory_space<smem>>
    %594 = vector.broadcast %593 : f32 to vector<16x512xf32>
    %595 = arith.mulf %594, %241 : vector<16x512xf32>
    %596 = arith.addf %592, %595 : vector<16x512xf32>
    %c6_283 = arith.constant 6 : index
    %c5_284 = arith.constant 5 : index
    %597 = memref.load %arg4[%c6_283, %c5_284] : memref<16x8xf32, #tpu.memory_space<smem>>
    %598 = vector.broadcast %597 : f32 to vector<16x512xf32>
    %599 = arith.mulf %598, %281 : vector<16x512xf32>
    %600 = arith.addf %596, %599 : vector<16x512xf32>
    %c6_285 = arith.constant 6 : index
    %c6_286 = arith.constant 6 : index
    %601 = memref.load %arg4[%c6_285, %c6_286] : memref<16x8xf32, #tpu.memory_space<smem>>
    %602 = vector.broadcast %601 : f32 to vector<16x512xf32>
    %603 = arith.mulf %602, %321 : vector<16x512xf32>
    %604 = arith.addf %600, %603 : vector<16x512xf32>
    %c6_287 = arith.constant 6 : index
    %c7_288 = arith.constant 7 : index
    %605 = memref.load %arg4[%c6_287, %c7_288] : memref<16x8xf32, #tpu.memory_space<smem>>
    %606 = vector.broadcast %605 : f32 to vector<16x512xf32>
    %607 = arith.mulf %606, %361 : vector<16x512xf32>
    %608 = arith.addf %604, %607 : vector<16x512xf32>
    %609 = arith.mulf %608, %608 : vector<16x512xf32>
    %cst_289 = arith.constant 5.000000e-01 : f32
    %610 = vector.broadcast %cst_289 : f32 to vector<16x512xf32>
    %611 = arith.mulf %609, %610 : vector<16x512xf32>
    %cst_290 = arith.constant 1.000000e+00 : f32
    %612 = vector.broadcast %cst_290 : f32 to vector<16x512xf32>
    %613 = arith.subf %612, %611 : vector<16x512xf32>
    %c7_291 = arith.constant 7 : index
    %c0_292 = arith.constant 0 : index
    %614 = memref.load %arg4[%c7_291, %c0_292] : memref<16x8xf32, #tpu.memory_space<smem>>
    %615 = vector.broadcast %614 : f32 to vector<16x512xf32>
    %616 = arith.mulf %615, %81 : vector<16x512xf32>
    %c7_293 = arith.constant 7 : index
    %c1_294 = arith.constant 1 : index
    %617 = memref.load %arg4[%c7_293, %c1_294] : memref<16x8xf32, #tpu.memory_space<smem>>
    %618 = vector.broadcast %617 : f32 to vector<16x512xf32>
    %619 = arith.mulf %618, %121 : vector<16x512xf32>
    %620 = arith.addf %616, %619 : vector<16x512xf32>
    %c7_295 = arith.constant 7 : index
    %c2_296 = arith.constant 2 : index
    %621 = memref.load %arg4[%c7_295, %c2_296] : memref<16x8xf32, #tpu.memory_space<smem>>
    %622 = vector.broadcast %621 : f32 to vector<16x512xf32>
    %623 = arith.mulf %622, %161 : vector<16x512xf32>
    %624 = arith.addf %620, %623 : vector<16x512xf32>
    %c7_297 = arith.constant 7 : index
    %c3_298 = arith.constant 3 : index
    %625 = memref.load %arg4[%c7_297, %c3_298] : memref<16x8xf32, #tpu.memory_space<smem>>
    %626 = vector.broadcast %625 : f32 to vector<16x512xf32>
    %627 = arith.mulf %626, %201 : vector<16x512xf32>
    %628 = arith.addf %624, %627 : vector<16x512xf32>
    %c7_299 = arith.constant 7 : index
    %c4_300 = arith.constant 4 : index
    %629 = memref.load %arg4[%c7_299, %c4_300] : memref<16x8xf32, #tpu.memory_space<smem>>
    %630 = vector.broadcast %629 : f32 to vector<16x512xf32>
    %631 = arith.mulf %630, %241 : vector<16x512xf32>
    %632 = arith.addf %628, %631 : vector<16x512xf32>
    %c7_301 = arith.constant 7 : index
    %c5_302 = arith.constant 5 : index
    %633 = memref.load %arg4[%c7_301, %c5_302] : memref<16x8xf32, #tpu.memory_space<smem>>
    %634 = vector.broadcast %633 : f32 to vector<16x512xf32>
    %635 = arith.mulf %634, %281 : vector<16x512xf32>
    %636 = arith.addf %632, %635 : vector<16x512xf32>
    %c7_303 = arith.constant 7 : index
    %c6_304 = arith.constant 6 : index
    %637 = memref.load %arg4[%c7_303, %c6_304] : memref<16x8xf32, #tpu.memory_space<smem>>
    %638 = vector.broadcast %637 : f32 to vector<16x512xf32>
    %639 = arith.mulf %638, %321 : vector<16x512xf32>
    %640 = arith.addf %636, %639 : vector<16x512xf32>
    %c7_305 = arith.constant 7 : index
    %c7_306 = arith.constant 7 : index
    %641 = memref.load %arg4[%c7_305, %c7_306] : memref<16x8xf32, #tpu.memory_space<smem>>
    %642 = vector.broadcast %641 : f32 to vector<16x512xf32>
    %643 = arith.mulf %642, %361 : vector<16x512xf32>
    %644 = arith.addf %640, %643 : vector<16x512xf32>
    %645 = arith.mulf %644, %644 : vector<16x512xf32>
    %cst_307 = arith.constant 5.000000e-01 : f32
    %646 = vector.broadcast %cst_307 : f32 to vector<16x512xf32>
    %647 = arith.mulf %645, %646 : vector<16x512xf32>
    %cst_308 = arith.constant 1.000000e+00 : f32
    %648 = vector.broadcast %cst_308 : f32 to vector<16x512xf32>
    %649 = arith.subf %648, %647 : vector<16x512xf32>
    %c8_309 = arith.constant 8 : index
    %c0_310 = arith.constant 0 : index
    %650 = memref.load %arg4[%c8_309, %c0_310] : memref<16x8xf32, #tpu.memory_space<smem>>
    %651 = vector.broadcast %650 : f32 to vector<16x512xf32>
    %652 = arith.mulf %651, %397 : vector<16x512xf32>
    %c8_311 = arith.constant 8 : index
    %c1_312 = arith.constant 1 : index
    %653 = memref.load %arg4[%c8_311, %c1_312] : memref<16x8xf32, #tpu.memory_space<smem>>
    %654 = vector.broadcast %653 : f32 to vector<16x512xf32>
    %655 = arith.mulf %654, %433 : vector<16x512xf32>
    %656 = arith.addf %652, %655 : vector<16x512xf32>
    %c8_313 = arith.constant 8 : index
    %c2_314 = arith.constant 2 : index
    %657 = memref.load %arg4[%c8_313, %c2_314] : memref<16x8xf32, #tpu.memory_space<smem>>
    %658 = vector.broadcast %657 : f32 to vector<16x512xf32>
    %659 = arith.mulf %658, %469 : vector<16x512xf32>
    %660 = arith.addf %656, %659 : vector<16x512xf32>
    %c8_315 = arith.constant 8 : index
    %c3_316 = arith.constant 3 : index
    %661 = memref.load %arg4[%c8_315, %c3_316] : memref<16x8xf32, #tpu.memory_space<smem>>
    %662 = vector.broadcast %661 : f32 to vector<16x512xf32>
    %663 = arith.mulf %662, %505 : vector<16x512xf32>
    %664 = arith.addf %660, %663 : vector<16x512xf32>
    %c8_317 = arith.constant 8 : index
    %c4_318 = arith.constant 4 : index
    %665 = memref.load %arg4[%c8_317, %c4_318] : memref<16x8xf32, #tpu.memory_space<smem>>
    %666 = vector.broadcast %665 : f32 to vector<16x512xf32>
    %667 = arith.mulf %666, %541 : vector<16x512xf32>
    %668 = arith.addf %664, %667 : vector<16x512xf32>
    %c8_319 = arith.constant 8 : index
    %c5_320 = arith.constant 5 : index
    %669 = memref.load %arg4[%c8_319, %c5_320] : memref<16x8xf32, #tpu.memory_space<smem>>
    %670 = vector.broadcast %669 : f32 to vector<16x512xf32>
    %671 = arith.mulf %670, %577 : vector<16x512xf32>
    %672 = arith.addf %668, %671 : vector<16x512xf32>
    %c8_321 = arith.constant 8 : index
    %c6_322 = arith.constant 6 : index
    %673 = memref.load %arg4[%c8_321, %c6_322] : memref<16x8xf32, #tpu.memory_space<smem>>
    %674 = vector.broadcast %673 : f32 to vector<16x512xf32>
    %675 = arith.mulf %674, %613 : vector<16x512xf32>
    %676 = arith.addf %672, %675 : vector<16x512xf32>
    %c8_323 = arith.constant 8 : index
    %c7_324 = arith.constant 7 : index
    %677 = memref.load %arg4[%c8_323, %c7_324] : memref<16x8xf32, #tpu.memory_space<smem>>
    %678 = vector.broadcast %677 : f32 to vector<16x512xf32>
    %679 = arith.mulf %678, %649 : vector<16x512xf32>
    %680 = arith.addf %676, %679 : vector<16x512xf32>
    %681 = arith.mulf %680, %680 : vector<16x512xf32>
    %cst_325 = arith.constant 5.000000e-01 : f32
    %682 = vector.broadcast %cst_325 : f32 to vector<16x512xf32>
    %683 = arith.mulf %681, %682 : vector<16x512xf32>
    %cst_326 = arith.constant 1.000000e+00 : f32
    %684 = vector.broadcast %cst_326 : f32 to vector<16x512xf32>
    %685 = arith.subf %684, %683 : vector<16x512xf32>
    %c9 = arith.constant 9 : index
    %c0_327 = arith.constant 0 : index
    %686 = memref.load %arg4[%c9, %c0_327] : memref<16x8xf32, #tpu.memory_space<smem>>
    %687 = vector.broadcast %686 : f32 to vector<16x512xf32>
    %688 = arith.mulf %687, %397 : vector<16x512xf32>
    %c9_328 = arith.constant 9 : index
    %c1_329 = arith.constant 1 : index
    %689 = memref.load %arg4[%c9_328, %c1_329] : memref<16x8xf32, #tpu.memory_space<smem>>
    %690 = vector.broadcast %689 : f32 to vector<16x512xf32>
    %691 = arith.mulf %690, %433 : vector<16x512xf32>
    %692 = arith.addf %688, %691 : vector<16x512xf32>
    %c9_330 = arith.constant 9 : index
    %c2_331 = arith.constant 2 : index
    %693 = memref.load %arg4[%c9_330, %c2_331] : memref<16x8xf32, #tpu.memory_space<smem>>
    %694 = vector.broadcast %693 : f32 to vector<16x512xf32>
    %695 = arith.mulf %694, %469 : vector<16x512xf32>
    %696 = arith.addf %692, %695 : vector<16x512xf32>
    %c9_332 = arith.constant 9 : index
    %c3_333 = arith.constant 3 : index
    %697 = memref.load %arg4[%c9_332, %c3_333] : memref<16x8xf32, #tpu.memory_space<smem>>
    %698 = vector.broadcast %697 : f32 to vector<16x512xf32>
    %699 = arith.mulf %698, %505 : vector<16x512xf32>
    %700 = arith.addf %696, %699 : vector<16x512xf32>
    %c9_334 = arith.constant 9 : index
    %c4_335 = arith.constant 4 : index
    %701 = memref.load %arg4[%c9_334, %c4_335] : memref<16x8xf32, #tpu.memory_space<smem>>
    %702 = vector.broadcast %701 : f32 to vector<16x512xf32>
    %703 = arith.mulf %702, %541 : vector<16x512xf32>
    %704 = arith.addf %700, %703 : vector<16x512xf32>
    %c9_336 = arith.constant 9 : index
    %c5_337 = arith.constant 5 : index
    %705 = memref.load %arg4[%c9_336, %c5_337] : memref<16x8xf32, #tpu.memory_space<smem>>
    %706 = vector.broadcast %705 : f32 to vector<16x512xf32>
    %707 = arith.mulf %706, %577 : vector<16x512xf32>
    %708 = arith.addf %704, %707 : vector<16x512xf32>
    %c9_338 = arith.constant 9 : index
    %c6_339 = arith.constant 6 : index
    %709 = memref.load %arg4[%c9_338, %c6_339] : memref<16x8xf32, #tpu.memory_space<smem>>
    %710 = vector.broadcast %709 : f32 to vector<16x512xf32>
    %711 = arith.mulf %710, %613 : vector<16x512xf32>
    %712 = arith.addf %708, %711 : vector<16x512xf32>
    %c9_340 = arith.constant 9 : index
    %c7_341 = arith.constant 7 : index
    %713 = memref.load %arg4[%c9_340, %c7_341] : memref<16x8xf32, #tpu.memory_space<smem>>
    %714 = vector.broadcast %713 : f32 to vector<16x512xf32>
    %715 = arith.mulf %714, %649 : vector<16x512xf32>
    %716 = arith.addf %712, %715 : vector<16x512xf32>
    %717 = arith.mulf %716, %716 : vector<16x512xf32>
    %cst_342 = arith.constant 5.000000e-01 : f32
    %718 = vector.broadcast %cst_342 : f32 to vector<16x512xf32>
    %719 = arith.mulf %717, %718 : vector<16x512xf32>
    %cst_343 = arith.constant 1.000000e+00 : f32
    %720 = vector.broadcast %cst_343 : f32 to vector<16x512xf32>
    %721 = arith.subf %720, %719 : vector<16x512xf32>
    %c10 = arith.constant 10 : index
    %c0_344 = arith.constant 0 : index
    %722 = memref.load %arg4[%c10, %c0_344] : memref<16x8xf32, #tpu.memory_space<smem>>
    %723 = vector.broadcast %722 : f32 to vector<16x512xf32>
    %724 = arith.mulf %723, %397 : vector<16x512xf32>
    %c10_345 = arith.constant 10 : index
    %c1_346 = arith.constant 1 : index
    %725 = memref.load %arg4[%c10_345, %c1_346] : memref<16x8xf32, #tpu.memory_space<smem>>
    %726 = vector.broadcast %725 : f32 to vector<16x512xf32>
    %727 = arith.mulf %726, %433 : vector<16x512xf32>
    %728 = arith.addf %724, %727 : vector<16x512xf32>
    %c10_347 = arith.constant 10 : index
    %c2_348 = arith.constant 2 : index
    %729 = memref.load %arg4[%c10_347, %c2_348] : memref<16x8xf32, #tpu.memory_space<smem>>
    %730 = vector.broadcast %729 : f32 to vector<16x512xf32>
    %731 = arith.mulf %730, %469 : vector<16x512xf32>
    %732 = arith.addf %728, %731 : vector<16x512xf32>
    %c10_349 = arith.constant 10 : index
    %c3_350 = arith.constant 3 : index
    %733 = memref.load %arg4[%c10_349, %c3_350] : memref<16x8xf32, #tpu.memory_space<smem>>
    %734 = vector.broadcast %733 : f32 to vector<16x512xf32>
    %735 = arith.mulf %734, %505 : vector<16x512xf32>
    %736 = arith.addf %732, %735 : vector<16x512xf32>
    %c10_351 = arith.constant 10 : index
    %c4_352 = arith.constant 4 : index
    %737 = memref.load %arg4[%c10_351, %c4_352] : memref<16x8xf32, #tpu.memory_space<smem>>
    %738 = vector.broadcast %737 : f32 to vector<16x512xf32>
    %739 = arith.mulf %738, %541 : vector<16x512xf32>
    %740 = arith.addf %736, %739 : vector<16x512xf32>
    %c10_353 = arith.constant 10 : index
    %c5_354 = arith.constant 5 : index
    %741 = memref.load %arg4[%c10_353, %c5_354] : memref<16x8xf32, #tpu.memory_space<smem>>
    %742 = vector.broadcast %741 : f32 to vector<16x512xf32>
    %743 = arith.mulf %742, %577 : vector<16x512xf32>
    %744 = arith.addf %740, %743 : vector<16x512xf32>
    %c10_355 = arith.constant 10 : index
    %c6_356 = arith.constant 6 : index
    %745 = memref.load %arg4[%c10_355, %c6_356] : memref<16x8xf32, #tpu.memory_space<smem>>
    %746 = vector.broadcast %745 : f32 to vector<16x512xf32>
    %747 = arith.mulf %746, %613 : vector<16x512xf32>
    %748 = arith.addf %744, %747 : vector<16x512xf32>
    %c10_357 = arith.constant 10 : index
    %c7_358 = arith.constant 7 : index
    %749 = memref.load %arg4[%c10_357, %c7_358] : memref<16x8xf32, #tpu.memory_space<smem>>
    %750 = vector.broadcast %749 : f32 to vector<16x512xf32>
    %751 = arith.mulf %750, %649 : vector<16x512xf32>
    %752 = arith.addf %748, %751 : vector<16x512xf32>
    %753 = arith.mulf %752, %752 : vector<16x512xf32>
    %cst_359 = arith.constant 5.000000e-01 : f32
    %754 = vector.broadcast %cst_359 : f32 to vector<16x512xf32>
    %755 = arith.mulf %753, %754 : vector<16x512xf32>
    %cst_360 = arith.constant 1.000000e+00 : f32
    %756 = vector.broadcast %cst_360 : f32 to vector<16x512xf32>
    %757 = arith.subf %756, %755 : vector<16x512xf32>
    %c11 = arith.constant 11 : index
    %c0_361 = arith.constant 0 : index
    %758 = memref.load %arg4[%c11, %c0_361] : memref<16x8xf32, #tpu.memory_space<smem>>
    %759 = vector.broadcast %758 : f32 to vector<16x512xf32>
    %760 = arith.mulf %759, %397 : vector<16x512xf32>
    %c11_362 = arith.constant 11 : index
    %c1_363 = arith.constant 1 : index
    %761 = memref.load %arg4[%c11_362, %c1_363] : memref<16x8xf32, #tpu.memory_space<smem>>
    %762 = vector.broadcast %761 : f32 to vector<16x512xf32>
    %763 = arith.mulf %762, %433 : vector<16x512xf32>
    %764 = arith.addf %760, %763 : vector<16x512xf32>
    %c11_364 = arith.constant 11 : index
    %c2_365 = arith.constant 2 : index
    %765 = memref.load %arg4[%c11_364, %c2_365] : memref<16x8xf32, #tpu.memory_space<smem>>
    %766 = vector.broadcast %765 : f32 to vector<16x512xf32>
    %767 = arith.mulf %766, %469 : vector<16x512xf32>
    %768 = arith.addf %764, %767 : vector<16x512xf32>
    %c11_366 = arith.constant 11 : index
    %c3_367 = arith.constant 3 : index
    %769 = memref.load %arg4[%c11_366, %c3_367] : memref<16x8xf32, #tpu.memory_space<smem>>
    %770 = vector.broadcast %769 : f32 to vector<16x512xf32>
    %771 = arith.mulf %770, %505 : vector<16x512xf32>
    %772 = arith.addf %768, %771 : vector<16x512xf32>
    %c11_368 = arith.constant 11 : index
    %c4_369 = arith.constant 4 : index
    %773 = memref.load %arg4[%c11_368, %c4_369] : memref<16x8xf32, #tpu.memory_space<smem>>
    %774 = vector.broadcast %773 : f32 to vector<16x512xf32>
    %775 = arith.mulf %774, %541 : vector<16x512xf32>
    %776 = arith.addf %772, %775 : vector<16x512xf32>
    %c11_370 = arith.constant 11 : index
    %c5_371 = arith.constant 5 : index
    %777 = memref.load %arg4[%c11_370, %c5_371] : memref<16x8xf32, #tpu.memory_space<smem>>
    %778 = vector.broadcast %777 : f32 to vector<16x512xf32>
    %779 = arith.mulf %778, %577 : vector<16x512xf32>
    %780 = arith.addf %776, %779 : vector<16x512xf32>
    %c11_372 = arith.constant 11 : index
    %c6_373 = arith.constant 6 : index
    %781 = memref.load %arg4[%c11_372, %c6_373] : memref<16x8xf32, #tpu.memory_space<smem>>
    %782 = vector.broadcast %781 : f32 to vector<16x512xf32>
    %783 = arith.mulf %782, %613 : vector<16x512xf32>
    %784 = arith.addf %780, %783 : vector<16x512xf32>
    %c11_374 = arith.constant 11 : index
    %c7_375 = arith.constant 7 : index
    %785 = memref.load %arg4[%c11_374, %c7_375] : memref<16x8xf32, #tpu.memory_space<smem>>
    %786 = vector.broadcast %785 : f32 to vector<16x512xf32>
    %787 = arith.mulf %786, %649 : vector<16x512xf32>
    %788 = arith.addf %784, %787 : vector<16x512xf32>
    %789 = arith.mulf %788, %788 : vector<16x512xf32>
    %cst_376 = arith.constant 5.000000e-01 : f32
    %790 = vector.broadcast %cst_376 : f32 to vector<16x512xf32>
    %791 = arith.mulf %789, %790 : vector<16x512xf32>
    %cst_377 = arith.constant 1.000000e+00 : f32
    %792 = vector.broadcast %cst_377 : f32 to vector<16x512xf32>
    %793 = arith.subf %792, %791 : vector<16x512xf32>
    %c12 = arith.constant 12 : index
    %c0_378 = arith.constant 0 : index
    %794 = memref.load %arg4[%c12, %c0_378] : memref<16x8xf32, #tpu.memory_space<smem>>
    %795 = vector.broadcast %794 : f32 to vector<16x512xf32>
    %796 = arith.mulf %795, %397 : vector<16x512xf32>
    %c12_379 = arith.constant 12 : index
    %c1_380 = arith.constant 1 : index
    %797 = memref.load %arg4[%c12_379, %c1_380] : memref<16x8xf32, #tpu.memory_space<smem>>
    %798 = vector.broadcast %797 : f32 to vector<16x512xf32>
    %799 = arith.mulf %798, %433 : vector<16x512xf32>
    %800 = arith.addf %796, %799 : vector<16x512xf32>
    %c12_381 = arith.constant 12 : index
    %c2_382 = arith.constant 2 : index
    %801 = memref.load %arg4[%c12_381, %c2_382] : memref<16x8xf32, #tpu.memory_space<smem>>
    %802 = vector.broadcast %801 : f32 to vector<16x512xf32>
    %803 = arith.mulf %802, %469 : vector<16x512xf32>
    %804 = arith.addf %800, %803 : vector<16x512xf32>
    %c12_383 = arith.constant 12 : index
    %c3_384 = arith.constant 3 : index
    %805 = memref.load %arg4[%c12_383, %c3_384] : memref<16x8xf32, #tpu.memory_space<smem>>
    %806 = vector.broadcast %805 : f32 to vector<16x512xf32>
    %807 = arith.mulf %806, %505 : vector<16x512xf32>
    %808 = arith.addf %804, %807 : vector<16x512xf32>
    %c12_385 = arith.constant 12 : index
    %c4_386 = arith.constant 4 : index
    %809 = memref.load %arg4[%c12_385, %c4_386] : memref<16x8xf32, #tpu.memory_space<smem>>
    %810 = vector.broadcast %809 : f32 to vector<16x512xf32>
    %811 = arith.mulf %810, %541 : vector<16x512xf32>
    %812 = arith.addf %808, %811 : vector<16x512xf32>
    %c12_387 = arith.constant 12 : index
    %c5_388 = arith.constant 5 : index
    %813 = memref.load %arg4[%c12_387, %c5_388] : memref<16x8xf32, #tpu.memory_space<smem>>
    %814 = vector.broadcast %813 : f32 to vector<16x512xf32>
    %815 = arith.mulf %814, %577 : vector<16x512xf32>
    %816 = arith.addf %812, %815 : vector<16x512xf32>
    %c12_389 = arith.constant 12 : index
    %c6_390 = arith.constant 6 : index
    %817 = memref.load %arg4[%c12_389, %c6_390] : memref<16x8xf32, #tpu.memory_space<smem>>
    %818 = vector.broadcast %817 : f32 to vector<16x512xf32>
    %819 = arith.mulf %818, %613 : vector<16x512xf32>
    %820 = arith.addf %816, %819 : vector<16x512xf32>
    %c12_391 = arith.constant 12 : index
    %c7_392 = arith.constant 7 : index
    %821 = memref.load %arg4[%c12_391, %c7_392] : memref<16x8xf32, #tpu.memory_space<smem>>
    %822 = vector.broadcast %821 : f32 to vector<16x512xf32>
    %823 = arith.mulf %822, %649 : vector<16x512xf32>
    %824 = arith.addf %820, %823 : vector<16x512xf32>
    %825 = arith.mulf %824, %824 : vector<16x512xf32>
    %cst_393 = arith.constant 5.000000e-01 : f32
    %826 = vector.broadcast %cst_393 : f32 to vector<16x512xf32>
    %827 = arith.mulf %825, %826 : vector<16x512xf32>
    %cst_394 = arith.constant 1.000000e+00 : f32
    %828 = vector.broadcast %cst_394 : f32 to vector<16x512xf32>
    %829 = arith.subf %828, %827 : vector<16x512xf32>
    %c13 = arith.constant 13 : index
    %c0_395 = arith.constant 0 : index
    %830 = memref.load %arg4[%c13, %c0_395] : memref<16x8xf32, #tpu.memory_space<smem>>
    %831 = vector.broadcast %830 : f32 to vector<16x512xf32>
    %832 = arith.mulf %831, %397 : vector<16x512xf32>
    %c13_396 = arith.constant 13 : index
    %c1_397 = arith.constant 1 : index
    %833 = memref.load %arg4[%c13_396, %c1_397] : memref<16x8xf32, #tpu.memory_space<smem>>
    %834 = vector.broadcast %833 : f32 to vector<16x512xf32>
    %835 = arith.mulf %834, %433 : vector<16x512xf32>
    %836 = arith.addf %832, %835 : vector<16x512xf32>
    %c13_398 = arith.constant 13 : index
    %c2_399 = arith.constant 2 : index
    %837 = memref.load %arg4[%c13_398, %c2_399] : memref<16x8xf32, #tpu.memory_space<smem>>
    %838 = vector.broadcast %837 : f32 to vector<16x512xf32>
    %839 = arith.mulf %838, %469 : vector<16x512xf32>
    %840 = arith.addf %836, %839 : vector<16x512xf32>
    %c13_400 = arith.constant 13 : index
    %c3_401 = arith.constant 3 : index
    %841 = memref.load %arg4[%c13_400, %c3_401] : memref<16x8xf32, #tpu.memory_space<smem>>
    %842 = vector.broadcast %841 : f32 to vector<16x512xf32>
    %843 = arith.mulf %842, %505 : vector<16x512xf32>
    %844 = arith.addf %840, %843 : vector<16x512xf32>
    %c13_402 = arith.constant 13 : index
    %c4_403 = arith.constant 4 : index
    %845 = memref.load %arg4[%c13_402, %c4_403] : memref<16x8xf32, #tpu.memory_space<smem>>
    %846 = vector.broadcast %845 : f32 to vector<16x512xf32>
    %847 = arith.mulf %846, %541 : vector<16x512xf32>
    %848 = arith.addf %844, %847 : vector<16x512xf32>
    %c13_404 = arith.constant 13 : index
    %c5_405 = arith.constant 5 : index
    %849 = memref.load %arg4[%c13_404, %c5_405] : memref<16x8xf32, #tpu.memory_space<smem>>
    %850 = vector.broadcast %849 : f32 to vector<16x512xf32>
    %851 = arith.mulf %850, %577 : vector<16x512xf32>
    %852 = arith.addf %848, %851 : vector<16x512xf32>
    %c13_406 = arith.constant 13 : index
    %c6_407 = arith.constant 6 : index
    %853 = memref.load %arg4[%c13_406, %c6_407] : memref<16x8xf32, #tpu.memory_space<smem>>
    %854 = vector.broadcast %853 : f32 to vector<16x512xf32>
    %855 = arith.mulf %854, %613 : vector<16x512xf32>
    %856 = arith.addf %852, %855 : vector<16x512xf32>
    %c13_408 = arith.constant 13 : index
    %c7_409 = arith.constant 7 : index
    %857 = memref.load %arg4[%c13_408, %c7_409] : memref<16x8xf32, #tpu.memory_space<smem>>
    %858 = vector.broadcast %857 : f32 to vector<16x512xf32>
    %859 = arith.mulf %858, %649 : vector<16x512xf32>
    %860 = arith.addf %856, %859 : vector<16x512xf32>
    %861 = arith.mulf %860, %860 : vector<16x512xf32>
    %cst_410 = arith.constant 5.000000e-01 : f32
    %862 = vector.broadcast %cst_410 : f32 to vector<16x512xf32>
    %863 = arith.mulf %861, %862 : vector<16x512xf32>
    %cst_411 = arith.constant 1.000000e+00 : f32
    %864 = vector.broadcast %cst_411 : f32 to vector<16x512xf32>
    %865 = arith.subf %864, %863 : vector<16x512xf32>
    %c14 = arith.constant 14 : index
    %c0_412 = arith.constant 0 : index
    %866 = memref.load %arg4[%c14, %c0_412] : memref<16x8xf32, #tpu.memory_space<smem>>
    %867 = vector.broadcast %866 : f32 to vector<16x512xf32>
    %868 = arith.mulf %867, %397 : vector<16x512xf32>
    %c14_413 = arith.constant 14 : index
    %c1_414 = arith.constant 1 : index
    %869 = memref.load %arg4[%c14_413, %c1_414] : memref<16x8xf32, #tpu.memory_space<smem>>
    %870 = vector.broadcast %869 : f32 to vector<16x512xf32>
    %871 = arith.mulf %870, %433 : vector<16x512xf32>
    %872 = arith.addf %868, %871 : vector<16x512xf32>
    %c14_415 = arith.constant 14 : index
    %c2_416 = arith.constant 2 : index
    %873 = memref.load %arg4[%c14_415, %c2_416] : memref<16x8xf32, #tpu.memory_space<smem>>
    %874 = vector.broadcast %873 : f32 to vector<16x512xf32>
    %875 = arith.mulf %874, %469 : vector<16x512xf32>
    %876 = arith.addf %872, %875 : vector<16x512xf32>
    %c14_417 = arith.constant 14 : index
    %c3_418 = arith.constant 3 : index
    %877 = memref.load %arg4[%c14_417, %c3_418] : memref<16x8xf32, #tpu.memory_space<smem>>
    %878 = vector.broadcast %877 : f32 to vector<16x512xf32>
    %879 = arith.mulf %878, %505 : vector<16x512xf32>
    %880 = arith.addf %876, %879 : vector<16x512xf32>
    %c14_419 = arith.constant 14 : index
    %c4_420 = arith.constant 4 : index
    %881 = memref.load %arg4[%c14_419, %c4_420] : memref<16x8xf32, #tpu.memory_space<smem>>
    %882 = vector.broadcast %881 : f32 to vector<16x512xf32>
    %883 = arith.mulf %882, %541 : vector<16x512xf32>
    %884 = arith.addf %880, %883 : vector<16x512xf32>
    %c14_421 = arith.constant 14 : index
    %c5_422 = arith.constant 5 : index
    %885 = memref.load %arg4[%c14_421, %c5_422] : memref<16x8xf32, #tpu.memory_space<smem>>
    %886 = vector.broadcast %885 : f32 to vector<16x512xf32>
    %887 = arith.mulf %886, %577 : vector<16x512xf32>
    %888 = arith.addf %884, %887 : vector<16x512xf32>
    %c14_423 = arith.constant 14 : index
    %c6_424 = arith.constant 6 : index
    %889 = memref.load %arg4[%c14_423, %c6_424] : memref<16x8xf32, #tpu.memory_space<smem>>
    %890 = vector.broadcast %889 : f32 to vector<16x512xf32>
    %891 = arith.mulf %890, %613 : vector<16x512xf32>
    %892 = arith.addf %888, %891 : vector<16x512xf32>
    %c14_425 = arith.constant 14 : index
    %c7_426 = arith.constant 7 : index
    %893 = memref.load %arg4[%c14_425, %c7_426] : memref<16x8xf32, #tpu.memory_space<smem>>
    %894 = vector.broadcast %893 : f32 to vector<16x512xf32>
    %895 = arith.mulf %894, %649 : vector<16x512xf32>
    %896 = arith.addf %892, %895 : vector<16x512xf32>
    %897 = arith.mulf %896, %896 : vector<16x512xf32>
    %cst_427 = arith.constant 5.000000e-01 : f32
    %898 = vector.broadcast %cst_427 : f32 to vector<16x512xf32>
    %899 = arith.mulf %897, %898 : vector<16x512xf32>
    %cst_428 = arith.constant 1.000000e+00 : f32
    %900 = vector.broadcast %cst_428 : f32 to vector<16x512xf32>
    %901 = arith.subf %900, %899 : vector<16x512xf32>
    %c15 = arith.constant 15 : index
    %c0_429 = arith.constant 0 : index
    %902 = memref.load %arg4[%c15, %c0_429] : memref<16x8xf32, #tpu.memory_space<smem>>
    %903 = vector.broadcast %902 : f32 to vector<16x512xf32>
    %904 = arith.mulf %903, %397 : vector<16x512xf32>
    %c15_430 = arith.constant 15 : index
    %c1_431 = arith.constant 1 : index
    %905 = memref.load %arg4[%c15_430, %c1_431] : memref<16x8xf32, #tpu.memory_space<smem>>
    %906 = vector.broadcast %905 : f32 to vector<16x512xf32>
    %907 = arith.mulf %906, %433 : vector<16x512xf32>
    %908 = arith.addf %904, %907 : vector<16x512xf32>
    %c15_432 = arith.constant 15 : index
    %c2_433 = arith.constant 2 : index
    %909 = memref.load %arg4[%c15_432, %c2_433] : memref<16x8xf32, #tpu.memory_space<smem>>
    %910 = vector.broadcast %909 : f32 to vector<16x512xf32>
    %911 = arith.mulf %910, %469 : vector<16x512xf32>
    %912 = arith.addf %908, %911 : vector<16x512xf32>
    %c15_434 = arith.constant 15 : index
    %c3_435 = arith.constant 3 : index
    %913 = memref.load %arg4[%c15_434, %c3_435] : memref<16x8xf32, #tpu.memory_space<smem>>
    %914 = vector.broadcast %913 : f32 to vector<16x512xf32>
    %915 = arith.mulf %914, %505 : vector<16x512xf32>
    %916 = arith.addf %912, %915 : vector<16x512xf32>
    %c15_436 = arith.constant 15 : index
    %c4_437 = arith.constant 4 : index
    %917 = memref.load %arg4[%c15_436, %c4_437] : memref<16x8xf32, #tpu.memory_space<smem>>
    %918 = vector.broadcast %917 : f32 to vector<16x512xf32>
    %919 = arith.mulf %918, %541 : vector<16x512xf32>
    %920 = arith.addf %916, %919 : vector<16x512xf32>
    %c15_438 = arith.constant 15 : index
    %c5_439 = arith.constant 5 : index
    %921 = memref.load %arg4[%c15_438, %c5_439] : memref<16x8xf32, #tpu.memory_space<smem>>
    %922 = vector.broadcast %921 : f32 to vector<16x512xf32>
    %923 = arith.mulf %922, %577 : vector<16x512xf32>
    %924 = arith.addf %920, %923 : vector<16x512xf32>
    %c15_440 = arith.constant 15 : index
    %c6_441 = arith.constant 6 : index
    %925 = memref.load %arg4[%c15_440, %c6_441] : memref<16x8xf32, #tpu.memory_space<smem>>
    %926 = vector.broadcast %925 : f32 to vector<16x512xf32>
    %927 = arith.mulf %926, %613 : vector<16x512xf32>
    %928 = arith.addf %924, %927 : vector<16x512xf32>
    %c15_442 = arith.constant 15 : index
    %c7_443 = arith.constant 7 : index
    %929 = memref.load %arg4[%c15_442, %c7_443] : memref<16x8xf32, #tpu.memory_space<smem>>
    %930 = vector.broadcast %929 : f32 to vector<16x512xf32>
    %931 = arith.mulf %930, %649 : vector<16x512xf32>
    %932 = arith.addf %928, %931 : vector<16x512xf32>
    %933 = arith.mulf %932, %932 : vector<16x512xf32>
    %cst_444 = arith.constant 5.000000e-01 : f32
    %934 = vector.broadcast %cst_444 : f32 to vector<16x512xf32>
    %935 = arith.mulf %933, %934 : vector<16x512xf32>
    %cst_445 = arith.constant 1.000000e+00 : f32
    %936 = vector.broadcast %cst_445 : f32 to vector<16x512xf32>
    %937 = arith.subf %936, %935 : vector<16x512xf32>
    %c0_446 = arith.constant 0 : index
    %938 = memref.load %arg5[%c0_446] : memref<8xf32, #tpu.memory_space<smem>>
    %939 = vector.broadcast %938 : f32 to vector<16x512xf32>
    %940 = arith.mulf %939, %685 : vector<16x512xf32>
    %c1_447 = arith.constant 1 : index
    %941 = memref.load %arg5[%c1_447] : memref<8xf32, #tpu.memory_space<smem>>
    %942 = vector.broadcast %941 : f32 to vector<16x512xf32>
    %943 = arith.mulf %942, %721 : vector<16x512xf32>
    %944 = arith.addf %940, %943 : vector<16x512xf32>
    %c2_448 = arith.constant 2 : index
    %945 = memref.load %arg5[%c2_448] : memref<8xf32, #tpu.memory_space<smem>>
    %946 = vector.broadcast %945 : f32 to vector<16x512xf32>
    %947 = arith.mulf %946, %757 : vector<16x512xf32>
    %948 = arith.addf %944, %947 : vector<16x512xf32>
    %c3_449 = arith.constant 3 : index
    %949 = memref.load %arg5[%c3_449] : memref<8xf32, #tpu.memory_space<smem>>
    %950 = vector.broadcast %949 : f32 to vector<16x512xf32>
    %951 = arith.mulf %950, %793 : vector<16x512xf32>
    %952 = arith.addf %948, %951 : vector<16x512xf32>
    %c4_450 = arith.constant 4 : index
    %953 = memref.load %arg5[%c4_450] : memref<8xf32, #tpu.memory_space<smem>>
    %954 = vector.broadcast %953 : f32 to vector<16x512xf32>
    %955 = arith.mulf %954, %829 : vector<16x512xf32>
    %956 = arith.addf %952, %955 : vector<16x512xf32>
    %c5_451 = arith.constant 5 : index
    %957 = memref.load %arg5[%c5_451] : memref<8xf32, #tpu.memory_space<smem>>
    %958 = vector.broadcast %957 : f32 to vector<16x512xf32>
    %959 = arith.mulf %958, %865 : vector<16x512xf32>
    %960 = arith.addf %956, %959 : vector<16x512xf32>
    %c6_452 = arith.constant 6 : index
    %961 = memref.load %arg5[%c6_452] : memref<8xf32, #tpu.memory_space<smem>>
    %962 = vector.broadcast %961 : f32 to vector<16x512xf32>
    %963 = arith.mulf %962, %901 : vector<16x512xf32>
    %964 = arith.addf %960, %963 : vector<16x512xf32>
    %c7_453 = arith.constant 7 : index
    %965 = memref.load %arg5[%c7_453] : memref<8xf32, #tpu.memory_space<smem>>
    %966 = vector.broadcast %965 : f32 to vector<16x512xf32>
    %967 = arith.mulf %966, %937 : vector<16x512xf32>
    %968 = arith.addf %964, %967 : vector<16x512xf32>
    %c0_454 = arith.constant 0 : index
    %969 = memref.load %arg6[%c0_454] : memref<1xf32, #tpu.memory_space<smem>>
    %970 = vector.broadcast %969 : f32 to vector<16x512xf32>
    %971 = arith.addf %968, %970 : vector<16x512xf32>
    %c0_455 = arith.constant 0 : index
    %c0_456 = arith.constant 0 : index
    %972 = vector.load %arg7[%c0_455, %c0_456] : memref<16x512xf32, #tpu.memory_space<vmem>>, vector<16x512xf32>
    tpu.vector_store %arg7[%c0_455, %c0_456], %971 {strides = array<i32>} : memref<16x512xf32, #tpu.memory_space<vmem>>, vector<16x512xf32>,
    return
  }
  func.func @transform_0(%arg0: i32) -> (i32, i32) {
    %c0_i32 = arith.constant 0 : i32
    %c0_i32_0 = arith.constant 0 : i32
    return %arg0, %c0_i32 : i32, i32
  }
  func.func @transform_1(%arg0: i32) -> (i32, i32) {
    %c0_i32 = arith.constant 0 : i32
    %c0_i32_0 = arith.constant 0 : i32
    return %arg0, %c0_i32 : i32, i32
  }
  func.func @transform_2(%arg0: i32) -> (i32, i32) {
    %c0_i32 = arith.constant 0 : i32
    %c0_i32_0 = arith.constant 0 : i32
    %c0_i32_1 = arith.constant 0 : i32
    return %c0_i32, %c0_i32_0 : i32, i32
  }
  func.func @transform_3(%arg0: i32) -> (i32, i32) {
    %c0_i32 = arith.constant 0 : i32
    %c0_i32_0 = arith.constant 0 : i32
    %c0_i32_1 = arith.constant 0 : i32
    return %c0_i32, %c0_i32_0 : i32, i32
  }
  func.func @transform_4(%arg0: i32) -> i32 {
    %c0_i32 = arith.constant 0 : i32
    %c0_i32_0 = arith.constant 0 : i32
    return %c0_i32 : i32
  }
  func.func @transform_5(%arg0: i32) -> i32 {
    %c0_i32 = arith.constant 0 : i32
    %c0_i32_0 = arith.constant 0 : i32
    return %c0_i32 : i32
  }
  func.func @transform_6(%arg0: i32) -> (i32, i32) {
    %c0_i32 = arith.constant 0 : i32
    %c0_i32_0 = arith.constant 0 : i32
    return %arg0, %c0_i32 : i32, i32
  }
}

</mosaic_0001>

<llo_original>
// kernel: tpu_custom_call.1
$region0: #{tpu_custom_call.1}
  #allocation0 [shape = 'u32[]', space=smem, size = 0x4, offset = 0x4, fixed_abs, tag = 'smem constant byte address 0x4 - core index']
  #allocation1 [shape = 'u32[144,128]{1,0:T(1,128)}', space=vmem, size = 0x12000, scoped, tag = 'internal scratch']
  #allocation2 [shape = 'f32[1]{0:T(128)S(6)}', space=smem, size = 0x200, scoped, tag = 'scoped memory for tpu_custom_call.1']
  %s0 = inlined_call_operand.hbm [shape: f32[48,512], index: 0, kind: input, shape index: {}]
  %s1 = inlined_call_operand.hbm [shape: f32[48,512], index: 1, kind: input, shape index: {}]
  %s2 = inlined_call_operand.vmem [shape: f32[9,8], index: 2, kind: input, shape index: {}]
  %s3 = inlined_call_operand.vmem [shape: f32[16,8], index: 3, kind: input, shape index: {}]
  %s4 = inlined_call_operand.vmem [shape: f32[8], index: 4, kind: input, shape index: {}]
  %s5 = inlined_call_operand.<no memory space> [shape: f32[1], index: 5, kind: input, shape index: {}]
  %s6 = inlined_call_operand.hbm [shape: f32[48,512], index: 6, kind: output, shape index: {}]
  %s7 = sld [smem:[#allocation0]]
  $region77: #{tpu_custom_call.1} parent=0
    _
  %s9 = ssub.s32 1, %s7
  %s10 = scalar_select 0, %s9, %s7
  %11 = sst [smem:[#allocation2]] %s5
  $region1: #{tpu_custom_call.1} parent=0
    #allocation3 [shape = 'u8[65536]{0}', space=vmem, size = 0x10000, scoped, tag = 'input window, operand 0']
    #allocation4 [shape = 's32[2]{0}', space=sflag, size = 0x8, scoped, tag = 'scoped memory for tpu_custom_call.1']
    #allocation5 [shape = 's32[2]{0}', space=sflag, size = 0x8, scoped, tag = 'scoped memory for tpu_custom_call.1']
    #allocation6 [shape = 's32[2]{0}', space=sflag, size = 0x8, scoped, tag = 'scoped memory for tpu_custom_call.1']
    #allocation7 [shape = 'u8[65536]{0}', space=vmem, size = 0x10000, scoped, tag = 'input window, operand 1']
    #allocation8 [shape = 's32[2]{0}', space=sflag, size = 0x8, scoped, tag = 'scoped memory for tpu_custom_call.1']
    #allocation9 [shape = 'u8[8192]{0}', space=smem, size = 0x2000, scoped, tag = 'input window, operand 2, single buffered']
    #allocation10 [shape = 'u8[8192]{0}', space=smem, size = 0x2000, scoped, tag = 'input window, operand 3, single buffered']
    #allocation11 [shape = 's32[1]{0}', space=sflag, size = 0x4, scoped, tag = 'scoped memory for tpu_custom_call.1']
    #allocation12 [shape = 'u8[512]{0}', space=smem, size = 0x200, scoped, tag = 'input window, operand 4, single buffered']
    #allocation13 [shape = 'u8[65536]{0}', space=vmem, size = 0x10000, scoped, tag = 'output window, operand 0']
    %12 = vsyncpa [#allocation4], 0
    %s13 = scalar_lea.sflag [#allocation4], 1
    %14 = vsyncpa %s13, 0
    %15 = vsyncpa [#allocation8], 0
    %s16 = scalar_lea.sflag [#allocation8], 1
    %17 = vsyncpa %s16, 0
    %18 = vsyncpa [#allocation6], 0
    %19 = vsyncpa [#allocation11], 0
    %20 = vsyncpa [#allocation5], 0
    %s21 = scalar_lea.sflag [#allocation5], 1
    %22 = vsyncpa %s21, 0
    loop: start=0, step=1, limit=5
    $region2: #{tpu_custom_call.1} parent=1 // loop_pre_header
      _
    $region3: #{tpu_custom_call.1} parent=1 // loop_header
      %s24 = sphi 0, %s28
      %p25 = scmp.ge.s32.totalorder %s24, 5
      %s34 = sphi 0, %s36
      %s37 = sphi 0, %s34
      %s38 = sphi 0, %s37
      %s54 = sphi 0, %s38
      %s60 = sphi 0, %s62
      %s63 = sphi 0, %s60
      %s64 = sphi 0, %s63
      %s80 = sphi 0, %s64
      %s84 = sphi 0, %s84
      %s86 = sphi 0, %s84
      %s87 = sphi 0, %s86
      %s101 = sphi 0, %s87
      %s105 = sphi 0, %s105
      %s107 = sphi 0, %s105
      %s108 = sphi 0, %s107
      %s122 = sphi 0, %s108
      %s126 = sphi 0, %s126
      %s128 = sphi 0, %s126
      %s129 = sphi 0, %s128
      %s143 = sphi 0, %s129
      %s147 = sphi 0, %s147
      %s149 = sphi 0, %s147
      %s150 = sphi 0, %s149
      %s164 = sphi 0, %s150
      %s170 = sphi 0, %s172
      %s173 = sphi 0, %s170
      %s174 = sphi 0, %s173
      %s190 = sphi 0, %s174
    $region4: #{tpu_custom_call.1} parent=1 // loop_header_branch
      %27 = sbr.rel (%p25) target = $region8
    $region5: #{tpu_custom_call.1} parent=1 // loop_body
      %s29 = ssub.s32 %s24, 1
      %s30 = ssub.s32 %s24, 2
      %s31 = sadd.s32 %s24, 1
      %s32 = ssub.s32 %s24, %s31
      %p33 = scmp.eq.s32.totalorder %s32, 0
      %s35 = sadd.s32 %s34, 1
      %s36 = scalar_select %p33, %s34, %s35
      %p39 = pneg %p33
      %p40 = scmp.eq.s32.totalorder %s24, 2
      %p41 = por %p39, %p40
      %p42 = scmp.ne.s32.totalorder %s34, %s37
      %p43 = scmp.eq.s32.totalorder %s24, 0
      %p44 = por %p42, %p43
      %p45 = scmp.ne.s32.totalorder %s34, %s37
      %p46 = scmp.eq.s32.totalorder %s29, 2
      %p47 = por %p45, %p46
      %p48 = scmp.ne.s32.totalorder %s37, %s38
      %p49 = scmp.eq.s32.totalorder %s29, 0
      %p50 = por %p48, %p49
      %p51 = scmp.ne.s32.totalorder %s37, %s38
      %p52 = scmp.eq.s32.totalorder %s30, 2
      %p53 = por %p51, %p52
      %p55 = scmp.ne.s32.totalorder %s38, %s54
      %p56 = scmp.eq.s32.totalorder %s30, 0
      %p57 = por %p55, %p56
      %s58 = ssub.s32 %s24, %s31
      %p59 = scmp.eq.s32.totalorder %s58, 0
      %s61 = sadd.s32 %s60, 1
      %s62 = scalar_select %p59, %s60, %s61
      %p65 = pneg %p59
      %p66 = scmp.eq.s32.totalorder %s24, 2
      %p67 = por %p65, %p66
      %p68 = scmp.ne.s32.totalorder %s60, %s63
      %p69 = scmp.eq.s32.totalorder %s24, 0
      %p70 = por %p68, %p69
      %p71 = scmp.ne.s32.totalorder %s60, %s63
      %p72 = scmp.eq.s32.totalorder %s29, 2
      %p73 = por %p71, %p72
      %p74 = scmp.ne.s32.totalorder %s63, %s64
      %p75 = scmp.eq.s32.totalorder %s29, 0
      %p76 = por %p74, %p75
      %p77 = scmp.ne.s32.totalorder %s63, %s64
      %p78 = scmp.eq.s32.totalorder %s30, 2
      %p79 = por %p77, %p78
      %p81 = scmp.ne.s32.totalorder %s64, %s80
      %p82 = scmp.eq.s32.totalorder %s30, 0
      %p83 = por %p81, %p82
      %s85 = sadd.s32 %s84, 1
      %p88 = scmp.eq.s32.totalorder %s24, 2
      %p89 = scmp.ne.s32.totalorder %s84, %s86
      %p90 = scmp.eq.s32.totalorder %s24, 0
      %p91 = por %p89, %p90
      %p92 = scmp.ne.s32.totalorder %s84, %s86
      %p93 = scmp.eq.s32.totalorder %s29, 2
      %p94 = por %p92, %p93
      %p95 = scmp.ne.s32.totalorder %s86, %s87
      %p96 = scmp.eq.s32.totalorder %s29, 0
      %p97 = por %p95, %p96
      %p98 = scmp.ne.s32.totalorder %s86, %s87
      %p99 = scmp.eq.s32.totalorder %s30, 2
      %p100 = por %p98, %p99
      %p102 = scmp.ne.s32.totalorder %s87, %s101
      %p103 = scmp.eq.s32.totalorder %s30, 0
      %p104 = por %p102, %p103
      %s106 = sadd.s32 %s105, 1
      %p109 = scmp.eq.s32.totalorder %s24, 2
      %p110 = scmp.ne.s32.totalorder %s105, %s107
      %p111 = scmp.eq.s32.totalorder %s24, 0
      %p112 = por %p110, %p111
      %p113 = scmp.ne.s32.totalorder %s105, %s107
      %p114 = scmp.eq.s32.totalorder %s29, 2
      %p115 = por %p113, %p114
      %p116 = scmp.ne.s32.totalorder %s107, %s108
      %p117 = scmp.eq.s32.totalorder %s29, 0
      %p118 = por %p116, %p117
      %p119 = scmp.ne.s32.totalorder %s107, %s108
      %p120 = scmp.eq.s32.totalorder %s30, 2
      %p121 = por %p119, %p120
      %p123 = scmp.ne.s32.totalorder %s108, %s122
      %p124 = scmp.eq.s32.totalorder %s30, 0
      %p125 = por %p123, %p124
      %s127 = sadd.s32 %s126, 1
      %p130 = scmp.eq.s32.totalorder %s24, 2
      %p131 = scmp.ne.s32.totalorder %s126, %s128
      %p132 = scmp.eq.s32.totalorder %s24, 0
      %p133 = por %p131, %p132
      %p134 = scmp.ne.s32.totalorder %s126, %s128
      %p135 = scmp.eq.s32.totalorder %s29, 2
      %p136 = por %p134, %p135
      %p137 = scmp.ne.s32.totalorder %s128, %s129
      %p138 = scmp.eq.s32.totalorder %s29, 0
      %p139 = por %p137, %p138
      %p140 = scmp.ne.s32.totalorder %s128, %s129
      %p141 = scmp.eq.s32.totalorder %s30, 2
      %p142 = por %p140, %p141
      %p144 = scmp.ne.s32.totalorder %s129, %s143
      %p145 = scmp.eq.s32.totalorder %s30, 0
      %p146 = por %p144, %p145
      %s148 = sadd.s32 %s147, 1
      %p151 = scmp.eq.s32.totalorder %s24, 2
      %p152 = scmp.ne.s32.totalorder %s147, %s149
      %p153 = scmp.eq.s32.totalorder %s24, 0
      %p154 = por %p152, %p153
      %p155 = scmp.ne.s32.totalorder %s147, %s149
      %p156 = scmp.eq.s32.totalorder %s29, 2
      %p157 = por %p155, %p156
      %p158 = scmp.ne.s32.totalorder %s149, %s150
      %p159 = scmp.eq.s32.totalorder %s29, 0
      %p160 = por %p158, %p159
      %p161 = scmp.ne.s32.totalorder %s149, %s150
      %p162 = scmp.eq.s32.totalorder %s30, 2
      %p163 = por %p161, %p162
      %p165 = scmp.ne.s32.totalorder %s150, %s164
      %p166 = scmp.eq.s32.totalorder %s30, 0
      %p167 = por %p165, %p166
      %s168 = ssub.s32 %s24, %s31
      %p169 = scmp.eq.s32.totalorder %s168, 0
      %s171 = sadd.s32 %s170, 1
      %s172 = scalar_select %p169, %s170, %s171
      %p175 = pneg %p169
      %p176 = scmp.eq.s32.totalorder %s24, 2
      %p177 = por %p175, %p176
      %p178 = scmp.ne.s32.totalorder %s170, %s173
      %p179 = scmp.eq.s32.totalorder %s24, 0
      %p180 = por %p178, %p179
      %p181 = scmp.ne.s32.totalorder %s170, %s173
      %p182 = scmp.eq.s32.totalorder %s29, 2
      %p183 = por %p181, %p182
      %p184 = scmp.ne.s32.totalorder %s173, %s174
      %p185 = scmp.eq.s32.totalorder %s29, 0
      %p186 = por %p184, %p185
      %p187 = scmp.ne.s32.totalorder %s173, %s174
      %p188 = scmp.eq.s32.totalorder %s30, 2
      %p189 = por %p187, %p188
      %p191 = scmp.ne.s32.totalorder %s174, %s190
      %p192 = scmp.eq.s32.totalorder %s30, 0
      %p193 = por %p191, %p192
      %p194 = scmp.le.s32.totalorder 1, %s24
      %p195 = scmp.lt.s32.totalorder %s24, 4
      %p196 = pnand %p194, %p195
      %p197 = pneg %p196
      // Predicated region
      $region9: #{tpu_custom_call.1} parent=5 // pred_check
        _
      $region10: #{tpu_custom_call.1} parent=5 // pred_check_branch
        %199 = sbr.rel (%p196) target = $region12
      $region11: #{tpu_custom_call.1} parent=5 // pred_region
        %s200 = ssub.s32 %s24, 1
        // Predicated region
        $region13: #{tpu_custom_call.1} parent=11 // pred_check
          %p201 = pneg %p97
        $region14: #{tpu_custom_call.1} parent=11 // pred_check_branch
          %203 = sbr.rel (%p201) target = $region16
        $region15: #{tpu_custom_call.1} parent=11 // pred_region
          %s205 = ssub.s32 256, 256
          %206 = vsyncadd [#allocation6], %s205
          %s207 = sshll.u32 %s2, 4
          %s208 = int_to_ptr.vmem [resolvable:$true] %s207
          %213 = dma.vmem_to_smem %s208, 256, [#allocation9], [#allocation6], 128, 128, 8
        $region16: #{tpu_custom_call.1} parent=11 // pred_fallthru
          _
        // Predicated region
        $region17: #{tpu_custom_call.1} parent=11 // pred_check
          %p214 = pneg %p118
        $region18: #{tpu_custom_call.1} parent=11 // pred_check_branch
          %216 = sbr.rel (%p214) target = $region20
        $region19: #{tpu_custom_call.1} parent=11 // pred_region
          %s218 = ssub.s32 256, 256
          %219 = vsyncadd [#allocation11], %s218
          %s220 = sshll.u32 %s3, 4
          %s221 = int_to_ptr.vmem [resolvable:$true] %s220
          %226 = dma.vmem_to_smem %s221, 256, [#allocation10], [#allocation11], 128, 128, 8
        $region20: #{tpu_custom_call.1} parent=11 // pred_fallthru
          _
        // Predicated region
        $region21: #{tpu_custom_call.1} parent=11 // pred_check
          %p227 = pneg %p139
        $region22: #{tpu_custom_call.1} parent=11 // pred_check_branch
          %229 = sbr.rel (%p227) target = $region24
        $region23: #{tpu_custom_call.1} parent=11 // pred_region
          %s231 = ssub.s32 16, 16
          %232 = vsyncadd [#allocation11], %s231
          %s234 = sshll.u32 %s4, 4
          %s235 = int_to_ptr.vmem [resolvable:$true] %s234
          %237 = dma.vmem_to_smem %s235, 16, [#allocation12], [#allocation11]
        $region24: #{tpu_custom_call.1} parent=11 // pred_fallthru
          _
        // Predicated region
        $region25: #{tpu_custom_call.1} parent=11 // pred_check
          %p238 = pneg %p160
        $region26: #{tpu_custom_call.1} parent=11 // pred_check_branch
          %240 = sbr.rel (%p238) target = $region28
        $region27: #{tpu_custom_call.1} parent=11 // pred_region
          _
        $region28: #{tpu_custom_call.1} parent=11 // pred_fallthru
          _
      $region12: #{tpu_custom_call.1} parent=5 // pred_fallthru
        _
      %p241 = scmp.lt.s32.totalorder %s24, 3
      // Predicated region
      $region29: #{tpu_custom_call.1} parent=5 // pred_check
        %p242 = pneg %p241
      $region30: #{tpu_custom_call.1} parent=5 // pred_check_branch
        %244 = sbr.rel (%p242) target = $region32
      $region31: #{tpu_custom_call.1} parent=5 // pred_region
        // Predicated region
        $region33: #{tpu_custom_call.1} parent=31 // pred_check
          %p245 = pneg %p44
        $region34: #{tpu_custom_call.1} parent=31 // pred_check_branch
          %247 = sbr.rel (%p245) target = $region36
        $region35: #{tpu_custom_call.1} parent=31 // pred_region
          %s248 = sand.u32 %s34, 1
          %s249 = scalar_lea.sflag [#allocation4], %s248
          %s250 = sand.u32 %s34, 1
          %s251 = smul.addr %s250, 64
          %s252 = scalar_lea.vmem [#allocation3], %s251
          %s253 = smul.u32 2, %s24
          %s255 = ssub.s32 1024, 1024
          %256 = vsyncadd %s249, %s255
          %s257 = smul.addr %s253, 4
          %s258 = smul.addr %s257, 128
          %s259 = scalar_lea.hbm %s0, %s258
          %s260 = sshll.u32 %s252, 4
          %s261 = int_to_ptr.vmem [resolvable:$true] %s260
          %266 = dma.hbm_to_vmem [thread:$0]  %s259, 1024, %s261, %s249, 512, 512, 32
        $region36: #{tpu_custom_call.1} parent=31 // pred_fallthru
          _
        // Predicated region
        $region37: #{tpu_custom_call.1} parent=31 // pred_check
          %p267 = pneg %p70
        $region38: #{tpu_custom_call.1} parent=31 // pred_check_branch
          %269 = sbr.rel (%p267) target = $region40
        $region39: #{tpu_custom_call.1} parent=31 // pred_region
          %s270 = sand.u32 %s60, 1
          %s271 = scalar_lea.sflag [#allocation8], %s270
          %s272 = sand.u32 %s60, 1
          %s273 = smul.addr %s272, 64
          %s274 = scalar_lea.vmem [#allocation7], %s273
          %s275 = smul.u32 2, %s24
          %s277 = ssub.s32 1024, 1024
          %278 = vsyncadd %s271, %s277
          %s279 = smul.addr %s275, 4
          %s280 = smul.addr %s279, 128
          %s281 = scalar_lea.hbm %s1, %s280
          %s282 = sshll.u32 %s274, 4
          %s283 = int_to_ptr.vmem [resolvable:$true] %s282
          %288 = dma.hbm_to_vmem [thread:$0]  %s281, 1024, %s283, %s271, 512, 512, 32
        $region40: #{tpu_custom_call.1} parent=31 // pred_fallthru
          _
      $region32: #{tpu_custom_call.1} parent=5 // pred_fallthru
        _
      %p289 = scmp.le.s32.totalorder 1, %s24
      %p290 = scmp.lt.s32.totalorder %s24, 4
      %p291 = pnand %p289, %p290
      %p292 = pneg %p291
      // Predicated region
      $region41: #{tpu_custom_call.1} parent=5 // pred_check
        _
      $region42: #{tpu_custom_call.1} parent=5 // pred_check_branch
        %294 = sbr.rel (%p291) target = $region44
      $region43: #{tpu_custom_call.1} parent=5 // pred_region
        %s295 = ssub.s32 %s24, 1
        %s296 = sand.u32 %s37, 1
        %s297 = scalar_lea.sflag [#allocation4], %s296
        %s298 = sand.u32 %s37, 1
        %s299 = smul.addr %s298, 64
        %s300 = scalar_lea.vmem [#allocation3], %s299
        // Predicated region
        $region45: #{tpu_custom_call.1} parent=43 // pred_check
          %p301 = pneg %p50
        $region46: #{tpu_custom_call.1} parent=43 // pred_check_branch
          %303 = sbr.rel (%p301) target = $region48
        $region47: #{tpu_custom_call.1} parent=43 // pred_region
          %304 = dma.done %s297, 1024
        $region48: #{tpu_custom_call.1} parent=43 // pred_fallthru
          _
        %s305 = sand.u32 %s63, 1
        %s306 = scalar_lea.sflag [#allocation8], %s305
        %s307 = sand.u32 %s63, 1
        %s308 = smul.addr %s307, 64
        %s309 = scalar_lea.vmem [#allocation7], %s308
        // Predicated region
        $region49: #{tpu_custom_call.1} parent=43 // pred_check
          %p310 = pneg %p76
        $region50: #{tpu_custom_call.1} parent=43 // pred_check_branch
          %312 = sbr.rel (%p310) target = $region52
        $region51: #{tpu_custom_call.1} parent=43 // pred_region
          %313 = dma.done %s306, 1024
        $region52: #{tpu_custom_call.1} parent=43 // pred_fallthru
          _
        // Predicated region
        $region53: #{tpu_custom_call.1} parent=43 // pred_check
          %p314 = pneg %p97
        $region54: #{tpu_custom_call.1} parent=43 // pred_check_branch
          %316 = sbr.rel (%p314) target = $region56
        $region55: #{tpu_custom_call.1} parent=43 // pred_region
          %317 = dma.done [#allocation6], 256
        $region56: #{tpu_custom_call.1} parent=43 // pred_fallthru
          _
        // Predicated region
        $region57: #{tpu_custom_call.1} parent=43 // pred_check
          %p318 = pneg %p118
        $region58: #{tpu_custom_call.1} parent=43 // pred_check_branch
          %320 = sbr.rel (%p318) target = $region60
        $region59: #{tpu_custom_call.1} parent=43 // pred_region
          %321 = dma.done [#allocation11], 256
        $region60: #{tpu_custom_call.1} parent=43 // pred_fallthru
          _
        // Predicated region
        $region61: #{tpu_custom_call.1} parent=43 // pred_check
          %p322 = pneg %p139
        $region62: #{tpu_custom_call.1} parent=43 // pred_check_branch
          %324 = sbr.rel (%p322) target = $region64
        $region63: #{tpu_custom_call.1} parent=43 // pred_region
          %325 = dma.done [#allocation11], 16
        $region64: #{tpu_custom_call.1} parent=43 // pred_fallthru
          _
        %326 = sfence
        %s327 = sand.u32 %s37, 1
        %s328 = scalar_lea.sflag [#allocation4], %s327
        %s329 = sand.u32 %s37, 1
        %s330 = smul.addr %s329, 64
        %s331 = scalar_lea.vmem [#allocation3], %s330
        %p332 = pneg %p50
        %p333 = pneg %p47
        %s334 = sand.u32 %s63, 1
        %s335 = scalar_lea.sflag [#allocation8], %s334
        %s336 = sand.u32 %s63, 1
        %s337 = smul.addr %s336, 64
        %s338 = scalar_lea.vmem [#allocation7], %s337
        %p339 = pneg %p76
        %p340 = pneg %p73
        %p341 = pneg %p97
        %p342 = pneg %p94
        %p343 = pneg %p118
        %p344 = pneg %p115
        %p345 = pneg %p139
        %p346 = pneg %p136
        %p347 = pneg %p160
        %p348 = pneg %p157
        %p349 = pneg %p186
        %p350 = pneg %p183
        %s351 = sand.u32 %s173, 1
        %s352 = scalar_lea.sflag [#allocation5], %s351
        %s353 = sand.u32 %s173, 1
        %s354 = smul.addr %s353, 64
        %s355 = scalar_lea.vmem [#allocation13], %s354
        %s356 = smul.u32 2, %s29
        %s357 = smul.u32 2, %s29
        %s358 = smul.u32 2, %s29
        %v359 = vld [vmem:[%s300] sm:$0xff]
        %v360 = vld [vmem:[%s300 + $0x8] sm:$0xff]
        %v361 = vld [vmem:[%s300 + $0x10] sm:$0xff]
        %v362 = vld [vmem:[%s300 + $0x18] sm:$0xff]
        %v363 = vld [vmem:[%s300 + $0x20] sm:$0xff]
        %v364 = vld [vmem:[%s300 + $0x28] sm:$0xff]
        %v365 = vld [vmem:[%s300 + $0x30] sm:$0xff]
        %v366 = vld [vmem:[%s300 + $0x38] sm:$0xff]
        %v367 = vld [vmem:[%s309] sm:$0xff]
        %v368 = vld [vmem:[%s309 + $0x8] sm:$0xff]
        %v369 = vld [vmem:[%s309 + $0x10] sm:$0xff]
        %v370 = vld [vmem:[%s309 + $0x18] sm:$0xff]
        %v371 = vld [vmem:[%s309 + $0x20] sm:$0xff]
        %v372 = vld [vmem:[%s309 + $0x28] sm:$0xff]
        %v373 = vld [vmem:[%s309 + $0x30] sm:$0xff]
        %v374 = vld [vmem:[%s309 + $0x38] sm:$0xff]
        %v375 = vand.u32 2147483647, %v359
        %vm376 = vcmp.le.f32.partialorder %v375, 0.7853982
        %vm377 = vcmp.lt.s32.totalorder %v359, 0
        %v378 = vand.u32 %v359, 2139095040
        %v379 = vshrl.u32 %v378, 23
        %v380 = vsub.s32 %v379, 127
        %v381 = vand.u32 2147483647, %v359
        %v382 = vand.u32 %v381, 8388607
        %v383 = vor.u32 %v382, 8388608
        %v384 = vsub.s32 0, %v383
        %v385 = vadd.s32 %v380, 1
        %vm386 = vcmp.gt.s32.totalorder %v385, 0
        %v387 = vsel %vm386, %v385, 0
        %v388 = vshrl.u32 %v387, 5
        %v389 = vand.u32 %v387, 31
        %v390 = vsub.s32 32, %v389
        %v391 = vshrl.u32 683565275, %v390
        %v392 = vshll.u32 683565275, %v389
        %v393 = vshrl.u32 2475754826, %v390
        %v394 = vor.u32 %v392, %v393
        %v395 = vshll.u32 2475754826, %v389
        %v396 = vshrl.u32 2131351028, %v390
        %v397 = vor.u32 %v395, %v396
        %v398 = vshll.u32 2131351028, %v389
        %v399 = vshrl.u32 2102212464, %v390
        %v400 = vor.u32 %v398, %v399
        %v401 = vshll.u32 2102212464, %v389
        %v402 = vshrl.u32 920167782, %v390
        %v403 = vor.u32 %v401, %v402
        %v404 = vshll.u32 920167782, %v389
        %v405 = vshrl.u32 1326507024, %v390
        %v406 = vor.u32 %v404, %v405
        %vm407 = vcmp.lt.s32.totalorder %v388, 1
        %vm408 = vcmp.lt.s32.totalorder %v388, 2
        %vm409 = vcmp.lt.s32.totalorder %v388, 3
        %vm410 = vcmp.lt.s32.totalorder %v388, 4
        %v411 = vsel %vm407, %v391, %v394
        %v412 = vsel %vm410, %v400, 2102212464
        %v413 = vsel %vm409, %v397, %v412
        %v414 = vsel %vm408, %v411, %v413
        %v415 = vsel %vm407, %v394, %v397
        %v416 = vsel %vm410, %v403, 920167782
        %v417 = vsel %vm409, %v400, %v416
        %v418 = vsel %vm408, %v415, %v417
        %v419 = vsel %vm407, %v397, %v400
        %v420 = vsel %vm410, %v406, 1326507024
        %v421 = vsel %vm409, %v403, %v420
        %v422 = vsel %vm408, %v419, %v421
        %v423 = vshll.u32 %v383, 8
        %v424 = vmul.u32.u64.compose %v423, %v422
        %v425 = vextract.low.u32 %v424
        %v426 = vextract.high.u32 %v424
        %v427 = vmul.u32.u64.compose %v423, %v418
        %v428 = vextract.low.u32 %v427
        %v429 = vextract.high.u32 %v427
        %v430 = vmul.u32 %v423, %v414
        %v431 = vadd.s32 %v426, %v428
        %vm432 = vc.u32 %v426, %v428
        %v433 = vadd.s32 %v429, 1
        %v434 = vsel %vm432, %v433, %v429
        %v435 = vadd.s32 %v430, %v434
        %v436 = vadd.s32 %v435, 536870912
        %v437 = vshrl.u32 %v436, 30
        %v438 = vshll.u32 %v437, 30
        %v439 = vsub.s32 %v435, %v438
        %vm440 = vcmp.lt.s32.totalorder %v439, 0
        %v441 = vsub.s32 0, %v439
        %v442 = vsel %vm440, %v441, %v439
        %v443 = vclz %v442
        %v444 = vsub.s32 %v443, 2
        %vm445 = vcmp.gt.s32.totalorder 0, %v444
        %v446 = vsel %vm445, 0, %v444
        %v447 = vsub.s32 32, %v446
        %v448 = vshll.u32 %v439, %v446
        %v449 = vshrl.u32 %v431, %v447
        %v450 = vor.u32 %v448, %v449
        %v451 = vsub.s32 4294967266, %v446
        %v452 = vadd.s32 %v451, 127
        %v453 = vshll.u32 %v452, 23
        %v454 = vor.u32 4788187, %v453
        %v455 = vand.u32 2147483647, %v454
        %v457 = vcvt.s32.f32 %v450
        %v458 = vmul.f32 %v457, %v455
        %v459 = vxor.u32 %v458, 2147483648
        %v460 = vsel %vm377, %v459, %v458
        %v461 = vsub.s32 4, %v437
        %v462 = vsel %vm377, %v461, %v437
        %v463 = vsel %vm376, %v359, %v460
        %v464 = vsel %vm376, 0, %v462
        %v465 = vcosq.f32.pop %v463
        %v466 = vsinq.f32.pop %v463
        %vm467 = vweird.f32 %v359
        %v468 = vadd.s32 %v464, 3
        %v469 = vand.u32 %v468, 3
        %vm470 = vcmp.lt.s32.totalorder %v469, 2
        %vm471 = vcmp.eq.s32.totalorder %v469, 0
        %v472 = vxor.u32 %v466, 2147483648
        %v473 = vsel %vm471, %v465, %v472
        %vm474 = vcmp.eq.s32.totalorder %v469, 2
        %v475 = vxor.u32 %v465, 2147483648
        %v476 = vsel %vm474, %v475, %v466
        %v477 = vsel %vm470, %v473, %v476
        %v478 = vsel %vm467, nan, %v477
        %v479 = vand.u32 2147483647, %v360
        %vm480 = vcmp.le.f32.partialorder %v479, 0.7853982
        %vm481 = vcmp.lt.s32.totalorder %v360, 0
        %v482 = vand.u32 %v360, 2139095040
        %v483 = vshrl.u32 %v482, 23
        %v484 = vsub.s32 %v483, 127
        %v485 = vand.u32 2147483647, %v360
        %v486 = vand.u32 %v485, 8388607
        %v487 = vor.u32 %v486, 8388608
        %v488 = vsub.s32 0, %v487
        %v489 = vadd.s32 %v484, 1
        %vm490 = vcmp.gt.s32.totalorder %v489, 0
        %v491 = vsel %vm490, %v489, 0
        %v492 = vshrl.u32 %v491, 5
        %v493 = vand.u32 %v491, 31
        %v494 = vsub.s32 32, %v493
        %v495 = vshrl.u32 683565275, %v494
        %v496 = vshll.u32 683565275, %v493
        %v497 = vshrl.u32 2475754826, %v494
        %v498 = vor.u32 %v496, %v497
        %v499 = vshll.u32 2475754826, %v493
        %v500 = vshrl.u32 2131351028, %v494
        %v501 = vor.u32 %v499, %v500
        %v502 = vshll.u32 2131351028, %v493
        %v503 = vshrl.u32 2102212464, %v494
        %v504 = vor.u32 %v502, %v503
        %v505 = vshll.u32 2102212464, %v493
        %v506 = vshrl.u32 920167782, %v494
        %v507 = vor.u32 %v505, %v506
        %v508 = vshll.u32 920167782, %v493
        %v509 = vshrl.u32 1326507024, %v494
        %v510 = vor.u32 %v508, %v509
        %vm511 = vcmp.lt.s32.totalorder %v492, 1
        %vm512 = vcmp.lt.s32.totalorder %v492, 2
        %vm513 = vcmp.lt.s32.totalorder %v492, 3
        %vm514 = vcmp.lt.s32.totalorder %v492, 4
        %v515 = vsel %vm511, %v495, %v498
        %v516 = vsel %vm514, %v504, 2102212464
        %v517 = vsel %vm513, %v501, %v516
        %v518 = vsel %vm512, %v515, %v517
        %v519 = vsel %vm511, %v498, %v501
        %v520 = vsel %vm514, %v507, 920167782
        %v521 = vsel %vm513, %v504, %v520
        %v522 = vsel %vm512, %v519, %v521
        %v523 = vsel %vm511, %v501, %v504
        %v524 = vsel %vm514, %v510, 1326507024
        %v525 = vsel %vm513, %v507, %v524
        %v526 = vsel %vm512, %v523, %v525
        %v527 = vshll.u32 %v487, 8
        %v528 = vmul.u32.u64.compose %v527, %v526
        %v529 = vextract.low.u32 %v528
        %v530 = vextract.high.u32 %v528
        %v531 = vmul.u32.u64.compose %v527, %v522
        %v532 = vextract.low.u32 %v531
        %v533 = vextract.high.u32 %v531
        %v534 = vmul.u32 %v527, %v518
        %v535 = vadd.s32 %v530, %v532
        %vm536 = vc.u32 %v530, %v532
        %v537 = vadd.s32 %v533, 1
        %v538 = vsel %vm536, %v537, %v533
        %v539 = vadd.s32 %v534, %v538
        %v540 = vadd.s32 %v539, 536870912
        %v541 = vshrl.u32 %v540, 30
        %v542 = vshll.u32 %v541, 30
        %v543 = vsub.s32 %v539, %v542
        %vm544 = vcmp.lt.s32.totalorder %v543, 0
        %v545 = vsub.s32 0, %v543
        %v546 = vsel %vm544, %v545, %v543
        %v547 = vclz %v546
        %v548 = vsub.s32 %v547, 2
        %vm549 = vcmp.gt.s32.totalorder 0, %v548
        %v550 = vsel %vm549, 0, %v548
        %v551 = vsub.s32 32, %v550
        %v552 = vshll.u32 %v543, %v550
        %v553 = vshrl.u32 %v535, %v551
        %v554 = vor.u32 %v552, %v553
        %v555 = vsub.s32 4294967266, %v550
        %v556 = vadd.s32 %v555, 127
        %v557 = vshll.u32 %v556, 23
        %v558 = vor.u32 4788187, %v557
        %v559 = vand.u32 2147483647, %v558
        %v561 = vcvt.s32.f32 %v554
        %v562 = vmul.f32 %v561, %v559
        %v563 = vxor.u32 %v562, 2147483648
        %v564 = vsel %vm481, %v563, %v562
        %v565 = vsub.s32 4, %v541
        %v566 = vsel %vm481, %v565, %v541
        %v567 = vsel %vm480, %v360, %v564
        %v568 = vsel %vm480, 0, %v566
        %v569 = vcosq.f32.pop %v567
        %v570 = vsinq.f32.pop %v567
        %vm571 = vweird.f32 %v360
        %v572 = vadd.s32 %v568, 3
        %v573 = vand.u32 %v572, 3
        %vm574 = vcmp.lt.s32.totalorder %v573, 2
        %vm575 = vcmp.eq.s32.totalorder %v573, 0
        %v576 = vxor.u32 %v570, 2147483648
        %v577 = vsel %vm575, %v569, %v576
        %vm578 = vcmp.eq.s32.totalorder %v573, 2
        %v579 = vxor.u32 %v569, 2147483648
        %v580 = vsel %vm578, %v579, %v570
        %v581 = vsel %vm574, %v577, %v580
        %v582 = vsel %vm571, nan, %v581
        %v583 = vand.u32 2147483647, %v361
        %vm584 = vcmp.le.f32.partialorder %v583, 0.7853982
        %vm585 = vcmp.lt.s32.totalorder %v361, 0
        %v586 = vand.u32 %v361, 2139095040
        %v587 = vshrl.u32 %v586, 23
        %v588 = vsub.s32 %v587, 127
        %v589 = vand.u32 2147483647, %v361
        %v590 = vand.u32 %v589, 8388607
        %v591 = vor.u32 %v590, 8388608
        %v592 = vsub.s32 0, %v591
        %v593 = vadd.s32 %v588, 1
        %vm594 = vcmp.gt.s32.totalorder %v593, 0
        %v595 = vsel %vm594, %v593, 0
        %v596 = vshrl.u32 %v595, 5
        %v597 = vand.u32 %v595, 31
        %v598 = vsub.s32 32, %v597
        %v599 = vshrl.u32 683565275, %v598
        %v600 = vshll.u32 683565275, %v597
        %v601 = vshrl.u32 2475754826, %v598
        %v602 = vor.u32 %v600, %v601
        %v603 = vshll.u32 2475754826, %v597
        %v604 = vshrl.u32 2131351028, %v598
        %v605 = vor.u32 %v603, %v604
        %v606 = vshll.u32 2131351028, %v597
        %v607 = vshrl.u32 2102212464, %v598
        %v608 = vor.u32 %v606, %v607
        %v609 = vshll.u32 2102212464, %v597
        %v610 = vshrl.u32 920167782, %v598
        %v611 = vor.u32 %v609, %v610
        %v612 = vshll.u32 920167782, %v597
        %v613 = vshrl.u32 1326507024, %v598
        %v614 = vor.u32 %v612, %v613
        %vm615 = vcmp.lt.s32.totalorder %v596, 1
        %vm616 = vcmp.lt.s32.totalorder %v596, 2
        %vm617 = vcmp.lt.s32.totalorder %v596, 3
        %vm618 = vcmp.lt.s32.totalorder %v596, 4
        %v619 = vsel %vm615, %v599, %v602
        %v620 = vsel %vm618, %v608, 2102212464
        %v621 = vsel %vm617, %v605, %v620
        %v622 = vsel %vm616, %v619, %v621
        %v623 = vsel %vm615, %v602, %v605
        %v624 = vsel %vm618, %v611, 920167782
        %v625 = vsel %vm617, %v608, %v624
        %v626 = vsel %vm616, %v623, %v625
        %v627 = vsel %vm615, %v605, %v608
        %v628 = vsel %vm618, %v614, 1326507024
        %v629 = vsel %vm617, %v611, %v628
        %v630 = vsel %vm616, %v627, %v629
        %v631 = vshll.u32 %v591, 8
        %v632 = vmul.u32.u64.compose %v631, %v630
        %v633 = vextract.low.u32 %v632
        %v634 = vextract.high.u32 %v632
        %v635 = vmul.u32.u64.compose %v631, %v626
        %v636 = vextract.low.u32 %v635
        %v637 = vextract.high.u32 %v635
        %v638 = vmul.u32 %v631, %v622
        %v639 = vadd.s32 %v634, %v636
        %vm640 = vc.u32 %v634, %v636
        %v641 = vadd.s32 %v637, 1
        %v642 = vsel %vm640, %v641, %v637
        %v643 = vadd.s32 %v638, %v642
        %v644 = vadd.s32 %v643, 536870912
        %v645 = vshrl.u32 %v644, 30
        %v646 = vshll.u32 %v645, 30
        %v647 = vsub.s32 %v643, %v646
        %vm648 = vcmp.lt.s32.totalorder %v647, 0
        %v649 = vsub.s32 0, %v647
        %v650 = vsel %vm648, %v649, %v647
        %v651 = vclz %v650
        %v652 = vsub.s32 %v651, 2
        %vm653 = vcmp.gt.s32.totalorder 0, %v652
        %v654 = vsel %vm653, 0, %v652
        %v655 = vsub.s32 32, %v654
        %v656 = vshll.u32 %v647, %v654
        %v657 = vshrl.u32 %v639, %v655
        %v658 = vor.u32 %v656, %v657
        %v659 = vsub.s32 4294967266, %v654
        %v660 = vadd.s32 %v659, 127
        %v661 = vshll.u32 %v660, 23
        %v662 = vor.u32 4788187, %v661
        %v663 = vand.u32 2147483647, %v662
        %v665 = vcvt.s32.f32 %v658
        %v666 = vmul.f32 %v665, %v663
        %v667 = vxor.u32 %v666, 2147483648
        %v668 = vsel %vm585, %v667, %v666
        %v669 = vsub.s32 4, %v645
        %v670 = vsel %vm585, %v669, %v645
        %v671 = vsel %vm584, %v361, %v668
        %v672 = vsel %vm584, 0, %v670
        %v673 = vcosq.f32.pop %v671
        %v674 = vsinq.f32.pop %v671
        %vm675 = vweird.f32 %v361
        %v676 = vadd.s32 %v672, 3
        %v677 = vand.u32 %v676, 3
        %vm678 = vcmp.lt.s32.totalorder %v677, 2
        %vm679 = vcmp.eq.s32.totalorder %v677, 0
        %v680 = vxor.u32 %v674, 2147483648
        %v681 = vsel %vm679, %v673, %v680
        %vm682 = vcmp.eq.s32.totalorder %v677, 2
        %v683 = vxor.u32 %v673, 2147483648
        %v684 = vsel %vm682, %v683, %v674
        %v685 = vsel %vm678, %v681, %v684
        %v686 = vsel %vm675, nan, %v685
        %v687 = vand.u32 2147483647, %v362
        %vm688 = vcmp.le.f32.partialorder %v687, 0.7853982
        %vm689 = vcmp.lt.s32.totalorder %v362, 0
        %v690 = vand.u32 %v362, 2139095040
        %v691 = vshrl.u32 %v690, 23
        %v692 = vsub.s32 %v691, 127
        %v693 = vand.u32 2147483647, %v362
        %v694 = vand.u32 %v693, 8388607
        %v695 = vor.u32 %v694, 8388608
        %v696 = vsub.s32 0, %v695
        %v697 = vadd.s32 %v692, 1
        %vm698 = vcmp.gt.s32.totalorder %v697, 0
        %v699 = vsel %vm698, %v697, 0
        %v700 = vshrl.u32 %v699, 5
        %v701 = vand.u32 %v699, 31
        %v702 = vsub.s32 32, %v701
        %v703 = vshrl.u32 683565275, %v702
        %v704 = vshll.u32 683565275, %v701
        %v705 = vshrl.u32 2475754826, %v702
        %v706 = vor.u32 %v704, %v705
        %v707 = vshll.u32 2475754826, %v701
        %v708 = vshrl.u32 2131351028, %v702
        %v709 = vor.u32 %v707, %v708
        %v710 = vshll.u32 2131351028, %v701
        %v711 = vshrl.u32 2102212464, %v702
        %v712 = vor.u32 %v710, %v711
        %v713 = vshll.u32 2102212464, %v701
        %v714 = vshrl.u32 920167782, %v702
        %v715 = vor.u32 %v713, %v714
        %v716 = vshll.u32 920167782, %v701
        %v717 = vshrl.u32 1326507024, %v702
        %v718 = vor.u32 %v716, %v717
        %vm719 = vcmp.lt.s32.totalorder %v700, 1
        %vm720 = vcmp.lt.s32.totalorder %v700, 2
        %vm721 = vcmp.lt.s32.totalorder %v700, 3
        %vm722 = vcmp.lt.s32.totalorder %v700, 4
        %v723 = vsel %vm719, %v703, %v706
        %v724 = vsel %vm722, %v712, 2102212464
        %v725 = vsel %vm721, %v709, %v724
        %v726 = vsel %vm720, %v723, %v725
        %v727 = vsel %vm719, %v706, %v709
        %v728 = vsel %vm722, %v715, 920167782
        %v729 = vsel %vm721, %v712, %v728
        %v730 = vsel %vm720, %v727, %v729
        %v731 = vsel %vm719, %v709, %v712
        %v732 = vsel %vm722, %v718, 1326507024
        %v733 = vsel %vm721, %v715, %v732
        %v734 = vsel %vm720, %v731, %v733
        %v735 = vshll.u32 %v695, 8
        %v736 = vmul.u32.u64.compose %v735, %v734
        %v737 = vextract.low.u32 %v736
        %v738 = vextract.high.u32 %v736
        %v739 = vmul.u32.u64.compose %v735, %v730
        %v740 = vextract.low.u32 %v739
        %v741 = vextract.high.u32 %v739
        %v742 = vmul.u32 %v735, %v726
        %v743 = vadd.s32 %v738, %v740
        %vm744 = vc.u32 %v738, %v740
        %v745 = vadd.s32 %v741, 1
        %v746 = vsel %vm744, %v745, %v741
        %v747 = vadd.s32 %v742, %v746
        %v748 = vadd.s32 %v747, 536870912
        %v749 = vshrl.u32 %v748, 30
        %v750 = vshll.u32 %v749, 30
        %v751 = vsub.s32 %v747, %v750
        %vm752 = vcmp.lt.s32.totalorder %v751, 0
        %v753 = vsub.s32 0, %v751
        %v754 = vsel %vm752, %v753, %v751
        %v755 = vclz %v754
        %v756 = vsub.s32 %v755, 2
        %vm757 = vcmp.gt.s32.totalorder 0, %v756
        %v758 = vsel %vm757, 0, %v756
        %v759 = vsub.s32 32, %v758
        %v760 = vshll.u32 %v751, %v758
        %v761 = vshrl.u32 %v743, %v759
        %v762 = vor.u32 %v760, %v761
        %v763 = vsub.s32 4294967266, %v758
        %v764 = vadd.s32 %v763, 127
        %v765 = vshll.u32 %v764, 23
        %v766 = vor.u32 4788187, %v765
        %v767 = vand.u32 2147483647, %v766
        %v769 = vcvt.s32.f32 %v762
        %v770 = vmul.f32 %v769, %v767
        %v771 = vxor.u32 %v770, 2147483648
        %v772 = vsel %vm689, %v771, %v770
        %v773 = vsub.s32 4, %v749
        %v774 = vsel %vm689, %v773, %v749
        %v775 = vsel %vm688, %v362, %v772
        %v776 = vsel %vm688, 0, %v774
        %v777 = vcosq.f32.pop %v775
        %v778 = vsinq.f32.pop %v775
        %vm779 = vweird.f32 %v362
        %v780 = vadd.s32 %v776, 3
        %v781 = vand.u32 %v780, 3
        %vm782 = vcmp.lt.s32.totalorder %v781, 2
        %vm783 = vcmp.eq.s32.totalorder %v781, 0
        %v784 = vxor.u32 %v778, 2147483648
        %v785 = vsel %vm783, %v777, %v784
        %vm786 = vcmp.eq.s32.totalorder %v781, 2
        %v787 = vxor.u32 %v777, 2147483648
        %v788 = vsel %vm786, %v787, %v778
        %v789 = vsel %vm782, %v785, %v788
        %v790 = vsel %vm779, nan, %v789
        %v791 = vand.u32 2147483647, %v363
        %vm792 = vcmp.le.f32.partialorder %v791, 0.7853982
        %vm793 = vcmp.lt.s32.totalorder %v363, 0
        %v794 = vand.u32 %v363, 2139095040
        %v795 = vshrl.u32 %v794, 23
        %v796 = vsub.s32 %v795, 127
        %v797 = vand.u32 2147483647, %v363
        %v798 = vand.u32 %v797, 8388607
        %v799 = vor.u32 %v798, 8388608
        %v800 = vsub.s32 0, %v799
        %v801 = vadd.s32 %v796, 1
        %vm802 = vcmp.gt.s32.totalorder %v801, 0
        %v803 = vsel %vm802, %v801, 0
        %v804 = vshrl.u32 %v803, 5
        %v805 = vand.u32 %v803, 31
        %v806 = vsub.s32 32, %v805
        %v807 = vshrl.u32 683565275, %v806
        %v808 = vshll.u32 683565275, %v805
        %v809 = vshrl.u32 2475754826, %v806
        %v810 = vor.u32 %v808, %v809
        %v811 = vshll.u32 2475754826, %v805
        %v812 = vshrl.u32 2131351028, %v806
        %v813 = vor.u32 %v811, %v812
        %v814 = vshll.u32 2131351028, %v805
        %v815 = vshrl.u32 2102212464, %v806
        %v816 = vor.u32 %v814, %v815
        %v817 = vshll.u32 2102212464, %v805
        %v818 = vshrl.u32 920167782, %v806
        %v819 = vor.u32 %v817, %v818
        %v820 = vshll.u32 920167782, %v805
        %v821 = vshrl.u32 1326507024, %v806
        %v822 = vor.u32 %v820, %v821
        %vm823 = vcmp.lt.s32.totalorder %v804, 1
        %vm824 = vcmp.lt.s32.totalorder %v804, 2
        %vm825 = vcmp.lt.s32.totalorder %v804, 3
        %vm826 = vcmp.lt.s32.totalorder %v804, 4
        %v827 = vsel %vm823, %v807, %v810
        %v828 = vsel %vm826, %v816, 2102212464
        %v829 = vsel %vm825, %v813, %v828
        %v830 = vsel %vm824, %v827, %v829
        %v831 = vsel %vm823, %v810, %v813
        %v832 = vsel %vm826, %v819, 920167782
        %v833 = vsel %vm825, %v816, %v832
        %v834 = vsel %vm824, %v831, %v833
        %v835 = vsel %vm823, %v813, %v816
        %v836 = vsel %vm826, %v822, 1326507024
        %v837 = vsel %vm825, %v819, %v836
        %v838 = vsel %vm824, %v835, %v837
        %v839 = vshll.u32 %v799, 8
        %v840 = vmul.u32.u64.compose %v839, %v838
        %v841 = vextract.low.u32 %v840
        %v842 = vextract.high.u32 %v840
        %v843 = vmul.u32.u64.compose %v839, %v834
        %v844 = vextract.low.u32 %v843
        %v845 = vextract.high.u32 %v843
        %v846 = vmul.u32 %v839, %v830
        %v847 = vadd.s32 %v842, %v844
        %vm848 = vc.u32 %v842, %v844
        %v849 = vadd.s32 %v845, 1
        %v850 = vsel %vm848, %v849, %v845
        %v851 = vadd.s32 %v846, %v850
        %v852 = vadd.s32 %v851, 536870912
        %v853 = vshrl.u32 %v852, 30
        %v854 = vshll.u32 %v853, 30
        %v855 = vsub.s32 %v851, %v854
        %vm856 = vcmp.lt.s32.totalorder %v855, 0
        %v857 = vsub.s32 0, %v855
        %v858 = vsel %vm856, %v857, %v855
        %v859 = vclz %v858
        %v860 = vsub.s32 %v859, 2
        %vm861 = vcmp.gt.s32.totalorder 0, %v860
        %v862 = vsel %vm861, 0, %v860
        %v863 = vsub.s32 32, %v862
        %v864 = vshll.u32 %v855, %v862
        %v865 = vshrl.u32 %v847, %v863
        %v866 = vor.u32 %v864, %v865
        %v867 = vsub.s32 4294967266, %v862
        %v868 = vadd.s32 %v867, 127
        %v869 = vshll.u32 %v868, 23
        %v870 = vor.u32 4788187, %v869
        %v871 = vand.u32 2147483647, %v870
        %v873 = vcvt.s32.f32 %v866
        %v874 = vmul.f32 %v873, %v871
        %v875 = vxor.u32 %v874, 2147483648
        %v876 = vsel %vm793, %v875, %v874
        %v877 = vsub.s32 4, %v853
        %v878 = vsel %vm793, %v877, %v853
        %v879 = vsel %vm792, %v363, %v876
        %v880 = vsel %vm792, 0, %v878
        %v881 = vcosq.f32.pop %v879
        %v882 = vsinq.f32.pop %v879
        %vm883 = vweird.f32 %v363
        %v884 = vadd.s32 %v880, 3
        %v885 = vand.u32 %v884, 3
        %vm886 = vcmp.lt.s32.totalorder %v885, 2
        %vm887 = vcmp.eq.s32.totalorder %v885, 0
        %v888 = vxor.u32 %v882, 2147483648
        %v889 = vsel %vm887, %v881, %v888
        %vm890 = vcmp.eq.s32.totalorder %v885, 2
        %v891 = vxor.u32 %v881, 2147483648
        %v892 = vsel %vm890, %v891, %v882
        %v893 = vsel %vm886, %v889, %v892
        %v894 = vsel %vm883, nan, %v893
        %v895 = vand.u32 2147483647, %v364
        %vm896 = vcmp.le.f32.partialorder %v895, 0.7853982
        %vm897 = vcmp.lt.s32.totalorder %v364, 0
        %v898 = vand.u32 %v364, 2139095040
        %v899 = vshrl.u32 %v898, 23
        %v900 = vsub.s32 %v899, 127
        %v901 = vand.u32 2147483647, %v364
        %v902 = vand.u32 %v901, 8388607
        %v903 = vor.u32 %v902, 8388608
        %v904 = vsub.s32 0, %v903
        %v905 = vadd.s32 %v900, 1
        %vm906 = vcmp.gt.s32.totalorder %v905, 0
        %v907 = vsel %vm906, %v905, 0
        %v908 = vshrl.u32 %v907, 5
        %v909 = vand.u32 %v907, 31
        %v910 = vsub.s32 32, %v909
        %v911 = vshrl.u32 683565275, %v910
        %v912 = vshll.u32 683565275, %v909
        %v913 = vshrl.u32 2475754826, %v910
        %v914 = vor.u32 %v912, %v913
        %v915 = vshll.u32 2475754826, %v909
        %v916 = vshrl.u32 2131351028, %v910
        %v917 = vor.u32 %v915, %v916
        %v918 = vshll.u32 2131351028, %v909
        %v919 = vshrl.u32 2102212464, %v910
        %v920 = vor.u32 %v918, %v919
        %v921 = vshll.u32 2102212464, %v909
        %v922 = vshrl.u32 920167782, %v910
        %v923 = vor.u32 %v921, %v922
        %v924 = vshll.u32 920167782, %v909
        %v925 = vshrl.u32 1326507024, %v910
        %v926 = vor.u32 %v924, %v925
        %vm927 = vcmp.lt.s32.totalorder %v908, 1
        %vm928 = vcmp.lt.s32.totalorder %v908, 2
        %vm929 = vcmp.lt.s32.totalorder %v908, 3
        %vm930 = vcmp.lt.s32.totalorder %v908, 4
        %v931 = vsel %vm927, %v911, %v914
        %v932 = vsel %vm930, %v920, 2102212464
        %v933 = vsel %vm929, %v917, %v932
        %v934 = vsel %vm928, %v931, %v933
        %v935 = vsel %vm927, %v914, %v917
        %v936 = vsel %vm930, %v923, 920167782
        %v937 = vsel %vm929, %v920, %v936
        %v938 = vsel %vm928, %v935, %v937
        %v939 = vsel %vm927, %v917, %v920
        %v940 = vsel %vm930, %v926, 1326507024
        %v941 = vsel %vm929, %v923, %v940
        %v942 = vsel %vm928, %v939, %v941
        %v943 = vshll.u32 %v903, 8
        %v944 = vmul.u32.u64.compose %v943, %v942
        %v945 = vextract.low.u32 %v944
        %v946 = vextract.high.u32 %v944
        %v947 = vmul.u32.u64.compose %v943, %v938
        %v948 = vextract.low.u32 %v947
        %v949 = vextract.high.u32 %v947
        %v950 = vmul.u32 %v943, %v934
        %v951 = vadd.s32 %v946, %v948
        %vm952 = vc.u32 %v946, %v948
        %v953 = vadd.s32 %v949, 1
        %v954 = vsel %vm952, %v953, %v949
        %v955 = vadd.s32 %v950, %v954
        %v956 = vadd.s32 %v955, 536870912
        %v957 = vshrl.u32 %v956, 30
        %v958 = vshll.u32 %v957, 30
        %v959 = vsub.s32 %v955, %v958
        %vm960 = vcmp.lt.s32.totalorder %v959, 0
        %v961 = vsub.s32 0, %v959
        %v962 = vsel %vm960, %v961, %v959
        %v963 = vclz %v962
        %v964 = vsub.s32 %v963, 2
        %vm965 = vcmp.gt.s32.totalorder 0, %v964
        %v966 = vsel %vm965, 0, %v964
        %v967 = vsub.s32 32, %v966
        %v968 = vshll.u32 %v959, %v966
        %v969 = vshrl.u32 %v951, %v967
        %v970 = vor.u32 %v968, %v969
        %v971 = vsub.s32 4294967266, %v966
        %v972 = vadd.s32 %v971, 127
        %v973 = vshll.u32 %v972, 23
        %v974 = vor.u32 4788187, %v973
        %v975 = vand.u32 2147483647, %v974
        %v977 = vcvt.s32.f32 %v970
        %v978 = vmul.f32 %v977, %v975
        %v979 = vxor.u32 %v978, 2147483648
        %v980 = vsel %vm897, %v979, %v978
        %v981 = vsub.s32 4, %v957
        %v982 = vsel %vm897, %v981, %v957
        %v983 = vsel %vm896, %v364, %v980
        %v984 = vsel %vm896, 0, %v982
        %v985 = vcosq.f32.pop %v983
        %v986 = vsinq.f32.pop %v983
        %vm987 = vweird.f32 %v364
        %v988 = vadd.s32 %v984, 3
        %v989 = vand.u32 %v988, 3
        %vm990 = vcmp.lt.s32.totalorder %v989, 2
        %vm991 = vcmp.eq.s32.totalorder %v989, 0
        %v992 = vxor.u32 %v986, 2147483648
        %v993 = vsel %vm991, %v985, %v992
        %vm994 = vcmp.eq.s32.totalorder %v989, 2
        %v995 = vxor.u32 %v985, 2147483648
        %v996 = vsel %vm994, %v995, %v986
        %v997 = vsel %vm990, %v993, %v996
        %v998 = vsel %vm987, nan, %v997
        %v999 = vand.u32 2147483647, %v365
        %vm1000 = vcmp.le.f32.partialorder %v999, 0.7853982
        %vm1001 = vcmp.lt.s32.totalorder %v365, 0
        %v1002 = vand.u32 %v365, 2139095040
        %v1003 = vshrl.u32 %v1002, 23
        %v1004 = vsub.s32 %v1003, 127
        %v1005 = vand.u32 2147483647, %v365
        %v1006 = vand.u32 %v1005, 8388607
        %v1007 = vor.u32 %v1006, 8388608
        %v1008 = vsub.s32 0, %v1007
        %v1009 = vadd.s32 %v1004, 1
        %vm1010 = vcmp.gt.s32.totalorder %v1009, 0
        %v1011 = vsel %vm1010, %v1009, 0
        %v1012 = vshrl.u32 %v1011, 5
        %v1013 = vand.u32 %v1011, 31
        %v1014 = vsub.s32 32, %v1013
        %v1015 = vshrl.u32 683565275, %v1014
        %v1016 = vshll.u32 683565275, %v1013
        %v1017 = vshrl.u32 2475754826, %v1014
        %v1018 = vor.u32 %v1016, %v1017
        %v1019 = vshll.u32 2475754826, %v1013
        %v1020 = vshrl.u32 2131351028, %v1014
        %v1021 = vor.u32 %v1019, %v1020
        %v1022 = vshll.u32 2131351028, %v1013
        %v1023 = vshrl.u32 2102212464, %v1014
        %v1024 = vor.u32 %v1022, %v1023
        %v1025 = vshll.u32 2102212464, %v1013
        %v1026 = vshrl.u32 920167782, %v1014
        %v1027 = vor.u32 %v1025, %v1026
        %v1028 = vshll.u32 920167782, %v1013
        %v1029 = vshrl.u32 1326507024, %v1014
        %v1030 = vor.u32 %v1028, %v1029
        %vm1031 = vcmp.lt.s32.totalorder %v1012, 1
        %vm1032 = vcmp.lt.s32.totalorder %v1012, 2
        %vm1033 = vcmp.lt.s32.totalorder %v1012, 3
        %vm1034 = vcmp.lt.s32.totalorder %v1012, 4
        %v1035 = vsel %vm1031, %v1015, %v1018
        %v1036 = vsel %vm1034, %v1024, 2102212464
        %v1037 = vsel %vm1033, %v1021, %v1036
        %v1038 = vsel %vm1032, %v1035, %v1037
        %v1039 = vsel %vm1031, %v1018, %v1021
        %v1040 = vsel %vm1034, %v1027, 920167782
        %v1041 = vsel %vm1033, %v1024, %v1040
        %v1042 = vsel %vm1032, %v1039, %v1041
        %v1043 = vsel %vm1031, %v1021, %v1024
        %v1044 = vsel %vm1034, %v1030, 1326507024
        %v1045 = vsel %vm1033, %v1027, %v1044
        %v1046 = vsel %vm1032, %v1043, %v1045
        %v1047 = vshll.u32 %v1007, 8
        %v1048 = vmul.u32.u64.compose %v1047, %v1046
        %v1049 = vextract.low.u32 %v1048
        %v1050 = vextract.high.u32 %v1048
        %v1051 = vmul.u32.u64.compose %v1047, %v1042
        %v1052 = vextract.low.u32 %v1051
        %v1053 = vextract.high.u32 %v1051
        %v1054 = vmul.u32 %v1047, %v1038
        %v1055 = vadd.s32 %v1050, %v1052
        %vm1056 = vc.u32 %v1050, %v1052
        %v1057 = vadd.s32 %v1053, 1
        %v1058 = vsel %vm1056, %v1057, %v1053
        %v1059 = vadd.s32 %v1054, %v1058
        %v1060 = vadd.s32 %v1059, 536870912
        %v1061 = vshrl.u32 %v1060, 30
        %v1062 = vshll.u32 %v1061, 30
        %v1063 = vsub.s32 %v1059, %v1062
        %vm1064 = vcmp.lt.s32.totalorder %v1063, 0
        %v1065 = vsub.s32 0, %v1063
        %v1066 = vsel %vm1064, %v1065, %v1063
        %v1067 = vclz %v1066
        %v1068 = vsub.s32 %v1067, 2
        %vm1069 = vcmp.gt.s32.totalorder 0, %v1068
        %v1070 = vsel %vm1069, 0, %v1068
        %v1071 = vsub.s32 32, %v1070
        %v1072 = vshll.u32 %v1063, %v1070
        %v1073 = vshrl.u32 %v1055, %v1071
        %v1074 = vor.u32 %v1072, %v1073
        %v1075 = vsub.s32 4294967266, %v1070
        %v1076 = vadd.s32 %v1075, 127
        %v1077 = vshll.u32 %v1076, 23
        %v1078 = vor.u32 4788187, %v1077
        %v1079 = vand.u32 2147483647, %v1078
        %v1081 = vcvt.s32.f32 %v1074
        %v1082 = vmul.f32 %v1081, %v1079
        %v1083 = vxor.u32 %v1082, 2147483648
        %v1084 = vsel %vm1001, %v1083, %v1082
        %v1085 = vsub.s32 4, %v1061
        %v1086 = vsel %vm1001, %v1085, %v1061
        %v1087 = vsel %vm1000, %v365, %v1084
        %v1088 = vsel %vm1000, 0, %v1086
        %v1089 = vcosq.f32.pop %v1087
        %v1090 = vsinq.f32.pop %v1087
        %vm1091 = vweird.f32 %v365
        %v1092 = vadd.s32 %v1088, 3
        %v1093 = vand.u32 %v1092, 3
        %vm1094 = vcmp.lt.s32.totalorder %v1093, 2
        %vm1095 = vcmp.eq.s32.totalorder %v1093, 0
        %v1096 = vxor.u32 %v1090, 2147483648
        %v1097 = vsel %vm1095, %v1089, %v1096
        %vm1098 = vcmp.eq.s32.totalorder %v1093, 2
        %v1099 = vxor.u32 %v1089, 2147483648
        %v1100 = vsel %vm1098, %v1099, %v1090
        %v1101 = vsel %vm1094, %v1097, %v1100
        %v1102 = vsel %vm1091, nan, %v1101
        %v1103 = vand.u32 2147483647, %v366
        %vm1104 = vcmp.le.f32.partialorder %v1103, 0.7853982
        %vm1105 = vcmp.lt.s32.totalorder %v366, 0
        %v1106 = vand.u32 %v366, 2139095040
        %v1107 = vshrl.u32 %v1106, 23
        %v1108 = vsub.s32 %v1107, 127
        %v1109 = vand.u32 2147483647, %v366
        %v1110 = vand.u32 %v1109, 8388607
        %v1111 = vor.u32 %v1110, 8388608
        %v1112 = vsub.s32 0, %v1111
        %v1113 = vadd.s32 %v1108, 1
        %vm1114 = vcmp.gt.s32.totalorder %v1113, 0
        %v1115 = vsel %vm1114, %v1113, 0
        %v1116 = vshrl.u32 %v1115, 5
        %v1117 = vand.u32 %v1115, 31
        %v1118 = vsub.s32 32, %v1117
        %v1119 = vshrl.u32 683565275, %v1118
        %v1120 = vshll.u32 683565275, %v1117
        %v1121 = vshrl.u32 2475754826, %v1118
        %v1122 = vor.u32 %v1120, %v1121
        %v1123 = vshll.u32 2475754826, %v1117
        %v1124 = vshrl.u32 2131351028, %v1118
        %v1125 = vor.u32 %v1123, %v1124
        %v1126 = vshll.u32 2131351028, %v1117
        %v1127 = vshrl.u32 2102212464, %v1118
        %v1128 = vor.u32 %v1126, %v1127
        %v1129 = vshll.u32 2102212464, %v1117
        %v1130 = vshrl.u32 920167782, %v1118
        %v1131 = vor.u32 %v1129, %v1130
        %v1132 = vshll.u32 920167782, %v1117
        %v1133 = vshrl.u32 1326507024, %v1118
        %v1134 = vor.u32 %v1132, %v1133
        %vm1135 = vcmp.lt.s32.totalorder %v1116, 1
        %vm1136 = vcmp.lt.s32.totalorder %v1116, 2
        %vm1137 = vcmp.lt.s32.totalorder %v1116, 3
        %vm1138 = vcmp.lt.s32.totalorder %v1116, 4
        %v1139 = vsel %vm1135, %v1119, %v1122
        %v1140 = vsel %vm1138, %v1128, 2102212464
        %v1141 = vsel %vm1137, %v1125, %v1140
        %v1142 = vsel %vm1136, %v1139, %v1141
        %v1143 = vsel %vm1135, %v1122, %v1125
        %v1144 = vsel %vm1138, %v1131, 920167782
        %v1145 = vsel %vm1137, %v1128, %v1144
        %v1146 = vsel %vm1136, %v1143, %v1145
        %v1147 = vsel %vm1135, %v1125, %v1128
        %v1148 = vsel %vm1138, %v1134, 1326507024
        %v1149 = vsel %vm1137, %v1131, %v1148
        %v1150 = vsel %vm1136, %v1147, %v1149
        %v1151 = vshll.u32 %v1111, 8
        %v1152 = vmul.u32.u64.compose %v1151, %v1150
        %v1153 = vextract.low.u32 %v1152
        %v1154 = vextract.high.u32 %v1152
        %v1155 = vmul.u32.u64.compose %v1151, %v1146
        %v1156 = vextract.low.u32 %v1155
        %v1157 = vextract.high.u32 %v1155
        %v1158 = vmul.u32 %v1151, %v1142
        %v1159 = vadd.s32 %v1154, %v1156
        %vm1160 = vc.u32 %v1154, %v1156
        %v1161 = vadd.s32 %v1157, 1
        %v1162 = vsel %vm1160, %v1161, %v1157
        %v1163 = vadd.s32 %v1158, %v1162
        %v1164 = vadd.s32 %v1163, 536870912
        %v1165 = vshrl.u32 %v1164, 30
        %v1166 = vshll.u32 %v1165, 30
        %v1167 = vsub.s32 %v1163, %v1166
        %vm1168 = vcmp.lt.s32.totalorder %v1167, 0
        %v1169 = vsub.s32 0, %v1167
        %v1170 = vsel %vm1168, %v1169, %v1167
        %v1171 = vclz %v1170
        %v1172 = vsub.s32 %v1171, 2
        %vm1173 = vcmp.gt.s32.totalorder 0, %v1172
        %v1174 = vsel %vm1173, 0, %v1172
        %v1175 = vsub.s32 32, %v1174
        %v1176 = vshll.u32 %v1167, %v1174
        %v1177 = vshrl.u32 %v1159, %v1175
        %v1178 = vor.u32 %v1176, %v1177
        %v1179 = vsub.s32 4294967266, %v1174
        %v1180 = vadd.s32 %v1179, 127
        %v1181 = vshll.u32 %v1180, 23
        %v1182 = vor.u32 4788187, %v1181
        %v1183 = vand.u32 2147483647, %v1182
        %v1185 = vcvt.s32.f32 %v1178
        %v1186 = vmul.f32 %v1185, %v1183
        %v1187 = vxor.u32 %v1186, 2147483648
        %v1188 = vsel %vm1105, %v1187, %v1186
        %v1189 = vsub.s32 4, %v1165
        %v1190 = vsel %vm1105, %v1189, %v1165
        %v1191 = vsel %vm1104, %v366, %v1188
        %v1192 = vsel %vm1104, 0, %v1190
        %v1193 = vcosq.f32.pop %v1191
        %v1194 = vsinq.f32.pop %v1191
        %vm1195 = vweird.f32 %v366
        %v1196 = vadd.s32 %v1192, 3
        %v1197 = vand.u32 %v1196, 3
        %vm1198 = vcmp.lt.s32.totalorder %v1197, 2
        %vm1199 = vcmp.eq.s32.totalorder %v1197, 0
        %v1200 = vxor.u32 %v1194, 2147483648
        %v1201 = vsel %vm1199, %v1193, %v1200
        %vm1202 = vcmp.eq.s32.totalorder %v1197, 2
        %v1203 = vxor.u32 %v1193, 2147483648
        %v1204 = vsel %vm1202, %v1203, %v1194
        %v1205 = vsel %vm1198, %v1201, %v1204
        %v1206 = vsel %vm1195, nan, %v1205
        %v1207 = vand.u32 2147483647, %v359
        %vm1208 = vcmp.le.f32.partialorder %v1207, 0.7853982
        %vm1209 = vcmp.lt.s32.totalorder %v359, 0
        %v1210 = vand.u32 %v359, 2139095040
        %v1211 = vshrl.u32 %v1210, 23
        %v1212 = vsub.s32 %v1211, 127
        %v1213 = vand.u32 2147483647, %v359
        %v1214 = vand.u32 %v1213, 8388607
        %v1215 = vor.u32 %v1214, 8388608
        %v1216 = vsub.s32 0, %v1215
        %v1217 = vadd.s32 %v1212, 1
        %vm1218 = vcmp.gt.s32.totalorder %v1217, 0
        %v1219 = vsel %vm1218, %v1217, 0
        %v1220 = vshrl.u32 %v1219, 5
        %v1221 = vand.u32 %v1219, 31
        %v1222 = vsub.s32 32, %v1221
        %v1223 = vshrl.u32 683565275, %v1222
        %v1224 = vshll.u32 683565275, %v1221
        %v1225 = vshrl.u32 2475754826, %v1222
        %v1226 = vor.u32 %v1224, %v1225
        %v1227 = vshll.u32 2475754826, %v1221
        %v1228 = vshrl.u32 2131351028, %v1222
        %v1229 = vor.u32 %v1227, %v1228
        %v1230 = vshll.u32 2131351028, %v1221
        %v1231 = vshrl.u32 2102212464, %v1222
        %v1232 = vor.u32 %v1230, %v1231
        %v1233 = vshll.u32 2102212464, %v1221
        %v1234 = vshrl.u32 920167782, %v1222
        %v1235 = vor.u32 %v1233, %v1234
        %v1236 = vshll.u32 920167782, %v1221
        %v1237 = vshrl.u32 1326507024, %v1222
        %v1238 = vor.u32 %v1236, %v1237
        %vm1239 = vcmp.lt.s32.totalorder %v1220, 1
        %vm1240 = vcmp.lt.s32.totalorder %v1220, 2
        %vm1241 = vcmp.lt.s32.totalorder %v1220, 3
        %vm1242 = vcmp.lt.s32.totalorder %v1220, 4
        %v1243 = vsel %vm1239, %v1223, %v1226
        %v1244 = vsel %vm1242, %v1232, 2102212464
        %v1245 = vsel %vm1241, %v1229, %v1244
        %v1246 = vsel %vm1240, %v1243, %v1245
        %v1247 = vsel %vm1239, %v1226, %v1229
        %v1248 = vsel %vm1242, %v1235, 920167782
        %v1249 = vsel %vm1241, %v1232, %v1248
        %v1250 = vsel %vm1240, %v1247, %v1249
        %v1251 = vsel %vm1239, %v1229, %v1232
        %v1252 = vsel %vm1242, %v1238, 1326507024
        %v1253 = vsel %vm1241, %v1235, %v1252
        %v1254 = vsel %vm1240, %v1251, %v1253
        %v1255 = vshll.u32 %v1215, 8
        %v1256 = vmul.u32.u64.compose %v1255, %v1254
        %v1257 = vextract.low.u32 %v1256
        %v1258 = vextract.high.u32 %v1256
        %v1259 = vmul.u32.u64.compose %v1255, %v1250
        %v1260 = vextract.low.u32 %v1259
        %v1261 = vextract.high.u32 %v1259
        %v1262 = vmul.u32 %v1255, %v1246
        %v1263 = vadd.s32 %v1258, %v1260
        %vm1264 = vc.u32 %v1258, %v1260
        %v1265 = vadd.s32 %v1261, 1
        %v1266 = vsel %vm1264, %v1265, %v1261
        %v1267 = vadd.s32 %v1262, %v1266
        %v1268 = vadd.s32 %v1267, 536870912
        %v1269 = vshrl.u32 %v1268, 30
        %v1270 = vshll.u32 %v1269, 30
        %v1271 = vsub.s32 %v1267, %v1270
        %vm1272 = vcmp.lt.s32.totalorder %v1271, 0
        %v1273 = vsub.s32 0, %v1271
        %v1274 = vsel %vm1272, %v1273, %v1271
        %v1275 = vclz %v1274
        %v1276 = vsub.s32 %v1275, 2
        %vm1277 = vcmp.gt.s32.totalorder 0, %v1276
        %v1278 = vsel %vm1277, 0, %v1276
        %v1279 = vsub.s32 32, %v1278
        %v1280 = vshll.u32 %v1271, %v1278
        %v1281 = vshrl.u32 %v1263, %v1279
        %v1282 = vor.u32 %v1280, %v1281
        %v1283 = vsub.s32 4294967266, %v1278
        %v1284 = vadd.s32 %v1283, 127
        %v1285 = vshll.u32 %v1284, 23
        %v1286 = vor.u32 4788187, %v1285
        %v1287 = vand.u32 2147483647, %v1286
        %v1289 = vcvt.s32.f32 %v1282
        %v1290 = vmul.f32 %v1289, %v1287
        %v1291 = vxor.u32 %v1290, 2147483648
        %v1292 = vsel %vm1209, %v1291, %v1290
        %v1293 = vsub.s32 4, %v1269
        %v1294 = vsel %vm1209, %v1293, %v1269
        %v1295 = vsel %vm1208, %v359, %v1292
        %v1296 = vsel %vm1208, 0, %v1294
        %v1297 = vcosq.f32.pop %v1295
        %v1298 = vsinq.f32.pop %v1295
        %vm1299 = vweird.f32 %v359
        %v1300 = vand.u32 %v1296, 3
        %vm1301 = vcmp.lt.s32.totalorder %v1300, 2
        %vm1302 = vcmp.eq.s32.totalorder %v1300, 0
        %v1303 = vxor.u32 %v1298, 2147483648
        %v1304 = vsel %vm1302, %v1297, %v1303
        %vm1305 = vcmp.eq.s32.totalorder %v1300, 2
        %v1306 = vxor.u32 %v1297, 2147483648
        %v1307 = vsel %vm1305, %v1306, %v1298
        %v1308 = vsel %vm1301, %v1304, %v1307
        %v1309 = vsel %vm1299, nan, %v1308
        %v1310 = vand.u32 2147483647, %v360
        %vm1311 = vcmp.le.f32.partialorder %v1310, 0.7853982
        %vm1312 = vcmp.lt.s32.totalorder %v360, 0
        %v1313 = vand.u32 %v360, 2139095040
        %v1314 = vshrl.u32 %v1313, 23
        %v1315 = vsub.s32 %v1314, 127
        %v1316 = vand.u32 2147483647, %v360
        %v1317 = vand.u32 %v1316, 8388607
        %v1318 = vor.u32 %v1317, 8388608
        %v1319 = vsub.s32 0, %v1318
        %v1320 = vadd.s32 %v1315, 1
        %vm1321 = vcmp.gt.s32.totalorder %v1320, 0
        %v1322 = vsel %vm1321, %v1320, 0
        %v1323 = vshrl.u32 %v1322, 5
        %v1324 = vand.u32 %v1322, 31
        %v1325 = vsub.s32 32, %v1324
        %v1326 = vshrl.u32 683565275, %v1325
        %v1327 = vshll.u32 683565275, %v1324
        %v1328 = vshrl.u32 2475754826, %v1325
        %v1329 = vor.u32 %v1327, %v1328
        %v1330 = vshll.u32 2475754826, %v1324
        %v1331 = vshrl.u32 2131351028, %v1325
        %v1332 = vor.u32 %v1330, %v1331
        %v1333 = vshll.u32 2131351028, %v1324
        %v1334 = vshrl.u32 2102212464, %v1325
        %v1335 = vor.u32 %v1333, %v1334
        %v1336 = vshll.u32 2102212464, %v1324
        %v1337 = vshrl.u32 920167782, %v1325
        %v1338 = vor.u32 %v1336, %v1337
        %v1339 = vshll.u32 920167782, %v1324
        %v1340 = vshrl.u32 1326507024, %v1325
        %v1341 = vor.u32 %v1339, %v1340
        %vm1342 = vcmp.lt.s32.totalorder %v1323, 1
        %vm1343 = vcmp.lt.s32.totalorder %v1323, 2
        %vm1344 = vcmp.lt.s32.totalorder %v1323, 3
        %vm1345 = vcmp.lt.s32.totalorder %v1323, 4
        %v1346 = vsel %vm1342, %v1326, %v1329
        %v1347 = vsel %vm1345, %v1335, 2102212464
        %v1348 = vsel %vm1344, %v1332, %v1347
        %v1349 = vsel %vm1343, %v1346, %v1348
        %v1350 = vsel %vm1342, %v1329, %v1332
        %v1351 = vsel %vm1345, %v1338, 920167782
        %v1352 = vsel %vm1344, %v1335, %v1351
        %v1353 = vsel %vm1343, %v1350, %v1352
        %v1354 = vsel %vm1342, %v1332, %v1335
        %v1355 = vsel %vm1345, %v1341, 1326507024
        %v1356 = vsel %vm1344, %v1338, %v1355
        %v1357 = vsel %vm1343, %v1354, %v1356
        %v1358 = vshll.u32 %v1318, 8
        %v1359 = vmul.u32.u64.compose %v1358, %v1357
        %v1360 = vextract.low.u32 %v1359
        %v1361 = vextract.high.u32 %v1359
        %v1362 = vmul.u32.u64.compose %v1358, %v1353
        %v1363 = vextract.low.u32 %v1362
        %v1364 = vextract.high.u32 %v1362
        %v1365 = vmul.u32 %v1358, %v1349
        %v1366 = vadd.s32 %v1361, %v1363
        %vm1367 = vc.u32 %v1361, %v1363
        %v1368 = vadd.s32 %v1364, 1
        %v1369 = vsel %vm1367, %v1368, %v1364
        %v1370 = vadd.s32 %v1365, %v1369
        %v1371 = vadd.s32 %v1370, 536870912
        %v1372 = vshrl.u32 %v1371, 30
        %v1373 = vshll.u32 %v1372, 30
        %v1374 = vsub.s32 %v1370, %v1373
        %vm1375 = vcmp.lt.s32.totalorder %v1374, 0
        %v1376 = vsub.s32 0, %v1374
        %v1377 = vsel %vm1375, %v1376, %v1374
        %v1378 = vclz %v1377
        %v1379 = vsub.s32 %v1378, 2
        %vm1380 = vcmp.gt.s32.totalorder 0, %v1379
        %v1381 = vsel %vm1380, 0, %v1379
        %v1382 = vsub.s32 32, %v1381
        %v1383 = vshll.u32 %v1374, %v1381
        %v1384 = vshrl.u32 %v1366, %v1382
        %v1385 = vor.u32 %v1383, %v1384
        %v1386 = vsub.s32 4294967266, %v1381
        %v1387 = vadd.s32 %v1386, 127
        %v1388 = vshll.u32 %v1387, 23
        %v1389 = vor.u32 4788187, %v1388
        %v1390 = vand.u32 2147483647, %v1389
        %v1392 = vcvt.s32.f32 %v1385
        %v1393 = vmul.f32 %v1392, %v1390
        %v1394 = vxor.u32 %v1393, 2147483648
        %v1395 = vsel %vm1312, %v1394, %v1393
        %v1396 = vsub.s32 4, %v1372
        %v1397 = vsel %vm1312, %v1396, %v1372
        %v1398 = vsel %vm1311, %v360, %v1395
        %v1399 = vsel %vm1311, 0, %v1397
        %v1400 = vcosq.f32.pop %v1398
        %v1401 = vsinq.f32.pop %v1398
        %vm1402 = vweird.f32 %v360
        %v1403 = vand.u32 %v1399, 3
        %vm1404 = vcmp.lt.s32.totalorder %v1403, 2
        %vm1405 = vcmp.eq.s32.totalorder %v1403, 0
        %v1406 = vxor.u32 %v1401, 2147483648
        %v1407 = vsel %vm1405, %v1400, %v1406
        %vm1408 = vcmp.eq.s32.totalorder %v1403, 2
        %v1409 = vxor.u32 %v1400, 2147483648
        %v1410 = vsel %vm1408, %v1409, %v1401
        %v1411 = vsel %vm1404, %v1407, %v1410
        %v1412 = vsel %vm1402, nan, %v1411
        %v1413 = vand.u32 2147483647, %v361
        %vm1414 = vcmp.le.f32.partialorder %v1413, 0.7853982
        %vm1415 = vcmp.lt.s32.totalorder %v361, 0
        %v1416 = vand.u32 %v361, 2139095040
        %v1417 = vshrl.u32 %v1416, 23
        %v1418 = vsub.s32 %v1417, 127
        %v1419 = vand.u32 2147483647, %v361
        %v1420 = vand.u32 %v1419, 8388607
        %v1421 = vor.u32 %v1420, 8388608
        %v1422 = vsub.s32 0, %v1421
        %v1423 = vadd.s32 %v1418, 1
        %vm1424 = vcmp.gt.s32.totalorder %v1423, 0
        %v1425 = vsel %vm1424, %v1423, 0
        %v1426 = vshrl.u32 %v1425, 5
        %v1427 = vand.u32 %v1425, 31
        %v1428 = vsub.s32 32, %v1427
        %v1429 = vshrl.u32 683565275, %v1428
        %v1430 = vshll.u32 683565275, %v1427
        %v1431 = vshrl.u32 2475754826, %v1428
        %v1432 = vor.u32 %v1430, %v1431
        %v1433 = vshll.u32 2475754826, %v1427
        %v1434 = vshrl.u32 2131351028, %v1428
        %v1435 = vor.u32 %v1433, %v1434
        %v1436 = vshll.u32 2131351028, %v1427
        %v1437 = vshrl.u32 2102212464, %v1428
        %v1438 = vor.u32 %v1436, %v1437
        %v1439 = vshll.u32 2102212464, %v1427
        %v1440 = vshrl.u32 920167782, %v1428
        %v1441 = vor.u32 %v1439, %v1440
        %v1442 = vshll.u32 920167782, %v1427
        %v1443 = vshrl.u32 1326507024, %v1428
        %v1444 = vor.u32 %v1442, %v1443
        %vm1445 = vcmp.lt.s32.totalorder %v1426, 1
        %vm1446 = vcmp.lt.s32.totalorder %v1426, 2
        %vm1447 = vcmp.lt.s32.totalorder %v1426, 3
        %vm1448 = vcmp.lt.s32.totalorder %v1426, 4
        %v1449 = vsel %vm1445, %v1429, %v1432
        %v1450 = vsel %vm1448, %v1438, 2102212464
        %v1451 = vsel %vm1447, %v1435, %v1450
        %v1452 = vsel %vm1446, %v1449, %v1451
        %v1453 = vsel %vm1445, %v1432, %v1435
        %v1454 = vsel %vm1448, %v1441, 920167782
        %v1455 = vsel %vm1447, %v1438, %v1454
        %v1456 = vsel %vm1446, %v1453, %v1455
        %v1457 = vsel %vm1445, %v1435, %v1438
        %v1458 = vsel %vm1448, %v1444, 1326507024
        %v1459 = vsel %vm1447, %v1441, %v1458
        %v1460 = vsel %vm1446, %v1457, %v1459
        %v1461 = vshll.u32 %v1421, 8
        %v1462 = vmul.u32.u64.compose %v1461, %v1460
        %v1463 = vextract.low.u32 %v1462
        %v1464 = vextract.high.u32 %v1462
        %v1465 = vmul.u32.u64.compose %v1461, %v1456
        %v1466 = vextract.low.u32 %v1465
        %v1467 = vextract.high.u32 %v1465
        %v1468 = vmul.u32 %v1461, %v1452
        %v1469 = vadd.s32 %v1464, %v1466
        %vm1470 = vc.u32 %v1464, %v1466
        %v1471 = vadd.s32 %v1467, 1
        %v1472 = vsel %vm1470, %v1471, %v1467
        %v1473 = vadd.s32 %v1468, %v1472
        %v1474 = vadd.s32 %v1473, 536870912
        %v1475 = vshrl.u32 %v1474, 30
        %v1476 = vshll.u32 %v1475, 30
        %v1477 = vsub.s32 %v1473, %v1476
        %vm1478 = vcmp.lt.s32.totalorder %v1477, 0
        %v1479 = vsub.s32 0, %v1477
        %v1480 = vsel %vm1478, %v1479, %v1477
        %v1481 = vclz %v1480
        %v1482 = vsub.s32 %v1481, 2
        %vm1483 = vcmp.gt.s32.totalorder 0, %v1482
        %v1484 = vsel %vm1483, 0, %v1482
        %v1485 = vsub.s32 32, %v1484
        %v1486 = vshll.u32 %v1477, %v1484
        %v1487 = vshrl.u32 %v1469, %v1485
        %v1488 = vor.u32 %v1486, %v1487
        %v1489 = vsub.s32 4294967266, %v1484
        %v1490 = vadd.s32 %v1489, 127
        %v1491 = vshll.u32 %v1490, 23
        %v1492 = vor.u32 4788187, %v1491
        %v1493 = vand.u32 2147483647, %v1492
        %v1495 = vcvt.s32.f32 %v1488
        %v1496 = vmul.f32 %v1495, %v1493
        %v1497 = vxor.u32 %v1496, 2147483648
        %v1498 = vsel %vm1415, %v1497, %v1496
        %v1499 = vsub.s32 4, %v1475
        %v1500 = vsel %vm1415, %v1499, %v1475
        %v1501 = vsel %vm1414, %v361, %v1498
        %v1502 = vsel %vm1414, 0, %v1500
        %v1503 = vcosq.f32.pop %v1501
        %v1504 = vsinq.f32.pop %v1501
        %vm1505 = vweird.f32 %v361
        %v1506 = vand.u32 %v1502, 3
        %vm1507 = vcmp.lt.s32.totalorder %v1506, 2
        %vm1508 = vcmp.eq.s32.totalorder %v1506, 0
        %v1509 = vxor.u32 %v1504, 2147483648
        %v1510 = vsel %vm1508, %v1503, %v1509
        %vm1511 = vcmp.eq.s32.totalorder %v1506, 2
        %v1512 = vxor.u32 %v1503, 2147483648
        %v1513 = vsel %vm1511, %v1512, %v1504
        %v1514 = vsel %vm1507, %v1510, %v1513
        %v1515 = vsel %vm1505, nan, %v1514
        %v1516 = vand.u32 2147483647, %v362
        %vm1517 = vcmp.le.f32.partialorder %v1516, 0.7853982
        %vm1518 = vcmp.lt.s32.totalorder %v362, 0
        %v1519 = vand.u32 %v362, 2139095040
        %v1520 = vshrl.u32 %v1519, 23
        %v1521 = vsub.s32 %v1520, 127
        %v1522 = vand.u32 2147483647, %v362
        %v1523 = vand.u32 %v1522, 8388607
        %v1524 = vor.u32 %v1523, 8388608
        %v1525 = vsub.s32 0, %v1524
        %v1526 = vadd.s32 %v1521, 1
        %vm1527 = vcmp.gt.s32.totalorder %v1526, 0
        %v1528 = vsel %vm1527, %v1526, 0
        %v1529 = vshrl.u32 %v1528, 5
        %v1530 = vand.u32 %v1528, 31
        %v1531 = vsub.s32 32, %v1530
        %v1532 = vshrl.u32 683565275, %v1531
        %v1533 = vshll.u32 683565275, %v1530
        %v1534 = vshrl.u32 2475754826, %v1531
        %v1535 = vor.u32 %v1533, %v1534
        %v1536 = vshll.u32 2475754826, %v1530
        %v1537 = vshrl.u32 2131351028, %v1531
        %v1538 = vor.u32 %v1536, %v1537
        %v1539 = vshll.u32 2131351028, %v1530
        %v1540 = vshrl.u32 2102212464, %v1531
        %v1541 = vor.u32 %v1539, %v1540
        %v1542 = vshll.u32 2102212464, %v1530
        %v1543 = vshrl.u32 920167782, %v1531
        %v1544 = vor.u32 %v1542, %v1543
        %v1545 = vshll.u32 920167782, %v1530
        %v1546 = vshrl.u32 1326507024, %v1531
        %v1547 = vor.u32 %v1545, %v1546
        %vm1548 = vcmp.lt.s32.totalorder %v1529, 1
        %vm1549 = vcmp.lt.s32.totalorder %v1529, 2
        %vm1550 = vcmp.lt.s32.totalorder %v1529, 3
        %vm1551 = vcmp.lt.s32.totalorder %v1529, 4
        %v1552 = vsel %vm1548, %v1532, %v1535
        %v1553 = vsel %vm1551, %v1541, 2102212464
        %v1554 = vsel %vm1550, %v1538, %v1553
        %v1555 = vsel %vm1549, %v1552, %v1554
        %v1556 = vsel %vm1548, %v1535, %v1538
        %v1557 = vsel %vm1551, %v1544, 920167782
        %v1558 = vsel %vm1550, %v1541, %v1557
        %v1559 = vsel %vm1549, %v1556, %v1558
        %v1560 = vsel %vm1548, %v1538, %v1541
        %v1561 = vsel %vm1551, %v1547, 1326507024
        %v1562 = vsel %vm1550, %v1544, %v1561
        %v1563 = vsel %vm1549, %v1560, %v1562
        %v1564 = vshll.u32 %v1524, 8
        %v1565 = vmul.u32.u64.compose %v1564, %v1563
        %v1566 = vextract.low.u32 %v1565
        %v1567 = vextract.high.u32 %v1565
        %v1568 = vmul.u32.u64.compose %v1564, %v1559
        %v1569 = vextract.low.u32 %v1568
        %v1570 = vextract.high.u32 %v1568
        %v1571 = vmul.u32 %v1564, %v1555
        %v1572 = vadd.s32 %v1567, %v1569
        %vm1573 = vc.u32 %v1567, %v1569
        %v1574 = vadd.s32 %v1570, 1
        %v1575 = vsel %vm1573, %v1574, %v1570
        %v1576 = vadd.s32 %v1571, %v1575
        %v1577 = vadd.s32 %v1576, 536870912
        %v1578 = vshrl.u32 %v1577, 30
        %v1579 = vshll.u32 %v1578, 30
        %v1580 = vsub.s32 %v1576, %v1579
        %vm1581 = vcmp.lt.s32.totalorder %v1580, 0
        %v1582 = vsub.s32 0, %v1580
        %v1583 = vsel %vm1581, %v1582, %v1580
        %v1584 = vclz %v1583
        %v1585 = vsub.s32 %v1584, 2
        %vm1586 = vcmp.gt.s32.totalorder 0, %v1585
        %v1587 = vsel %vm1586, 0, %v1585
        %v1588 = vsub.s32 32, %v1587
        %v1589 = vshll.u32 %v1580, %v1587
        %v1590 = vshrl.u32 %v1572, %v1588
        %v1591 = vor.u32 %v1589, %v1590
        %v1592 = vsub.s32 4294967266, %v1587
        %v1593 = vadd.s32 %v1592, 127
        %v1594 = vshll.u32 %v1593, 23
        %v1595 = vor.u32 4788187, %v1594
        %v1596 = vand.u32 2147483647, %v1595
        %v1598 = vcvt.s32.f32 %v1591
        %v1599 = vmul.f32 %v1598, %v1596
        %v1600 = vxor.u32 %v1599, 2147483648
        %v1601 = vsel %vm1518, %v1600, %v1599
        %v1602 = vsub.s32 4, %v1578
        %v1603 = vsel %vm1518, %v1602, %v1578
        %v1604 = vsel %vm1517, %v362, %v1601
        %v1605 = vsel %vm1517, 0, %v1603
        %v1606 = vcosq.f32.pop %v1604
        %v1607 = vsinq.f32.pop %v1604
        %vm1608 = vweird.f32 %v362
        %v1609 = vand.u32 %v1605, 3
        %vm1610 = vcmp.lt.s32.totalorder %v1609, 2
        %vm1611 = vcmp.eq.s32.totalorder %v1609, 0
        %v1612 = vxor.u32 %v1607, 2147483648
        %v1613 = vsel %vm1611, %v1606, %v1612
        %vm1614 = vcmp.eq.s32.totalorder %v1609, 2
        %v1615 = vxor.u32 %v1606, 2147483648
        %v1616 = vsel %vm1614, %v1615, %v1607
        %v1617 = vsel %vm1610, %v1613, %v1616
        %v1618 = vsel %vm1608, nan, %v1617
        %v1619 = vand.u32 2147483647, %v363
        %vm1620 = vcmp.le.f32.partialorder %v1619, 0.7853982
        %vm1621 = vcmp.lt.s32.totalorder %v363, 0
        %v1622 = vand.u32 %v363, 2139095040
        %v1623 = vshrl.u32 %v1622, 23
        %v1624 = vsub.s32 %v1623, 127
        %v1625 = vand.u32 2147483647, %v363
        %v1626 = vand.u32 %v1625, 8388607
        %v1627 = vor.u32 %v1626, 8388608
        %v1628 = vsub.s32 0, %v1627
        %v1629 = vadd.s32 %v1624, 1
        %vm1630 = vcmp.gt.s32.totalorder %v1629, 0
        %v1631 = vsel %vm1630, %v1629, 0
        %v1632 = vshrl.u32 %v1631, 5
        %v1633 = vand.u32 %v1631, 31
        %v1634 = vsub.s32 32, %v1633
        %v1635 = vshrl.u32 683565275, %v1634
        %v1636 = vshll.u32 683565275, %v1633
        %v1637 = vshrl.u32 2475754826, %v1634
        %v1638 = vor.u32 %v1636, %v1637
        %v1639 = vshll.u32 2475754826, %v1633
        %v1640 = vshrl.u32 2131351028, %v1634
        %v1641 = vor.u32 %v1639, %v1640
        %v1642 = vshll.u32 2131351028, %v1633
        %v1643 = vshrl.u32 2102212464, %v1634
        %v1644 = vor.u32 %v1642, %v1643
        %v1645 = vshll.u32 2102212464, %v1633
        %v1646 = vshrl.u32 920167782, %v1634
        %v1647 = vor.u32 %v1645, %v1646
        %v1648 = vshll.u32 920167782, %v1633
        %v1649 = vshrl.u32 1326507024, %v1634
        %v1650 = vor.u32 %v1648, %v1649
        %vm1651 = vcmp.lt.s32.totalorder %v1632, 1
        %vm1652 = vcmp.lt.s32.totalorder %v1632, 2
        %vm1653 = vcmp.lt.s32.totalorder %v1632, 3
        %vm1654 = vcmp.lt.s32.totalorder %v1632, 4
        %v1655 = vsel %vm1651, %v1635, %v1638
        %v1656 = vsel %vm1654, %v1644, 2102212464
        %v1657 = vsel %vm1653, %v1641, %v1656
        %v1658 = vsel %vm1652, %v1655, %v1657
        %v1659 = vsel %vm1651, %v1638, %v1641
        %v1660 = vsel %vm1654, %v1647, 920167782
        %v1661 = vsel %vm1653, %v1644, %v1660
        %v1662 = vsel %vm1652, %v1659, %v1661
        %v1663 = vsel %vm1651, %v1641, %v1644
        %v1664 = vsel %vm1654, %v1650, 1326507024
        %v1665 = vsel %vm1653, %v1647, %v1664
        %v1666 = vsel %vm1652, %v1663, %v1665
        %v1667 = vshll.u32 %v1627, 8
        %v1668 = vmul.u32.u64.compose %v1667, %v1666
        %v1669 = vextract.low.u32 %v1668
        %v1670 = vextract.high.u32 %v1668
        %v1671 = vmul.u32.u64.compose %v1667, %v1662
        %v1672 = vextract.low.u32 %v1671
        %v1673 = vextract.high.u32 %v1671
        %v1674 = vmul.u32 %v1667, %v1658
        %v1675 = vadd.s32 %v1670, %v1672
        %vm1676 = vc.u32 %v1670, %v1672
        %v1677 = vadd.s32 %v1673, 1
        %v1678 = vsel %vm1676, %v1677, %v1673
        %v1679 = vadd.s32 %v1674, %v1678
        %v1680 = vadd.s32 %v1679, 536870912
        %v1681 = vshrl.u32 %v1680, 30
        %v1682 = vshll.u32 %v1681, 30
        %v1683 = vsub.s32 %v1679, %v1682
        %vm1684 = vcmp.lt.s32.totalorder %v1683, 0
        %v1685 = vsub.s32 0, %v1683
        %v1686 = vsel %vm1684, %v1685, %v1683
        %v1687 = vclz %v1686
        %v1688 = vsub.s32 %v1687, 2
        %vm1689 = vcmp.gt.s32.totalorder 0, %v1688
        %v1690 = vsel %vm1689, 0, %v1688
        %v1691 = vsub.s32 32, %v1690
        %v1692 = vshll.u32 %v1683, %v1690
        %v1693 = vshrl.u32 %v1675, %v1691
        %v1694 = vor.u32 %v1692, %v1693
        %v1695 = vsub.s32 4294967266, %v1690
        %v1696 = vadd.s32 %v1695, 127
        %v1697 = vshll.u32 %v1696, 23
        %v1698 = vor.u32 4788187, %v1697
        %v1699 = vand.u32 2147483647, %v1698
        %v1701 = vcvt.s32.f32 %v1694
        %v1702 = vmul.f32 %v1701, %v1699
        %v1703 = vxor.u32 %v1702, 2147483648
        %v1704 = vsel %vm1621, %v1703, %v1702
        %v1705 = vsub.s32 4, %v1681
        %v1706 = vsel %vm1621, %v1705, %v1681
        %v1707 = vsel %vm1620, %v363, %v1704
        %v1708 = vsel %vm1620, 0, %v1706
        %v1709 = vcosq.f32.pop %v1707
        %v1710 = vsinq.f32.pop %v1707
        %vm1711 = vweird.f32 %v363
        %v1712 = vand.u32 %v1708, 3
        %vm1713 = vcmp.lt.s32.totalorder %v1712, 2
        %vm1714 = vcmp.eq.s32.totalorder %v1712, 0
        %v1715 = vxor.u32 %v1710, 2147483648
        %v1716 = vsel %vm1714, %v1709, %v1715
        %vm1717 = vcmp.eq.s32.totalorder %v1712, 2
        %v1718 = vxor.u32 %v1709, 2147483648
        %v1719 = vsel %vm1717, %v1718, %v1710
        %v1720 = vsel %vm1713, %v1716, %v1719
        %v1721 = vsel %vm1711, nan, %v1720
        %v1722 = vand.u32 2147483647, %v364
        %vm1723 = vcmp.le.f32.partialorder %v1722, 0.7853982
        %vm1724 = vcmp.lt.s32.totalorder %v364, 0
        %v1725 = vand.u32 %v364, 2139095040
        %v1726 = vshrl.u32 %v1725, 23
        %v1727 = vsub.s32 %v1726, 127
        %v1728 = vand.u32 2147483647, %v364
        %v1729 = vand.u32 %v1728, 8388607
        %v1730 = vor.u32 %v1729, 8388608
        %v1731 = vsub.s32 0, %v1730
        %v1732 = vadd.s32 %v1727, 1
        %vm1733 = vcmp.gt.s32.totalorder %v1732, 0
        %v1734 = vsel %vm1733, %v1732, 0
        %v1735 = vshrl.u32 %v1734, 5
        %v1736 = vand.u32 %v1734, 31
        %v1737 = vsub.s32 32, %v1736
        %v1738 = vshrl.u32 683565275, %v1737
        %v1739 = vshll.u32 683565275, %v1736
        %v1740 = vshrl.u32 2475754826, %v1737
        %v1741 = vor.u32 %v1739, %v1740
        %v1742 = vshll.u32 2475754826, %v1736
        %v1743 = vshrl.u32 2131351028, %v1737
        %v1744 = vor.u32 %v1742, %v1743
        %v1745 = vshll.u32 2131351028, %v1736
        %v1746 = vshrl.u32 2102212464, %v1737
        %v1747 = vor.u32 %v1745, %v1746
        %v1748 = vshll.u32 2102212464, %v1736
        %v1749 = vshrl.u32 920167782, %v1737
        %v1750 = vor.u32 %v1748, %v1749
        %v1751 = vshll.u32 920167782, %v1736
        %v1752 = vshrl.u32 1326507024, %v1737
        %v1753 = vor.u32 %v1751, %v1752
        %vm1754 = vcmp.lt.s32.totalorder %v1735, 1
        %vm1755 = vcmp.lt.s32.totalorder %v1735, 2
        %vm1756 = vcmp.lt.s32.totalorder %v1735, 3
        %vm1757 = vcmp.lt.s32.totalorder %v1735, 4
        %v1758 = vsel %vm1754, %v1738, %v1741
        %v1759 = vsel %vm1757, %v1747, 2102212464
        %v1760 = vsel %vm1756, %v1744, %v1759
        %v1761 = vsel %vm1755, %v1758, %v1760
        %v1762 = vsel %vm1754, %v1741, %v1744
        %v1763 = vsel %vm1757, %v1750, 920167782
        %v1764 = vsel %vm1756, %v1747, %v1763
        %v1765 = vsel %vm1755, %v1762, %v1764
        %v1766 = vsel %vm1754, %v1744, %v1747
        %v1767 = vsel %vm1757, %v1753, 1326507024
        %v1768 = vsel %vm1756, %v1750, %v1767
        %v1769 = vsel %vm1755, %v1766, %v1768
        %v1770 = vshll.u32 %v1730, 8
        %v1771 = vmul.u32.u64.compose %v1770, %v1769
        %v1772 = vextract.low.u32 %v1771
        %v1773 = vextract.high.u32 %v1771
        %v1774 = vmul.u32.u64.compose %v1770, %v1765
        %v1775 = vextract.low.u32 %v1774
        %v1776 = vextract.high.u32 %v1774
        %v1777 = vmul.u32 %v1770, %v1761
        %v1778 = vadd.s32 %v1773, %v1775
        %vm1779 = vc.u32 %v1773, %v1775
        %v1780 = vadd.s32 %v1776, 1
        %v1781 = vsel %vm1779, %v1780, %v1776
        %v1782 = vadd.s32 %v1777, %v1781
        %v1783 = vadd.s32 %v1782, 536870912
        %v1784 = vshrl.u32 %v1783, 30
        %v1785 = vshll.u32 %v1784, 30
        %v1786 = vsub.s32 %v1782, %v1785
        %vm1787 = vcmp.lt.s32.totalorder %v1786, 0
        %v1788 = vsub.s32 0, %v1786
        %v1789 = vsel %vm1787, %v1788, %v1786
        %v1790 = vclz %v1789
        %v1791 = vsub.s32 %v1790, 2
        %vm1792 = vcmp.gt.s32.totalorder 0, %v1791
        %v1793 = vsel %vm1792, 0, %v1791
        %v1794 = vsub.s32 32, %v1793
        %v1795 = vshll.u32 %v1786, %v1793
        %v1796 = vshrl.u32 %v1778, %v1794
        %v1797 = vor.u32 %v1795, %v1796
        %v1798 = vsub.s32 4294967266, %v1793
        %v1799 = vadd.s32 %v1798, 127
        %v1800 = vshll.u32 %v1799, 23
        %v1801 = vor.u32 4788187, %v1800
        %v1802 = vand.u32 2147483647, %v1801
        %v1804 = vcvt.s32.f32 %v1797
        %v1805 = vmul.f32 %v1804, %v1802
        %v1806 = vxor.u32 %v1805, 2147483648
        %v1807 = vsel %vm1724, %v1806, %v1805
        %v1808 = vsub.s32 4, %v1784
        %v1809 = vsel %vm1724, %v1808, %v1784
        %v1810 = vsel %vm1723, %v364, %v1807
        %v1811 = vsel %vm1723, 0, %v1809
        %v1812 = vcosq.f32.pop %v1810
        %v1813 = vsinq.f32.pop %v1810
        %vm1814 = vweird.f32 %v364
        %v1815 = vand.u32 %v1811, 3
        %vm1816 = vcmp.lt.s32.totalorder %v1815, 2
        %vm1817 = vcmp.eq.s32.totalorder %v1815, 0
        %v1818 = vxor.u32 %v1813, 2147483648
        %v1819 = vsel %vm1817, %v1812, %v1818
        %vm1820 = vcmp.eq.s32.totalorder %v1815, 2
        %v1821 = vxor.u32 %v1812, 2147483648
        %v1822 = vsel %vm1820, %v1821, %v1813
        %v1823 = vsel %vm1816, %v1819, %v1822
        %v1824 = vsel %vm1814, nan, %v1823
        %v1825 = vand.u32 2147483647, %v365
        %vm1826 = vcmp.le.f32.partialorder %v1825, 0.7853982
        %vm1827 = vcmp.lt.s32.totalorder %v365, 0
        %v1828 = vand.u32 %v365, 2139095040
        %v1829 = vshrl.u32 %v1828, 23
        %v1830 = vsub.s32 %v1829, 127
        %v1831 = vand.u32 2147483647, %v365
        %v1832 = vand.u32 %v1831, 8388607
        %v1833 = vor.u32 %v1832, 8388608
        %v1834 = vsub.s32 0, %v1833
        %v1835 = vadd.s32 %v1830, 1
        %vm1836 = vcmp.gt.s32.totalorder %v1835, 0
        %v1837 = vsel %vm1836, %v1835, 0
        %v1838 = vshrl.u32 %v1837, 5
        %v1839 = vand.u32 %v1837, 31
        %v1840 = vsub.s32 32, %v1839
        %v1841 = vshrl.u32 683565275, %v1840
        %v1842 = vshll.u32 683565275, %v1839
        %v1843 = vshrl.u32 2475754826, %v1840
        %v1844 = vor.u32 %v1842, %v1843
        %v1845 = vshll.u32 2475754826, %v1839
        %v1846 = vshrl.u32 2131351028, %v1840
        %v1847 = vor.u32 %v1845, %v1846
        %v1848 = vshll.u32 2131351028, %v1839
        %v1849 = vshrl.u32 2102212464, %v1840
        %v1850 = vor.u32 %v1848, %v1849
        %v1851 = vshll.u32 2102212464, %v1839
        %v1852 = vshrl.u32 920167782, %v1840
        %v1853 = vor.u32 %v1851, %v1852
        %v1854 = vshll.u32 920167782, %v1839
        %v1855 = vshrl.u32 1326507024, %v1840
        %v1856 = vor.u32 %v1854, %v1855
        %vm1857 = vcmp.lt.s32.totalorder %v1838, 1
        %vm1858 = vcmp.lt.s32.totalorder %v1838, 2
        %vm1859 = vcmp.lt.s32.totalorder %v1838, 3
        %vm1860 = vcmp.lt.s32.totalorder %v1838, 4
        %v1861 = vsel %vm1857, %v1841, %v1844
        %v1862 = vsel %vm1860, %v1850, 2102212464
        %v1863 = vsel %vm1859, %v1847, %v1862
        %v1864 = vsel %vm1858, %v1861, %v1863
        %v1865 = vsel %vm1857, %v1844, %v1847
        %v1866 = vsel %vm1860, %v1853, 920167782
        %v1867 = vsel %vm1859, %v1850, %v1866
        %v1868 = vsel %vm1858, %v1865, %v1867
        %v1869 = vsel %vm1857, %v1847, %v1850
        %v1870 = vsel %vm1860, %v1856, 1326507024
        %v1871 = vsel %vm1859, %v1853, %v1870
        %v1872 = vsel %vm1858, %v1869, %v1871
        %v1873 = vshll.u32 %v1833, 8
        %v1874 = vmul.u32.u64.compose %v1873, %v1872
        %v1875 = vextract.low.u32 %v1874
        %v1876 = vextract.high.u32 %v1874
        %v1877 = vmul.u32.u64.compose %v1873, %v1868
        %v1878 = vextract.low.u32 %v1877
        %v1879 = vextract.high.u32 %v1877
        %v1880 = vmul.u32 %v1873, %v1864
        %v1881 = vadd.s32 %v1876, %v1878
        %vm1882 = vc.u32 %v1876, %v1878
        %v1883 = vadd.s32 %v1879, 1
        %v1884 = vsel %vm1882, %v1883, %v1879
        %v1885 = vadd.s32 %v1880, %v1884
        %v1886 = vadd.s32 %v1885, 536870912
        %v1887 = vshrl.u32 %v1886, 30
        %v1888 = vshll.u32 %v1887, 30
        %v1889 = vsub.s32 %v1885, %v1888
        %vm1890 = vcmp.lt.s32.totalorder %v1889, 0
        %v1891 = vsub.s32 0, %v1889
        %v1892 = vsel %vm1890, %v1891, %v1889
        %v1893 = vclz %v1892
        %v1894 = vsub.s32 %v1893, 2
        %vm1895 = vcmp.gt.s32.totalorder 0, %v1894
        %v1896 = vsel %vm1895, 0, %v1894
        %v1897 = vsub.s32 32, %v1896
        %v1898 = vshll.u32 %v1889, %v1896
        %v1899 = vshrl.u32 %v1881, %v1897
        %v1900 = vor.u32 %v1898, %v1899
        %v1901 = vsub.s32 4294967266, %v1896
        %v1902 = vadd.s32 %v1901, 127
        %v1903 = vshll.u32 %v1902, 23
        %v1904 = vor.u32 4788187, %v1903
        %v1905 = vand.u32 2147483647, %v1904
        %v1907 = vcvt.s32.f32 %v1900
        %v1908 = vmul.f32 %v1907, %v1905
        %v1909 = vxor.u32 %v1908, 2147483648
        %v1910 = vsel %vm1827, %v1909, %v1908
        %v1911 = vsub.s32 4, %v1887
        %v1912 = vsel %vm1827, %v1911, %v1887
        %v1913 = vsel %vm1826, %v365, %v1910
        %v1914 = vsel %vm1826, 0, %v1912
        %v1915 = vcosq.f32.pop %v1913
        %v1916 = vsinq.f32.pop %v1913
        %vm1917 = vweird.f32 %v365
        %v1918 = vand.u32 %v1914, 3
        %vm1919 = vcmp.lt.s32.totalorder %v1918, 2
        %vm1920 = vcmp.eq.s32.totalorder %v1918, 0
        %v1921 = vxor.u32 %v1916, 2147483648
        %v1922 = vsel %vm1920, %v1915, %v1921
        %vm1923 = vcmp.eq.s32.totalorder %v1918, 2
        %v1924 = vxor.u32 %v1915, 2147483648
        %v1925 = vsel %vm1923, %v1924, %v1916
        %v1926 = vsel %vm1919, %v1922, %v1925
        %v1927 = vsel %vm1917, nan, %v1926
        %v1928 = vand.u32 2147483647, %v366
        %vm1929 = vcmp.le.f32.partialorder %v1928, 0.7853982
        %vm1930 = vcmp.lt.s32.totalorder %v366, 0
        %v1931 = vand.u32 %v366, 2139095040
        %v1932 = vshrl.u32 %v1931, 23
        %v1933 = vsub.s32 %v1932, 127
        %v1934 = vand.u32 2147483647, %v366
        %v1935 = vand.u32 %v1934, 8388607
        %v1936 = vor.u32 %v1935, 8388608
        %v1937 = vsub.s32 0, %v1936
        %v1938 = vadd.s32 %v1933, 1
        %vm1939 = vcmp.gt.s32.totalorder %v1938, 0
        %v1940 = vsel %vm1939, %v1938, 0
        %v1941 = vshrl.u32 %v1940, 5
        %v1942 = vand.u32 %v1940, 31
        %v1943 = vsub.s32 32, %v1942
        %v1944 = vshrl.u32 683565275, %v1943
        %v1945 = vshll.u32 683565275, %v1942
        %v1946 = vshrl.u32 2475754826, %v1943
        %v1947 = vor.u32 %v1945, %v1946
        %v1948 = vshll.u32 2475754826, %v1942
        %v1949 = vshrl.u32 2131351028, %v1943
        %v1950 = vor.u32 %v1948, %v1949
        %v1951 = vshll.u32 2131351028, %v1942
        %v1952 = vshrl.u32 2102212464, %v1943
        %v1953 = vor.u32 %v1951, %v1952
        %v1954 = vshll.u32 2102212464, %v1942
        %v1955 = vshrl.u32 920167782, %v1943
        %v1956 = vor.u32 %v1954, %v1955
        %v1957 = vshll.u32 920167782, %v1942
        %v1958 = vshrl.u32 1326507024, %v1943
        %v1959 = vor.u32 %v1957, %v1958
        %vm1960 = vcmp.lt.s32.totalorder %v1941, 1
        %vm1961 = vcmp.lt.s32.totalorder %v1941, 2
        %vm1962 = vcmp.lt.s32.totalorder %v1941, 3
        %vm1963 = vcmp.lt.s32.totalorder %v1941, 4
        %v1964 = vsel %vm1960, %v1944, %v1947
        %v1965 = vsel %vm1963, %v1953, 2102212464
        %v1966 = vsel %vm1962, %v1950, %v1965
        %v1967 = vsel %vm1961, %v1964, %v1966
        %v1968 = vsel %vm1960, %v1947, %v1950
        %v1969 = vsel %vm1963, %v1956, 920167782
        %v1970 = vsel %vm1962, %v1953, %v1969
        %v1971 = vsel %vm1961, %v1968, %v1970
        %v1972 = vsel %vm1960, %v1950, %v1953
        %v1973 = vsel %vm1963, %v1959, 1326507024
        %v1974 = vsel %vm1962, %v1956, %v1973
        %v1975 = vsel %vm1961, %v1972, %v1974
        %v1976 = vshll.u32 %v1936, 8
        %v1977 = vmul.u32.u64.compose %v1976, %v1975
        %v1978 = vextract.low.u32 %v1977
        %v1979 = vextract.high.u32 %v1977
        %v1980 = vmul.u32.u64.compose %v1976, %v1971
        %v1981 = vextract.low.u32 %v1980
        %v1982 = vextract.high.u32 %v1980
        %v1983 = vmul.u32 %v1976, %v1967
        %v1984 = vadd.s32 %v1979, %v1981
        %vm1985 = vc.u32 %v1979, %v1981
        %v1986 = vadd.s32 %v1982, 1
        %v1987 = vsel %vm1985, %v1986, %v1982
        %v1988 = vadd.s32 %v1983, %v1987
        %v1989 = vadd.s32 %v1988, 536870912
        %v1990 = vshrl.u32 %v1989, 30
        %v1991 = vshll.u32 %v1990, 30
        %v1992 = vsub.s32 %v1988, %v1991
        %vm1993 = vcmp.lt.s32.totalorder %v1992, 0
        %v1994 = vsub.s32 0, %v1992
        %v1995 = vsel %vm1993, %v1994, %v1992
        %v1996 = vclz %v1995
        %v1997 = vsub.s32 %v1996, 2
        %vm1998 = vcmp.gt.s32.totalorder 0, %v1997
        %v1999 = vsel %vm1998, 0, %v1997
        %v2000 = vsub.s32 32, %v1999
        %v2001 = vshll.u32 %v1992, %v1999
        %v2002 = vshrl.u32 %v1984, %v2000
        %v2003 = vor.u32 %v2001, %v2002
        %v2004 = vsub.s32 4294967266, %v1999
        %v2005 = vadd.s32 %v2004, 127
        %v2006 = vshll.u32 %v2005, 23
        %v2007 = vor.u32 4788187, %v2006
        %v2008 = vand.u32 2147483647, %v2007
        %v2010 = vcvt.s32.f32 %v2003
        %v2011 = vmul.f32 %v2010, %v2008
        %v2012 = vxor.u32 %v2011, 2147483648
        %v2013 = vsel %vm1930, %v2012, %v2011
        %v2014 = vsub.s32 4, %v1990
        %v2015 = vsel %vm1930, %v2014, %v1990
        %v2016 = vsel %vm1929, %v366, %v2013
        %v2017 = vsel %vm1929, 0, %v2015
        %v2018 = vcosq.f32.pop %v2016
        %v2019 = vsinq.f32.pop %v2016
        %vm2020 = vweird.f32 %v366
        %v2021 = vand.u32 %v2017, 3
        %vm2022 = vcmp.lt.s32.totalorder %v2021, 2
        %vm2023 = vcmp.eq.s32.totalorder %v2021, 0
        %v2024 = vxor.u32 %v2019, 2147483648
        %v2025 = vsel %vm2023, %v2018, %v2024
        %vm2026 = vcmp.eq.s32.totalorder %v2021, 2
        %v2027 = vxor.u32 %v2018, 2147483648
        %v2028 = vsel %vm2026, %v2027, %v2019
        %v2029 = vsel %vm2022, %v2025, %v2028
        %v2030 = vsel %vm2020, nan, %v2029
        %v2031 = vand.u32 2147483647, %v367
        %vm2032 = vcmp.le.f32.partialorder %v2031, 0.7853982
        %vm2033 = vcmp.lt.s32.totalorder %v367, 0
        %v2034 = vand.u32 %v367, 2139095040
        %v2035 = vshrl.u32 %v2034, 23
        %v2036 = vsub.s32 %v2035, 127
        %v2037 = vand.u32 2147483647, %v367
        %v2038 = vand.u32 %v2037, 8388607
        %v2039 = vor.u32 %v2038, 8388608
        %v2040 = vsub.s32 0, %v2039
        %v2041 = vadd.s32 %v2036, 1
        %vm2042 = vcmp.gt.s32.totalorder %v2041, 0
        %v2043 = vsel %vm2042, %v2041, 0
        %v2044 = vshrl.u32 %v2043, 5
        %v2045 = vand.u32 %v2043, 31
        %v2046 = vsub.s32 32, %v2045
        %v2047 = vshrl.u32 683565275, %v2046
        %v2048 = vshll.u32 683565275, %v2045
        %v2049 = vshrl.u32 2475754826, %v2046
        %v2050 = vor.u32 %v2048, %v2049
        %v2051 = vshll.u32 2475754826, %v2045
        %v2052 = vshrl.u32 2131351028, %v2046
        %v2053 = vor.u32 %v2051, %v2052
        %v2054 = vshll.u32 2131351028, %v2045
        %v2055 = vshrl.u32 2102212464, %v2046
        %v2056 = vor.u32 %v2054, %v2055
        %v2057 = vshll.u32 2102212464, %v2045
        %v2058 = vshrl.u32 920167782, %v2046
        %v2059 = vor.u32 %v2057, %v2058
        %v2060 = vshll.u32 920167782, %v2045
        %v2061 = vshrl.u32 1326507024, %v2046
        %v2062 = vor.u32 %v2060, %v2061
        %vm2063 = vcmp.lt.s32.totalorder %v2044, 1
        %vm2064 = vcmp.lt.s32.totalorder %v2044, 2
        %vm2065 = vcmp.lt.s32.totalorder %v2044, 3
        %vm2066 = vcmp.lt.s32.totalorder %v2044, 4
        %v2067 = vsel %vm2063, %v2047, %v2050
        %v2068 = vsel %vm2066, %v2056, 2102212464
        %v2069 = vsel %vm2065, %v2053, %v2068
        %v2070 = vsel %vm2064, %v2067, %v2069
        %v2071 = vsel %vm2063, %v2050, %v2053
        %v2072 = vsel %vm2066, %v2059, 920167782
        %v2073 = vsel %vm2065, %v2056, %v2072
        %v2074 = vsel %vm2064, %v2071, %v2073
        %v2075 = vsel %vm2063, %v2053, %v2056
        %v2076 = vsel %vm2066, %v2062, 1326507024
        %v2077 = vsel %vm2065, %v2059, %v2076
        %v2078 = vsel %vm2064, %v2075, %v2077
        %v2079 = vshll.u32 %v2039, 8
        %v2080 = vmul.u32.u64.compose %v2079, %v2078
        %v2081 = vextract.low.u32 %v2080
        %v2082 = vextract.high.u32 %v2080
        %v2083 = vmul.u32.u64.compose %v2079, %v2074
        %v2084 = vextract.low.u32 %v2083
        %v2085 = vextract.high.u32 %v2083
        %v2086 = vmul.u32 %v2079, %v2070
        %v2087 = vadd.s32 %v2082, %v2084
        %vm2088 = vc.u32 %v2082, %v2084
        %v2089 = vadd.s32 %v2085, 1
        %v2090 = vsel %vm2088, %v2089, %v2085
        %v2091 = vadd.s32 %v2086, %v2090
        %v2092 = vadd.s32 %v2091, 536870912
        %v2093 = vshrl.u32 %v2092, 30
        %v2094 = vshll.u32 %v2093, 30
        %v2095 = vsub.s32 %v2091, %v2094
        %vm2096 = vcmp.lt.s32.totalorder %v2095, 0
        %v2097 = vsub.s32 0, %v2095
        %v2098 = vsel %vm2096, %v2097, %v2095
        %v2099 = vclz %v2098
        %v2100 = vsub.s32 %v2099, 2
        %vm2101 = vcmp.gt.s32.totalorder 0, %v2100
        %v2102 = vsel %vm2101, 0, %v2100
        %v2103 = vsub.s32 32, %v2102
        %v2104 = vshll.u32 %v2095, %v2102
        %v2105 = vshrl.u32 %v2087, %v2103
        %v2106 = vor.u32 %v2104, %v2105
        %v2107 = vsub.s32 4294967266, %v2102
        %v2108 = vadd.s32 %v2107, 127
        %v2109 = vshll.u32 %v2108, 23
        %v2110 = vor.u32 4788187, %v2109
        %v2111 = vand.u32 2147483647, %v2110
        %v2113 = vcvt.s32.f32 %v2106
        %v2114 = vmul.f32 %v2113, %v2111
        %v2115 = vxor.u32 %v2114, 2147483648
        %v2116 = vsel %vm2033, %v2115, %v2114
        %v2117 = vsub.s32 4, %v2093
        %v2118 = vsel %vm2033, %v2117, %v2093
        %v2119 = vsel %vm2032, %v367, %v2116
        %v2120 = vsel %vm2032, 0, %v2118
        %v2121 = vcosq.f32.pop %v2119
        %v2122 = vsinq.f32.pop %v2119
        %vm2123 = vweird.f32 %v367
        %v2124 = vadd.s32 %v2120, 3
        %v2125 = vand.u32 %v2124, 3
        %vm2126 = vcmp.lt.s32.totalorder %v2125, 2
        %vm2127 = vcmp.eq.s32.totalorder %v2125, 0
        %v2128 = vxor.u32 %v2122, 2147483648
        %v2129 = vsel %vm2127, %v2121, %v2128
        %vm2130 = vcmp.eq.s32.totalorder %v2125, 2
        %v2131 = vxor.u32 %v2121, 2147483648
        %v2132 = vsel %vm2130, %v2131, %v2122
        %v2133 = vsel %vm2126, %v2129, %v2132
        %v2134 = vsel %vm2123, nan, %v2133
        %v2135 = vand.u32 2147483647, %v368
        %vm2136 = vcmp.le.f32.partialorder %v2135, 0.7853982
        %vm2137 = vcmp.lt.s32.totalorder %v368, 0
        %v2138 = vand.u32 %v368, 2139095040
        %v2139 = vshrl.u32 %v2138, 23
        %v2140 = vsub.s32 %v2139, 127
        %v2141 = vand.u32 2147483647, %v368
        %v2142 = vand.u32 %v2141, 8388607
        %v2143 = vor.u32 %v2142, 8388608
        %v2144 = vsub.s32 0, %v2143
        %v2145 = vadd.s32 %v2140, 1
        %vm2146 = vcmp.gt.s32.totalorder %v2145, 0
        %v2147 = vsel %vm2146, %v2145, 0
        %v2148 = vshrl.u32 %v2147, 5
        %v2149 = vand.u32 %v2147, 31
        %v2150 = vsub.s32 32, %v2149
        %v2151 = vshrl.u32 683565275, %v2150
        %v2152 = vshll.u32 683565275, %v2149
        %v2153 = vshrl.u32 2475754826, %v2150
        %v2154 = vor.u32 %v2152, %v2153
        %v2155 = vshll.u32 2475754826, %v2149
        %v2156 = vshrl.u32 2131351028, %v2150
        %v2157 = vor.u32 %v2155, %v2156
        %v2158 = vshll.u32 2131351028, %v2149
        %v2159 = vshrl.u32 2102212464, %v2150
        %v2160 = vor.u32 %v2158, %v2159
        %v2161 = vshll.u32 2102212464, %v2149
        %v2162 = vshrl.u32 920167782, %v2150
        %v2163 = vor.u32 %v2161, %v2162
        %v2164 = vshll.u32 920167782, %v2149
        %v2165 = vshrl.u32 1326507024, %v2150
        %v2166 = vor.u32 %v2164, %v2165
        %vm2167 = vcmp.lt.s32.totalorder %v2148, 1
        %vm2168 = vcmp.lt.s32.totalorder %v2148, 2
        %vm2169 = vcmp.lt.s32.totalorder %v2148, 3
        %vm2170 = vcmp.lt.s32.totalorder %v2148, 4
        %v2171 = vsel %vm2167, %v2151, %v2154
        %v2172 = vsel %vm2170, %v2160, 2102212464
        %v2173 = vsel %vm2169, %v2157, %v2172
        %v2174 = vsel %vm2168, %v2171, %v2173
        %v2175 = vsel %vm2167, %v2154, %v2157
        %v2176 = vsel %vm2170, %v2163, 920167782
        %v2177 = vsel %vm2169, %v2160, %v2176
        %v2178 = vsel %vm2168, %v2175, %v2177
        %v2179 = vsel %vm2167, %v2157, %v2160
        %v2180 = vsel %vm2170, %v2166, 1326507024
        %v2181 = vsel %vm2169, %v2163, %v2180
        %v2182 = vsel %vm2168, %v2179, %v2181
        %v2183 = vshll.u32 %v2143, 8
        %v2184 = vmul.u32.u64.compose %v2183, %v2182
        %v2185 = vextract.low.u32 %v2184
        %v2186 = vextract.high.u32 %v2184
        %v2187 = vmul.u32.u64.compose %v2183, %v2178
        %v2188 = vextract.low.u32 %v2187
        %v2189 = vextract.high.u32 %v2187
        %v2190 = vmul.u32 %v2183, %v2174
        %v2191 = vadd.s32 %v2186, %v2188
        %vm2192 = vc.u32 %v2186, %v2188
        %v2193 = vadd.s32 %v2189, 1
        %v2194 = vsel %vm2192, %v2193, %v2189
        %v2195 = vadd.s32 %v2190, %v2194
        %v2196 = vadd.s32 %v2195, 536870912
        %v2197 = vshrl.u32 %v2196, 30
        %v2198 = vshll.u32 %v2197, 30
        %v2199 = vsub.s32 %v2195, %v2198
        %vm2200 = vcmp.lt.s32.totalorder %v2199, 0
        %v2201 = vsub.s32 0, %v2199
        %v2202 = vsel %vm2200, %v2201, %v2199
        %v2203 = vclz %v2202
        %v2204 = vsub.s32 %v2203, 2
        %vm2205 = vcmp.gt.s32.totalorder 0, %v2204
        %v2206 = vsel %vm2205, 0, %v2204
        %v2207 = vsub.s32 32, %v2206
        %v2208 = vshll.u32 %v2199, %v2206
        %v2209 = vshrl.u32 %v2191, %v2207
        %v2210 = vor.u32 %v2208, %v2209
        %v2211 = vsub.s32 4294967266, %v2206
        %v2212 = vadd.s32 %v2211, 127
        %v2213 = vshll.u32 %v2212, 23
        %v2214 = vor.u32 4788187, %v2213
        %v2215 = vand.u32 2147483647, %v2214
        %v2217 = vcvt.s32.f32 %v2210
        %v2218 = vmul.f32 %v2217, %v2215
        %v2219 = vxor.u32 %v2218, 2147483648
        %v2220 = vsel %vm2137, %v2219, %v2218
        %v2221 = vsub.s32 4, %v2197
        %v2222 = vsel %vm2137, %v2221, %v2197
        %v2223 = vsel %vm2136, %v368, %v2220
        %v2224 = vsel %vm2136, 0, %v2222
        %v2225 = vcosq.f32.pop %v2223
        %v2226 = vsinq.f32.pop %v2223
        %vm2227 = vweird.f32 %v368
        %v2228 = vadd.s32 %v2224, 3
        %v2229 = vand.u32 %v2228, 3
        %vm2230 = vcmp.lt.s32.totalorder %v2229, 2
        %vm2231 = vcmp.eq.s32.totalorder %v2229, 0
        %v2232 = vxor.u32 %v2226, 2147483648
        %v2233 = vsel %vm2231, %v2225, %v2232
        %vm2234 = vcmp.eq.s32.totalorder %v2229, 2
        %v2235 = vxor.u32 %v2225, 2147483648
        %v2236 = vsel %vm2234, %v2235, %v2226
        %v2237 = vsel %vm2230, %v2233, %v2236
        %v2238 = vsel %vm2227, nan, %v2237
        %v2239 = vand.u32 2147483647, %v369
        %vm2240 = vcmp.le.f32.partialorder %v2239, 0.7853982
        %vm2241 = vcmp.lt.s32.totalorder %v369, 0
        %v2242 = vand.u32 %v369, 2139095040
        %v2243 = vshrl.u32 %v2242, 23
        %v2244 = vsub.s32 %v2243, 127
        %v2245 = vand.u32 2147483647, %v369
        %v2246 = vand.u32 %v2245, 8388607
        %v2247 = vor.u32 %v2246, 8388608
        %v2248 = vsub.s32 0, %v2247
        %v2249 = vadd.s32 %v2244, 1
        %vm2250 = vcmp.gt.s32.totalorder %v2249, 0
        %v2251 = vsel %vm2250, %v2249, 0
        %v2252 = vshrl.u32 %v2251, 5
        %v2253 = vand.u32 %v2251, 31
        %v2254 = vsub.s32 32, %v2253
        %v2255 = vshrl.u32 683565275, %v2254
        %v2256 = vshll.u32 683565275, %v2253
        %v2257 = vshrl.u32 2475754826, %v2254
        %v2258 = vor.u32 %v2256, %v2257
        %v2259 = vshll.u32 2475754826, %v2253
        %v2260 = vshrl.u32 2131351028, %v2254
        %v2261 = vor.u32 %v2259, %v2260
        %v2262 = vshll.u32 2131351028, %v2253
        %v2263 = vshrl.u32 2102212464, %v2254
        %v2264 = vor.u32 %v2262, %v2263
        %v2265 = vshll.u32 2102212464, %v2253
        %v2266 = vshrl.u32 920167782, %v2254
        %v2267 = vor.u32 %v2265, %v2266
        %v2268 = vshll.u32 920167782, %v2253
        %v2269 = vshrl.u32 1326507024, %v2254
        %v2270 = vor.u32 %v2268, %v2269
        %vm2271 = vcmp.lt.s32.totalorder %v2252, 1
        %vm2272 = vcmp.lt.s32.totalorder %v2252, 2
        %vm2273 = vcmp.lt.s32.totalorder %v2252, 3
        %vm2274 = vcmp.lt.s32.totalorder %v2252, 4
        %v2275 = vsel %vm2271, %v2255, %v2258
        %v2276 = vsel %vm2274, %v2264, 2102212464
        %v2277 = vsel %vm2273, %v2261, %v2276
        %v2278 = vsel %vm2272, %v2275, %v2277
        %v2279 = vsel %vm2271, %v2258, %v2261
        %v2280 = vsel %vm2274, %v2267, 920167782
        %v2281 = vsel %vm2273, %v2264, %v2280
        %v2282 = vsel %vm2272, %v2279, %v2281
        %v2283 = vsel %vm2271, %v2261, %v2264
        %v2284 = vsel %vm2274, %v2270, 1326507024
        %v2285 = vsel %vm2273, %v2267, %v2284
        %v2286 = vsel %vm2272, %v2283, %v2285
        %v2287 = vshll.u32 %v2247, 8
        %v2288 = vmul.u32.u64.compose %v2287, %v2286
        %v2289 = vextract.low.u32 %v2288
        %v2290 = vextract.high.u32 %v2288
        %v2291 = vmul.u32.u64.compose %v2287, %v2282
        %v2292 = vextract.low.u32 %v2291
        %v2293 = vextract.high.u32 %v2291
        %v2294 = vmul.u32 %v2287, %v2278
        %v2295 = vadd.s32 %v2290, %v2292
        %vm2296 = vc.u32 %v2290, %v2292
        %v2297 = vadd.s32 %v2293, 1
        %v2298 = vsel %vm2296, %v2297, %v2293
        %v2299 = vadd.s32 %v2294, %v2298
        %v2300 = vadd.s32 %v2299, 536870912
        %v2301 = vshrl.u32 %v2300, 30
        %v2302 = vshll.u32 %v2301, 30
        %v2303 = vsub.s32 %v2299, %v2302
        %vm2304 = vcmp.lt.s32.totalorder %v2303, 0
        %v2305 = vsub.s32 0, %v2303
        %v2306 = vsel %vm2304, %v2305, %v2303
        %v2307 = vclz %v2306
        %v2308 = vsub.s32 %v2307, 2
        %vm2309 = vcmp.gt.s32.totalorder 0, %v2308
        %v2310 = vsel %vm2309, 0, %v2308
        %v2311 = vsub.s32 32, %v2310
        %v2312 = vshll.u32 %v2303, %v2310
        %v2313 = vshrl.u32 %v2295, %v2311
        %v2314 = vor.u32 %v2312, %v2313
        %v2315 = vsub.s32 4294967266, %v2310
        %v2316 = vadd.s32 %v2315, 127
        %v2317 = vshll.u32 %v2316, 23
        %v2318 = vor.u32 4788187, %v2317
        %v2319 = vand.u32 2147483647, %v2318
        %v2321 = vcvt.s32.f32 %v2314
        %v2322 = vmul.f32 %v2321, %v2319
        %v2323 = vxor.u32 %v2322, 2147483648
        %v2324 = vsel %vm2241, %v2323, %v2322
        %v2325 = vsub.s32 4, %v2301
        %v2326 = vsel %vm2241, %v2325, %v2301
        %v2327 = vsel %vm2240, %v369, %v2324
        %v2328 = vsel %vm2240, 0, %v2326
        %v2329 = vcosq.f32.pop %v2327
        %v2330 = vsinq.f32.pop %v2327
        %vm2331 = vweird.f32 %v369
        %v2332 = vadd.s32 %v2328, 3
        %v2333 = vand.u32 %v2332, 3
        %vm2334 = vcmp.lt.s32.totalorder %v2333, 2
        %vm2335 = vcmp.eq.s32.totalorder %v2333, 0
        %v2336 = vxor.u32 %v2330, 2147483648
        %v2337 = vsel %vm2335, %v2329, %v2336
        %vm2338 = vcmp.eq.s32.totalorder %v2333, 2
        %v2339 = vxor.u32 %v2329, 2147483648
        %v2340 = vsel %vm2338, %v2339, %v2330
        %v2341 = vsel %vm2334, %v2337, %v2340
        %v2342 = vsel %vm2331, nan, %v2341
        %v2343 = vand.u32 2147483647, %v370
        %vm2344 = vcmp.le.f32.partialorder %v2343, 0.7853982
        %vm2345 = vcmp.lt.s32.totalorder %v370, 0
        %v2346 = vand.u32 %v370, 2139095040
        %v2347 = vshrl.u32 %v2346, 23
        %v2348 = vsub.s32 %v2347, 127
        %v2349 = vand.u32 2147483647, %v370
        %v2350 = vand.u32 %v2349, 8388607
        %v2351 = vor.u32 %v2350, 8388608
        %v2352 = vsub.s32 0, %v2351
        %v2353 = vadd.s32 %v2348, 1
        %vm2354 = vcmp.gt.s32.totalorder %v2353, 0
        %v2355 = vsel %vm2354, %v2353, 0
        %v2356 = vshrl.u32 %v2355, 5
        %v2357 = vand.u32 %v2355, 31
        %v2358 = vsub.s32 32, %v2357
        %v2359 = vshrl.u32 683565275, %v2358
        %v2360 = vshll.u32 683565275, %v2357
        %v2361 = vshrl.u32 2475754826, %v2358
        %v2362 = vor.u32 %v2360, %v2361
        %v2363 = vshll.u32 2475754826, %v2357
        %v2364 = vshrl.u32 2131351028, %v2358
        %v2365 = vor.u32 %v2363, %v2364
        %v2366 = vshll.u32 2131351028, %v2357
        %v2367 = vshrl.u32 2102212464, %v2358
        %v2368 = vor.u32 %v2366, %v2367
        %v2369 = vshll.u32 2102212464, %v2357
        %v2370 = vshrl.u32 920167782, %v2358
        %v2371 = vor.u32 %v2369, %v2370
        %v2372 = vshll.u32 920167782, %v2357
        %v2373 = vshrl.u32 1326507024, %v2358
        %v2374 = vor.u32 %v2372, %v2373
        %vm2375 = vcmp.lt.s32.totalorder %v2356, 1
        %vm2376 = vcmp.lt.s32.totalorder %v2356, 2
        %vm2377 = vcmp.lt.s32.totalorder %v2356, 3
        %vm2378 = vcmp.lt.s32.totalorder %v2356, 4
        %v2379 = vsel %vm2375, %v2359, %v2362
        %v2380 = vsel %vm2378, %v2368, 2102212464
        %v2381 = vsel %vm2377, %v2365, %v2380
        %v2382 = vsel %vm2376, %v2379, %v2381
        %v2383 = vsel %vm2375, %v2362, %v2365
        %v2384 = vsel %vm2378, %v2371, 920167782
        %v2385 = vsel %vm2377, %v2368, %v2384
        %v2386 = vsel %vm2376, %v2383, %v2385
        %v2387 = vsel %vm2375, %v2365, %v2368
        %v2388 = vsel %vm2378, %v2374, 1326507024
        %v2389 = vsel %vm2377, %v2371, %v2388
        %v2390 = vsel %vm2376, %v2387, %v2389
        %v2391 = vshll.u32 %v2351, 8
        %v2392 = vmul.u32.u64.compose %v2391, %v2390
        %v2393 = vextract.low.u32 %v2392
        %v2394 = vextract.high.u32 %v2392
        %v2395 = vmul.u32.u64.compose %v2391, %v2386
        %v2396 = vextract.low.u32 %v2395
        %v2397 = vextract.high.u32 %v2395
        %v2398 = vmul.u32 %v2391, %v2382
        %v2399 = vadd.s32 %v2394, %v2396
        %vm2400 = vc.u32 %v2394, %v2396
        %v2401 = vadd.s32 %v2397, 1
        %v2402 = vsel %vm2400, %v2401, %v2397
        %v2403 = vadd.s32 %v2398, %v2402
        %v2404 = vadd.s32 %v2403, 536870912
        %v2405 = vshrl.u32 %v2404, 30
        %v2406 = vshll.u32 %v2405, 30
        %v2407 = vsub.s32 %v2403, %v2406
        %vm2408 = vcmp.lt.s32.totalorder %v2407, 0
        %v2409 = vsub.s32 0, %v2407
        %v2410 = vsel %vm2408, %v2409, %v2407
        %v2411 = vclz %v2410
        %v2412 = vsub.s32 %v2411, 2
        %vm2413 = vcmp.gt.s32.totalorder 0, %v2412
        %v2414 = vsel %vm2413, 0, %v2412
        %v2415 = vsub.s32 32, %v2414
        %v2416 = vshll.u32 %v2407, %v2414
        %v2417 = vshrl.u32 %v2399, %v2415
        %v2418 = vor.u32 %v2416, %v2417
        %v2419 = vsub.s32 4294967266, %v2414
        %v2420 = vadd.s32 %v2419, 127
        %v2421 = vshll.u32 %v2420, 23
        %v2422 = vor.u32 4788187, %v2421
        %v2423 = vand.u32 2147483647, %v2422
        %v2425 = vcvt.s32.f32 %v2418
        %v2426 = vmul.f32 %v2425, %v2423
        %v2427 = vxor.u32 %v2426, 2147483648
        %v2428 = vsel %vm2345, %v2427, %v2426
        %v2429 = vsub.s32 4, %v2405
        %v2430 = vsel %vm2345, %v2429, %v2405
        %v2431 = vsel %vm2344, %v370, %v2428
        %v2432 = vsel %vm2344, 0, %v2430
        %v2433 = vcosq.f32.pop %v2431
        %v2434 = vsinq.f32.pop %v2431
        %vm2435 = vweird.f32 %v370
        %v2436 = vadd.s32 %v2432, 3
        %v2437 = vand.u32 %v2436, 3
        %vm2438 = vcmp.lt.s32.totalorder %v2437, 2
        %vm2439 = vcmp.eq.s32.totalorder %v2437, 0
        %v2440 = vxor.u32 %v2434, 2147483648
        %v2441 = vsel %vm2439, %v2433, %v2440
        %vm2442 = vcmp.eq.s32.totalorder %v2437, 2
        %v2443 = vxor.u32 %v2433, 2147483648
        %v2444 = vsel %vm2442, %v2443, %v2434
        %v2445 = vsel %vm2438, %v2441, %v2444
        %v2446 = vsel %vm2435, nan, %v2445
        %v2447 = vand.u32 2147483647, %v371
        %vm2448 = vcmp.le.f32.partialorder %v2447, 0.7853982
        %vm2449 = vcmp.lt.s32.totalorder %v371, 0
        %v2450 = vand.u32 %v371, 2139095040
        %v2451 = vshrl.u32 %v2450, 23
        %v2452 = vsub.s32 %v2451, 127
        %v2453 = vand.u32 2147483647, %v371
        %v2454 = vand.u32 %v2453, 8388607
        %v2455 = vor.u32 %v2454, 8388608
        %v2456 = vsub.s32 0, %v2455
        %v2457 = vadd.s32 %v2452, 1
        %vm2458 = vcmp.gt.s32.totalorder %v2457, 0
        %v2459 = vsel %vm2458, %v2457, 0
        %v2460 = vshrl.u32 %v2459, 5
        %v2461 = vand.u32 %v2459, 31
        %v2462 = vsub.s32 32, %v2461
        %v2463 = vshrl.u32 683565275, %v2462
        %v2464 = vshll.u32 683565275, %v2461
        %v2465 = vshrl.u32 2475754826, %v2462
        %v2466 = vor.u32 %v2464, %v2465
        %v2467 = vshll.u32 2475754826, %v2461
        %v2468 = vshrl.u32 2131351028, %v2462
        %v2469 = vor.u32 %v2467, %v2468
        %v2470 = vshll.u32 2131351028, %v2461
        %v2471 = vshrl.u32 2102212464, %v2462
        %v2472 = vor.u32 %v2470, %v2471
        %v2473 = vshll.u32 2102212464, %v2461
        %v2474 = vshrl.u32 920167782, %v2462
        %v2475 = vor.u32 %v2473, %v2474
        %v2476 = vshll.u32 920167782, %v2461
        %v2477 = vshrl.u32 1326507024, %v2462
        %v2478 = vor.u32 %v2476, %v2477
        %vm2479 = vcmp.lt.s32.totalorder %v2460, 1
        %vm2480 = vcmp.lt.s32.totalorder %v2460, 2
        %vm2481 = vcmp.lt.s32.totalorder %v2460, 3
        %vm2482 = vcmp.lt.s32.totalorder %v2460, 4
        %v2483 = vsel %vm2479, %v2463, %v2466
        %v2484 = vsel %vm2482, %v2472, 2102212464
        %v2485 = vsel %vm2481, %v2469, %v2484
        %v2486 = vsel %vm2480, %v2483, %v2485
        %v2487 = vsel %vm2479, %v2466, %v2469
        %v2488 = vsel %vm2482, %v2475, 920167782
        %v2489 = vsel %vm2481, %v2472, %v2488
        %v2490 = vsel %vm2480, %v2487, %v2489
        %v2491 = vsel %vm2479, %v2469, %v2472
        %v2492 = vsel %vm2482, %v2478, 1326507024
        %v2493 = vsel %vm2481, %v2475, %v2492
        %v2494 = vsel %vm2480, %v2491, %v2493
        %v2495 = vshll.u32 %v2455, 8
        %v2496 = vmul.u32.u64.compose %v2495, %v2494
        %v2497 = vextract.low.u32 %v2496
        %v2498 = vextract.high.u32 %v2496
        %v2499 = vmul.u32.u64.compose %v2495, %v2490
        %v2500 = vextract.low.u32 %v2499
        %v2501 = vextract.high.u32 %v2499
        %v2502 = vmul.u32 %v2495, %v2486
        %v2503 = vadd.s32 %v2498, %v2500
        %vm2504 = vc.u32 %v2498, %v2500
        %v2505 = vadd.s32 %v2501, 1
        %v2506 = vsel %vm2504, %v2505, %v2501
        %v2507 = vadd.s32 %v2502, %v2506
        %v2508 = vadd.s32 %v2507, 536870912
        %v2509 = vshrl.u32 %v2508, 30
        %v2510 = vshll.u32 %v2509, 30
        %v2511 = vsub.s32 %v2507, %v2510
        %vm2512 = vcmp.lt.s32.totalorder %v2511, 0
        %v2513 = vsub.s32 0, %v2511
        %v2514 = vsel %vm2512, %v2513, %v2511
        %v2515 = vclz %v2514
        %v2516 = vsub.s32 %v2515, 2
        %vm2517 = vcmp.gt.s32.totalorder 0, %v2516
        %v2518 = vsel %vm2517, 0, %v2516
        %v2519 = vsub.s32 32, %v2518
        %v2520 = vshll.u32 %v2511, %v2518
        %v2521 = vshrl.u32 %v2503, %v2519
        %v2522 = vor.u32 %v2520, %v2521
        %v2523 = vsub.s32 4294967266, %v2518
        %v2524 = vadd.s32 %v2523, 127
        %v2525 = vshll.u32 %v2524, 23
        %v2526 = vor.u32 4788187, %v2525
        %v2527 = vand.u32 2147483647, %v2526
        %v2529 = vcvt.s32.f32 %v2522
        %v2530 = vmul.f32 %v2529, %v2527
        %v2531 = vxor.u32 %v2530, 2147483648
        %v2532 = vsel %vm2449, %v2531, %v2530
        %v2533 = vsub.s32 4, %v2509
        %v2534 = vsel %vm2449, %v2533, %v2509
        %v2535 = vsel %vm2448, %v371, %v2532
        %v2536 = vsel %vm2448, 0, %v2534
        %v2537 = vcosq.f32.pop %v2535
        %v2538 = vsinq.f32.pop %v2535
        %vm2539 = vweird.f32 %v371
        %v2540 = vadd.s32 %v2536, 3
        %v2541 = vand.u32 %v2540, 3
        %vm2542 = vcmp.lt.s32.totalorder %v2541, 2
        %vm2543 = vcmp.eq.s32.totalorder %v2541, 0
        %v2544 = vxor.u32 %v2538, 2147483648
        %v2545 = vsel %vm2543, %v2537, %v2544
        %vm2546 = vcmp.eq.s32.totalorder %v2541, 2
        %v2547 = vxor.u32 %v2537, 2147483648
        %v2548 = vsel %vm2546, %v2547, %v2538
        %v2549 = vsel %vm2542, %v2545, %v2548
        %v2550 = vsel %vm2539, nan, %v2549
        %v2551 = vand.u32 2147483647, %v372
        %vm2552 = vcmp.le.f32.partialorder %v2551, 0.7853982
        %vm2553 = vcmp.lt.s32.totalorder %v372, 0
        %v2554 = vand.u32 %v372, 2139095040
        %v2555 = vshrl.u32 %v2554, 23
        %v2556 = vsub.s32 %v2555, 127
        %v2557 = vand.u32 2147483647, %v372
        %v2558 = vand.u32 %v2557, 8388607
        %v2559 = vor.u32 %v2558, 8388608
        %v2560 = vsub.s32 0, %v2559
        %v2561 = vadd.s32 %v2556, 1
        %vm2562 = vcmp.gt.s32.totalorder %v2561, 0
        %v2563 = vsel %vm2562, %v2561, 0
        %v2564 = vshrl.u32 %v2563, 5
        %v2565 = vand.u32 %v2563, 31
        %v2566 = vsub.s32 32, %v2565
        %v2567 = vshrl.u32 683565275, %v2566
        %v2568 = vshll.u32 683565275, %v2565
        %v2569 = vshrl.u32 2475754826, %v2566
        %v2570 = vor.u32 %v2568, %v2569
        %v2571 = vshll.u32 2475754826, %v2565
        %v2572 = vshrl.u32 2131351028, %v2566
        %v2573 = vor.u32 %v2571, %v2572
        %v2574 = vshll.u32 2131351028, %v2565
        %v2575 = vshrl.u32 2102212464, %v2566
        %v2576 = vor.u32 %v2574, %v2575
        %v2577 = vshll.u32 2102212464, %v2565
        %v2578 = vshrl.u32 920167782, %v2566
        %v2579 = vor.u32 %v2577, %v2578
        %v2580 = vshll.u32 920167782, %v2565
        %v2581 = vshrl.u32 1326507024, %v2566
        %v2582 = vor.u32 %v2580, %v2581
        %vm2583 = vcmp.lt.s32.totalorder %v2564, 1
        %vm2584 = vcmp.lt.s32.totalorder %v2564, 2
        %vm2585 = vcmp.lt.s32.totalorder %v2564, 3
        %vm2586 = vcmp.lt.s32.totalorder %v2564, 4
        %v2587 = vsel %vm2583, %v2567, %v2570
        %v2588 = vsel %vm2586, %v2576, 2102212464
        %v2589 = vsel %vm2585, %v2573, %v2588
        %v2590 = vsel %vm2584, %v2587, %v2589
        %v2591 = vsel %vm2583, %v2570, %v2573
        %v2592 = vsel %vm2586, %v2579, 920167782
        %v2593 = vsel %vm2585, %v2576, %v2592
        %v2594 = vsel %vm2584, %v2591, %v2593
        %v2595 = vsel %vm2583, %v2573, %v2576
        %v2596 = vsel %vm2586, %v2582, 1326507024
        %v2597 = vsel %vm2585, %v2579, %v2596
        %v2598 = vsel %vm2584, %v2595, %v2597
        %v2599 = vshll.u32 %v2559, 8
        %v2600 = vmul.u32.u64.compose %v2599, %v2598
        %v2601 = vextract.low.u32 %v2600
        %v2602 = vextract.high.u32 %v2600
        %v2603 = vmul.u32.u64.compose %v2599, %v2594
        %v2604 = vextract.low.u32 %v2603
        %v2605 = vextract.high.u32 %v2603
        %v2606 = vmul.u32 %v2599, %v2590
        %v2607 = vadd.s32 %v2602, %v2604
        %vm2608 = vc.u32 %v2602, %v2604
        %v2609 = vadd.s32 %v2605, 1
        %v2610 = vsel %vm2608, %v2609, %v2605
        %v2611 = vadd.s32 %v2606, %v2610
        %v2612 = vadd.s32 %v2611, 536870912
        %v2613 = vshrl.u32 %v2612, 30
        %v2614 = vshll.u32 %v2613, 30
        %v2615 = vsub.s32 %v2611, %v2614
        %vm2616 = vcmp.lt.s32.totalorder %v2615, 0
        %v2617 = vsub.s32 0, %v2615
        %v2618 = vsel %vm2616, %v2617, %v2615
        %v2619 = vclz %v2618
        %v2620 = vsub.s32 %v2619, 2
        %vm2621 = vcmp.gt.s32.totalorder 0, %v2620
        %v2622 = vsel %vm2621, 0, %v2620
        %v2623 = vsub.s32 32, %v2622
        %v2624 = vshll.u32 %v2615, %v2622
        %v2625 = vshrl.u32 %v2607, %v2623
        %v2626 = vor.u32 %v2624, %v2625
        %v2627 = vsub.s32 4294967266, %v2622
        %v2628 = vadd.s32 %v2627, 127
        %v2629 = vshll.u32 %v2628, 23
        %v2630 = vor.u32 4788187, %v2629
        %v2631 = vand.u32 2147483647, %v2630
        %v2633 = vcvt.s32.f32 %v2626
        %v2634 = vmul.f32 %v2633, %v2631
        %v2635 = vxor.u32 %v2634, 2147483648
        %v2636 = vsel %vm2553, %v2635, %v2634
        %v2637 = vsub.s32 4, %v2613
        %v2638 = vsel %vm2553, %v2637, %v2613
        %v2639 = vsel %vm2552, %v372, %v2636
        %v2640 = vsel %vm2552, 0, %v2638
        %v2641 = vcosq.f32.pop %v2639
        %v2642 = vsinq.f32.pop %v2639
        %vm2643 = vweird.f32 %v372
        %v2644 = vadd.s32 %v2640, 3
        %v2645 = vand.u32 %v2644, 3
        %vm2646 = vcmp.lt.s32.totalorder %v2645, 2
        %vm2647 = vcmp.eq.s32.totalorder %v2645, 0
        %v2648 = vxor.u32 %v2642, 2147483648
        %v2649 = vsel %vm2647, %v2641, %v2648
        %vm2650 = vcmp.eq.s32.totalorder %v2645, 2
        %v2651 = vxor.u32 %v2641, 2147483648
        %v2652 = vsel %vm2650, %v2651, %v2642
        %v2653 = vsel %vm2646, %v2649, %v2652
        %v2654 = vsel %vm2643, nan, %v2653
        %v2655 = vand.u32 2147483647, %v373
        %vm2656 = vcmp.le.f32.partialorder %v2655, 0.7853982
        %vm2657 = vcmp.lt.s32.totalorder %v373, 0
        %v2658 = vand.u32 %v373, 2139095040
        %v2659 = vshrl.u32 %v2658, 23
        %v2660 = vsub.s32 %v2659, 127
        %v2661 = vand.u32 2147483647, %v373
        %v2662 = vand.u32 %v2661, 8388607
        %v2663 = vor.u32 %v2662, 8388608
        %v2664 = vsub.s32 0, %v2663
        %v2665 = vadd.s32 %v2660, 1
        %vm2666 = vcmp.gt.s32.totalorder %v2665, 0
        %v2667 = vsel %vm2666, %v2665, 0
        %v2668 = vshrl.u32 %v2667, 5
        %v2669 = vand.u32 %v2667, 31
        %v2670 = vsub.s32 32, %v2669
        %v2671 = vshrl.u32 683565275, %v2670
        %v2672 = vshll.u32 683565275, %v2669
        %v2673 = vshrl.u32 2475754826, %v2670
        %v2674 = vor.u32 %v2672, %v2673
        %v2675 = vshll.u32 2475754826, %v2669
        %v2676 = vshrl.u32 2131351028, %v2670
        %v2677 = vor.u32 %v2675, %v2676
        %v2678 = vshll.u32 2131351028, %v2669
        %v2679 = vshrl.u32 2102212464, %v2670
        %v2680 = vor.u32 %v2678, %v2679
        %v2681 = vshll.u32 2102212464, %v2669
        %v2682 = vshrl.u32 920167782, %v2670
        %v2683 = vor.u32 %v2681, %v2682
        %v2684 = vshll.u32 920167782, %v2669
        %v2685 = vshrl.u32 1326507024, %v2670
        %v2686 = vor.u32 %v2684, %v2685
        %vm2687 = vcmp.lt.s32.totalorder %v2668, 1
        %vm2688 = vcmp.lt.s32.totalorder %v2668, 2
        %vm2689 = vcmp.lt.s32.totalorder %v2668, 3
        %vm2690 = vcmp.lt.s32.totalorder %v2668, 4
        %v2691 = vsel %vm2687, %v2671, %v2674
        %v2692 = vsel %vm2690, %v2680, 2102212464
        %v2693 = vsel %vm2689, %v2677, %v2692
        %v2694 = vsel %vm2688, %v2691, %v2693
        %v2695 = vsel %vm2687, %v2674, %v2677
        %v2696 = vsel %vm2690, %v2683, 920167782
        %v2697 = vsel %vm2689, %v2680, %v2696
        %v2698 = vsel %vm2688, %v2695, %v2697
        %v2699 = vsel %vm2687, %v2677, %v2680
        %v2700 = vsel %vm2690, %v2686, 1326507024
        %v2701 = vsel %vm2689, %v2683, %v2700
        %v2702 = vsel %vm2688, %v2699, %v2701
        %v2703 = vshll.u32 %v2663, 8
        %v2704 = vmul.u32.u64.compose %v2703, %v2702
        %v2705 = vextract.low.u32 %v2704
        %v2706 = vextract.high.u32 %v2704
        %v2707 = vmul.u32.u64.compose %v2703, %v2698
        %v2708 = vextract.low.u32 %v2707
        %v2709 = vextract.high.u32 %v2707
        %v2710 = vmul.u32 %v2703, %v2694
        %v2711 = vadd.s32 %v2706, %v2708
        %vm2712 = vc.u32 %v2706, %v2708
        %v2713 = vadd.s32 %v2709, 1
        %v2714 = vsel %vm2712, %v2713, %v2709
        %v2715 = vadd.s32 %v2710, %v2714
        %v2716 = vadd.s32 %v2715, 536870912
        %v2717 = vshrl.u32 %v2716, 30
        %v2718 = vshll.u32 %v2717, 30
        %v2719 = vsub.s32 %v2715, %v2718
        %vm2720 = vcmp.lt.s32.totalorder %v2719, 0
        %v2721 = vsub.s32 0, %v2719
        %v2722 = vsel %vm2720, %v2721, %v2719
        %v2723 = vclz %v2722
        %v2724 = vsub.s32 %v2723, 2
        %vm2725 = vcmp.gt.s32.totalorder 0, %v2724
        %v2726 = vsel %vm2725, 0, %v2724
        %v2727 = vsub.s32 32, %v2726
        %v2728 = vshll.u32 %v2719, %v2726
        %v2729 = vshrl.u32 %v2711, %v2727
        %v2730 = vor.u32 %v2728, %v2729
        %v2731 = vsub.s32 4294967266, %v2726
        %v2732 = vadd.s32 %v2731, 127
        %v2733 = vshll.u32 %v2732, 23
        %v2734 = vor.u32 4788187, %v2733
        %v2735 = vand.u32 2147483647, %v2734
        %v2737 = vcvt.s32.f32 %v2730
        %v2738 = vmul.f32 %v2737, %v2735
        %v2739 = vxor.u32 %v2738, 2147483648
        %v2740 = vsel %vm2657, %v2739, %v2738
        %v2741 = vsub.s32 4, %v2717
        %v2742 = vsel %vm2657, %v2741, %v2717
        %v2743 = vsel %vm2656, %v373, %v2740
        %v2744 = vsel %vm2656, 0, %v2742
        %v2745 = vcosq.f32.pop %v2743
        %v2746 = vsinq.f32.pop %v2743
        %vm2747 = vweird.f32 %v373
        %v2748 = vadd.s32 %v2744, 3
        %v2749 = vand.u32 %v2748, 3
        %vm2750 = vcmp.lt.s32.totalorder %v2749, 2
        %vm2751 = vcmp.eq.s32.totalorder %v2749, 0
        %v2752 = vxor.u32 %v2746, 2147483648
        %v2753 = vsel %vm2751, %v2745, %v2752
        %vm2754 = vcmp.eq.s32.totalorder %v2749, 2
        %v2755 = vxor.u32 %v2745, 2147483648
        %v2756 = vsel %vm2754, %v2755, %v2746
        %v2757 = vsel %vm2750, %v2753, %v2756
        %v2758 = vsel %vm2747, nan, %v2757
        %v2759 = vand.u32 2147483647, %v374
        %vm2760 = vcmp.le.f32.partialorder %v2759, 0.7853982
        %vm2761 = vcmp.lt.s32.totalorder %v374, 0
        %v2762 = vand.u32 %v374, 2139095040
        %v2763 = vshrl.u32 %v2762, 23
        %v2764 = vsub.s32 %v2763, 127
        %v2765 = vand.u32 2147483647, %v374
        %v2766 = vand.u32 %v2765, 8388607
        %v2767 = vor.u32 %v2766, 8388608
        %v2768 = vsub.s32 0, %v2767
        %v2769 = vadd.s32 %v2764, 1
        %vm2770 = vcmp.gt.s32.totalorder %v2769, 0
        %v2771 = vsel %vm2770, %v2769, 0
        %v2772 = vshrl.u32 %v2771, 5
        %v2773 = vand.u32 %v2771, 31
        %v2774 = vsub.s32 32, %v2773
        %v2775 = vshrl.u32 683565275, %v2774
        %v2776 = vshll.u32 683565275, %v2773
        %v2777 = vshrl.u32 2475754826, %v2774
        %v2778 = vor.u32 %v2776, %v2777
        %v2779 = vshll.u32 2475754826, %v2773
        %v2780 = vshrl.u32 2131351028, %v2774
        %v2781 = vor.u32 %v2779, %v2780
        %v2782 = vshll.u32 2131351028, %v2773
        %v2783 = vshrl.u32 2102212464, %v2774
        %v2784 = vor.u32 %v2782, %v2783
        %v2785 = vshll.u32 2102212464, %v2773
        %v2786 = vshrl.u32 920167782, %v2774
        %v2787 = vor.u32 %v2785, %v2786
        %v2788 = vshll.u32 920167782, %v2773
        %v2789 = vshrl.u32 1326507024, %v2774
        %v2790 = vor.u32 %v2788, %v2789
        %vm2791 = vcmp.lt.s32.totalorder %v2772, 1
        %vm2792 = vcmp.lt.s32.totalorder %v2772, 2
        %vm2793 = vcmp.lt.s32.totalorder %v2772, 3
        %vm2794 = vcmp.lt.s32.totalorder %v2772, 4
        %v2795 = vsel %vm2791, %v2775, %v2778
        %v2796 = vsel %vm2794, %v2784, 2102212464
        %v2797 = vsel %vm2793, %v2781, %v2796
        %v2798 = vsel %vm2792, %v2795, %v2797
        %v2799 = vsel %vm2791, %v2778, %v2781
        %v2800 = vsel %vm2794, %v2787, 920167782
        %v2801 = vsel %vm2793, %v2784, %v2800
        %v2802 = vsel %vm2792, %v2799, %v2801
        %v2803 = vsel %vm2791, %v2781, %v2784
        %v2804 = vsel %vm2794, %v2790, 1326507024
        %v2805 = vsel %vm2793, %v2787, %v2804
        %v2806 = vsel %vm2792, %v2803, %v2805
        %v2807 = vshll.u32 %v2767, 8
        %v2808 = vmul.u32.u64.compose %v2807, %v2806
        %v2809 = vextract.low.u32 %v2808
        %v2810 = vextract.high.u32 %v2808
        %v2811 = vmul.u32.u64.compose %v2807, %v2802
        %v2812 = vextract.low.u32 %v2811
        %v2813 = vextract.high.u32 %v2811
        %v2814 = vmul.u32 %v2807, %v2798
        %v2815 = vadd.s32 %v2810, %v2812
        %vm2816 = vc.u32 %v2810, %v2812
        %v2817 = vadd.s32 %v2813, 1
        %v2818 = vsel %vm2816, %v2817, %v2813
        %v2819 = vadd.s32 %v2814, %v2818
        %v2820 = vadd.s32 %v2819, 536870912
        %v2821 = vshrl.u32 %v2820, 30
        %v2822 = vshll.u32 %v2821, 30
        %v2823 = vsub.s32 %v2819, %v2822
        %vm2824 = vcmp.lt.s32.totalorder %v2823, 0
        %v2825 = vsub.s32 0, %v2823
        %v2826 = vsel %vm2824, %v2825, %v2823
        %v2827 = vclz %v2826
        %v2828 = vsub.s32 %v2827, 2
        %vm2829 = vcmp.gt.s32.totalorder 0, %v2828
        %v2830 = vsel %vm2829, 0, %v2828
        %v2831 = vsub.s32 32, %v2830
        %v2832 = vshll.u32 %v2823, %v2830
        %v2833 = vshrl.u32 %v2815, %v2831
        %v2834 = vor.u32 %v2832, %v2833
        %v2835 = vsub.s32 4294967266, %v2830
        %v2836 = vadd.s32 %v2835, 127
        %v2837 = vshll.u32 %v2836, 23
        %v2838 = vor.u32 4788187, %v2837
        %v2839 = vand.u32 2147483647, %v2838
        %v2841 = vcvt.s32.f32 %v2834
        %v2842 = vmul.f32 %v2841, %v2839
        %v2843 = vxor.u32 %v2842, 2147483648
        %v2844 = vsel %vm2761, %v2843, %v2842
        %v2845 = vsub.s32 4, %v2821
        %v2846 = vsel %vm2761, %v2845, %v2821
        %v2847 = vsel %vm2760, %v374, %v2844
        %v2848 = vsel %vm2760, 0, %v2846
        %v2849 = vcosq.f32.pop %v2847
        %v2850 = vsinq.f32.pop %v2847
        %vm2851 = vweird.f32 %v374
        %v2852 = vadd.s32 %v2848, 3
        %v2853 = vand.u32 %v2852, 3
        %vm2854 = vcmp.lt.s32.totalorder %v2853, 2
        %vm2855 = vcmp.eq.s32.totalorder %v2853, 0
        %v2856 = vxor.u32 %v2850, 2147483648
        %v2857 = vsel %vm2855, %v2849, %v2856
        %vm2858 = vcmp.eq.s32.totalorder %v2853, 2
        %v2859 = vxor.u32 %v2849, 2147483648
        %v2860 = vsel %vm2858, %v2859, %v2850
        %v2861 = vsel %vm2854, %v2857, %v2860
        %v2862 = vsel %vm2851, nan, %v2861
        %v2863 = vand.u32 2147483647, %v367
        %vm2864 = vcmp.le.f32.partialorder %v2863, 0.7853982
        %vm2865 = vcmp.lt.s32.totalorder %v367, 0
        %v2866 = vand.u32 %v367, 2139095040
        %v2867 = vshrl.u32 %v2866, 23
        %v2868 = vsub.s32 %v2867, 127
        %v2869 = vand.u32 2147483647, %v367
        %v2870 = vand.u32 %v2869, 8388607
        %v2871 = vor.u32 %v2870, 8388608
        %v2872 = vsub.s32 0, %v2871
        %v2873 = vadd.s32 %v2868, 1
        %vm2874 = vcmp.gt.s32.totalorder %v2873, 0
        %v2875 = vsel %vm2874, %v2873, 0
        %v2876 = vshrl.u32 %v2875, 5
        %v2877 = vand.u32 %v2875, 31
        %v2878 = vsub.s32 32, %v2877
        %v2879 = vshrl.u32 683565275, %v2878
        %v2880 = vshll.u32 683565275, %v2877
        %v2881 = vshrl.u32 2475754826, %v2878
        %v2882 = vor.u32 %v2880, %v2881
        %v2883 = vshll.u32 2475754826, %v2877
        %v2884 = vshrl.u32 2131351028, %v2878
        %v2885 = vor.u32 %v2883, %v2884
        %v2886 = vshll.u32 2131351028, %v2877
        %v2887 = vshrl.u32 2102212464, %v2878
        %v2888 = vor.u32 %v2886, %v2887
        %v2889 = vshll.u32 2102212464, %v2877
        %v2890 = vshrl.u32 920167782, %v2878
        %v2891 = vor.u32 %v2889, %v2890
        %v2892 = vshll.u32 920167782, %v2877
        %v2893 = vshrl.u32 1326507024, %v2878
        %v2894 = vor.u32 %v2892, %v2893
        %vm2895 = vcmp.lt.s32.totalorder %v2876, 1
        %vm2896 = vcmp.lt.s32.totalorder %v2876, 2
        %vm2897 = vcmp.lt.s32.totalorder %v2876, 3
        %vm2898 = vcmp.lt.s32.totalorder %v2876, 4
        %v2899 = vsel %vm2895, %v2879, %v2882
        %v2900 = vsel %vm2898, %v2888, 2102212464
        %v2901 = vsel %vm2897, %v2885, %v2900
        %v2902 = vsel %vm2896, %v2899, %v2901
        %v2903 = vsel %vm2895, %v2882, %v2885
        %v2904 = vsel %vm2898, %v2891, 920167782
        %v2905 = vsel %vm2897, %v2888, %v2904
        %v2906 = vsel %vm2896, %v2903, %v2905
        %v2907 = vsel %vm2895, %v2885, %v2888
        %v2908 = vsel %vm2898, %v2894, 1326507024
        %v2909 = vsel %vm2897, %v2891, %v2908
        %v2910 = vsel %vm2896, %v2907, %v2909
        %v2911 = vshll.u32 %v2871, 8
        %v2912 = vmul.u32.u64.compose %v2911, %v2910
        %v2913 = vextract.low.u32 %v2912
        %v2914 = vextract.high.u32 %v2912
        %v2915 = vmul.u32.u64.compose %v2911, %v2906
        %v2916 = vextract.low.u32 %v2915
        %v2917 = vextract.high.u32 %v2915
        %v2918 = vmul.u32 %v2911, %v2902
        %v2919 = vadd.s32 %v2914, %v2916
        %vm2920 = vc.u32 %v2914, %v2916
        %v2921 = vadd.s32 %v2917, 1
        %v2922 = vsel %vm2920, %v2921, %v2917
        %v2923 = vadd.s32 %v2918, %v2922
        %v2924 = vadd.s32 %v2923, 536870912
        %v2925 = vshrl.u32 %v2924, 30
        %v2926 = vshll.u32 %v2925, 30
        %v2927 = vsub.s32 %v2923, %v2926
        %vm2928 = vcmp.lt.s32.totalorder %v2927, 0
        %v2929 = vsub.s32 0, %v2927
        %v2930 = vsel %vm2928, %v2929, %v2927
        %v2931 = vclz %v2930
        %v2932 = vsub.s32 %v2931, 2
        %vm2933 = vcmp.gt.s32.totalorder 0, %v2932
        %v2934 = vsel %vm2933, 0, %v2932
        %v2935 = vsub.s32 32, %v2934
        %v2936 = vshll.u32 %v2927, %v2934
        %v2937 = vshrl.u32 %v2919, %v2935
        %v2938 = vor.u32 %v2936, %v2937
        %v2939 = vsub.s32 4294967266, %v2934
        %v2940 = vadd.s32 %v2939, 127
        %v2941 = vshll.u32 %v2940, 23
        %v2942 = vor.u32 4788187, %v2941
        %v2943 = vand.u32 2147483647, %v2942
        %v2945 = vcvt.s32.f32 %v2938
        %v2946 = vmul.f32 %v2945, %v2943
        %v2947 = vxor.u32 %v2946, 2147483648
        %v2948 = vsel %vm2865, %v2947, %v2946
        %v2949 = vsub.s32 4, %v2925
        %v2950 = vsel %vm2865, %v2949, %v2925
        %v2951 = vsel %vm2864, %v367, %v2948
        %v2952 = vsel %vm2864, 0, %v2950
        %v2953 = vcosq.f32.pop %v2951
        %v2954 = vsinq.f32.pop %v2951
        %vm2955 = vweird.f32 %v367
        %v2956 = vand.u32 %v2952, 3
        %vm2957 = vcmp.lt.s32.totalorder %v2956, 2
        %vm2958 = vcmp.eq.s32.totalorder %v2956, 0
        %v2959 = vxor.u32 %v2954, 2147483648
        %v2960 = vsel %vm2958, %v2953, %v2959
        %vm2961 = vcmp.eq.s32.totalorder %v2956, 2
        %v2962 = vxor.u32 %v2953, 2147483648
        %v2963 = vsel %vm2961, %v2962, %v2954
        %v2964 = vsel %vm2957, %v2960, %v2963
        %v2965 = vsel %vm2955, nan, %v2964
        %v2966 = vand.u32 2147483647, %v368
        %vm2967 = vcmp.le.f32.partialorder %v2966, 0.7853982
        %vm2968 = vcmp.lt.s32.totalorder %v368, 0
        %v2969 = vand.u32 %v368, 2139095040
        %v2970 = vshrl.u32 %v2969, 23
        %v2971 = vsub.s32 %v2970, 127
        %v2972 = vand.u32 2147483647, %v368
        %v2973 = vand.u32 %v2972, 8388607
        %v2974 = vor.u32 %v2973, 8388608
        %v2975 = vsub.s32 0, %v2974
        %v2976 = vadd.s32 %v2971, 1
        %vm2977 = vcmp.gt.s32.totalorder %v2976, 0
        %v2978 = vsel %vm2977, %v2976, 0
        %v2979 = vshrl.u32 %v2978, 5
        %v2980 = vand.u32 %v2978, 31
        %v2981 = vsub.s32 32, %v2980
        %v2982 = vshrl.u32 683565275, %v2981
        %v2983 = vshll.u32 683565275, %v2980
        %v2984 = vshrl.u32 2475754826, %v2981
        %v2985 = vor.u32 %v2983, %v2984
        %v2986 = vshll.u32 2475754826, %v2980
        %v2987 = vshrl.u32 2131351028, %v2981
        %v2988 = vor.u32 %v2986, %v2987
        %v2989 = vshll.u32 2131351028, %v2980
        %v2990 = vshrl.u32 2102212464, %v2981
        %v2991 = vor.u32 %v2989, %v2990
        %v2992 = vshll.u32 2102212464, %v2980
        %v2993 = vshrl.u32 920167782, %v2981
        %v2994 = vor.u32 %v2992, %v2993
        %v2995 = vshll.u32 920167782, %v2980
        %v2996 = vshrl.u32 1326507024, %v2981
        %v2997 = vor.u32 %v2995, %v2996
        %vm2998 = vcmp.lt.s32.totalorder %v2979, 1
        %vm2999 = vcmp.lt.s32.totalorder %v2979, 2
        %vm3000 = vcmp.lt.s32.totalorder %v2979, 3
        %vm3001 = vcmp.lt.s32.totalorder %v2979, 4
        %v3002 = vsel %vm2998, %v2982, %v2985
        %v3003 = vsel %vm3001, %v2991, 2102212464
        %v3004 = vsel %vm3000, %v2988, %v3003
        %v3005 = vsel %vm2999, %v3002, %v3004
        %v3006 = vsel %vm2998, %v2985, %v2988
        %v3007 = vsel %vm3001, %v2994, 920167782
        %v3008 = vsel %vm3000, %v2991, %v3007
        %v3009 = vsel %vm2999, %v3006, %v3008
        %v3010 = vsel %vm2998, %v2988, %v2991
        %v3011 = vsel %vm3001, %v2997, 1326507024
        %v3012 = vsel %vm3000, %v2994, %v3011
        %v3013 = vsel %vm2999, %v3010, %v3012
        %v3014 = vshll.u32 %v2974, 8
        %v3015 = vmul.u32.u64.compose %v3014, %v3013
        %v3016 = vextract.low.u32 %v3015
        %v3017 = vextract.high.u32 %v3015
        %v3018 = vmul.u32.u64.compose %v3014, %v3009
        %v3019 = vextract.low.u32 %v3018
        %v3020 = vextract.high.u32 %v3018
        %v3021 = vmul.u32 %v3014, %v3005
        %v3022 = vadd.s32 %v3017, %v3019
        %vm3023 = vc.u32 %v3017, %v3019
        %v3024 = vadd.s32 %v3020, 1
        %v3025 = vsel %vm3023, %v3024, %v3020
        %v3026 = vadd.s32 %v3021, %v3025
        %v3027 = vadd.s32 %v3026, 536870912
        %v3028 = vshrl.u32 %v3027, 30
        %v3029 = vshll.u32 %v3028, 30
        %v3030 = vsub.s32 %v3026, %v3029
        %vm3031 = vcmp.lt.s32.totalorder %v3030, 0
        %v3032 = vsub.s32 0, %v3030
        %v3033 = vsel %vm3031, %v3032, %v3030
        %v3034 = vclz %v3033
        %v3035 = vsub.s32 %v3034, 2
        %vm3036 = vcmp.gt.s32.totalorder 0, %v3035
        %v3037 = vsel %vm3036, 0, %v3035
        %v3038 = vsub.s32 32, %v3037
        %v3039 = vshll.u32 %v3030, %v3037
        %v3040 = vshrl.u32 %v3022, %v3038
        %v3041 = vor.u32 %v3039, %v3040
        %v3042 = vsub.s32 4294967266, %v3037
        %v3043 = vadd.s32 %v3042, 127
        %v3044 = vshll.u32 %v3043, 23
        %v3045 = vor.u32 4788187, %v3044
        %v3046 = vand.u32 2147483647, %v3045
        %v3048 = vcvt.s32.f32 %v3041
        %v3049 = vmul.f32 %v3048, %v3046
        %v3050 = vxor.u32 %v3049, 2147483648
        %v3051 = vsel %vm2968, %v3050, %v3049
        %v3052 = vsub.s32 4, %v3028
        %v3053 = vsel %vm2968, %v3052, %v3028
        %v3054 = vsel %vm2967, %v368, %v3051
        %v3055 = vsel %vm2967, 0, %v3053
        %v3056 = vcosq.f32.pop %v3054
        %v3057 = vsinq.f32.pop %v3054
        %vm3058 = vweird.f32 %v368
        %v3059 = vand.u32 %v3055, 3
        %vm3060 = vcmp.lt.s32.totalorder %v3059, 2
        %vm3061 = vcmp.eq.s32.totalorder %v3059, 0
        %v3062 = vxor.u32 %v3057, 2147483648
        %v3063 = vsel %vm3061, %v3056, %v3062
        %vm3064 = vcmp.eq.s32.totalorder %v3059, 2
        %v3065 = vxor.u32 %v3056, 2147483648
        %v3066 = vsel %vm3064, %v3065, %v3057
        %v3067 = vsel %vm3060, %v3063, %v3066
        %v3068 = vsel %vm3058, nan, %v3067
        %v3069 = vand.u32 2147483647, %v369
        %vm3070 = vcmp.le.f32.partialorder %v3069, 0.7853982
        %vm3071 = vcmp.lt.s32.totalorder %v369, 0
        %v3072 = vand.u32 %v369, 2139095040
        %v3073 = vshrl.u32 %v3072, 23
        %v3074 = vsub.s32 %v3073, 127
        %v3075 = vand.u32 2147483647, %v369
        %v3076 = vand.u32 %v3075, 8388607
        %v3077 = vor.u32 %v3076, 8388608
        %v3078 = vsub.s32 0, %v3077
        %v3079 = vadd.s32 %v3074, 1
        %vm3080 = vcmp.gt.s32.totalorder %v3079, 0
        %v3081 = vsel %vm3080, %v3079, 0
        %v3082 = vshrl.u32 %v3081, 5
        %v3083 = vand.u32 %v3081, 31
        %v3084 = vsub.s32 32, %v3083
        %v3085 = vshrl.u32 683565275, %v3084
        %v3086 = vshll.u32 683565275, %v3083
        %v3087 = vshrl.u32 2475754826, %v3084
        %v3088 = vor.u32 %v3086, %v3087
        %v3089 = vshll.u32 2475754826, %v3083
        %v3090 = vshrl.u32 2131351028, %v3084
        %v3091 = vor.u32 %v3089, %v3090
        %v3092 = vshll.u32 2131351028, %v3083
        %v3093 = vshrl.u32 2102212464, %v3084
        %v3094 = vor.u32 %v3092, %v3093
        %v3095 = vshll.u32 2102212464, %v3083
        %v3096 = vshrl.u32 920167782, %v3084
        %v3097 = vor.u32 %v3095, %v3096
        %v3098 = vshll.u32 920167782, %v3083
        %v3099 = vshrl.u32 1326507024, %v3084
        %v3100 = vor.u32 %v3098, %v3099
        %vm3101 = vcmp.lt.s32.totalorder %v3082, 1
        %vm3102 = vcmp.lt.s32.totalorder %v3082, 2
        %vm3103 = vcmp.lt.s32.totalorder %v3082, 3
        %vm3104 = vcmp.lt.s32.totalorder %v3082, 4
        %v3105 = vsel %vm3101, %v3085, %v3088
        %v3106 = vsel %vm3104, %v3094, 2102212464
        %v3107 = vsel %vm3103, %v3091, %v3106
        %v3108 = vsel %vm3102, %v3105, %v3107
        %v3109 = vsel %vm3101, %v3088, %v3091
        %v3110 = vsel %vm3104, %v3097, 920167782
        %v3111 = vsel %vm3103, %v3094, %v3110
        %v3112 = vsel %vm3102, %v3109, %v3111
        %v3113 = vsel %vm3101, %v3091, %v3094
        %v3114 = vsel %vm3104, %v3100, 1326507024
        %v3115 = vsel %vm3103, %v3097, %v3114
        %v3116 = vsel %vm3102, %v3113, %v3115
        %v3117 = vshll.u32 %v3077, 8
        %v3118 = vmul.u32.u64.compose %v3117, %v3116
        %v3119 = vextract.low.u32 %v3118
        %v3120 = vextract.high.u32 %v3118
        %v3121 = vmul.u32.u64.compose %v3117, %v3112
        %v3122 = vextract.low.u32 %v3121
        %v3123 = vextract.high.u32 %v3121
        %v3124 = vmul.u32 %v3117, %v3108
        %v3125 = vadd.s32 %v3120, %v3122
        %vm3126 = vc.u32 %v3120, %v3122
        %v3127 = vadd.s32 %v3123, 1
        %v3128 = vsel %vm3126, %v3127, %v3123
        %v3129 = vadd.s32 %v3124, %v3128
        %v3130 = vadd.s32 %v3129, 536870912
        %v3131 = vshrl.u32 %v3130, 30
        %v3132 = vshll.u32 %v3131, 30
        %v3133 = vsub.s32 %v3129, %v3132
        %vm3134 = vcmp.lt.s32.totalorder %v3133, 0
        %v3135 = vsub.s32 0, %v3133
        %v3136 = vsel %vm3134, %v3135, %v3133
        %v3137 = vclz %v3136
        %v3138 = vsub.s32 %v3137, 2
        %vm3139 = vcmp.gt.s32.totalorder 0, %v3138
        %v3140 = vsel %vm3139, 0, %v3138
        %v3141 = vsub.s32 32, %v3140
        %v3142 = vshll.u32 %v3133, %v3140
        %v3143 = vshrl.u32 %v3125, %v3141
        %v3144 = vor.u32 %v3142, %v3143
        %v3145 = vsub.s32 4294967266, %v3140
        %v3146 = vadd.s32 %v3145, 127
        %v3147 = vshll.u32 %v3146, 23
        %v3148 = vor.u32 4788187, %v3147
        %v3149 = vand.u32 2147483647, %v3148
        %v3151 = vcvt.s32.f32 %v3144
        %v3152 = vmul.f32 %v3151, %v3149
        %v3153 = vxor.u32 %v3152, 2147483648
        %v3154 = vsel %vm3071, %v3153, %v3152
        %v3155 = vsub.s32 4, %v3131
        %v3156 = vsel %vm3071, %v3155, %v3131
        %v3157 = vsel %vm3070, %v369, %v3154
        %v3158 = vsel %vm3070, 0, %v3156
        %v3159 = vcosq.f32.pop %v3157
        %v3160 = vsinq.f32.pop %v3157
        %vm3161 = vweird.f32 %v369
        %v3162 = vand.u32 %v3158, 3
        %vm3163 = vcmp.lt.s32.totalorder %v3162, 2
        %vm3164 = vcmp.eq.s32.totalorder %v3162, 0
        %v3165 = vxor.u32 %v3160, 2147483648
        %v3166 = vsel %vm3164, %v3159, %v3165
        %vm3167 = vcmp.eq.s32.totalorder %v3162, 2
        %v3168 = vxor.u32 %v3159, 2147483648
        %v3169 = vsel %vm3167, %v3168, %v3160
        %v3170 = vsel %vm3163, %v3166, %v3169
        %v3171 = vsel %vm3161, nan, %v3170
        %v3172 = vand.u32 2147483647, %v370
        %vm3173 = vcmp.le.f32.partialorder %v3172, 0.7853982
        %vm3174 = vcmp.lt.s32.totalorder %v370, 0
        %v3175 = vand.u32 %v370, 2139095040
        %v3176 = vshrl.u32 %v3175, 23
        %v3177 = vsub.s32 %v3176, 127
        %v3178 = vand.u32 2147483647, %v370
        %v3179 = vand.u32 %v3178, 8388607
        %v3180 = vor.u32 %v3179, 8388608
        %v3181 = vsub.s32 0, %v3180
        %v3182 = vadd.s32 %v3177, 1
        %vm3183 = vcmp.gt.s32.totalorder %v3182, 0
        %v3184 = vsel %vm3183, %v3182, 0
        %v3185 = vshrl.u32 %v3184, 5
        %v3186 = vand.u32 %v3184, 31
        %v3187 = vsub.s32 32, %v3186
        %v3188 = vshrl.u32 683565275, %v3187
        %v3189 = vshll.u32 683565275, %v3186
        %v3190 = vshrl.u32 2475754826, %v3187
        %v3191 = vor.u32 %v3189, %v3190
        %v3192 = vshll.u32 2475754826, %v3186
        %v3193 = vshrl.u32 2131351028, %v3187
        %v3194 = vor.u32 %v3192, %v3193
        %v3195 = vshll.u32 2131351028, %v3186
        %v3196 = vshrl.u32 2102212464, %v3187
        %v3197 = vor.u32 %v3195, %v3196
        %v3198 = vshll.u32 2102212464, %v3186
        %v3199 = vshrl.u32 920167782, %v3187
        %v3200 = vor.u32 %v3198, %v3199
        %v3201 = vshll.u32 920167782, %v3186
        %v3202 = vshrl.u32 1326507024, %v3187
        %v3203 = vor.u32 %v3201, %v3202
        %vm3204 = vcmp.lt.s32.totalorder %v3185, 1
        %vm3205 = vcmp.lt.s32.totalorder %v3185, 2
        %vm3206 = vcmp.lt.s32.totalorder %v3185, 3
        %vm3207 = vcmp.lt.s32.totalorder %v3185, 4
        %v3208 = vsel %vm3204, %v3188, %v3191
        %v3209 = vsel %vm3207, %v3197, 2102212464
        %v3210 = vsel %vm3206, %v3194, %v3209
        %v3211 = vsel %vm3205, %v3208, %v3210
        %v3212 = vsel %vm3204, %v3191, %v3194
        %v3213 = vsel %vm3207, %v3200, 920167782
        %v3214 = vsel %vm3206, %v3197, %v3213
        %v3215 = vsel %vm3205, %v3212, %v3214
        %v3216 = vsel %vm3204, %v3194, %v3197
        %v3217 = vsel %vm3207, %v3203, 1326507024
        %v3218 = vsel %vm3206, %v3200, %v3217
        %v3219 = vsel %vm3205, %v3216, %v3218
        %v3220 = vshll.u32 %v3180, 8
        %v3221 = vmul.u32.u64.compose %v3220, %v3219
        %v3222 = vextract.low.u32 %v3221
        %v3223 = vextract.high.u32 %v3221
        %v3224 = vmul.u32.u64.compose %v3220, %v3215
        %v3225 = vextract.low.u32 %v3224
        %v3226 = vextract.high.u32 %v3224
        %v3227 = vmul.u32 %v3220, %v3211
        %v3228 = vadd.s32 %v3223, %v3225
        %vm3229 = vc.u32 %v3223, %v3225
        %v3230 = vadd.s32 %v3226, 1
        %v3231 = vsel %vm3229, %v3230, %v3226
        %v3232 = vadd.s32 %v3227, %v3231
        %v3233 = vadd.s32 %v3232, 536870912
        %v3234 = vshrl.u32 %v3233, 30
        %v3235 = vshll.u32 %v3234, 30
        %v3236 = vsub.s32 %v3232, %v3235
        %vm3237 = vcmp.lt.s32.totalorder %v3236, 0
        %v3238 = vsub.s32 0, %v3236
        %v3239 = vsel %vm3237, %v3238, %v3236
        %v3240 = vclz %v3239
        %v3241 = vsub.s32 %v3240, 2
        %vm3242 = vcmp.gt.s32.totalorder 0, %v3241
        %v3243 = vsel %vm3242, 0, %v3241
        %v3244 = vsub.s32 32, %v3243
        %v3245 = vshll.u32 %v3236, %v3243
        %v3246 = vshrl.u32 %v3228, %v3244
        %v3247 = vor.u32 %v3245, %v3246
        %v3248 = vsub.s32 4294967266, %v3243
        %v3249 = vadd.s32 %v3248, 127
        %v3250 = vshll.u32 %v3249, 23
        %v3251 = vor.u32 4788187, %v3250
        %v3252 = vand.u32 2147483647, %v3251
        %v3254 = vcvt.s32.f32 %v3247
        %v3255 = vmul.f32 %v3254, %v3252
        %v3256 = vxor.u32 %v3255, 2147483648
        %v3257 = vsel %vm3174, %v3256, %v3255
        %v3258 = vsub.s32 4, %v3234
        %v3259 = vsel %vm3174, %v3258, %v3234
        %v3260 = vsel %vm3173, %v370, %v3257
        %v3261 = vsel %vm3173, 0, %v3259
        %v3262 = vcosq.f32.pop %v3260
        %v3263 = vsinq.f32.pop %v3260
        %vm3264 = vweird.f32 %v370
        %v3265 = vand.u32 %v3261, 3
        %vm3266 = vcmp.lt.s32.totalorder %v3265, 2
        %vm3267 = vcmp.eq.s32.totalorder %v3265, 0
        %v3268 = vxor.u32 %v3263, 2147483648
        %v3269 = vsel %vm3267, %v3262, %v3268
        %vm3270 = vcmp.eq.s32.totalorder %v3265, 2
        %v3271 = vxor.u32 %v3262, 2147483648
        %v3272 = vsel %vm3270, %v3271, %v3263
        %v3273 = vsel %vm3266, %v3269, %v3272
        %v3274 = vsel %vm3264, nan, %v3273
        %v3275 = vand.u32 2147483647, %v371
        %vm3276 = vcmp.le.f32.partialorder %v3275, 0.7853982
        %vm3277 = vcmp.lt.s32.totalorder %v371, 0
        %v3278 = vand.u32 %v371, 2139095040
        %v3279 = vshrl.u32 %v3278, 23
        %v3280 = vsub.s32 %v3279, 127
        %v3281 = vand.u32 2147483647, %v371
        %v3282 = vand.u32 %v3281, 8388607
        %v3283 = vor.u32 %v3282, 8388608
        %v3284 = vsub.s32 0, %v3283
        %v3285 = vadd.s32 %v3280, 1
        %vm3286 = vcmp.gt.s32.totalorder %v3285, 0
        %v3287 = vsel %vm3286, %v3285, 0
        %v3288 = vshrl.u32 %v3287, 5
        %v3289 = vand.u32 %v3287, 31
        %v3290 = vsub.s32 32, %v3289
        %v3291 = vshrl.u32 683565275, %v3290
        %v3292 = vshll.u32 683565275, %v3289
        %v3293 = vshrl.u32 2475754826, %v3290
        %v3294 = vor.u32 %v3292, %v3293
        %v3295 = vshll.u32 2475754826, %v3289
        %v3296 = vshrl.u32 2131351028, %v3290
        %v3297 = vor.u32 %v3295, %v3296
        %v3298 = vshll.u32 2131351028, %v3289
        %v3299 = vshrl.u32 2102212464, %v3290
        %v3300 = vor.u32 %v3298, %v3299
        %v3301 = vshll.u32 2102212464, %v3289
        %v3302 = vshrl.u32 920167782, %v3290
        %v3303 = vor.u32 %v3301, %v3302
        %v3304 = vshll.u32 920167782, %v3289
        %v3305 = vshrl.u32 1326507024, %v3290
        %v3306 = vor.u32 %v3304, %v3305
        %vm3307 = vcmp.lt.s32.totalorder %v3288, 1
        %vm3308 = vcmp.lt.s32.totalorder %v3288, 2
        %vm3309 = vcmp.lt.s32.totalorder %v3288, 3
        %vm3310 = vcmp.lt.s32.totalorder %v3288, 4
        %v3311 = vsel %vm3307, %v3291, %v3294
        %v3312 = vsel %vm3310, %v3300, 2102212464
        %v3313 = vsel %vm3309, %v3297, %v3312
        %v3314 = vsel %vm3308, %v3311, %v3313
        %v3315 = vsel %vm3307, %v3294, %v3297
        %v3316 = vsel %vm3310, %v3303, 920167782
        %v3317 = vsel %vm3309, %v3300, %v3316
        %v3318 = vsel %vm3308, %v3315, %v3317
        %v3319 = vsel %vm3307, %v3297, %v3300
        %v3320 = vsel %vm3310, %v3306, 1326507024
        %v3321 = vsel %vm3309, %v3303, %v3320
        %v3322 = vsel %vm3308, %v3319, %v3321
        %v3323 = vshll.u32 %v3283, 8
        %v3324 = vmul.u32.u64.compose %v3323, %v3322
        %v3325 = vextract.low.u32 %v3324
        %v3326 = vextract.high.u32 %v3324
        %v3327 = vmul.u32.u64.compose %v3323, %v3318
        %v3328 = vextract.low.u32 %v3327
        %v3329 = vextract.high.u32 %v3327
        %v3330 = vmul.u32 %v3323, %v3314
        %v3331 = vadd.s32 %v3326, %v3328
        %vm3332 = vc.u32 %v3326, %v3328
        %v3333 = vadd.s32 %v3329, 1
        %v3334 = vsel %vm3332, %v3333, %v3329
        %v3335 = vadd.s32 %v3330, %v3334
        %v3336 = vadd.s32 %v3335, 536870912
        %v3337 = vshrl.u32 %v3336, 30
        %v3338 = vshll.u32 %v3337, 30
        %v3339 = vsub.s32 %v3335, %v3338
        %vm3340 = vcmp.lt.s32.totalorder %v3339, 0
        %v3341 = vsub.s32 0, %v3339
        %v3342 = vsel %vm3340, %v3341, %v3339
        %v3343 = vclz %v3342
        %v3344 = vsub.s32 %v3343, 2
        %vm3345 = vcmp.gt.s32.totalorder 0, %v3344
        %v3346 = vsel %vm3345, 0, %v3344
        %v3347 = vsub.s32 32, %v3346
        %v3348 = vshll.u32 %v3339, %v3346
        %v3349 = vshrl.u32 %v3331, %v3347
        %v3350 = vor.u32 %v3348, %v3349
        %v3351 = vsub.s32 4294967266, %v3346
        %v3352 = vadd.s32 %v3351, 127
        %v3353 = vshll.u32 %v3352, 23
        %v3354 = vor.u32 4788187, %v3353
        %v3355 = vand.u32 2147483647, %v3354
        %v3357 = vcvt.s32.f32 %v3350
        %v3358 = vmul.f32 %v3357, %v3355
        %v3359 = vxor.u32 %v3358, 2147483648
        %v3360 = vsel %vm3277, %v3359, %v3358
        %v3361 = vsub.s32 4, %v3337
        %v3362 = vsel %vm3277, %v3361, %v3337
        %v3363 = vsel %vm3276, %v371, %v3360
        %v3364 = vsel %vm3276, 0, %v3362
        %v3365 = vcosq.f32.pop %v3363
        %v3366 = vsinq.f32.pop %v3363
        %vm3367 = vweird.f32 %v371
        %v3368 = vand.u32 %v3364, 3
        %vm3369 = vcmp.lt.s32.totalorder %v3368, 2
        %vm3370 = vcmp.eq.s32.totalorder %v3368, 0
        %v3371 = vxor.u32 %v3366, 2147483648
        %v3372 = vsel %vm3370, %v3365, %v3371
        %vm3373 = vcmp.eq.s32.totalorder %v3368, 2
        %v3374 = vxor.u32 %v3365, 2147483648
        %v3375 = vsel %vm3373, %v3374, %v3366
        %v3376 = vsel %vm3369, %v3372, %v3375
        %v3377 = vsel %vm3367, nan, %v3376
        %v3378 = vand.u32 2147483647, %v372
        %vm3379 = vcmp.le.f32.partialorder %v3378, 0.7853982
        %vm3380 = vcmp.lt.s32.totalorder %v372, 0
        %v3381 = vand.u32 %v372, 2139095040
        %v3382 = vshrl.u32 %v3381, 23
        %v3383 = vsub.s32 %v3382, 127
        %v3384 = vand.u32 2147483647, %v372
        %v3385 = vand.u32 %v3384, 8388607
        %v3386 = vor.u32 %v3385, 8388608
        %v3387 = vsub.s32 0, %v3386
        %v3388 = vadd.s32 %v3383, 1
        %vm3389 = vcmp.gt.s32.totalorder %v3388, 0
        %v3390 = vsel %vm3389, %v3388, 0
        %v3391 = vshrl.u32 %v3390, 5
        %v3392 = vand.u32 %v3390, 31
        %v3393 = vsub.s32 32, %v3392
        %v3394 = vshrl.u32 683565275, %v3393
        %v3395 = vshll.u32 683565275, %v3392
        %v3396 = vshrl.u32 2475754826, %v3393
        %v3397 = vor.u32 %v3395, %v3396
        %v3398 = vshll.u32 2475754826, %v3392
        %v3399 = vshrl.u32 2131351028, %v3393
        %v3400 = vor.u32 %v3398, %v3399
        %v3401 = vshll.u32 2131351028, %v3392
        %v3402 = vshrl.u32 2102212464, %v3393
        %v3403 = vor.u32 %v3401, %v3402
        %v3404 = vshll.u32 2102212464, %v3392
        %v3405 = vshrl.u32 920167782, %v3393
        %v3406 = vor.u32 %v3404, %v3405
        %v3407 = vshll.u32 920167782, %v3392
        %v3408 = vshrl.u32 1326507024, %v3393
        %v3409 = vor.u32 %v3407, %v3408
        %vm3410 = vcmp.lt.s32.totalorder %v3391, 1
        %vm3411 = vcmp.lt.s32.totalorder %v3391, 2
        %vm3412 = vcmp.lt.s32.totalorder %v3391, 3
        %vm3413 = vcmp.lt.s32.totalorder %v3391, 4
        %v3414 = vsel %vm3410, %v3394, %v3397
        %v3415 = vsel %vm3413, %v3403, 2102212464
        %v3416 = vsel %vm3412, %v3400, %v3415
        %v3417 = vsel %vm3411, %v3414, %v3416
        %v3418 = vsel %vm3410, %v3397, %v3400
        %v3419 = vsel %vm3413, %v3406, 920167782
        %v3420 = vsel %vm3412, %v3403, %v3419
        %v3421 = vsel %vm3411, %v3418, %v3420
        %v3422 = vsel %vm3410, %v3400, %v3403
        %v3423 = vsel %vm3413, %v3409, 1326507024
        %v3424 = vsel %vm3412, %v3406, %v3423
        %v3425 = vsel %vm3411, %v3422, %v3424
        %v3426 = vshll.u32 %v3386, 8
        %v3427 = vmul.u32.u64.compose %v3426, %v3425
        %v3428 = vextract.low.u32 %v3427
        %v3429 = vextract.high.u32 %v3427
        %v3430 = vmul.u32.u64.compose %v3426, %v3421
        %v3431 = vextract.low.u32 %v3430
        %v3432 = vextract.high.u32 %v3430
        %v3433 = vmul.u32 %v3426, %v3417
        %v3434 = vadd.s32 %v3429, %v3431
        %vm3435 = vc.u32 %v3429, %v3431
        %v3436 = vadd.s32 %v3432, 1
        %v3437 = vsel %vm3435, %v3436, %v3432
        %v3438 = vadd.s32 %v3433, %v3437
        %v3439 = vadd.s32 %v3438, 536870912
        %v3440 = vshrl.u32 %v3439, 30
        %v3441 = vshll.u32 %v3440, 30
        %v3442 = vsub.s32 %v3438, %v3441
        %vm3443 = vcmp.lt.s32.totalorder %v3442, 0
        %v3444 = vsub.s32 0, %v3442
        %v3445 = vsel %vm3443, %v3444, %v3442
        %v3446 = vclz %v3445
        %v3447 = vsub.s32 %v3446, 2
        %vm3448 = vcmp.gt.s32.totalorder 0, %v3447
        %v3449 = vsel %vm3448, 0, %v3447
        %v3450 = vsub.s32 32, %v3449
        %v3451 = vshll.u32 %v3442, %v3449
        %v3452 = vshrl.u32 %v3434, %v3450
        %v3453 = vor.u32 %v3451, %v3452
        %v3454 = vsub.s32 4294967266, %v3449
        %v3455 = vadd.s32 %v3454, 127
        %v3456 = vshll.u32 %v3455, 23
        %v3457 = vor.u32 4788187, %v3456
        %v3458 = vand.u32 2147483647, %v3457
        %v3460 = vcvt.s32.f32 %v3453
        %v3461 = vmul.f32 %v3460, %v3458
        %v3462 = vxor.u32 %v3461, 2147483648
        %v3463 = vsel %vm3380, %v3462, %v3461
        %v3464 = vsub.s32 4, %v3440
        %v3465 = vsel %vm3380, %v3464, %v3440
        %v3466 = vsel %vm3379, %v372, %v3463
        %v3467 = vsel %vm3379, 0, %v3465
        %v3468 = vcosq.f32.pop %v3466
        %v3469 = vsinq.f32.pop %v3466
        %vm3470 = vweird.f32 %v372
        %v3471 = vand.u32 %v3467, 3
        %vm3472 = vcmp.lt.s32.totalorder %v3471, 2
        %vm3473 = vcmp.eq.s32.totalorder %v3471, 0
        %v3474 = vxor.u32 %v3469, 2147483648
        %v3475 = vsel %vm3473, %v3468, %v3474
        %vm3476 = vcmp.eq.s32.totalorder %v3471, 2
        %v3477 = vxor.u32 %v3468, 2147483648
        %v3478 = vsel %vm3476, %v3477, %v3469
        %v3479 = vsel %vm3472, %v3475, %v3478
        %v3480 = vsel %vm3470, nan, %v3479
        %v3481 = vand.u32 2147483647, %v373
        %vm3482 = vcmp.le.f32.partialorder %v3481, 0.7853982
        %vm3483 = vcmp.lt.s32.totalorder %v373, 0
        %v3484 = vand.u32 %v373, 2139095040
        %v3485 = vshrl.u32 %v3484, 23
        %v3486 = vsub.s32 %v3485, 127
        %v3487 = vand.u32 2147483647, %v373
        %v3488 = vand.u32 %v3487, 8388607
        %v3489 = vor.u32 %v3488, 8388608
        %v3490 = vsub.s32 0, %v3489
        %v3491 = vadd.s32 %v3486, 1
        %vm3492 = vcmp.gt.s32.totalorder %v3491, 0
        %v3493 = vsel %vm3492, %v3491, 0
        %v3494 = vshrl.u32 %v3493, 5
        %v3495 = vand.u32 %v3493, 31
        %v3496 = vsub.s32 32, %v3495
        %v3497 = vshrl.u32 683565275, %v3496
        %v3498 = vshll.u32 683565275, %v3495
        %v3499 = vshrl.u32 2475754826, %v3496
        %v3500 = vor.u32 %v3498, %v3499
        %v3501 = vshll.u32 2475754826, %v3495
        %v3502 = vshrl.u32 2131351028, %v3496
        %v3503 = vor.u32 %v3501, %v3502
        %v3504 = vshll.u32 2131351028, %v3495
        %v3505 = vshrl.u32 2102212464, %v3496
        %v3506 = vor.u32 %v3504, %v3505
        %v3507 = vshll.u32 2102212464, %v3495
        %v3508 = vshrl.u32 920167782, %v3496
        %v3509 = vor.u32 %v3507, %v3508
        %v3510 = vshll.u32 920167782, %v3495
        %v3511 = vshrl.u32 1326507024, %v3496
        %v3512 = vor.u32 %v3510, %v3511
        %vm3513 = vcmp.lt.s32.totalorder %v3494, 1
        %vm3514 = vcmp.lt.s32.totalorder %v3494, 2
        %vm3515 = vcmp.lt.s32.totalorder %v3494, 3
        %vm3516 = vcmp.lt.s32.totalorder %v3494, 4
        %v3517 = vsel %vm3513, %v3497, %v3500
        %v3518 = vsel %vm3516, %v3506, 2102212464
        %v3519 = vsel %vm3515, %v3503, %v3518
        %v3520 = vsel %vm3514, %v3517, %v3519
        %v3521 = vsel %vm3513, %v3500, %v3503
        %v3522 = vsel %vm3516, %v3509, 920167782
        %v3523 = vsel %vm3515, %v3506, %v3522
        %v3524 = vsel %vm3514, %v3521, %v3523
        %v3525 = vsel %vm3513, %v3503, %v3506
        %v3526 = vsel %vm3516, %v3512, 1326507024
        %v3527 = vsel %vm3515, %v3509, %v3526
        %v3528 = vsel %vm3514, %v3525, %v3527
        %v3529 = vshll.u32 %v3489, 8
        %v3530 = vmul.u32.u64.compose %v3529, %v3528
        %v3531 = vextract.low.u32 %v3530
        %v3532 = vextract.high.u32 %v3530
        %v3533 = vmul.u32.u64.compose %v3529, %v3524
        %v3534 = vextract.low.u32 %v3533
        %v3535 = vextract.high.u32 %v3533
        %v3536 = vmul.u32 %v3529, %v3520
        %v3537 = vadd.s32 %v3532, %v3534
        %vm3538 = vc.u32 %v3532, %v3534
        %v3539 = vadd.s32 %v3535, 1
        %v3540 = vsel %vm3538, %v3539, %v3535
        %v3541 = vadd.s32 %v3536, %v3540
        %v3542 = vadd.s32 %v3541, 536870912
        %v3543 = vshrl.u32 %v3542, 30
        %v3544 = vshll.u32 %v3543, 30
        %v3545 = vsub.s32 %v3541, %v3544
        %vm3546 = vcmp.lt.s32.totalorder %v3545, 0
        %v3547 = vsub.s32 0, %v3545
        %v3548 = vsel %vm3546, %v3547, %v3545
        %v3549 = vclz %v3548
        %v3550 = vsub.s32 %v3549, 2
        %vm3551 = vcmp.gt.s32.totalorder 0, %v3550
        %v3552 = vsel %vm3551, 0, %v3550
        %v3553 = vsub.s32 32, %v3552
        %v3554 = vshll.u32 %v3545, %v3552
        %v3555 = vshrl.u32 %v3537, %v3553
        %v3556 = vor.u32 %v3554, %v3555
        %v3557 = vsub.s32 4294967266, %v3552
        %v3558 = vadd.s32 %v3557, 127
        %v3559 = vshll.u32 %v3558, 23
        %v3560 = vor.u32 4788187, %v3559
        %v3561 = vand.u32 2147483647, %v3560
        %v3563 = vcvt.s32.f32 %v3556
        %v3564 = vmul.f32 %v3563, %v3561
        %v3565 = vxor.u32 %v3564, 2147483648
        %v3566 = vsel %vm3483, %v3565, %v3564
        %v3567 = vsub.s32 4, %v3543
        %v3568 = vsel %vm3483, %v3567, %v3543
        %v3569 = vsel %vm3482, %v373, %v3566
        %v3570 = vsel %vm3482, 0, %v3568
        %v3571 = vcosq.f32.pop %v3569
        %v3572 = vsinq.f32.pop %v3569
        %vm3573 = vweird.f32 %v373
        %v3574 = vand.u32 %v3570, 3
        %vm3575 = vcmp.lt.s32.totalorder %v3574, 2
        %vm3576 = vcmp.eq.s32.totalorder %v3574, 0
        %v3577 = vxor.u32 %v3572, 2147483648
        %v3578 = vsel %vm3576, %v3571, %v3577
        %vm3579 = vcmp.eq.s32.totalorder %v3574, 2
        %v3580 = vxor.u32 %v3571, 2147483648
        %v3581 = vsel %vm3579, %v3580, %v3572
        %v3582 = vsel %vm3575, %v3578, %v3581
        %v3583 = vsel %vm3573, nan, %v3582
        %v3584 = vand.u32 2147483647, %v374
        %vm3585 = vcmp.le.f32.partialorder %v3584, 0.7853982
        %vm3586 = vcmp.lt.s32.totalorder %v374, 0
        %v3587 = vand.u32 %v374, 2139095040
        %v3588 = vshrl.u32 %v3587, 23
        %v3589 = vsub.s32 %v3588, 127
        %v3590 = vand.u32 2147483647, %v374
        %v3591 = vand.u32 %v3590, 8388607
        %v3592 = vor.u32 %v3591, 8388608
        %v3593 = vsub.s32 0, %v3592
        %v3594 = vadd.s32 %v3589, 1
        %vm3595 = vcmp.gt.s32.totalorder %v3594, 0
        %v3596 = vsel %vm3595, %v3594, 0
        %v3597 = vshrl.u32 %v3596, 5
        %v3598 = vand.u32 %v3596, 31
        %v3599 = vsub.s32 32, %v3598
        %v3600 = vshrl.u32 683565275, %v3599
        %v3601 = vshll.u32 683565275, %v3598
        %v3602 = vshrl.u32 2475754826, %v3599
        %v3603 = vor.u32 %v3601, %v3602
        %v3604 = vshll.u32 2475754826, %v3598
        %v3605 = vshrl.u32 2131351028, %v3599
        %v3606 = vor.u32 %v3604, %v3605
        %v3607 = vshll.u32 2131351028, %v3598
        %v3608 = vshrl.u32 2102212464, %v3599
        %v3609 = vor.u32 %v3607, %v3608
        %v3610 = vshll.u32 2102212464, %v3598
        %v3611 = vshrl.u32 920167782, %v3599
        %v3612 = vor.u32 %v3610, %v3611
        %v3613 = vshll.u32 920167782, %v3598
        %v3614 = vshrl.u32 1326507024, %v3599
        %v3615 = vor.u32 %v3613, %v3614
        %vm3616 = vcmp.lt.s32.totalorder %v3597, 1
        %vm3617 = vcmp.lt.s32.totalorder %v3597, 2
        %vm3618 = vcmp.lt.s32.totalorder %v3597, 3
        %vm3619 = vcmp.lt.s32.totalorder %v3597, 4
        %v3620 = vsel %vm3616, %v3600, %v3603
        %v3621 = vsel %vm3619, %v3609, 2102212464
        %v3622 = vsel %vm3618, %v3606, %v3621
        %v3623 = vsel %vm3617, %v3620, %v3622
        %v3624 = vsel %vm3616, %v3603, %v3606
        %v3625 = vsel %vm3619, %v3612, 920167782
        %v3626 = vsel %vm3618, %v3609, %v3625
        %v3627 = vsel %vm3617, %v3624, %v3626
        %v3628 = vsel %vm3616, %v3606, %v3609
        %v3629 = vsel %vm3619, %v3615, 1326507024
        %v3630 = vsel %vm3618, %v3612, %v3629
        %v3631 = vsel %vm3617, %v3628, %v3630
        %v3632 = vshll.u32 %v3592, 8
        %v3633 = vmul.u32.u64.compose %v3632, %v3631
        %v3634 = vextract.low.u32 %v3633
        %v3635 = vextract.high.u32 %v3633
        %v3636 = vmul.u32.u64.compose %v3632, %v3627
        %v3637 = vextract.low.u32 %v3636
        %v3638 = vextract.high.u32 %v3636
        %v3639 = vmul.u32 %v3632, %v3623
        %v3640 = vadd.s32 %v3635, %v3637
        %vm3641 = vc.u32 %v3635, %v3637
        %v3642 = vadd.s32 %v3638, 1
        %v3643 = vsel %vm3641, %v3642, %v3638
        %v3644 = vadd.s32 %v3639, %v3643
        %v3645 = vadd.s32 %v3644, 536870912
        %v3646 = vshrl.u32 %v3645, 30
        %v3647 = vshll.u32 %v3646, 30
        %v3648 = vsub.s32 %v3644, %v3647
        %vm3649 = vcmp.lt.s32.totalorder %v3648, 0
        %v3650 = vsub.s32 0, %v3648
        %v3651 = vsel %vm3649, %v3650, %v3648
        %v3652 = vclz %v3651
        %v3653 = vsub.s32 %v3652, 2
        %vm3654 = vcmp.gt.s32.totalorder 0, %v3653
        %v3655 = vsel %vm3654, 0, %v3653
        %v3656 = vsub.s32 32, %v3655
        %v3657 = vshll.u32 %v3648, %v3655
        %v3658 = vshrl.u32 %v3640, %v3656
        %v3659 = vor.u32 %v3657, %v3658
        %v3660 = vsub.s32 4294967266, %v3655
        %v3661 = vadd.s32 %v3660, 127
        %v3662 = vshll.u32 %v3661, 23
        %v3663 = vor.u32 4788187, %v3662
        %v3664 = vand.u32 2147483647, %v3663
        %v3666 = vcvt.s32.f32 %v3659
        %v3667 = vmul.f32 %v3666, %v3664
        %v3668 = vxor.u32 %v3667, 2147483648
        %v3669 = vsel %vm3586, %v3668, %v3667
        %v3670 = vsub.s32 4, %v3646
        %v3671 = vsel %vm3586, %v3670, %v3646
        %v3672 = vsel %vm3585, %v374, %v3669
        %v3673 = vsel %vm3585, 0, %v3671
        %v3674 = vcosq.f32.pop %v3672
        %v3675 = vsinq.f32.pop %v3672
        %vm3676 = vweird.f32 %v374
        %v3677 = vand.u32 %v3673, 3
        %vm3678 = vcmp.lt.s32.totalorder %v3677, 2
        %vm3679 = vcmp.eq.s32.totalorder %v3677, 0
        %v3680 = vxor.u32 %v3675, 2147483648
        %v3681 = vsel %vm3679, %v3674, %v3680
        %vm3682 = vcmp.eq.s32.totalorder %v3677, 2
        %v3683 = vxor.u32 %v3674, 2147483648
        %v3684 = vsel %vm3682, %v3683, %v3675
        %v3685 = vsel %vm3678, %v3681, %v3684
        %v3686 = vsel %vm3676, nan, %v3685
        %v3687 = vmul.f32 %v2134, 0.48860252
        %v3688 = vmul.f32 %v2238, 0.48860252
        %v3689 = vmul.f32 %v2342, 0.48860252
        %v3690 = vmul.f32 %v2446, 0.48860252
        %v3691 = vmul.f32 %v2550, 0.48860252
        %v3692 = vmul.f32 %v2654, 0.48860252
        %v3693 = vmul.f32 %v2758, 0.48860252
        %v3694 = vmul.f32 %v2862, 0.48860252
        %v3695 = vmul.f32 %v3687, %v478
        %v3696 = vmul.f32 %v3688, %v582
        %v3697 = vmul.f32 %v3689, %v686
        %v3698 = vmul.f32 %v3690, %v790
        %v3699 = vmul.f32 %v3691, %v894
        %v3700 = vmul.f32 %v3692, %v998
        %v3701 = vmul.f32 %v3693, %v1102
        %v3702 = vmul.f32 %v3694, %v1206
        %v3703 = vmul.f32 %v1309, 0.48860252
        %v3704 = vmul.f32 %v1412, 0.48860252
        %v3705 = vmul.f32 %v1515, 0.48860252
        %v3706 = vmul.f32 %v1618, 0.48860252
        %v3707 = vmul.f32 %v1721, 0.48860252
        %v3708 = vmul.f32 %v1824, 0.48860252
        %v3709 = vmul.f32 %v1927, 0.48860252
        %v3710 = vmul.f32 %v2030, 0.48860252
        %v3711 = vmul.f32 %v2965, 0.48860252
        %v3712 = vmul.f32 %v3068, 0.48860252
        %v3713 = vmul.f32 %v3171, 0.48860252
        %v3714 = vmul.f32 %v3274, 0.48860252
        %v3715 = vmul.f32 %v3377, 0.48860252
        %v3716 = vmul.f32 %v3480, 0.48860252
        %v3717 = vmul.f32 %v3583, 0.48860252
        %v3718 = vmul.f32 %v3686, 0.48860252
        %v3719 = vmul.f32 %v3711, %v478
        %v3720 = vmul.f32 %v3712, %v582
        %v3721 = vmul.f32 %v3713, %v686
        %v3722 = vmul.f32 %v3714, %v790
        %v3723 = vmul.f32 %v3715, %v894
        %v3724 = vmul.f32 %v3716, %v998
        %v3725 = vmul.f32 %v3717, %v1102
        %v3726 = vmul.f32 %v3718, %v1206
        %v3727 = vmul.f32 %v2134, 1.0925485
        %v3728 = vmul.f32 %v2238, 1.0925485
        %v3729 = vmul.f32 %v2342, 1.0925485
        %v3730 = vmul.f32 %v2446, 1.0925485
        %v3731 = vmul.f32 %v2550, 1.0925485
        %v3732 = vmul.f32 %v2654, 1.0925485
        %v3733 = vmul.f32 %v2758, 1.0925485
        %v3734 = vmul.f32 %v2862, 1.0925485
        %v3735 = vmul.f32 %v3727, %v2965
        %v3736 = vmul.f32 %v3728, %v3068
        %v3737 = vmul.f32 %v3729, %v3171
        %v3738 = vmul.f32 %v3730, %v3274
        %v3739 = vmul.f32 %v3731, %v3377
        %v3740 = vmul.f32 %v3732, %v3480
        %v3741 = vmul.f32 %v3733, %v3583
        %v3742 = vmul.f32 %v3734, %v3686
        %v3743 = vmul.f32 %v3735, %v478
        %v3744 = vmul.f32 %v3736, %v582
        %v3745 = vmul.f32 %v3737, %v686
        %v3746 = vmul.f32 %v3738, %v790
        %v3747 = vmul.f32 %v3739, %v894
        %v3748 = vmul.f32 %v3740, %v998
        %v3749 = vmul.f32 %v3741, %v1102
        %v3750 = vmul.f32 %v3742, %v1206
        %v3751 = vmul.f32 %v3743, %v478
        %v3752 = vmul.f32 %v3744, %v582
        %v3753 = vmul.f32 %v3745, %v686
        %v3754 = vmul.f32 %v3746, %v790
        %v3755 = vmul.f32 %v3747, %v894
        %v3756 = vmul.f32 %v3748, %v998
        %v3757 = vmul.f32 %v3749, %v1102
        %v3758 = vmul.f32 %v3750, %v1206
        %v3759 = vmul.f32 %v3727, %v478
        %v3760 = vmul.f32 %v3728, %v582
        %v3761 = vmul.f32 %v3729, %v686
        %v3762 = vmul.f32 %v3730, %v790
        %v3763 = vmul.f32 %v3731, %v894
        %v3764 = vmul.f32 %v3732, %v998
        %v3765 = vmul.f32 %v3733, %v1102
        %v3766 = vmul.f32 %v3734, %v1206
        %v3767 = vmul.f32 %v3759, %v1309
        %v3768 = vmul.f32 %v3760, %v1412
        %v3769 = vmul.f32 %v3761, %v1515
        %v3770 = vmul.f32 %v3762, %v1618
        %v3771 = vmul.f32 %v3763, %v1721
        %v3772 = vmul.f32 %v3764, %v1824
        %v3773 = vmul.f32 %v3765, %v1927
        %v3774 = vmul.f32 %v3766, %v2030
        %v3775 = vmul.f32 %v1309, 3.0
        %v3776 = vmul.f32 %v1412, 3.0
        %v3777 = vmul.f32 %v1515, 3.0
        %v3778 = vmul.f32 %v1618, 3.0
        %v3779 = vmul.f32 %v1721, 3.0
        %v3780 = vmul.f32 %v1824, 3.0
        %v3781 = vmul.f32 %v1927, 3.0
        %v3782 = vmul.f32 %v2030, 3.0
        %v3783 = vmul.f32 %v3775, %v1309
        %v3784 = vmul.f32 %v3776, %v1412
        %v3785 = vmul.f32 %v3777, %v1515
        %v3786 = vmul.f32 %v3778, %v1618
        %v3787 = vmul.f32 %v3779, %v1721
        %v3788 = vmul.f32 %v3780, %v1824
        %v3789 = vmul.f32 %v3781, %v1927
        %v3790 = vmul.f32 %v3782, %v2030
        %v3791 = vsub.f32 %v3783, 1.0
        %v3792 = vsub.f32 %v3784, 1.0
        %v3793 = vsub.f32 %v3785, 1.0
        %v3794 = vsub.f32 %v3786, 1.0
        %v3795 = vsub.f32 %v3787, 1.0
        %v3796 = vsub.f32 %v3788, 1.0
        %v3797 = vsub.f32 %v3789, 1.0
        %v3798 = vsub.f32 %v3790, 1.0
        %v3799 = vmul.f32 %v3791, 0.31539157
        %v3800 = vmul.f32 %v3792, 0.31539157
        %v3801 = vmul.f32 %v3793, 0.31539157
        %v3802 = vmul.f32 %v3794, 0.31539157
        %v3803 = vmul.f32 %v3795, 0.31539157
        %v3804 = vmul.f32 %v3796, 0.31539157
        %v3805 = vmul.f32 %v3797, 0.31539157
        %v3806 = vmul.f32 %v3798, 0.31539157
        %v3807 = vmul.f32 %v2965, 1.0925485
        %v3808 = vmul.f32 %v3068, 1.0925485
        %v3809 = vmul.f32 %v3171, 1.0925485
        %v3810 = vmul.f32 %v3274, 1.0925485
        %v3811 = vmul.f32 %v3377, 1.0925485
        %v3812 = vmul.f32 %v3480, 1.0925485
        %v3813 = vmul.f32 %v3583, 1.0925485
        %v3814 = vmul.f32 %v3686, 1.0925485
        %v3815 = vmul.f32 %v3807, %v478
        %v3816 = vmul.f32 %v3808, %v582
        %v3817 = vmul.f32 %v3809, %v686
        %v3818 = vmul.f32 %v3810, %v790
        %v3819 = vmul.f32 %v3811, %v894
        %v3820 = vmul.f32 %v3812, %v998
        %v3821 = vmul.f32 %v3813, %v1102
        %v3822 = vmul.f32 %v3814, %v1206
        %v3823 = vmul.f32 %v3815, %v1309
        %v3824 = vmul.f32 %v3816, %v1412
        %v3825 = vmul.f32 %v3817, %v1515
        %v3826 = vmul.f32 %v3818, %v1618
        %v3827 = vmul.f32 %v3819, %v1721
        %v3828 = vmul.f32 %v3820, %v1824
        %v3829 = vmul.f32 %v3821, %v1927
        %v3830 = vmul.f32 %v3822, %v2030
        %v3831 = vmul.f32 %v2965, %v2965
        %v3832 = vmul.f32 %v3068, %v3068
        %v3833 = vmul.f32 %v3171, %v3171
        %v3834 = vmul.f32 %v3274, %v3274
        %v3835 = vmul.f32 %v3377, %v3377
        %v3836 = vmul.f32 %v3480, %v3480
        %v3837 = vmul.f32 %v3583, %v3583
        %v3838 = vmul.f32 %v3686, %v3686
        %v3839 = vmul.f32 %v2134, %v2134
        %v3840 = vmul.f32 %v2238, %v2238
        %v3841 = vmul.f32 %v2342, %v2342
        %v3842 = vmul.f32 %v2446, %v2446
        %v3843 = vmul.f32 %v2550, %v2550
        %v3844 = vmul.f32 %v2654, %v2654
        %v3845 = vmul.f32 %v2758, %v2758
        %v3846 = vmul.f32 %v2862, %v2862
        %v3847 = vsub.f32 %v3831, %v3839
        %v3848 = vsub.f32 %v3832, %v3840
        %v3849 = vsub.f32 %v3833, %v3841
        %v3850 = vsub.f32 %v3834, %v3842
        %v3851 = vsub.f32 %v3835, %v3843
        %v3852 = vsub.f32 %v3836, %v3844
        %v3853 = vsub.f32 %v3837, %v3845
        %v3854 = vsub.f32 %v3838, %v3846
        %v3855 = vmul.f32 %v3847, 0.54627424
        %v3856 = vmul.f32 %v3848, 0.54627424
        %v3857 = vmul.f32 %v3849, 0.54627424
        %v3858 = vmul.f32 %v3850, 0.54627424
        %v3859 = vmul.f32 %v3851, 0.54627424
        %v3860 = vmul.f32 %v3852, 0.54627424
        %v3861 = vmul.f32 %v3853, 0.54627424
        %v3862 = vmul.f32 %v3854, 0.54627424
        %v3863 = vmul.f32 %v3855, %v478
        %v3864 = vmul.f32 %v3856, %v582
        %v3865 = vmul.f32 %v3857, %v686
        %v3866 = vmul.f32 %v3858, %v790
        %v3867 = vmul.f32 %v3859, %v894
        %v3868 = vmul.f32 %v3860, %v998
        %v3869 = vmul.f32 %v3861, %v1102
        %v3870 = vmul.f32 %v3862, %v1206
        %v3871 = vmul.f32 %v3863, %v478
        %v3872 = vmul.f32 %v3864, %v582
        %v3873 = vmul.f32 %v3865, %v686
        %v3874 = vmul.f32 %v3866, %v790
        %v3875 = vmul.f32 %v3867, %v894
        %v3876 = vmul.f32 %v3868, %v998
        %v3877 = vmul.f32 %v3869, %v1102
        %v3878 = vmul.f32 %v3870, %v1206
        %s3879 = sld [smem:[#allocation9]]
        %v3880 = vstv %s3879
        %v3881 = vmul.f32 %v3880, 0.2820948
        %s3882 = sld [smem:[#allocation9 + $0x80]]
        %v3883 = vstv %s3882
        %v3884 = vmul.f32 %v3883, %v3695
        %v3885 = vmul.f32 %v3883, %v3696
        %v3886 = vmul.f32 %v3883, %v3697
        %v3887 = vmul.f32 %v3883, %v3698
        %v3888 = vmul.f32 %v3883, %v3699
        %v3889 = vmul.f32 %v3883, %v3700
        %v3890 = vmul.f32 %v3883, %v3701
        %v3891 = vmul.f32 %v3883, %v3702
        %v3892 = vadd.f32 %v3881, %v3884
        %v3893 = vadd.f32 %v3881, %v3885
        %v3894 = vadd.f32 %v3881, %v3886
        %v3895 = vadd.f32 %v3881, %v3887
        %v3896 = vadd.f32 %v3881, %v3888
        %v3897 = vadd.f32 %v3881, %v3889
        %v3898 = vadd.f32 %v3881, %v3890
        %v3899 = vadd.f32 %v3881, %v3891
        %s3900 = sld [smem:[#allocation9 + $0x100]]
        %v3901 = vstv %s3900
        %v3902 = vmul.f32 %v3901, %v3703
        %v3903 = vmul.f32 %v3901, %v3704
        %v3904 = vmul.f32 %v3901, %v3705
        %v3905 = vmul.f32 %v3901, %v3706
        %v3906 = vmul.f32 %v3901, %v3707
        %v3907 = vmul.f32 %v3901, %v3708
        %v3908 = vmul.f32 %v3901, %v3709
        %v3909 = vmul.f32 %v3901, %v3710
        %v3910 = vadd.f32 %v3892, %v3902
        %v3911 = vadd.f32 %v3893, %v3903
        %v3912 = vadd.f32 %v3894, %v3904
        %v3913 = vadd.f32 %v3895, %v3905
        %v3914 = vadd.f32 %v3896, %v3906
        %v3915 = vadd.f32 %v3897, %v3907
        %v3916 = vadd.f32 %v3898, %v3908
        %v3917 = vadd.f32 %v3899, %v3909
        %s3918 = sld [smem:[#allocation9 + $0x180]]
        %v3919 = vstv %s3918
        %v3920 = vmul.f32 %v3919, %v3719
        %v3921 = vmul.f32 %v3919, %v3720
        %v3922 = vmul.f32 %v3919, %v3721
        %v3923 = vmul.f32 %v3919, %v3722
        %v3924 = vmul.f32 %v3919, %v3723
        %v3925 = vmul.f32 %v3919, %v3724
        %v3926 = vmul.f32 %v3919, %v3725
        %v3927 = vmul.f32 %v3919, %v3726
        %v3928 = vadd.f32 %v3910, %v3920
        %v3929 = vadd.f32 %v3911, %v3921
        %v3930 = vadd.f32 %v3912, %v3922
        %v3931 = vadd.f32 %v3913, %v3923
        %v3932 = vadd.f32 %v3914, %v3924
        %v3933 = vadd.f32 %v3915, %v3925
        %v3934 = vadd.f32 %v3916, %v3926
        %v3935 = vadd.f32 %v3917, %v3927
        %s3936 = sld [smem:[#allocation9 + $0x200]]
        %v3937 = vstv %s3936
        %v3938 = vmul.f32 %v3937, %v3751
        %v3939 = vmul.f32 %v3937, %v3752
        %v3940 = vmul.f32 %v3937, %v3753
        %v3941 = vmul.f32 %v3937, %v3754
        %v3942 = vmul.f32 %v3937, %v3755
        %v3943 = vmul.f32 %v3937, %v3756
        %v3944 = vmul.f32 %v3937, %v3757
        %v3945 = vmul.f32 %v3937, %v3758
        %v3946 = vadd.f32 %v3928, %v3938
        %v3947 = vadd.f32 %v3929, %v3939
        %v3948 = vadd.f32 %v3930, %v3940
        %v3949 = vadd.f32 %v3931, %v3941
        %v3950 = vadd.f32 %v3932, %v3942
        %v3951 = vadd.f32 %v3933, %v3943
        %v3952 = vadd.f32 %v3934, %v3944
        %v3953 = vadd.f32 %v3935, %v3945
        %s3954 = sld [smem:[#allocation9 + $0x280]]
        %v3955 = vstv %s3954
        %v3956 = vmul.f32 %v3955, %v3767
        %v3957 = vmul.f32 %v3955, %v3768
        %v3958 = vmul.f32 %v3955, %v3769
        %v3959 = vmul.f32 %v3955, %v3770
        %v3960 = vmul.f32 %v3955, %v3771
        %v3961 = vmul.f32 %v3955, %v3772
        %v3962 = vmul.f32 %v3955, %v3773
        %v3963 = vmul.f32 %v3955, %v3774
        %v3964 = vadd.f32 %v3946, %v3956
        %v3965 = vadd.f32 %v3947, %v3957
        %v3966 = vadd.f32 %v3948, %v3958
        %v3967 = vadd.f32 %v3949, %v3959
        %v3968 = vadd.f32 %v3950, %v3960
        %v3969 = vadd.f32 %v3951, %v3961
        %v3970 = vadd.f32 %v3952, %v3962
        %v3971 = vadd.f32 %v3953, %v3963
        %s3972 = sld [smem:[#allocation9 + $0x300]]
        %v3973 = vstv %s3972
        %v3974 = vmul.f32 %v3973, %v3799
        %v3975 = vmul.f32 %v3973, %v3800
        %v3976 = vmul.f32 %v3973, %v3801
        %v3977 = vmul.f32 %v3973, %v3802
        %v3978 = vmul.f32 %v3973, %v3803
        %v3979 = vmul.f32 %v3973, %v3804
        %v3980 = vmul.f32 %v3973, %v3805
        %v3981 = vmul.f32 %v3973, %v3806
        %v3982 = vadd.f32 %v3964, %v3974
        %v3983 = vadd.f32 %v3965, %v3975
        %v3984 = vadd.f32 %v3966, %v3976
        %v3985 = vadd.f32 %v3967, %v3977
        %v3986 = vadd.f32 %v3968, %v3978
        %v3987 = vadd.f32 %v3969, %v3979
        %v3988 = vadd.f32 %v3970, %v3980
        %v3989 = vadd.f32 %v3971, %v3981
        %s3990 = sld [smem:[#allocation9 + $0x380]]
        %v3991 = vstv %s3990
        %v3992 = vmul.f32 %v3991, %v3823
        %v3993 = vmul.f32 %v3991, %v3824
        %v3994 = vmul.f32 %v3991, %v3825
        %v3995 = vmul.f32 %v3991, %v3826
        %v3996 = vmul.f32 %v3991, %v3827
        %v3997 = vmul.f32 %v3991, %v3828
        %v3998 = vmul.f32 %v3991, %v3829
        %v3999 = vmul.f32 %v3991, %v3830
        %v4000 = vadd.f32 %v3982, %v3992
        %v4001 = vadd.f32 %v3983, %v3993
        %v4002 = vadd.f32 %v3984, %v3994
        %v4003 = vadd.f32 %v3985, %v3995
        %v4004 = vadd.f32 %v3986, %v3996
        %v4005 = vadd.f32 %v3987, %v3997
        %v4006 = vadd.f32 %v3988, %v3998
        %v4007 = vadd.f32 %v3989, %v3999
        %s4008 = sld [smem:[#allocation9 + $0x400]]
        %v4009 = vstv %s4008
        %v4010 = vmul.f32 %v4009, %v3871
        %v4011 = vmul.f32 %v4009, %v3872
        %v4012 = vmul.f32 %v4009, %v3873
        %v4013 = vmul.f32 %v4009, %v3874
        %v4014 = vmul.f32 %v4009, %v3875
        %v4015 = vmul.f32 %v4009, %v3876
        %v4016 = vmul.f32 %v4009, %v3877
        %v4017 = vmul.f32 %v4009, %v3878
        %v4018 = vadd.f32 %v4000, %v4010
        %v4019 = vadd.f32 %v4001, %v4011
        %v4020 = vadd.f32 %v4002, %v4012
        %v4021 = vadd.f32 %v4003, %v4013
        %v4022 = vadd.f32 %v4004, %v4014
        %v4023 = vadd.f32 %v4005, %v4015
        %v4024 = vadd.f32 %v4006, %v4016
        %v4025 = vadd.f32 %v4007, %v4017
        %v4026 = vmul.f32 %v4018, %v4018
        %v4027 = vmul.f32 %v4019, %v4019
        %v4028 = vmul.f32 %v4020, %v4020
        %v4029 = vmul.f32 %v4021, %v4021
        %v4030 = vmul.f32 %v4022, %v4022
        %v4031 = vmul.f32 %v4023, %v4023
        %v4032 = vmul.f32 %v4024, %v4024
        %v4033 = vmul.f32 %v4025, %v4025
        %v4034 = vmul.f32 %v4026, 0.5
        %v4035 = vmul.f32 %v4027, 0.5
        %v4036 = vmul.f32 %v4028, 0.5
        %v4037 = vmul.f32 %v4029, 0.5
        %v4038 = vmul.f32 %v4030, 0.5
        %v4039 = vmul.f32 %v4031, 0.5
        %v4040 = vmul.f32 %v4032, 0.5
        %v4041 = vmul.f32 %v4033, 0.5
        %v4042 = vsub.f32 1.0, %v4034
        %v4043 = vsub.f32 1.0, %v4035
        %v4044 = vsub.f32 1.0, %v4036
        %v4045 = vsub.f32 1.0, %v4037
        %v4046 = vsub.f32 1.0, %v4038
        %v4047 = vsub.f32 1.0, %v4039
        %v4048 = vsub.f32 1.0, %v4040
        %v4049 = vsub.f32 1.0, %v4041
        %s4050 = sld [smem:[#allocation9 + $0x1]]
        %v4051 = vstv %s4050
        %v4052 = vmul.f32 %v4051, 0.2820948
        %s4053 = sld [smem:[#allocation9 + $0x81]]
        %v4054 = vstv %s4053
        %v4055 = vmul.f32 %v4054, %v3695
        %v4056 = vmul.f32 %v4054, %v3696
        %v4057 = vmul.f32 %v4054, %v3697
        %v4058 = vmul.f32 %v4054, %v3698
        %v4059 = vmul.f32 %v4054, %v3699
        %v4060 = vmul.f32 %v4054, %v3700
        %v4061 = vmul.f32 %v4054, %v3701
        %v4062 = vmul.f32 %v4054, %v3702
        %v4063 = vadd.f32 %v4052, %v4055
        %v4064 = vadd.f32 %v4052, %v4056
        %v4065 = vadd.f32 %v4052, %v4057
        %v4066 = vadd.f32 %v4052, %v4058
        %v4067 = vadd.f32 %v4052, %v4059
        %v4068 = vadd.f32 %v4052, %v4060
        %v4069 = vadd.f32 %v4052, %v4061
        %v4070 = vadd.f32 %v4052, %v4062
        %s4071 = sld [smem:[#allocation9 + $0x101]]
        %v4072 = vstv %s4071
        %v4073 = vmul.f32 %v4072, %v3703
        %v4074 = vmul.f32 %v4072, %v3704
        %v4075 = vmul.f32 %v4072, %v3705
        %v4076 = vmul.f32 %v4072, %v3706
        %v4077 = vmul.f32 %v4072, %v3707
        %v4078 = vmul.f32 %v4072, %v3708
        %v4079 = vmul.f32 %v4072, %v3709
        %v4080 = vmul.f32 %v4072, %v3710
        %v4081 = vadd.f32 %v4063, %v4073
        %v4082 = vadd.f32 %v4064, %v4074
        %v4083 = vadd.f32 %v4065, %v4075
        %v4084 = vadd.f32 %v4066, %v4076
        %v4085 = vadd.f32 %v4067, %v4077
        %v4086 = vadd.f32 %v4068, %v4078
        %v4087 = vadd.f32 %v4069, %v4079
        %v4088 = vadd.f32 %v4070, %v4080
        %s4089 = sld [smem:[#allocation9 + $0x181]]
        %v4090 = vstv %s4089
        %v4091 = vmul.f32 %v4090, %v3719
        %v4092 = vmul.f32 %v4090, %v3720
        %v4093 = vmul.f32 %v4090, %v3721
        %v4094 = vmul.f32 %v4090, %v3722
        %v4095 = vmul.f32 %v4090, %v3723
        %v4096 = vmul.f32 %v4090, %v3724
        %v4097 = vmul.f32 %v4090, %v3725
        %v4098 = vmul.f32 %v4090, %v3726
        %v4099 = vadd.f32 %v4081, %v4091
        %v4100 = vadd.f32 %v4082, %v4092
        %v4101 = vadd.f32 %v4083, %v4093
        %v4102 = vadd.f32 %v4084, %v4094
        %v4103 = vadd.f32 %v4085, %v4095
        %v4104 = vadd.f32 %v4086, %v4096
        %v4105 = vadd.f32 %v4087, %v4097
        %v4106 = vadd.f32 %v4088, %v4098
        %s4107 = sld [smem:[#allocation9 + $0x201]]
        %v4108 = vstv %s4107
        %v4109 = vmul.f32 %v4108, %v3751
        %v4110 = vmul.f32 %v4108, %v3752
        %v4111 = vmul.f32 %v4108, %v3753
        %v4112 = vmul.f32 %v4108, %v3754
        %v4113 = vmul.f32 %v4108, %v3755
        %v4114 = vmul.f32 %v4108, %v3756
        %v4115 = vmul.f32 %v4108, %v3757
        %v4116 = vmul.f32 %v4108, %v3758
        %v4117 = vadd.f32 %v4099, %v4109
        %v4118 = vadd.f32 %v4100, %v4110
        %v4119 = vadd.f32 %v4101, %v4111
        %v4120 = vadd.f32 %v4102, %v4112
        %v4121 = vadd.f32 %v4103, %v4113
        %v4122 = vadd.f32 %v4104, %v4114
        %v4123 = vadd.f32 %v4105, %v4115
        %v4124 = vadd.f32 %v4106, %v4116
        %s4125 = sld [smem:[#allocation9 + $0x281]]
        %v4126 = vstv %s4125
        %v4127 = vmul.f32 %v4126, %v3767
        %v4128 = vmul.f32 %v4126, %v3768
        %v4129 = vmul.f32 %v4126, %v3769
        %v4130 = vmul.f32 %v4126, %v3770
        %v4131 = vmul.f32 %v4126, %v3771
        %v4132 = vmul.f32 %v4126, %v3772
        %v4133 = vmul.f32 %v4126, %v3773
        %v4134 = vmul.f32 %v4126, %v3774
        %v4135 = vadd.f32 %v4117, %v4127
        %v4136 = vadd.f32 %v4118, %v4128
        %v4137 = vadd.f32 %v4119, %v4129
        %v4138 = vadd.f32 %v4120, %v4130
        %v4139 = vadd.f32 %v4121, %v4131
        %v4140 = vadd.f32 %v4122, %v4132
        %v4141 = vadd.f32 %v4123, %v4133
        %v4142 = vadd.f32 %v4124, %v4134
        %s4143 = sld [smem:[#allocation9 + $0x301]]
        %v4144 = vstv %s4143
        %v4145 = vmul.f32 %v4144, %v3799
        %v4146 = vmul.f32 %v4144, %v3800
        %v4147 = vmul.f32 %v4144, %v3801
        %v4148 = vmul.f32 %v4144, %v3802
        %v4149 = vmul.f32 %v4144, %v3803
        %v4150 = vmul.f32 %v4144, %v3804
        %v4151 = vmul.f32 %v4144, %v3805
        %v4152 = vmul.f32 %v4144, %v3806
        %v4153 = vadd.f32 %v4135, %v4145
        %v4154 = vadd.f32 %v4136, %v4146
        %v4155 = vadd.f32 %v4137, %v4147
        %v4156 = vadd.f32 %v4138, %v4148
        %v4157 = vadd.f32 %v4139, %v4149
        %v4158 = vadd.f32 %v4140, %v4150
        %v4159 = vadd.f32 %v4141, %v4151
        %v4160 = vadd.f32 %v4142, %v4152
        %s4161 = sld [smem:[#allocation9 + $0x381]]
        %v4162 = vstv %s4161
        %v4163 = vmul.f32 %v4162, %v3823
        %v4164 = vmul.f32 %v4162, %v3824
        %v4165 = vmul.f32 %v4162, %v3825
        %v4166 = vmul.f32 %v4162, %v3826
        %v4167 = vmul.f32 %v4162, %v3827
        %v4168 = vmul.f32 %v4162, %v3828
        %v4169 = vmul.f32 %v4162, %v3829
        %v4170 = vmul.f32 %v4162, %v3830
        %v4171 = vadd.f32 %v4153, %v4163
        %v4172 = vadd.f32 %v4154, %v4164
        %v4173 = vadd.f32 %v4155, %v4165
        %v4174 = vadd.f32 %v4156, %v4166
        %v4175 = vadd.f32 %v4157, %v4167
        %v4176 = vadd.f32 %v4158, %v4168
        %v4177 = vadd.f32 %v4159, %v4169
        %v4178 = vadd.f32 %v4160, %v4170
        %s4179 = sld [smem:[#allocation9 + $0x401]]
        %v4180 = vstv %s4179
        %v4181 = vmul.f32 %v4180, %v3871
        %v4182 = vmul.f32 %v4180, %v3872
        %v4183 = vmul.f32 %v4180, %v3873
        %v4184 = vmul.f32 %v4180, %v3874
        %v4185 = vmul.f32 %v4180, %v3875
        %v4186 = vmul.f32 %v4180, %v3876
        %v4187 = vmul.f32 %v4180, %v3877
        %v4188 = vmul.f32 %v4180, %v3878
        %v4189 = vadd.f32 %v4171, %v4181
        %v4190 = vadd.f32 %v4172, %v4182
        %v4191 = vadd.f32 %v4173, %v4183
        %v4192 = vadd.f32 %v4174, %v4184
        %v4193 = vadd.f32 %v4175, %v4185
        %v4194 = vadd.f32 %v4176, %v4186
        %v4195 = vadd.f32 %v4177, %v4187
        %v4196 = vadd.f32 %v4178, %v4188
        %v4197 = vmul.f32 %v4189, %v4189
        %v4198 = vmul.f32 %v4190, %v4190
        %v4199 = vmul.f32 %v4191, %v4191
        %v4200 = vmul.f32 %v4192, %v4192
        %v4201 = vmul.f32 %v4193, %v4193
        %v4202 = vmul.f32 %v4194, %v4194
        %v4203 = vmul.f32 %v4195, %v4195
        %v4204 = vmul.f32 %v4196, %v4196
        %v4205 = vmul.f32 %v4197, 0.5
        %v4206 = vmul.f32 %v4198, 0.5
        %v4207 = vmul.f32 %v4199, 0.5
        %v4208 = vmul.f32 %v4200, 0.5
        %v4209 = vmul.f32 %v4201, 0.5
        %v4210 = vmul.f32 %v4202, 0.5
        %v4211 = vmul.f32 %v4203, 0.5
        %v4212 = vmul.f32 %v4204, 0.5
        %v4213 = vsub.f32 1.0, %v4205
        %v4214 = vsub.f32 1.0, %v4206
        %v4215 = vsub.f32 1.0, %v4207
        %v4216 = vsub.f32 1.0, %v4208
        %v4217 = vsub.f32 1.0, %v4209
        %v4218 = vsub.f32 1.0, %v4210
        %v4219 = vsub.f32 1.0, %v4211
        %v4220 = vsub.f32 1.0, %v4212
        %s4221 = sld [smem:[#allocation9 + $0x2]]
        %v4222 = vstv %s4221
        %v4223 = vmul.f32 %v4222, 0.2820948
        %s4224 = sld [smem:[#allocation9 + $0x82]]
        %v4225 = vstv %s4224
        %v4226 = vmul.f32 %v4225, %v3695
        %v4227 = vmul.f32 %v4225, %v3696
        %v4228 = vmul.f32 %v4225, %v3697
        %v4229 = vmul.f32 %v4225, %v3698
        %v4230 = vmul.f32 %v4225, %v3699
        %v4231 = vmul.f32 %v4225, %v3700
        %v4232 = vmul.f32 %v4225, %v3701
        %v4233 = vmul.f32 %v4225, %v3702
        %v4234 = vadd.f32 %v4223, %v4226
        %v4235 = vadd.f32 %v4223, %v4227
        %v4236 = vadd.f32 %v4223, %v4228
        %v4237 = vadd.f32 %v4223, %v4229
        %v4238 = vadd.f32 %v4223, %v4230
        %v4239 = vadd.f32 %v4223, %v4231
        %v4240 = vadd.f32 %v4223, %v4232
        %v4241 = vadd.f32 %v4223, %v4233
        %s4242 = sld [smem:[#allocation9 + $0x102]]
        %v4243 = vstv %s4242
        %v4244 = vmul.f32 %v4243, %v3703
        %v4245 = vmul.f32 %v4243, %v3704
        %v4246 = vmul.f32 %v4243, %v3705
        %v4247 = vmul.f32 %v4243, %v3706
        %v4248 = vmul.f32 %v4243, %v3707
        %v4249 = vmul.f32 %v4243, %v3708
        %v4250 = vmul.f32 %v4243, %v3709
        %v4251 = vmul.f32 %v4243, %v3710
        %v4252 = vadd.f32 %v4234, %v4244
        %v4253 = vadd.f32 %v4235, %v4245
        %v4254 = vadd.f32 %v4236, %v4246
        %v4255 = vadd.f32 %v4237, %v4247
        %v4256 = vadd.f32 %v4238, %v4248
        %v4257 = vadd.f32 %v4239, %v4249
        %v4258 = vadd.f32 %v4240, %v4250
        %v4259 = vadd.f32 %v4241, %v4251
        %s4260 = sld [smem:[#allocation9 + $0x182]]
        %v4261 = vstv %s4260
        %v4262 = vmul.f32 %v4261, %v3719
        %v4263 = vmul.f32 %v4261, %v3720
        %v4264 = vmul.f32 %v4261, %v3721
        %v4265 = vmul.f32 %v4261, %v3722
        %v4266 = vmul.f32 %v4261, %v3723
        %v4267 = vmul.f32 %v4261, %v3724
        %v4268 = vmul.f32 %v4261, %v3725
        %v4269 = vmul.f32 %v4261, %v3726
        %v4270 = vadd.f32 %v4252, %v4262
        %v4271 = vadd.f32 %v4253, %v4263
        %v4272 = vadd.f32 %v4254, %v4264
        %v4273 = vadd.f32 %v4255, %v4265
        %v4274 = vadd.f32 %v4256, %v4266
        %v4275 = vadd.f32 %v4257, %v4267
        %v4276 = vadd.f32 %v4258, %v4268
        %v4277 = vadd.f32 %v4259, %v4269
        %s4278 = sld [smem:[#allocation9 + $0x202]]
        %v4279 = vstv %s4278
        %v4280 = vmul.f32 %v4279, %v3751
        %v4281 = vmul.f32 %v4279, %v3752
        %v4282 = vmul.f32 %v4279, %v3753
        %v4283 = vmul.f32 %v4279, %v3754
        %v4284 = vmul.f32 %v4279, %v3755
        %v4285 = vmul.f32 %v4279, %v3756
        %v4286 = vmul.f32 %v4279, %v3757
        %v4287 = vmul.f32 %v4279, %v3758
        %v4288 = vadd.f32 %v4270, %v4280
        %v4289 = vadd.f32 %v4271, %v4281
        %v4290 = vadd.f32 %v4272, %v4282
        %v4291 = vadd.f32 %v4273, %v4283
        %v4292 = vadd.f32 %v4274, %v4284
        %v4293 = vadd.f32 %v4275, %v4285
        %v4294 = vadd.f32 %v4276, %v4286
        %v4295 = vadd.f32 %v4277, %v4287
        %s4296 = sld [smem:[#allocation9 + $0x282]]
        %v4297 = vstv %s4296
        %v4298 = vmul.f32 %v4297, %v3767
        %v4299 = vmul.f32 %v4297, %v3768
        %v4300 = vmul.f32 %v4297, %v3769
        %v4301 = vmul.f32 %v4297, %v3770
        %v4302 = vmul.f32 %v4297, %v3771
        %v4303 = vmul.f32 %v4297, %v3772
        %v4304 = vmul.f32 %v4297, %v3773
        %v4305 = vmul.f32 %v4297, %v3774
        %v4306 = vadd.f32 %v4288, %v4298
        %v4307 = vadd.f32 %v4289, %v4299
        %v4308 = vadd.f32 %v4290, %v4300
        %v4309 = vadd.f32 %v4291, %v4301
        %v4310 = vadd.f32 %v4292, %v4302
        %v4311 = vadd.f32 %v4293, %v4303
        %v4312 = vadd.f32 %v4294, %v4304
        %v4313 = vadd.f32 %v4295, %v4305
        %s4314 = sld [smem:[#allocation9 + $0x302]]
        %v4315 = vstv %s4314
        %v4316 = vmul.f32 %v4315, %v3799
        %v4317 = vmul.f32 %v4315, %v3800
        %v4318 = vmul.f32 %v4315, %v3801
        %v4319 = vmul.f32 %v4315, %v3802
        %v4320 = vmul.f32 %v4315, %v3803
        %v4321 = vmul.f32 %v4315, %v3804
        %v4322 = vmul.f32 %v4315, %v3805
        %v4323 = vmul.f32 %v4315, %v3806
        %v4324 = vadd.f32 %v4306, %v4316
        %v4325 = vadd.f32 %v4307, %v4317
        %v4326 = vadd.f32 %v4308, %v4318
        %v4327 = vadd.f32 %v4309, %v4319
        %v4328 = vadd.f32 %v4310, %v4320
        %v4329 = vadd.f32 %v4311, %v4321
        %v4330 = vadd.f32 %v4312, %v4322
        %v4331 = vadd.f32 %v4313, %v4323
        %s4332 = sld [smem:[#allocation9 + $0x382]]
        %v4333 = vstv %s4332
        %v4334 = vmul.f32 %v4333, %v3823
        %v4335 = vmul.f32 %v4333, %v3824
        %v4336 = vmul.f32 %v4333, %v3825
        %v4337 = vmul.f32 %v4333, %v3826
        %v4338 = vmul.f32 %v4333, %v3827
        %v4339 = vmul.f32 %v4333, %v3828
        %v4340 = vmul.f32 %v4333, %v3829
        %v4341 = vmul.f32 %v4333, %v3830
        %v4342 = vadd.f32 %v4324, %v4334
        %v4343 = vadd.f32 %v4325, %v4335
        %v4344 = vadd.f32 %v4326, %v4336
        %v4345 = vadd.f32 %v4327, %v4337
        %v4346 = vadd.f32 %v4328, %v4338
        %v4347 = vadd.f32 %v4329, %v4339
        %v4348 = vadd.f32 %v4330, %v4340
        %v4349 = vadd.f32 %v4331, %v4341
        %s4350 = sld [smem:[#allocation9 + $0x402]]
        %v4351 = vstv %s4350
        %v4352 = vmul.f32 %v4351, %v3871
        %v4353 = vmul.f32 %v4351, %v3872
        %v4354 = vmul.f32 %v4351, %v3873
        %v4355 = vmul.f32 %v4351, %v3874
        %v4356 = vmul.f32 %v4351, %v3875
        %v4357 = vmul.f32 %v4351, %v3876
        %v4358 = vmul.f32 %v4351, %v3877
        %v4359 = vmul.f32 %v4351, %v3878
        %v4360 = vadd.f32 %v4342, %v4352
        %v4361 = vadd.f32 %v4343, %v4353
        %v4362 = vadd.f32 %v4344, %v4354
        %v4363 = vadd.f32 %v4345, %v4355
        %v4364 = vadd.f32 %v4346, %v4356
        %v4365 = vadd.f32 %v4347, %v4357
        %v4366 = vadd.f32 %v4348, %v4358
        %v4367 = vadd.f32 %v4349, %v4359
        %v4368 = vmul.f32 %v4360, %v4360
        %v4369 = vmul.f32 %v4361, %v4361
        %v4370 = vmul.f32 %v4362, %v4362
        %v4371 = vmul.f32 %v4363, %v4363
        %v4372 = vmul.f32 %v4364, %v4364
        %v4373 = vmul.f32 %v4365, %v4365
        %v4374 = vmul.f32 %v4366, %v4366
        %v4375 = vmul.f32 %v4367, %v4367
        %v4376 = vmul.f32 %v4368, 0.5
        %v4377 = vmul.f32 %v4369, 0.5
        %v4378 = vmul.f32 %v4370, 0.5
        %v4379 = vmul.f32 %v4371, 0.5
        %v4380 = vmul.f32 %v4372, 0.5
        %v4381 = vmul.f32 %v4373, 0.5
        %v4382 = vmul.f32 %v4374, 0.5
        %v4383 = vmul.f32 %v4375, 0.5
        %v4384 = vsub.f32 1.0, %v4376
        %v4385 = vsub.f32 1.0, %v4377
        %v4386 = vsub.f32 1.0, %v4378
        %v4387 = vsub.f32 1.0, %v4379
        %v4388 = vsub.f32 1.0, %v4380
        %v4389 = vsub.f32 1.0, %v4381
        %v4390 = vsub.f32 1.0, %v4382
        %v4391 = vsub.f32 1.0, %v4383
        %s4392 = sld [smem:[#allocation9 + $0x3]]
        %v4393 = vstv %s4392
        %v4394 = vmul.f32 %v4393, 0.2820948
        %s4395 = sld [smem:[#allocation9 + $0x83]]
        %v4396 = vstv %s4395
        %v4397 = vmul.f32 %v4396, %v3695
        %v4398 = vmul.f32 %v4396, %v3696
        %v4399 = vmul.f32 %v4396, %v3697
        %v4400 = vmul.f32 %v4396, %v3698
        %v4401 = vmul.f32 %v4396, %v3699
        %v4402 = vmul.f32 %v4396, %v3700
        %v4403 = vmul.f32 %v4396, %v3701
        %v4404 = vmul.f32 %v4396, %v3702
        %v4405 = vadd.f32 %v4394, %v4397
        %v4406 = vadd.f32 %v4394, %v4398
        %v4407 = vadd.f32 %v4394, %v4399
        %v4408 = vadd.f32 %v4394, %v4400
        %v4409 = vadd.f32 %v4394, %v4401
        %v4410 = vadd.f32 %v4394, %v4402
        %v4411 = vadd.f32 %v4394, %v4403
        %v4412 = vadd.f32 %v4394, %v4404
        %s4413 = sld [smem:[#allocation9 + $0x103]]
        %v4414 = vstv %s4413
        %v4415 = vmul.f32 %v4414, %v3703
        %v4416 = vmul.f32 %v4414, %v3704
        %v4417 = vmul.f32 %v4414, %v3705
        %v4418 = vmul.f32 %v4414, %v3706
        %v4419 = vmul.f32 %v4414, %v3707
        %v4420 = vmul.f32 %v4414, %v3708
        %v4421 = vmul.f32 %v4414, %v3709
        %v4422 = vmul.f32 %v4414, %v3710
        %v4423 = vadd.f32 %v4405, %v4415
        %v4424 = vadd.f32 %v4406, %v4416
        %v4425 = vadd.f32 %v4407, %v4417
        %v4426 = vadd.f32 %v4408, %v4418
        %v4427 = vadd.f32 %v4409, %v4419
        %v4428 = vadd.f32 %v4410, %v4420
        %v4429 = vadd.f32 %v4411, %v4421
        %v4430 = vadd.f32 %v4412, %v4422
        %s4431 = sld [smem:[#allocation9 + $0x183]]
        %v4432 = vstv %s4431
        %v4433 = vmul.f32 %v4432, %v3719
        %v4434 = vmul.f32 %v4432, %v3720
        %v4435 = vmul.f32 %v4432, %v3721
        %v4436 = vmul.f32 %v4432, %v3722
        %v4437 = vmul.f32 %v4432, %v3723
        %v4438 = vmul.f32 %v4432, %v3724
        %v4439 = vmul.f32 %v4432, %v3725
        %v4440 = vmul.f32 %v4432, %v3726
        %v4441 = vadd.f32 %v4423, %v4433
        %v4442 = vadd.f32 %v4424, %v4434
        %v4443 = vadd.f32 %v4425, %v4435
        %v4444 = vadd.f32 %v4426, %v4436
        %v4445 = vadd.f32 %v4427, %v4437
        %v4446 = vadd.f32 %v4428, %v4438
        %v4447 = vadd.f32 %v4429, %v4439
        %v4448 = vadd.f32 %v4430, %v4440
        %s4449 = sld [smem:[#allocation9 + $0x203]]
        %v4450 = vstv %s4449
        %v4451 = vmul.f32 %v4450, %v3751
        %v4452 = vmul.f32 %v4450, %v3752
        %v4453 = vmul.f32 %v4450, %v3753
        %v4454 = vmul.f32 %v4450, %v3754
        %v4455 = vmul.f32 %v4450, %v3755
        %v4456 = vmul.f32 %v4450, %v3756
        %v4457 = vmul.f32 %v4450, %v3757
        %v4458 = vmul.f32 %v4450, %v3758
        %v4459 = vadd.f32 %v4441, %v4451
        %v4460 = vadd.f32 %v4442, %v4452
        %v4461 = vadd.f32 %v4443, %v4453
        %v4462 = vadd.f32 %v4444, %v4454
        %v4463 = vadd.f32 %v4445, %v4455
        %v4464 = vadd.f32 %v4446, %v4456
        %v4465 = vadd.f32 %v4447, %v4457
        %v4466 = vadd.f32 %v4448, %v4458
        %s4467 = sld [smem:[#allocation9 + $0x283]]
        %v4468 = vstv %s4467
        %v4469 = vmul.f32 %v4468, %v3767
        %v4470 = vmul.f32 %v4468, %v3768
        %v4471 = vmul.f32 %v4468, %v3769
        %v4472 = vmul.f32 %v4468, %v3770
        %v4473 = vmul.f32 %v4468, %v3771
        %v4474 = vmul.f32 %v4468, %v3772
        %v4475 = vmul.f32 %v4468, %v3773
        %v4476 = vmul.f32 %v4468, %v3774
        %v4477 = vadd.f32 %v4459, %v4469
        %v4478 = vadd.f32 %v4460, %v4470
        %v4479 = vadd.f32 %v4461, %v4471
        %v4480 = vadd.f32 %v4462, %v4472
        %v4481 = vadd.f32 %v4463, %v4473
        %v4482 = vadd.f32 %v4464, %v4474
        %v4483 = vadd.f32 %v4465, %v4475
        %v4484 = vadd.f32 %v4466, %v4476
        %s4485 = sld [smem:[#allocation9 + $0x303]]
        %v4486 = vstv %s4485
        %v4487 = vmul.f32 %v4486, %v3799
        %v4488 = vmul.f32 %v4486, %v3800
        %v4489 = vmul.f32 %v4486, %v3801
        %v4490 = vmul.f32 %v4486, %v3802
        %v4491 = vmul.f32 %v4486, %v3803
        %v4492 = vmul.f32 %v4486, %v3804
        %v4493 = vmul.f32 %v4486, %v3805
        %v4494 = vmul.f32 %v4486, %v3806
        %v4495 = vadd.f32 %v4477, %v4487
        %v4496 = vadd.f32 %v4478, %v4488
        %v4497 = vadd.f32 %v4479, %v4489
        %v4498 = vadd.f32 %v4480, %v4490
        %v4499 = vadd.f32 %v4481, %v4491
        %v4500 = vadd.f32 %v4482, %v4492
        %v4501 = vadd.f32 %v4483, %v4493
        %v4502 = vadd.f32 %v4484, %v4494
        %s4503 = sld [smem:[#allocation9 + $0x383]]
        %v4504 = vstv %s4503
        %v4505 = vmul.f32 %v4504, %v3823
        %v4506 = vmul.f32 %v4504, %v3824
        %v4507 = vmul.f32 %v4504, %v3825
        %v4508 = vmul.f32 %v4504, %v3826
        %v4509 = vmul.f32 %v4504, %v3827
        %v4510 = vmul.f32 %v4504, %v3828
        %v4511 = vmul.f32 %v4504, %v3829
        %v4512 = vmul.f32 %v4504, %v3830
        %v4513 = vadd.f32 %v4495, %v4505
        %v4514 = vadd.f32 %v4496, %v4506
        %v4515 = vadd.f32 %v4497, %v4507
        %v4516 = vadd.f32 %v4498, %v4508
        %v4517 = vadd.f32 %v4499, %v4509
        %v4518 = vadd.f32 %v4500, %v4510
        %v4519 = vadd.f32 %v4501, %v4511
        %v4520 = vadd.f32 %v4502, %v4512
        %s4521 = sld [smem:[#allocation9 + $0x403]]
        %v4522 = vstv %s4521
        %v4523 = vmul.f32 %v4522, %v3871
        %v4524 = vmul.f32 %v4522, %v3872
        %v4525 = vmul.f32 %v4522, %v3873
        %v4526 = vmul.f32 %v4522, %v3874
        %v4527 = vmul.f32 %v4522, %v3875
        %v4528 = vmul.f32 %v4522, %v3876
        %v4529 = vmul.f32 %v4522, %v3877
        %v4530 = vmul.f32 %v4522, %v3878
        %v4531 = vadd.f32 %v4513, %v4523
        %v4532 = vadd.f32 %v4514, %v4524
        %v4533 = vadd.f32 %v4515, %v4525
        %v4534 = vadd.f32 %v4516, %v4526
        %v4535 = vadd.f32 %v4517, %v4527
        %v4536 = vadd.f32 %v4518, %v4528
        %v4537 = vadd.f32 %v4519, %v4529
        %v4538 = vadd.f32 %v4520, %v4530
        %v4539 = vmul.f32 %v4531, %v4531
        %v4540 = vmul.f32 %v4532, %v4532
        %v4541 = vmul.f32 %v4533, %v4533
        %v4542 = vmul.f32 %v4534, %v4534
        %v4543 = vmul.f32 %v4535, %v4535
        %v4544 = vmul.f32 %v4536, %v4536
        %v4545 = vmul.f32 %v4537, %v4537
        %v4546 = vmul.f32 %v4538, %v4538
        %v4547 = vmul.f32 %v4539, 0.5
        %v4548 = vmul.f32 %v4540, 0.5
        %v4549 = vmul.f32 %v4541, 0.5
        %v4550 = vmul.f32 %v4542, 0.5
        %v4551 = vmul.f32 %v4543, 0.5
        %v4552 = vmul.f32 %v4544, 0.5
        %v4553 = vmul.f32 %v4545, 0.5
        %v4554 = vmul.f32 %v4546, 0.5
        %v4555 = vsub.f32 1.0, %v4547
        %v4556 = vsub.f32 1.0, %v4548
        %v4557 = vsub.f32 1.0, %v4549
        %v4558 = vsub.f32 1.0, %v4550
        %v4559 = vsub.f32 1.0, %v4551
        %v4560 = vsub.f32 1.0, %v4552
        %v4561 = vsub.f32 1.0, %v4553
        %v4562 = vsub.f32 1.0, %v4554
        %s4563 = sld [smem:[#allocation9 + $0x4]]
        %v4564 = vstv %s4563
        %v4565 = vmul.f32 %v4564, 0.2820948
        %s4566 = sld [smem:[#allocation9 + $0x84]]
        %v4567 = vstv %s4566
        %v4568 = vmul.f32 %v4567, %v3695
        %v4569 = vmul.f32 %v4567, %v3696
        %v4570 = vmul.f32 %v4567, %v3697
        %v4571 = vmul.f32 %v4567, %v3698
        %v4572 = vmul.f32 %v4567, %v3699
        %v4573 = vmul.f32 %v4567, %v3700
        %v4574 = vmul.f32 %v4567, %v3701
        %v4575 = vmul.f32 %v4567, %v3702
        %v4576 = vadd.f32 %v4565, %v4568
        %v4577 = vadd.f32 %v4565, %v4569
        %v4578 = vadd.f32 %v4565, %v4570
        %v4579 = vadd.f32 %v4565, %v4571
        %v4580 = vadd.f32 %v4565, %v4572
        %v4581 = vadd.f32 %v4565, %v4573
        %v4582 = vadd.f32 %v4565, %v4574
        %v4583 = vadd.f32 %v4565, %v4575
        %s4584 = sld [smem:[#allocation9 + $0x104]]
        %v4585 = vstv %s4584
        %v4586 = vmul.f32 %v4585, %v3703
        %v4587 = vmul.f32 %v4585, %v3704
        %v4588 = vmul.f32 %v4585, %v3705
        %v4589 = vmul.f32 %v4585, %v3706
        %v4590 = vmul.f32 %v4585, %v3707
        %v4591 = vmul.f32 %v4585, %v3708
        %v4592 = vmul.f32 %v4585, %v3709
        %v4593 = vmul.f32 %v4585, %v3710
        %v4594 = vadd.f32 %v4576, %v4586
        %v4595 = vadd.f32 %v4577, %v4587
        %v4596 = vadd.f32 %v4578, %v4588
        %v4597 = vadd.f32 %v4579, %v4589
        %v4598 = vadd.f32 %v4580, %v4590
        %v4599 = vadd.f32 %v4581, %v4591
        %v4600 = vadd.f32 %v4582, %v4592
        %v4601 = vadd.f32 %v4583, %v4593
        %s4602 = sld [smem:[#allocation9 + $0x184]]
        %v4603 = vstv %s4602
        %v4604 = vmul.f32 %v4603, %v3719
        %v4605 = vmul.f32 %v4603, %v3720
        %v4606 = vmul.f32 %v4603, %v3721
        %v4607 = vmul.f32 %v4603, %v3722
        %v4608 = vmul.f32 %v4603, %v3723
        %v4609 = vmul.f32 %v4603, %v3724
        %v4610 = vmul.f32 %v4603, %v3725
        %v4611 = vmul.f32 %v4603, %v3726
        %v4612 = vadd.f32 %v4594, %v4604
        %v4613 = vadd.f32 %v4595, %v4605
        %v4614 = vadd.f32 %v4596, %v4606
        %v4615 = vadd.f32 %v4597, %v4607
        %v4616 = vadd.f32 %v4598, %v4608
        %v4617 = vadd.f32 %v4599, %v4609
        %v4618 = vadd.f32 %v4600, %v4610
        %v4619 = vadd.f32 %v4601, %v4611
        %s4620 = sld [smem:[#allocation9 + $0x204]]
        %v4621 = vstv %s4620
        %v4622 = vmul.f32 %v4621, %v3751
        %v4623 = vmul.f32 %v4621, %v3752
        %v4624 = vmul.f32 %v4621, %v3753
        %v4625 = vmul.f32 %v4621, %v3754
        %v4626 = vmul.f32 %v4621, %v3755
        %v4627 = vmul.f32 %v4621, %v3756
        %v4628 = vmul.f32 %v4621, %v3757
        %v4629 = vmul.f32 %v4621, %v3758
        %v4630 = vadd.f32 %v4612, %v4622
        %v4631 = vadd.f32 %v4613, %v4623
        %v4632 = vadd.f32 %v4614, %v4624
        %v4633 = vadd.f32 %v4615, %v4625
        %v4634 = vadd.f32 %v4616, %v4626
        %v4635 = vadd.f32 %v4617, %v4627
        %v4636 = vadd.f32 %v4618, %v4628
        %v4637 = vadd.f32 %v4619, %v4629
        %s4638 = sld [smem:[#allocation9 + $0x284]]
        %v4639 = vstv %s4638
        %v4640 = vmul.f32 %v4639, %v3767
        %v4641 = vmul.f32 %v4639, %v3768
        %v4642 = vmul.f32 %v4639, %v3769
        %v4643 = vmul.f32 %v4639, %v3770
        %v4644 = vmul.f32 %v4639, %v3771
        %v4645 = vmul.f32 %v4639, %v3772
        %v4646 = vmul.f32 %v4639, %v3773
        %v4647 = vmul.f32 %v4639, %v3774
        %v4648 = vadd.f32 %v4630, %v4640
        %v4649 = vadd.f32 %v4631, %v4641
        %v4650 = vadd.f32 %v4632, %v4642
        %v4651 = vadd.f32 %v4633, %v4643
        %v4652 = vadd.f32 %v4634, %v4644
        %v4653 = vadd.f32 %v4635, %v4645
        %v4654 = vadd.f32 %v4636, %v4646
        %v4655 = vadd.f32 %v4637, %v4647
        %s4656 = sld [smem:[#allocation9 + $0x304]]
        %v4657 = vstv %s4656
        %v4658 = vmul.f32 %v4657, %v3799
        %v4659 = vmul.f32 %v4657, %v3800
        %v4660 = vmul.f32 %v4657, %v3801
        %v4661 = vmul.f32 %v4657, %v3802
        %v4662 = vmul.f32 %v4657, %v3803
        %v4663 = vmul.f32 %v4657, %v3804
        %v4664 = vmul.f32 %v4657, %v3805
        %v4665 = vmul.f32 %v4657, %v3806
        %v4666 = vadd.f32 %v4648, %v4658
        %v4667 = vadd.f32 %v4649, %v4659
        %v4668 = vadd.f32 %v4650, %v4660
        %v4669 = vadd.f32 %v4651, %v4661
        %v4670 = vadd.f32 %v4652, %v4662
        %v4671 = vadd.f32 %v4653, %v4663
        %v4672 = vadd.f32 %v4654, %v4664
        %v4673 = vadd.f32 %v4655, %v4665
        %s4674 = sld [smem:[#allocation9 + $0x384]]
        %v4675 = vstv %s4674
        %v4676 = vmul.f32 %v4675, %v3823
        %v4677 = vmul.f32 %v4675, %v3824
        %v4678 = vmul.f32 %v4675, %v3825
        %v4679 = vmul.f32 %v4675, %v3826
        %v4680 = vmul.f32 %v4675, %v3827
        %v4681 = vmul.f32 %v4675, %v3828
        %v4682 = vmul.f32 %v4675, %v3829
        %v4683 = vmul.f32 %v4675, %v3830
        %v4684 = vadd.f32 %v4666, %v4676
        %v4685 = vadd.f32 %v4667, %v4677
        %v4686 = vadd.f32 %v4668, %v4678
        %v4687 = vadd.f32 %v4669, %v4679
        %v4688 = vadd.f32 %v4670, %v4680
        %v4689 = vadd.f32 %v4671, %v4681
        %v4690 = vadd.f32 %v4672, %v4682
        %v4691 = vadd.f32 %v4673, %v4683
        %s4692 = sld [smem:[#allocation9 + $0x404]]
        %v4693 = vstv %s4692
        %v4694 = vmul.f32 %v4693, %v3871
        %v4695 = vmul.f32 %v4693, %v3872
        %v4696 = vmul.f32 %v4693, %v3873
        %v4697 = vmul.f32 %v4693, %v3874
        %v4698 = vmul.f32 %v4693, %v3875
        %v4699 = vmul.f32 %v4693, %v3876
        %v4700 = vmul.f32 %v4693, %v3877
        %v4701 = vmul.f32 %v4693, %v3878
        %v4702 = vadd.f32 %v4684, %v4694
        %v4703 = vadd.f32 %v4685, %v4695
        %v4704 = vadd.f32 %v4686, %v4696
        %v4705 = vadd.f32 %v4687, %v4697
        %v4706 = vadd.f32 %v4688, %v4698
        %v4707 = vadd.f32 %v4689, %v4699
        %v4708 = vadd.f32 %v4690, %v4700
        %v4709 = vadd.f32 %v4691, %v4701
        %v4710 = vmul.f32 %v4702, %v4702
        %v4711 = vmul.f32 %v4703, %v4703
        %v4712 = vmul.f32 %v4704, %v4704
        %v4713 = vmul.f32 %v4705, %v4705
        %v4714 = vmul.f32 %v4706, %v4706
        %v4715 = vmul.f32 %v4707, %v4707
        %v4716 = vmul.f32 %v4708, %v4708
        %v4717 = vmul.f32 %v4709, %v4709
        %v4718 = vmul.f32 %v4710, 0.5
        %v4719 = vmul.f32 %v4711, 0.5
        %v4720 = vmul.f32 %v4712, 0.5
        %v4721 = vmul.f32 %v4713, 0.5
        %v4722 = vmul.f32 %v4714, 0.5
        %v4723 = vmul.f32 %v4715, 0.5
        %v4724 = vmul.f32 %v4716, 0.5
        %v4725 = vmul.f32 %v4717, 0.5
        %v4726 = vsub.f32 1.0, %v4718
        %v4727 = vsub.f32 1.0, %v4719
        %v4728 = vsub.f32 1.0, %v4720
        %v4729 = vsub.f32 1.0, %v4721
        %v4730 = vsub.f32 1.0, %v4722
        %v4731 = vsub.f32 1.0, %v4723
        %v4732 = vsub.f32 1.0, %v4724
        %v4733 = vsub.f32 1.0, %v4725
        %s4734 = sld [smem:[#allocation9 + $0x5]]
        %v4735 = vstv %s4734
        %v4736 = vmul.f32 %v4735, 0.2820948
        %s4737 = sld [smem:[#allocation9 + $0x85]]
        %v4738 = vstv %s4737
        %v4739 = vmul.f32 %v4738, %v3695
        %v4740 = vmul.f32 %v4738, %v3696
        %v4741 = vmul.f32 %v4738, %v3697
        %v4742 = vmul.f32 %v4738, %v3698
        %v4743 = vmul.f32 %v4738, %v3699
        %v4744 = vmul.f32 %v4738, %v3700
        %v4745 = vmul.f32 %v4738, %v3701
        %v4746 = vmul.f32 %v4738, %v3702
        %v4747 = vadd.f32 %v4736, %v4739
        %v4748 = vadd.f32 %v4736, %v4740
        %v4749 = vadd.f32 %v4736, %v4741
        %v4750 = vadd.f32 %v4736, %v4742
        %v4751 = vadd.f32 %v4736, %v4743
        %v4752 = vadd.f32 %v4736, %v4744
        %v4753 = vadd.f32 %v4736, %v4745
        %v4754 = vadd.f32 %v4736, %v4746
        %s4755 = sld [smem:[#allocation9 + $0x105]]
        %v4756 = vstv %s4755
        %v4757 = vmul.f32 %v4756, %v3703
        %v4758 = vmul.f32 %v4756, %v3704
        %v4759 = vmul.f32 %v4756, %v3705
        %v4760 = vmul.f32 %v4756, %v3706
        %v4761 = vmul.f32 %v4756, %v3707
        %v4762 = vmul.f32 %v4756, %v3708
        %v4763 = vmul.f32 %v4756, %v3709
        %v4764 = vmul.f32 %v4756, %v3710
        %v4765 = vadd.f32 %v4747, %v4757
        %v4766 = vadd.f32 %v4748, %v4758
        %v4767 = vadd.f32 %v4749, %v4759
        %v4768 = vadd.f32 %v4750, %v4760
        %v4769 = vadd.f32 %v4751, %v4761
        %v4770 = vadd.f32 %v4752, %v4762
        %v4771 = vadd.f32 %v4753, %v4763
        %v4772 = vadd.f32 %v4754, %v4764
        %s4773 = sld [smem:[#allocation9 + $0x185]]
        %v4774 = vstv %s4773
        %v4775 = vmul.f32 %v4774, %v3719
        %v4776 = vmul.f32 %v4774, %v3720
        %v4777 = vmul.f32 %v4774, %v3721
        %v4778 = vmul.f32 %v4774, %v3722
        %v4779 = vmul.f32 %v4774, %v3723
        %v4780 = vmul.f32 %v4774, %v3724
        %v4781 = vmul.f32 %v4774, %v3725
        %v4782 = vmul.f32 %v4774, %v3726
        %v4783 = vadd.f32 %v4765, %v4775
        %v4784 = vadd.f32 %v4766, %v4776
        %v4785 = vadd.f32 %v4767, %v4777
        %v4786 = vadd.f32 %v4768, %v4778
        %v4787 = vadd.f32 %v4769, %v4779
        %v4788 = vadd.f32 %v4770, %v4780
        %v4789 = vadd.f32 %v4771, %v4781
        %v4790 = vadd.f32 %v4772, %v4782
        %s4791 = sld [smem:[#allocation9 + $0x205]]
        %v4792 = vstv %s4791
        %v4793 = vmul.f32 %v4792, %v3751
        %v4794 = vmul.f32 %v4792, %v3752
        %v4795 = vmul.f32 %v4792, %v3753
        %v4796 = vmul.f32 %v4792, %v3754
        %v4797 = vmul.f32 %v4792, %v3755
        %v4798 = vmul.f32 %v4792, %v3756
        %v4799 = vmul.f32 %v4792, %v3757
        %v4800 = vmul.f32 %v4792, %v3758
        %v4801 = vadd.f32 %v4783, %v4793
        %v4802 = vadd.f32 %v4784, %v4794
        %v4803 = vadd.f32 %v4785, %v4795
        %v4804 = vadd.f32 %v4786, %v4796
        %v4805 = vadd.f32 %v4787, %v4797
        %v4806 = vadd.f32 %v4788, %v4798
        %v4807 = vadd.f32 %v4789, %v4799
        %v4808 = vadd.f32 %v4790, %v4800
        %s4809 = sld [smem:[#allocation9 + $0x285]]
        %v4810 = vstv %s4809
        %v4811 = vmul.f32 %v4810, %v3767
        %v4812 = vmul.f32 %v4810, %v3768
        %v4813 = vmul.f32 %v4810, %v3769
        %v4814 = vmul.f32 %v4810, %v3770
        %v4815 = vmul.f32 %v4810, %v3771
        %v4816 = vmul.f32 %v4810, %v3772
        %v4817 = vmul.f32 %v4810, %v3773
        %v4818 = vmul.f32 %v4810, %v3774
        %v4819 = vadd.f32 %v4801, %v4811
        %v4820 = vadd.f32 %v4802, %v4812
        %v4821 = vadd.f32 %v4803, %v4813
        %v4822 = vadd.f32 %v4804, %v4814
        %v4823 = vadd.f32 %v4805, %v4815
        %v4824 = vadd.f32 %v4806, %v4816
        %v4825 = vadd.f32 %v4807, %v4817
        %v4826 = vadd.f32 %v4808, %v4818
        %s4827 = sld [smem:[#allocation9 + $0x305]]
        %v4828 = vstv %s4827
        %v4829 = vmul.f32 %v4828, %v3799
        %v4830 = vmul.f32 %v4828, %v3800
        %v4831 = vmul.f32 %v4828, %v3801
        %v4832 = vmul.f32 %v4828, %v3802
        %v4833 = vmul.f32 %v4828, %v3803
        %v4834 = vmul.f32 %v4828, %v3804
        %v4835 = vmul.f32 %v4828, %v3805
        %v4836 = vmul.f32 %v4828, %v3806
        %v4837 = vadd.f32 %v4819, %v4829
        %v4838 = vadd.f32 %v4820, %v4830
        %v4839 = vadd.f32 %v4821, %v4831
        %v4840 = vadd.f32 %v4822, %v4832
        %v4841 = vadd.f32 %v4823, %v4833
        %v4842 = vadd.f32 %v4824, %v4834
        %v4843 = vadd.f32 %v4825, %v4835
        %v4844 = vadd.f32 %v4826, %v4836
        %s4845 = sld [smem:[#allocation9 + $0x385]]
        %v4846 = vstv %s4845
        %v4847 = vmul.f32 %v4846, %v3823
        %v4848 = vmul.f32 %v4846, %v3824
        %v4849 = vmul.f32 %v4846, %v3825
        %v4850 = vmul.f32 %v4846, %v3826
        %v4851 = vmul.f32 %v4846, %v3827
        %v4852 = vmul.f32 %v4846, %v3828
        %v4853 = vmul.f32 %v4846, %v3829
        %v4854 = vmul.f32 %v4846, %v3830
        %v4855 = vadd.f32 %v4837, %v4847
        %v4856 = vadd.f32 %v4838, %v4848
        %v4857 = vadd.f32 %v4839, %v4849
        %v4858 = vadd.f32 %v4840, %v4850
        %v4859 = vadd.f32 %v4841, %v4851
        %v4860 = vadd.f32 %v4842, %v4852
        %v4861 = vadd.f32 %v4843, %v4853
        %v4862 = vadd.f32 %v4844, %v4854
        %s4863 = sld [smem:[#allocation9 + $0x405]]
        %v4864 = vstv %s4863
        %v4865 = vmul.f32 %v4864, %v3871
        %v4866 = vmul.f32 %v4864, %v3872
        %v4867 = vmul.f32 %v4864, %v3873
        %v4868 = vmul.f32 %v4864, %v3874
        %v4869 = vmul.f32 %v4864, %v3875
        %v4870 = vmul.f32 %v4864, %v3876
        %v4871 = vmul.f32 %v4864, %v3877
        %v4872 = vmul.f32 %v4864, %v3878
        %v4873 = vadd.f32 %v4855, %v4865
        %v4874 = vadd.f32 %v4856, %v4866
        %v4875 = vadd.f32 %v4857, %v4867
        %v4876 = vadd.f32 %v4858, %v4868
        %v4877 = vadd.f32 %v4859, %v4869
        %v4878 = vadd.f32 %v4860, %v4870
        %v4879 = vadd.f32 %v4861, %v4871
        %v4880 = vadd.f32 %v4862, %v4872
        %v4881 = vmul.f32 %v4873, %v4873
        %v4882 = vmul.f32 %v4874, %v4874
        %v4883 = vmul.f32 %v4875, %v4875
        %v4884 = vmul.f32 %v4876, %v4876
        %v4885 = vmul.f32 %v4877, %v4877
        %v4886 = vmul.f32 %v4878, %v4878
        %v4887 = vmul.f32 %v4879, %v4879
        %v4888 = vmul.f32 %v4880, %v4880
        %v4889 = vmul.f32 %v4881, 0.5
        %v4890 = vmul.f32 %v4882, 0.5
        %v4891 = vmul.f32 %v4883, 0.5
        %v4892 = vmul.f32 %v4884, 0.5
        %v4893 = vmul.f32 %v4885, 0.5
        %v4894 = vmul.f32 %v4886, 0.5
        %v4895 = vmul.f32 %v4887, 0.5
        %v4896 = vmul.f32 %v4888, 0.5
        %v4897 = vsub.f32 1.0, %v4889
        %v4898 = vsub.f32 1.0, %v4890
        %v4899 = vsub.f32 1.0, %v4891
        %v4900 = vsub.f32 1.0, %v4892
        %v4901 = vsub.f32 1.0, %v4893
        %v4902 = vsub.f32 1.0, %v4894
        %v4903 = vsub.f32 1.0, %v4895
        %v4904 = vsub.f32 1.0, %v4896
        %s4905 = sld [smem:[#allocation9 + $0x6]]
        %v4906 = vstv %s4905
        %v4907 = vmul.f32 %v4906, 0.2820948
        %s4908 = sld [smem:[#allocation9 + $0x86]]
        %v4909 = vstv %s4908
        %v4910 = vmul.f32 %v4909, %v3695
        %v4911 = vmul.f32 %v4909, %v3696
        %v4912 = vmul.f32 %v4909, %v3697
        %v4913 = vmul.f32 %v4909, %v3698
        %v4914 = vmul.f32 %v4909, %v3699
        %v4915 = vmul.f32 %v4909, %v3700
        %v4916 = vmul.f32 %v4909, %v3701
        %v4917 = vmul.f32 %v4909, %v3702
        %v4918 = vadd.f32 %v4907, %v4910
        %v4919 = vadd.f32 %v4907, %v4911
        %v4920 = vadd.f32 %v4907, %v4912
        %v4921 = vadd.f32 %v4907, %v4913
        %v4922 = vadd.f32 %v4907, %v4914
        %v4923 = vadd.f32 %v4907, %v4915
        %v4924 = vadd.f32 %v4907, %v4916
        %v4925 = vadd.f32 %v4907, %v4917
        %s4926 = sld [smem:[#allocation9 + $0x106]]
        %v4927 = vstv %s4926
        %v4928 = vmul.f32 %v4927, %v3703
        %v4929 = vmul.f32 %v4927, %v3704
        %v4930 = vmul.f32 %v4927, %v3705
        %v4931 = vmul.f32 %v4927, %v3706
        %v4932 = vmul.f32 %v4927, %v3707
        %v4933 = vmul.f32 %v4927, %v3708
        %v4934 = vmul.f32 %v4927, %v3709
        %v4935 = vmul.f32 %v4927, %v3710
        %v4936 = vadd.f32 %v4918, %v4928
        %v4937 = vadd.f32 %v4919, %v4929
        %v4938 = vadd.f32 %v4920, %v4930
        %v4939 = vadd.f32 %v4921, %v4931
        %v4940 = vadd.f32 %v4922, %v4932
        %v4941 = vadd.f32 %v4923, %v4933
        %v4942 = vadd.f32 %v4924, %v4934
        %v4943 = vadd.f32 %v4925, %v4935
        %s4944 = sld [smem:[#allocation9 + $0x186]]
        %v4945 = vstv %s4944
        %v4946 = vmul.f32 %v4945, %v3719
        %v4947 = vmul.f32 %v4945, %v3720
        %v4948 = vmul.f32 %v4945, %v3721
        %v4949 = vmul.f32 %v4945, %v3722
        %v4950 = vmul.f32 %v4945, %v3723
        %v4951 = vmul.f32 %v4945, %v3724
        %v4952 = vmul.f32 %v4945, %v3725
        %v4953 = vmul.f32 %v4945, %v3726
        %v4954 = vadd.f32 %v4936, %v4946
        %v4955 = vadd.f32 %v4937, %v4947
        %v4956 = vadd.f32 %v4938, %v4948
        %v4957 = vadd.f32 %v4939, %v4949
        %v4958 = vadd.f32 %v4940, %v4950
        %v4959 = vadd.f32 %v4941, %v4951
        %v4960 = vadd.f32 %v4942, %v4952
        %v4961 = vadd.f32 %v4943, %v4953
        %s4962 = sld [smem:[#allocation9 + $0x206]]
        %v4963 = vstv %s4962
        %v4964 = vmul.f32 %v4963, %v3751
        %v4965 = vmul.f32 %v4963, %v3752
        %v4966 = vmul.f32 %v4963, %v3753
        %v4967 = vmul.f32 %v4963, %v3754
        %v4968 = vmul.f32 %v4963, %v3755
        %v4969 = vmul.f32 %v4963, %v3756
        %v4970 = vmul.f32 %v4963, %v3757
        %v4971 = vmul.f32 %v4963, %v3758
        %v4972 = vadd.f32 %v4954, %v4964
        %v4973 = vadd.f32 %v4955, %v4965
        %v4974 = vadd.f32 %v4956, %v4966
        %v4975 = vadd.f32 %v4957, %v4967
        %v4976 = vadd.f32 %v4958, %v4968
        %v4977 = vadd.f32 %v4959, %v4969
        %v4978 = vadd.f32 %v4960, %v4970
        %v4979 = vadd.f32 %v4961, %v4971
        %s4980 = sld [smem:[#allocation9 + $0x286]]
        %v4981 = vstv %s4980
        %v4982 = vmul.f32 %v4981, %v3767
        %v4983 = vmul.f32 %v4981, %v3768
        %v4984 = vmul.f32 %v4981, %v3769
        %v4985 = vmul.f32 %v4981, %v3770
        %v4986 = vmul.f32 %v4981, %v3771
        %v4987 = vmul.f32 %v4981, %v3772
        %v4988 = vmul.f32 %v4981, %v3773
        %v4989 = vmul.f32 %v4981, %v3774
        %v4990 = vadd.f32 %v4972, %v4982
        %v4991 = vadd.f32 %v4973, %v4983
        %v4992 = vadd.f32 %v4974, %v4984
        %v4993 = vadd.f32 %v4975, %v4985
        %v4994 = vadd.f32 %v4976, %v4986
        %v4995 = vadd.f32 %v4977, %v4987
        %v4996 = vadd.f32 %v4978, %v4988
        %v4997 = vadd.f32 %v4979, %v4989
        %s4998 = sld [smem:[#allocation9 + $0x306]]
        %v4999 = vstv %s4998
        %v5000 = vmul.f32 %v4999, %v3799
        %v5001 = vmul.f32 %v4999, %v3800
        %v5002 = vmul.f32 %v4999, %v3801
        %v5003 = vmul.f32 %v4999, %v3802
        %v5004 = vmul.f32 %v4999, %v3803
        %v5005 = vmul.f32 %v4999, %v3804
        %v5006 = vmul.f32 %v4999, %v3805
        %v5007 = vmul.f32 %v4999, %v3806
        %v5008 = vadd.f32 %v4990, %v5000
        %v5009 = vadd.f32 %v4991, %v5001
        %v5010 = vadd.f32 %v4992, %v5002
        %v5011 = vadd.f32 %v4993, %v5003
        %v5012 = vadd.f32 %v4994, %v5004
        %v5013 = vadd.f32 %v4995, %v5005
        %v5014 = vadd.f32 %v4996, %v5006
        %v5015 = vadd.f32 %v4997, %v5007
        %s5016 = sld [smem:[#allocation9 + $0x386]]
        %v5017 = vstv %s5016
        %v5018 = vmul.f32 %v5017, %v3823
        %v5019 = vmul.f32 %v5017, %v3824
        %v5020 = vmul.f32 %v5017, %v3825
        %v5021 = vmul.f32 %v5017, %v3826
        %v5022 = vmul.f32 %v5017, %v3827
        %v5023 = vmul.f32 %v5017, %v3828
        %v5024 = vmul.f32 %v5017, %v3829
        %v5025 = vmul.f32 %v5017, %v3830
        %v5026 = vadd.f32 %v5008, %v5018
        %v5027 = vadd.f32 %v5009, %v5019
        %v5028 = vadd.f32 %v5010, %v5020
        %v5029 = vadd.f32 %v5011, %v5021
        %v5030 = vadd.f32 %v5012, %v5022
        %v5031 = vadd.f32 %v5013, %v5023
        %v5032 = vadd.f32 %v5014, %v5024
        %v5033 = vadd.f32 %v5015, %v5025
        %s5034 = sld [smem:[#allocation9 + $0x406]]
        %v5035 = vstv %s5034
        %v5036 = vmul.f32 %v5035, %v3871
        %v5037 = vmul.f32 %v5035, %v3872
        %v5038 = vmul.f32 %v5035, %v3873
        %v5039 = vmul.f32 %v5035, %v3874
        %v5040 = vmul.f32 %v5035, %v3875
        %v5041 = vmul.f32 %v5035, %v3876
        %v5042 = vmul.f32 %v5035, %v3877
        %v5043 = vmul.f32 %v5035, %v3878
        %v5044 = vadd.f32 %v5026, %v5036
        %v5045 = vadd.f32 %v5027, %v5037
        %v5046 = vadd.f32 %v5028, %v5038
        %v5047 = vadd.f32 %v5029, %v5039
        %v5048 = vadd.f32 %v5030, %v5040
        %v5049 = vadd.f32 %v5031, %v5041
        %v5050 = vadd.f32 %v5032, %v5042
        %v5051 = vadd.f32 %v5033, %v5043
        %v5052 = vmul.f32 %v5044, %v5044
        %v5053 = vmul.f32 %v5045, %v5045
        %v5054 = vmul.f32 %v5046, %v5046
        %v5055 = vmul.f32 %v5047, %v5047
        %v5056 = vmul.f32 %v5048, %v5048
        %v5057 = vmul.f32 %v5049, %v5049
        %v5058 = vmul.f32 %v5050, %v5050
        %v5059 = vmul.f32 %v5051, %v5051
        %v5060 = vmul.f32 %v5052, 0.5
        %v5061 = vmul.f32 %v5053, 0.5
        %v5062 = vmul.f32 %v5054, 0.5
        %v5063 = vmul.f32 %v5055, 0.5
        %v5064 = vmul.f32 %v5056, 0.5
        %v5065 = vmul.f32 %v5057, 0.5
        %v5066 = vmul.f32 %v5058, 0.5
        %v5067 = vmul.f32 %v5059, 0.5
        %v5068 = vsub.f32 1.0, %v5060
        %v5069 = vsub.f32 1.0, %v5061
        %v5070 = vsub.f32 1.0, %v5062
        %v5071 = vsub.f32 1.0, %v5063
        %v5072 = vsub.f32 1.0, %v5064
        %v5073 = vsub.f32 1.0, %v5065
        %v5074 = vsub.f32 1.0, %v5066
        %v5075 = vsub.f32 1.0, %v5067
        %s5076 = sld [smem:[#allocation9 + $0x7]]
        %v5077 = vstv %s5076
        %v5078 = vmul.f32 %v5077, 0.2820948
        %s5079 = sld [smem:[#allocation9 + $0x87]]
        %v5080 = vstv %s5079
        %v5081 = vmul.f32 %v5080, %v3695
        %v5082 = vmul.f32 %v5080, %v3696
        %v5083 = vmul.f32 %v5080, %v3697
        %v5084 = vmul.f32 %v5080, %v3698
        %v5085 = vmul.f32 %v5080, %v3699
        %v5086 = vmul.f32 %v5080, %v3700
        %v5087 = vmul.f32 %v5080, %v3701
        %v5088 = vmul.f32 %v5080, %v3702
        %v5089 = vadd.f32 %v5078, %v5081
        %v5090 = vadd.f32 %v5078, %v5082
        %v5091 = vadd.f32 %v5078, %v5083
        %v5092 = vadd.f32 %v5078, %v5084
        %v5093 = vadd.f32 %v5078, %v5085
        %v5094 = vadd.f32 %v5078, %v5086
        %v5095 = vadd.f32 %v5078, %v5087
        %v5096 = vadd.f32 %v5078, %v5088
        %s5097 = sld [smem:[#allocation9 + $0x107]]
        %v5098 = vstv %s5097
        %v5099 = vmul.f32 %v5098, %v3703
        %v5100 = vmul.f32 %v5098, %v3704
        %v5101 = vmul.f32 %v5098, %v3705
        %v5102 = vmul.f32 %v5098, %v3706
        %v5103 = vmul.f32 %v5098, %v3707
        %v5104 = vmul.f32 %v5098, %v3708
        %v5105 = vmul.f32 %v5098, %v3709
        %v5106 = vmul.f32 %v5098, %v3710
        %v5107 = vadd.f32 %v5089, %v5099
        %v5108 = vadd.f32 %v5090, %v5100
        %v5109 = vadd.f32 %v5091, %v5101
        %v5110 = vadd.f32 %v5092, %v5102
        %v5111 = vadd.f32 %v5093, %v5103
        %v5112 = vadd.f32 %v5094, %v5104
        %v5113 = vadd.f32 %v5095, %v5105
        %v5114 = vadd.f32 %v5096, %v5106
        %s5115 = sld [smem:[#allocation9 + $0x187]]
        %v5116 = vstv %s5115
        %v5117 = vmul.f32 %v5116, %v3719
        %v5118 = vmul.f32 %v5116, %v3720
        %v5119 = vmul.f32 %v5116, %v3721
        %v5120 = vmul.f32 %v5116, %v3722
        %v5121 = vmul.f32 %v5116, %v3723
        %v5122 = vmul.f32 %v5116, %v3724
        %v5123 = vmul.f32 %v5116, %v3725
        %v5124 = vmul.f32 %v5116, %v3726
        %v5125 = vadd.f32 %v5107, %v5117
        %v5126 = vadd.f32 %v5108, %v5118
        %v5127 = vadd.f32 %v5109, %v5119
        %v5128 = vadd.f32 %v5110, %v5120
        %v5129 = vadd.f32 %v5111, %v5121
        %v5130 = vadd.f32 %v5112, %v5122
        %v5131 = vadd.f32 %v5113, %v5123
        %v5132 = vadd.f32 %v5114, %v5124
        %s5133 = sld [smem:[#allocation9 + $0x207]]
        %v5134 = vstv %s5133
        %v5135 = vmul.f32 %v5134, %v3751
        %v5136 = vmul.f32 %v5134, %v3752
        %v5137 = vmul.f32 %v5134, %v3753
        %v5138 = vmul.f32 %v5134, %v3754
        %v5139 = vmul.f32 %v5134, %v3755
        %v5140 = vmul.f32 %v5134, %v3756
        %v5141 = vmul.f32 %v5134, %v3757
        %v5142 = vmul.f32 %v5134, %v3758
        %v5143 = vadd.f32 %v5125, %v5135
        %v5144 = vadd.f32 %v5126, %v5136
        %v5145 = vadd.f32 %v5127, %v5137
        %v5146 = vadd.f32 %v5128, %v5138
        %v5147 = vadd.f32 %v5129, %v5139
        %v5148 = vadd.f32 %v5130, %v5140
        %v5149 = vadd.f32 %v5131, %v5141
        %v5150 = vadd.f32 %v5132, %v5142
        %s5151 = sld [smem:[#allocation9 + $0x287]]
        %v5152 = vstv %s5151
        %v5153 = vmul.f32 %v5152, %v3767
        %v5154 = vmul.f32 %v5152, %v3768
        %v5155 = vmul.f32 %v5152, %v3769
        %v5156 = vmul.f32 %v5152, %v3770
        %v5157 = vmul.f32 %v5152, %v3771
        %v5158 = vmul.f32 %v5152, %v3772
        %v5159 = vmul.f32 %v5152, %v3773
        %v5160 = vmul.f32 %v5152, %v3774
        %v5161 = vadd.f32 %v5143, %v5153
        %v5162 = vadd.f32 %v5144, %v5154
        %v5163 = vadd.f32 %v5145, %v5155
        %v5164 = vadd.f32 %v5146, %v5156
        %v5165 = vadd.f32 %v5147, %v5157
        %v5166 = vadd.f32 %v5148, %v5158
        %v5167 = vadd.f32 %v5149, %v5159
        %v5168 = vadd.f32 %v5150, %v5160
        %s5169 = sld [smem:[#allocation9 + $0x307]]
        %v5170 = vstv %s5169
        %v5171 = vmul.f32 %v5170, %v3799
        %v5172 = vmul.f32 %v5170, %v3800
        %v5173 = vmul.f32 %v5170, %v3801
        %v5174 = vmul.f32 %v5170, %v3802
        %v5175 = vmul.f32 %v5170, %v3803
        %v5176 = vmul.f32 %v5170, %v3804
        %v5177 = vmul.f32 %v5170, %v3805
        %v5178 = vmul.f32 %v5170, %v3806
        %v5179 = vadd.f32 %v5161, %v5171
        %v5180 = vadd.f32 %v5162, %v5172
        %v5181 = vadd.f32 %v5163, %v5173
        %v5182 = vadd.f32 %v5164, %v5174
        %v5183 = vadd.f32 %v5165, %v5175
        %v5184 = vadd.f32 %v5166, %v5176
        %v5185 = vadd.f32 %v5167, %v5177
        %v5186 = vadd.f32 %v5168, %v5178
        %s5187 = sld [smem:[#allocation9 + $0x387]]
        %v5188 = vstv %s5187
        %v5189 = vmul.f32 %v5188, %v3823
        %v5190 = vmul.f32 %v5188, %v3824
        %v5191 = vmul.f32 %v5188, %v3825
        %v5192 = vmul.f32 %v5188, %v3826
        %v5193 = vmul.f32 %v5188, %v3827
        %v5194 = vmul.f32 %v5188, %v3828
        %v5195 = vmul.f32 %v5188, %v3829
        %v5196 = vmul.f32 %v5188, %v3830
        %v5197 = vadd.f32 %v5179, %v5189
        %v5198 = vadd.f32 %v5180, %v5190
        %v5199 = vadd.f32 %v5181, %v5191
        %v5200 = vadd.f32 %v5182, %v5192
        %v5201 = vadd.f32 %v5183, %v5193
        %v5202 = vadd.f32 %v5184, %v5194
        %v5203 = vadd.f32 %v5185, %v5195
        %v5204 = vadd.f32 %v5186, %v5196
        %s5205 = sld [smem:[#allocation9 + $0x407]]
        %v5206 = vstv %s5205
        %v5207 = vmul.f32 %v5206, %v3871
        %v5208 = vmul.f32 %v5206, %v3872
        %v5209 = vmul.f32 %v5206, %v3873
        %v5210 = vmul.f32 %v5206, %v3874
        %v5211 = vmul.f32 %v5206, %v3875
        %v5212 = vmul.f32 %v5206, %v3876
        %v5213 = vmul.f32 %v5206, %v3877
        %v5214 = vmul.f32 %v5206, %v3878
        %v5215 = vadd.f32 %v5197, %v5207
        %v5216 = vadd.f32 %v5198, %v5208
        %v5217 = vadd.f32 %v5199, %v5209
        %v5218 = vadd.f32 %v5200, %v5210
        %v5219 = vadd.f32 %v5201, %v5211
        %v5220 = vadd.f32 %v5202, %v5212
        %v5221 = vadd.f32 %v5203, %v5213
        %v5222 = vadd.f32 %v5204, %v5214
        %v5223 = vmul.f32 %v5215, %v5215
        %v5224 = vmul.f32 %v5216, %v5216
        %v5225 = vmul.f32 %v5217, %v5217
        %v5226 = vmul.f32 %v5218, %v5218
        %v5227 = vmul.f32 %v5219, %v5219
        %v5228 = vmul.f32 %v5220, %v5220
        %v5229 = vmul.f32 %v5221, %v5221
        %v5230 = vmul.f32 %v5222, %v5222
        %v5231 = vmul.f32 %v5223, 0.5
        %v5232 = vmul.f32 %v5224, 0.5
        %v5233 = vmul.f32 %v5225, 0.5
        %v5234 = vmul.f32 %v5226, 0.5
        %v5235 = vmul.f32 %v5227, 0.5
        %v5236 = vmul.f32 %v5228, 0.5
        %v5237 = vmul.f32 %v5229, 0.5
        %v5238 = vmul.f32 %v5230, 0.5
        %v5239 = vsub.f32 1.0, %v5231
        %v5240 = vsub.f32 1.0, %v5232
        %v5241 = vsub.f32 1.0, %v5233
        %v5242 = vsub.f32 1.0, %v5234
        %v5243 = vsub.f32 1.0, %v5235
        %v5244 = vsub.f32 1.0, %v5236
        %v5245 = vsub.f32 1.0, %v5237
        %v5246 = vsub.f32 1.0, %v5238
        %s5247 = sld [smem:[#allocation10]]
        %v5248 = vstv %s5247
        %v5249 = vmul.f32 %v5248, %v4042
        %v5250 = vmul.f32 %v5248, %v4043
        %v5251 = vmul.f32 %v5248, %v4044
        %v5252 = vmul.f32 %v5248, %v4045
        %v5253 = vmul.f32 %v5248, %v4046
        %v5254 = vmul.f32 %v5248, %v4047
        %v5255 = vmul.f32 %v5248, %v4048
        %v5256 = vmul.f32 %v5248, %v4049
        %s5257 = sld [smem:[#allocation10 + $0x1]]
        %v5258 = vstv %s5257
        %v5259 = vmul.f32 %v5258, %v4213
        %v5260 = vmul.f32 %v5258, %v4214
        %v5261 = vmul.f32 %v5258, %v4215
        %v5262 = vmul.f32 %v5258, %v4216
        %v5263 = vmul.f32 %v5258, %v4217
        %v5264 = vmul.f32 %v5258, %v4218
        %v5265 = vmul.f32 %v5258, %v4219
        %v5266 = vmul.f32 %v5258, %v4220
        %v5267 = vadd.f32 %v5249, %v5259
        %v5268 = vadd.f32 %v5250, %v5260
        %v5269 = vadd.f32 %v5251, %v5261
        %v5270 = vadd.f32 %v5252, %v5262
        %v5271 = vadd.f32 %v5253, %v5263
        %v5272 = vadd.f32 %v5254, %v5264
        %v5273 = vadd.f32 %v5255, %v5265
        %v5274 = vadd.f32 %v5256, %v5266
        %s5275 = sld [smem:[#allocation10 + $0x2]]
        %v5276 = vstv %s5275
        %v5277 = vmul.f32 %v5276, %v4384
        %v5278 = vmul.f32 %v5276, %v4385
        %v5279 = vmul.f32 %v5276, %v4386
        %v5280 = vmul.f32 %v5276, %v4387
        %v5281 = vmul.f32 %v5276, %v4388
        %v5282 = vmul.f32 %v5276, %v4389
        %v5283 = vmul.f32 %v5276, %v4390
        %v5284 = vmul.f32 %v5276, %v4391
        %v5285 = vadd.f32 %v5267, %v5277
        %v5286 = vadd.f32 %v5268, %v5278
        %v5287 = vadd.f32 %v5269, %v5279
        %v5288 = vadd.f32 %v5270, %v5280
        %v5289 = vadd.f32 %v5271, %v5281
        %v5290 = vadd.f32 %v5272, %v5282
        %v5291 = vadd.f32 %v5273, %v5283
        %v5292 = vadd.f32 %v5274, %v5284
        %s5293 = sld [smem:[#allocation10 + $0x3]]
        %v5294 = vstv %s5293
        %v5295 = vmul.f32 %v5294, %v4555
        %v5296 = vmul.f32 %v5294, %v4556
        %v5297 = vmul.f32 %v5294, %v4557
        %v5298 = vmul.f32 %v5294, %v4558
        %v5299 = vmul.f32 %v5294, %v4559
        %v5300 = vmul.f32 %v5294, %v4560
        %v5301 = vmul.f32 %v5294, %v4561
        %v5302 = vmul.f32 %v5294, %v4562
        %v5303 = vadd.f32 %v5285, %v5295
        %v5304 = vadd.f32 %v5286, %v5296
        %v5305 = vadd.f32 %v5287, %v5297
        %v5306 = vadd.f32 %v5288, %v5298
        %v5307 = vadd.f32 %v5289, %v5299
        %v5308 = vadd.f32 %v5290, %v5300
        %v5309 = vadd.f32 %v5291, %v5301
        %v5310 = vadd.f32 %v5292, %v5302
        %s5311 = sld [smem:[#allocation10 + $0x4]]
        %v5312 = vstv %s5311
        %v5313 = vmul.f32 %v5312, %v4726
        %v5314 = vmul.f32 %v5312, %v4727
        %v5315 = vmul.f32 %v5312, %v4728
        %v5316 = vmul.f32 %v5312, %v4729
        %v5317 = vmul.f32 %v5312, %v4730
        %v5318 = vmul.f32 %v5312, %v4731
        %v5319 = vmul.f32 %v5312, %v4732
        %v5320 = vmul.f32 %v5312, %v4733
        %v5321 = vadd.f32 %v5303, %v5313
        %v5322 = vadd.f32 %v5304, %v5314
        %v5323 = vadd.f32 %v5305, %v5315
        %v5324 = vadd.f32 %v5306, %v5316
        %v5325 = vadd.f32 %v5307, %v5317
        %v5326 = vadd.f32 %v5308, %v5318
        %v5327 = vadd.f32 %v5309, %v5319
        %v5328 = vadd.f32 %v5310, %v5320
        %s5329 = sld [smem:[#allocation10 + $0x5]]
        %v5330 = vstv %s5329
        %v5331 = vmul.f32 %v5330, %v4897
        %v5332 = vmul.f32 %v5330, %v4898
        %v5333 = vmul.f32 %v5330, %v4899
        %v5334 = vmul.f32 %v5330, %v4900
        %v5335 = vmul.f32 %v5330, %v4901
        %v5336 = vmul.f32 %v5330, %v4902
        %v5337 = vmul.f32 %v5330, %v4903
        %v5338 = vmul.f32 %v5330, %v4904
        %v5339 = vadd.f32 %v5321, %v5331
        %v5340 = vadd.f32 %v5322, %v5332
        %v5341 = vadd.f32 %v5323, %v5333
        %v5342 = vadd.f32 %v5324, %v5334
        %v5343 = vadd.f32 %v5325, %v5335
        %v5344 = vadd.f32 %v5326, %v5336
        %v5345 = vadd.f32 %v5327, %v5337
        %v5346 = vadd.f32 %v5328, %v5338
        %s5347 = sld [smem:[#allocation10 + $0x6]]
        %v5348 = vstv %s5347
        %v5349 = vmul.f32 %v5348, %v5068
        %v5350 = vmul.f32 %v5348, %v5069
        %v5351 = vmul.f32 %v5348, %v5070
        %v5352 = vmul.f32 %v5348, %v5071
        %v5353 = vmul.f32 %v5348, %v5072
        %v5354 = vmul.f32 %v5348, %v5073
        %v5355 = vmul.f32 %v5348, %v5074
        %v5356 = vmul.f32 %v5348, %v5075
        %v5357 = vadd.f32 %v5339, %v5349
        %v5358 = vadd.f32 %v5340, %v5350
        %v5359 = vadd.f32 %v5341, %v5351
        %v5360 = vadd.f32 %v5342, %v5352
        %v5361 = vadd.f32 %v5343, %v5353
        %v5362 = vadd.f32 %v5344, %v5354
        %v5363 = vadd.f32 %v5345, %v5355
        %v5364 = vadd.f32 %v5346, %v5356
        %s5365 = sld [smem:[#allocation10 + $0x7]]
        %v5366 = vstv %s5365
        %v5367 = vmul.f32 %v5366, %v5239
        %v5368 = vmul.f32 %v5366, %v5240
        %v5369 = vmul.f32 %v5366, %v5241
        %v5370 = vmul.f32 %v5366, %v5242
        %v5371 = vmul.f32 %v5366, %v5243
        %v5372 = vmul.f32 %v5366, %v5244
        %v5373 = vmul.f32 %v5366, %v5245
        %v5374 = vmul.f32 %v5366, %v5246
        %v5375 = vadd.f32 %v5357, %v5367
        %v5376 = vadd.f32 %v5358, %v5368
        %v5377 = vadd.f32 %v5359, %v5369
        %v5378 = vadd.f32 %v5360, %v5370
        %v5379 = vadd.f32 %v5361, %v5371
        %v5380 = vadd.f32 %v5362, %v5372
        %v5381 = vadd.f32 %v5363, %v5373
        %v5382 = vadd.f32 %v5364, %v5374
        %v5383 = vmul.f32 %v5375, %v5375
        %v5384 = vmul.f32 %v5376, %v5376
        %v5385 = vmul.f32 %v5377, %v5377
        %v5386 = vmul.f32 %v5378, %v5378
        %v5387 = vmul.f32 %v5379, %v5379
        %v5388 = vmul.f32 %v5380, %v5380
        %v5389 = vmul.f32 %v5381, %v5381
        %v5390 = vmul.f32 %v5382, %v5382
        %v5391 = vmul.f32 %v5383, 0.5
        %v5392 = vmul.f32 %v5384, 0.5
        %v5393 = vmul.f32 %v5385, 0.5
        %v5394 = vmul.f32 %v5386, 0.5
        %v5395 = vmul.f32 %v5387, 0.5
        %v5396 = vmul.f32 %v5388, 0.5
        %v5397 = vmul.f32 %v5389, 0.5
        %v5398 = vmul.f32 %v5390, 0.5
        %v5399 = vsub.f32 1.0, %v5391
        %v5400 = vsub.f32 1.0, %v5392
        %v5401 = vsub.f32 1.0, %v5393
        %v5402 = vsub.f32 1.0, %v5394
        %v5403 = vsub.f32 1.0, %v5395
        %v5404 = vsub.f32 1.0, %v5396
        %v5405 = vsub.f32 1.0, %v5397
        %v5406 = vsub.f32 1.0, %v5398
        %s5407 = sld [smem:[#allocation10 + $0x80]]
        %v5408 = vstv %s5407
        %v5409 = vmul.f32 %v5408, %v4042
        %v5410 = vmul.f32 %v5408, %v4043
        %v5411 = vmul.f32 %v5408, %v4044
        %v5412 = vmul.f32 %v5408, %v4045
        %v5413 = vmul.f32 %v5408, %v4046
        %v5414 = vmul.f32 %v5408, %v4047
        %v5415 = vmul.f32 %v5408, %v4048
        %v5416 = vmul.f32 %v5408, %v4049
        %s5417 = sld [smem:[#allocation10 + $0x81]]
        %v5418 = vstv %s5417
        %v5419 = vmul.f32 %v5418, %v4213
        %v5420 = vmul.f32 %v5418, %v4214
        %v5421 = vmul.f32 %v5418, %v4215
        %v5422 = vmul.f32 %v5418, %v4216
        %v5423 = vmul.f32 %v5418, %v4217
        %v5424 = vmul.f32 %v5418, %v4218
        %v5425 = vmul.f32 %v5418, %v4219
        %v5426 = vmul.f32 %v5418, %v4220
        %v5427 = vadd.f32 %v5409, %v5419
        %v5428 = vadd.f32 %v5410, %v5420
        %v5429 = vadd.f32 %v5411, %v5421
        %v5430 = vadd.f32 %v5412, %v5422
        %v5431 = vadd.f32 %v5413, %v5423
        %v5432 = vadd.f32 %v5414, %v5424
        %v5433 = vadd.f32 %v5415, %v5425
        %v5434 = vadd.f32 %v5416, %v5426
        %s5435 = sld [smem:[#allocation10 + $0x82]]
        %v5436 = vstv %s5435
        %v5437 = vmul.f32 %v5436, %v4384
        %v5438 = vmul.f32 %v5436, %v4385
        %v5439 = vmul.f32 %v5436, %v4386
        %v5440 = vmul.f32 %v5436, %v4387
        %v5441 = vmul.f32 %v5436, %v4388
        %v5442 = vmul.f32 %v5436, %v4389
        %v5443 = vmul.f32 %v5436, %v4390
        %v5444 = vmul.f32 %v5436, %v4391
        %v5445 = vadd.f32 %v5427, %v5437
        %v5446 = vadd.f32 %v5428, %v5438
        %v5447 = vadd.f32 %v5429, %v5439
        %v5448 = vadd.f32 %v5430, %v5440
        %v5449 = vadd.f32 %v5431, %v5441
        %v5450 = vadd.f32 %v5432, %v5442
        %v5451 = vadd.f32 %v5433, %v5443
        %v5452 = vadd.f32 %v5434, %v5444
        %s5453 = sld [smem:[#allocation10 + $0x83]]
        %v5454 = vstv %s5453
        %v5455 = vmul.f32 %v5454, %v4555
        %v5456 = vmul.f32 %v5454, %v4556
        %v5457 = vmul.f32 %v5454, %v4557
        %v5458 = vmul.f32 %v5454, %v4558
        %v5459 = vmul.f32 %v5454, %v4559
        %v5460 = vmul.f32 %v5454, %v4560
        %v5461 = vmul.f32 %v5454, %v4561
        %v5462 = vmul.f32 %v5454, %v4562
        %v5463 = vadd.f32 %v5445, %v5455
        %v5464 = vadd.f32 %v5446, %v5456
        %v5465 = vadd.f32 %v5447, %v5457
        %v5466 = vadd.f32 %v5448, %v5458
        %v5467 = vadd.f32 %v5449, %v5459
        %v5468 = vadd.f32 %v5450, %v5460
        %v5469 = vadd.f32 %v5451, %v5461
        %v5470 = vadd.f32 %v5452, %v5462
        %s5471 = sld [smem:[#allocation10 + $0x84]]
        %v5472 = vstv %s5471
        %v5473 = vmul.f32 %v5472, %v4726
        %v5474 = vmul.f32 %v5472, %v4727
        %v5475 = vmul.f32 %v5472, %v4728
        %v5476 = vmul.f32 %v5472, %v4729
        %v5477 = vmul.f32 %v5472, %v4730
        %v5478 = vmul.f32 %v5472, %v4731
        %v5479 = vmul.f32 %v5472, %v4732
        %v5480 = vmul.f32 %v5472, %v4733
        %v5481 = vadd.f32 %v5463, %v5473
        %v5482 = vadd.f32 %v5464, %v5474
        %v5483 = vadd.f32 %v5465, %v5475
        %v5484 = vadd.f32 %v5466, %v5476
        %v5485 = vadd.f32 %v5467, %v5477
        %v5486 = vadd.f32 %v5468, %v5478
        %v5487 = vadd.f32 %v5469, %v5479
        %v5488 = vadd.f32 %v5470, %v5480
        %s5489 = sld [smem:[#allocation10 + $0x85]]
        %v5490 = vstv %s5489
        %v5491 = vmul.f32 %v5490, %v4897
        %v5492 = vmul.f32 %v5490, %v4898
        %v5493 = vmul.f32 %v5490, %v4899
        %v5494 = vmul.f32 %v5490, %v4900
        %v5495 = vmul.f32 %v5490, %v4901
        %v5496 = vmul.f32 %v5490, %v4902
        %v5497 = vmul.f32 %v5490, %v4903
        %v5498 = vmul.f32 %v5490, %v4904
        %v5499 = vadd.f32 %v5481, %v5491
        %v5500 = vadd.f32 %v5482, %v5492
        %v5501 = vadd.f32 %v5483, %v5493
        %v5502 = vadd.f32 %v5484, %v5494
        %v5503 = vadd.f32 %v5485, %v5495
        %v5504 = vadd.f32 %v5486, %v5496
        %v5505 = vadd.f32 %v5487, %v5497
        %v5506 = vadd.f32 %v5488, %v5498
        %s5507 = sld [smem:[#allocation10 + $0x86]]
        %v5508 = vstv %s5507
        %v5509 = vmul.f32 %v5508, %v5068
        %v5510 = vmul.f32 %v5508, %v5069
        %v5511 = vmul.f32 %v5508, %v5070
        %v5512 = vmul.f32 %v5508, %v5071
        %v5513 = vmul.f32 %v5508, %v5072
        %v5514 = vmul.f32 %v5508, %v5073
        %v5515 = vmul.f32 %v5508, %v5074
        %v5516 = vmul.f32 %v5508, %v5075
        %v5517 = vadd.f32 %v5499, %v5509
        %v5518 = vadd.f32 %v5500, %v5510
        %v5519 = vadd.f32 %v5501, %v5511
        %v5520 = vadd.f32 %v5502, %v5512
        %v5521 = vadd.f32 %v5503, %v5513
        %v5522 = vadd.f32 %v5504, %v5514
        %v5523 = vadd.f32 %v5505, %v5515
        %v5524 = vadd.f32 %v5506, %v5516
        %s5525 = sld [smem:[#allocation10 + $0x87]]
        %v5526 = vstv %s5525
        %v5527 = vmul.f32 %v5526, %v5239
        %v5528 = vmul.f32 %v5526, %v5240
        %v5529 = vmul.f32 %v5526, %v5241
        %v5530 = vmul.f32 %v5526, %v5242
        %v5531 = vmul.f32 %v5526, %v5243
        %v5532 = vmul.f32 %v5526, %v5244
        %v5533 = vmul.f32 %v5526, %v5245
        %v5534 = vmul.f32 %v5526, %v5246
        %v5535 = vadd.f32 %v5517, %v5527
        %v5536 = vadd.f32 %v5518, %v5528
        %v5537 = vadd.f32 %v5519, %v5529
        %v5538 = vadd.f32 %v5520, %v5530
        %v5539 = vadd.f32 %v5521, %v5531
        %v5540 = vadd.f32 %v5522, %v5532
        %v5541 = vadd.f32 %v5523, %v5533
        %v5542 = vadd.f32 %v5524, %v5534
        %v5543 = vmul.f32 %v5535, %v5535
        %v5544 = vmul.f32 %v5536, %v5536
        %v5545 = vmul.f32 %v5537, %v5537
        %v5546 = vmul.f32 %v5538, %v5538
        %v5547 = vmul.f32 %v5539, %v5539
        %v5548 = vmul.f32 %v5540, %v5540
        %v5549 = vmul.f32 %v5541, %v5541
        %v5550 = vmul.f32 %v5542, %v5542
        %v5551 = vmul.f32 %v5543, 0.5
        %v5552 = vmul.f32 %v5544, 0.5
        %v5553 = vmul.f32 %v5545, 0.5
        %v5554 = vmul.f32 %v5546, 0.5
        %v5555 = vmul.f32 %v5547, 0.5
        %v5556 = vmul.f32 %v5548, 0.5
        %v5557 = vmul.f32 %v5549, 0.5
        %v5558 = vmul.f32 %v5550, 0.5
        %v5559 = vsub.f32 1.0, %v5551
        %v5560 = vsub.f32 1.0, %v5552
        %v5561 = vsub.f32 1.0, %v5553
        %v5562 = vsub.f32 1.0, %v5554
        %v5563 = vsub.f32 1.0, %v5555
        %v5564 = vsub.f32 1.0, %v5556
        %v5565 = vsub.f32 1.0, %v5557
        %v5566 = vsub.f32 1.0, %v5558
        %s5567 = sld [smem:[#allocation10 + $0x100]]
        %v5568 = vstv %s5567
        %v5569 = vmul.f32 %v5568, %v4042
        %v5570 = vmul.f32 %v5568, %v4043
        %v5571 = vmul.f32 %v5568, %v4044
        %v5572 = vmul.f32 %v5568, %v4045
        %v5573 = vmul.f32 %v5568, %v4046
        %v5574 = vmul.f32 %v5568, %v4047
        %v5575 = vmul.f32 %v5568, %v4048
        %v5576 = vmul.f32 %v5568, %v4049
        %s5577 = sld [smem:[#allocation10 + $0x101]]
        %v5578 = vstv %s5577
        %v5579 = vmul.f32 %v5578, %v4213
        %v5580 = vmul.f32 %v5578, %v4214
        %v5581 = vmul.f32 %v5578, %v4215
        %v5582 = vmul.f32 %v5578, %v4216
        %v5583 = vmul.f32 %v5578, %v4217
        %v5584 = vmul.f32 %v5578, %v4218
        %v5585 = vmul.f32 %v5578, %v4219
        %v5586 = vmul.f32 %v5578, %v4220
        %v5587 = vadd.f32 %v5569, %v5579
        %v5588 = vadd.f32 %v5570, %v5580
        %v5589 = vadd.f32 %v5571, %v5581
        %v5590 = vadd.f32 %v5572, %v5582
        %v5591 = vadd.f32 %v5573, %v5583
        %v5592 = vadd.f32 %v5574, %v5584
        %v5593 = vadd.f32 %v5575, %v5585
        %v5594 = vadd.f32 %v5576, %v5586
        %s5595 = sld [smem:[#allocation10 + $0x102]]
        %v5596 = vstv %s5595
        %v5597 = vmul.f32 %v5596, %v4384
        %v5598 = vmul.f32 %v5596, %v4385
        %v5599 = vmul.f32 %v5596, %v4386
        %v5600 = vmul.f32 %v5596, %v4387
        %v5601 = vmul.f32 %v5596, %v4388
        %v5602 = vmul.f32 %v5596, %v4389
        %v5603 = vmul.f32 %v5596, %v4390
        %v5604 = vmul.f32 %v5596, %v4391
        %v5605 = vadd.f32 %v5587, %v5597
        %v5606 = vadd.f32 %v5588, %v5598
        %v5607 = vadd.f32 %v5589, %v5599
        %v5608 = vadd.f32 %v5590, %v5600
        %v5609 = vadd.f32 %v5591, %v5601
        %v5610 = vadd.f32 %v5592, %v5602
        %v5611 = vadd.f32 %v5593, %v5603
        %v5612 = vadd.f32 %v5594, %v5604
        %s5613 = sld [smem:[#allocation10 + $0x103]]
        %v5614 = vstv %s5613
        %v5615 = vmul.f32 %v5614, %v4555
        %v5616 = vmul.f32 %v5614, %v4556
        %v5617 = vmul.f32 %v5614, %v4557
        %v5618 = vmul.f32 %v5614, %v4558
        %v5619 = vmul.f32 %v5614, %v4559
        %v5620 = vmul.f32 %v5614, %v4560
        %v5621 = vmul.f32 %v5614, %v4561
        %v5622 = vmul.f32 %v5614, %v4562
        %v5623 = vadd.f32 %v5605, %v5615
        %v5624 = vadd.f32 %v5606, %v5616
        %v5625 = vadd.f32 %v5607, %v5617
        %v5626 = vadd.f32 %v5608, %v5618
        %v5627 = vadd.f32 %v5609, %v5619
        %v5628 = vadd.f32 %v5610, %v5620
        %v5629 = vadd.f32 %v5611, %v5621
        %v5630 = vadd.f32 %v5612, %v5622
        %s5631 = sld [smem:[#allocation10 + $0x104]]
        %v5632 = vstv %s5631
        %v5633 = vmul.f32 %v5632, %v4726
        %v5634 = vmul.f32 %v5632, %v4727
        %v5635 = vmul.f32 %v5632, %v4728
        %v5636 = vmul.f32 %v5632, %v4729
        %v5637 = vmul.f32 %v5632, %v4730
        %v5638 = vmul.f32 %v5632, %v4731
        %v5639 = vmul.f32 %v5632, %v4732
        %v5640 = vmul.f32 %v5632, %v4733
        %v5641 = vadd.f32 %v5623, %v5633
        %v5642 = vadd.f32 %v5624, %v5634
        %v5643 = vadd.f32 %v5625, %v5635
        %v5644 = vadd.f32 %v5626, %v5636
        %v5645 = vadd.f32 %v5627, %v5637
        %v5646 = vadd.f32 %v5628, %v5638
        %v5647 = vadd.f32 %v5629, %v5639
        %v5648 = vadd.f32 %v5630, %v5640
        %s5649 = sld [smem:[#allocation10 + $0x105]]
        %v5650 = vstv %s5649
        %v5651 = vmul.f32 %v5650, %v4897
        %v5652 = vmul.f32 %v5650, %v4898
        %v5653 = vmul.f32 %v5650, %v4899
        %v5654 = vmul.f32 %v5650, %v4900
        %v5655 = vmul.f32 %v5650, %v4901
        %v5656 = vmul.f32 %v5650, %v4902
        %v5657 = vmul.f32 %v5650, %v4903
        %v5658 = vmul.f32 %v5650, %v4904
        %v5659 = vadd.f32 %v5641, %v5651
        %v5660 = vadd.f32 %v5642, %v5652
        %v5661 = vadd.f32 %v5643, %v5653
        %v5662 = vadd.f32 %v5644, %v5654
        %v5663 = vadd.f32 %v5645, %v5655
        %v5664 = vadd.f32 %v5646, %v5656
        %v5665 = vadd.f32 %v5647, %v5657
        %v5666 = vadd.f32 %v5648, %v5658
        %s5667 = sld [smem:[#allocation10 + $0x106]]
        %v5668 = vstv %s5667
        %v5669 = vmul.f32 %v5668, %v5068
        %v5670 = vmul.f32 %v5668, %v5069
        %v5671 = vmul.f32 %v5668, %v5070
        %v5672 = vmul.f32 %v5668, %v5071
        %v5673 = vmul.f32 %v5668, %v5072
        %v5674 = vmul.f32 %v5668, %v5073
        %v5675 = vmul.f32 %v5668, %v5074
        %v5676 = vmul.f32 %v5668, %v5075
        %v5677 = vadd.f32 %v5659, %v5669
        %v5678 = vadd.f32 %v5660, %v5670
        %v5679 = vadd.f32 %v5661, %v5671
        %v5680 = vadd.f32 %v5662, %v5672
        %v5681 = vadd.f32 %v5663, %v5673
        %v5682 = vadd.f32 %v5664, %v5674
        %v5683 = vadd.f32 %v5665, %v5675
        %v5684 = vadd.f32 %v5666, %v5676
        %s5685 = sld [smem:[#allocation10 + $0x107]]
        %v5686 = vstv %s5685
        %v5687 = vmul.f32 %v5686, %v5239
        %v5688 = vmul.f32 %v5686, %v5240
        %v5689 = vmul.f32 %v5686, %v5241
        %v5690 = vmul.f32 %v5686, %v5242
        %v5691 = vmul.f32 %v5686, %v5243
        %v5692 = vmul.f32 %v5686, %v5244
        %v5693 = vmul.f32 %v5686, %v5245
        %v5694 = vmul.f32 %v5686, %v5246
        %v5695 = vadd.f32 %v5677, %v5687
        %v5696 = vadd.f32 %v5678, %v5688
        %v5697 = vadd.f32 %v5679, %v5689
        %v5698 = vadd.f32 %v5680, %v5690
        %v5699 = vadd.f32 %v5681, %v5691
        %v5700 = vadd.f32 %v5682, %v5692
        %v5701 = vadd.f32 %v5683, %v5693
        %v5702 = vadd.f32 %v5684, %v5694
        %v5703 = vmul.f32 %v5695, %v5695
        %v5704 = vmul.f32 %v5696, %v5696
        %v5705 = vmul.f32 %v5697, %v5697
        %v5706 = vmul.f32 %v5698, %v5698
        %v5707 = vmul.f32 %v5699, %v5699
        %v5708 = vmul.f32 %v5700, %v5700
        %v5709 = vmul.f32 %v5701, %v5701
        %v5710 = vmul.f32 %v5702, %v5702
        %v5711 = vmul.f32 %v5703, 0.5
        %v5712 = vmul.f32 %v5704, 0.5
        %v5713 = vmul.f32 %v5705, 0.5
        %v5714 = vmul.f32 %v5706, 0.5
        %v5715 = vmul.f32 %v5707, 0.5
        %v5716 = vmul.f32 %v5708, 0.5
        %v5717 = vmul.f32 %v5709, 0.5
        %v5718 = vmul.f32 %v5710, 0.5
        %v5719 = vsub.f32 1.0, %v5711
        %v5720 = vsub.f32 1.0, %v5712
        %v5721 = vsub.f32 1.0, %v5713
        %v5722 = vsub.f32 1.0, %v5714
        %v5723 = vsub.f32 1.0, %v5715
        %v5724 = vsub.f32 1.0, %v5716
        %v5725 = vsub.f32 1.0, %v5717
        %v5726 = vsub.f32 1.0, %v5718
        %s5727 = sld [smem:[#allocation10 + $0x180]]
        %v5728 = vstv %s5727
        %v5729 = vmul.f32 %v5728, %v4042
        %v5730 = vmul.f32 %v5728, %v4043
        %v5731 = vmul.f32 %v5728, %v4044
        %v5732 = vmul.f32 %v5728, %v4045
        %v5733 = vmul.f32 %v5728, %v4046
        %v5734 = vmul.f32 %v5728, %v4047
        %v5735 = vmul.f32 %v5728, %v4048
        %v5736 = vmul.f32 %v5728, %v4049
        %s5737 = sld [smem:[#allocation10 + $0x181]]
        %v5738 = vstv %s5737
        %v5739 = vmul.f32 %v5738, %v4213
        %v5740 = vmul.f32 %v5738, %v4214
        %v5741 = vmul.f32 %v5738, %v4215
        %v5742 = vmul.f32 %v5738, %v4216
        %v5743 = vmul.f32 %v5738, %v4217
        %v5744 = vmul.f32 %v5738, %v4218
        %v5745 = vmul.f32 %v5738, %v4219
        %v5746 = vmul.f32 %v5738, %v4220
        %v5747 = vadd.f32 %v5729, %v5739
        %v5748 = vadd.f32 %v5730, %v5740
        %v5749 = vadd.f32 %v5731, %v5741
        %v5750 = vadd.f32 %v5732, %v5742
        %v5751 = vadd.f32 %v5733, %v5743
        %v5752 = vadd.f32 %v5734, %v5744
        %v5753 = vadd.f32 %v5735, %v5745
        %v5754 = vadd.f32 %v5736, %v5746
        %s5755 = sld [smem:[#allocation10 + $0x182]]
        %v5756 = vstv %s5755
        %v5757 = vmul.f32 %v5756, %v4384
        %v5758 = vmul.f32 %v5756, %v4385
        %v5759 = vmul.f32 %v5756, %v4386
        %v5760 = vmul.f32 %v5756, %v4387
        %v5761 = vmul.f32 %v5756, %v4388
        %v5762 = vmul.f32 %v5756, %v4389
        %v5763 = vmul.f32 %v5756, %v4390
        %v5764 = vmul.f32 %v5756, %v4391
        %v5765 = vadd.f32 %v5747, %v5757
        %v5766 = vadd.f32 %v5748, %v5758
        %v5767 = vadd.f32 %v5749, %v5759
        %v5768 = vadd.f32 %v5750, %v5760
        %v5769 = vadd.f32 %v5751, %v5761
        %v5770 = vadd.f32 %v5752, %v5762
        %v5771 = vadd.f32 %v5753, %v5763
        %v5772 = vadd.f32 %v5754, %v5764
        %s5773 = sld [smem:[#allocation10 + $0x183]]
        %v5774 = vstv %s5773
        %v5775 = vmul.f32 %v5774, %v4555
        %v5776 = vmul.f32 %v5774, %v4556
        %v5777 = vmul.f32 %v5774, %v4557
        %v5778 = vmul.f32 %v5774, %v4558
        %v5779 = vmul.f32 %v5774, %v4559
        %v5780 = vmul.f32 %v5774, %v4560
        %v5781 = vmul.f32 %v5774, %v4561
        %v5782 = vmul.f32 %v5774, %v4562
        %v5783 = vadd.f32 %v5765, %v5775
        %v5784 = vadd.f32 %v5766, %v5776
        %v5785 = vadd.f32 %v5767, %v5777
        %v5786 = vadd.f32 %v5768, %v5778
        %v5787 = vadd.f32 %v5769, %v5779
        %v5788 = vadd.f32 %v5770, %v5780
        %v5789 = vadd.f32 %v5771, %v5781
        %v5790 = vadd.f32 %v5772, %v5782
        %s5791 = sld [smem:[#allocation10 + $0x184]]
        %v5792 = vstv %s5791
        %v5793 = vmul.f32 %v5792, %v4726
        %v5794 = vmul.f32 %v5792, %v4727
        %v5795 = vmul.f32 %v5792, %v4728
        %v5796 = vmul.f32 %v5792, %v4729
        %v5797 = vmul.f32 %v5792, %v4730
        %v5798 = vmul.f32 %v5792, %v4731
        %v5799 = vmul.f32 %v5792, %v4732
        %v5800 = vmul.f32 %v5792, %v4733
        %v5801 = vadd.f32 %v5783, %v5793
        %v5802 = vadd.f32 %v5784, %v5794
        %v5803 = vadd.f32 %v5785, %v5795
        %v5804 = vadd.f32 %v5786, %v5796
        %v5805 = vadd.f32 %v5787, %v5797
        %v5806 = vadd.f32 %v5788, %v5798
        %v5807 = vadd.f32 %v5789, %v5799
        %v5808 = vadd.f32 %v5790, %v5800
        %s5809 = sld [smem:[#allocation10 + $0x185]]
        %v5810 = vstv %s5809
        %v5811 = vmul.f32 %v5810, %v4897
        %v5812 = vmul.f32 %v5810, %v4898
        %v5813 = vmul.f32 %v5810, %v4899
        %v5814 = vmul.f32 %v5810, %v4900
        %v5815 = vmul.f32 %v5810, %v4901
        %v5816 = vmul.f32 %v5810, %v4902
        %v5817 = vmul.f32 %v5810, %v4903
        %v5818 = vmul.f32 %v5810, %v4904
        %v5819 = vadd.f32 %v5801, %v5811
        %v5820 = vadd.f32 %v5802, %v5812
        %v5821 = vadd.f32 %v5803, %v5813
        %v5822 = vadd.f32 %v5804, %v5814
        %v5823 = vadd.f32 %v5805, %v5815
        %v5824 = vadd.f32 %v5806, %v5816
        %v5825 = vadd.f32 %v5807, %v5817
        %v5826 = vadd.f32 %v5808, %v5818
        %s5827 = sld [smem:[#allocation10 + $0x186]]
        %v5828 = vstv %s5827
        %v5829 = vmul.f32 %v5828, %v5068
        %v5830 = vmul.f32 %v5828, %v5069
        %v5831 = vmul.f32 %v5828, %v5070
        %v5832 = vmul.f32 %v5828, %v5071
        %v5833 = vmul.f32 %v5828, %v5072
        %v5834 = vmul.f32 %v5828, %v5073
        %v5835 = vmul.f32 %v5828, %v5074
        %v5836 = vmul.f32 %v5828, %v5075
        %v5837 = vadd.f32 %v5819, %v5829
        %v5838 = vadd.f32 %v5820, %v5830
        %v5839 = vadd.f32 %v5821, %v5831
        %v5840 = vadd.f32 %v5822, %v5832
        %v5841 = vadd.f32 %v5823, %v5833
        %v5842 = vadd.f32 %v5824, %v5834
        %v5843 = vadd.f32 %v5825, %v5835
        %v5844 = vadd.f32 %v5826, %v5836
        %s5845 = sld [smem:[#allocation10 + $0x187]]
        %v5846 = vstv %s5845
        %v5847 = vmul.f32 %v5846, %v5239
        %v5848 = vmul.f32 %v5846, %v5240
        %v5849 = vmul.f32 %v5846, %v5241
        %v5850 = vmul.f32 %v5846, %v5242
        %v5851 = vmul.f32 %v5846, %v5243
        %v5852 = vmul.f32 %v5846, %v5244
        %v5853 = vmul.f32 %v5846, %v5245
        %v5854 = vmul.f32 %v5846, %v5246
        %v5855 = vadd.f32 %v5837, %v5847
        %v5856 = vadd.f32 %v5838, %v5848
        %v5857 = vadd.f32 %v5839, %v5849
        %v5858 = vadd.f32 %v5840, %v5850
        %v5859 = vadd.f32 %v5841, %v5851
        %v5860 = vadd.f32 %v5842, %v5852
        %v5861 = vadd.f32 %v5843, %v5853
        %v5862 = vadd.f32 %v5844, %v5854
        %v5863 = vmul.f32 %v5855, %v5855
        %v5864 = vmul.f32 %v5856, %v5856
        %v5865 = vmul.f32 %v5857, %v5857
        %v5866 = vmul.f32 %v5858, %v5858
        %v5867 = vmul.f32 %v5859, %v5859
        %v5868 = vmul.f32 %v5860, %v5860
        %v5869 = vmul.f32 %v5861, %v5861
        %v5870 = vmul.f32 %v5862, %v5862
        %v5871 = vmul.f32 %v5863, 0.5
        %v5872 = vmul.f32 %v5864, 0.5
        %v5873 = vmul.f32 %v5865, 0.5
        %v5874 = vmul.f32 %v5866, 0.5
        %v5875 = vmul.f32 %v5867, 0.5
        %v5876 = vmul.f32 %v5868, 0.5
        %v5877 = vmul.f32 %v5869, 0.5
        %v5878 = vmul.f32 %v5870, 0.5
        %v5879 = vsub.f32 1.0, %v5871
        %v5880 = vsub.f32 1.0, %v5872
        %v5881 = vsub.f32 1.0, %v5873
        %v5882 = vsub.f32 1.0, %v5874
        %v5883 = vsub.f32 1.0, %v5875
        %v5884 = vsub.f32 1.0, %v5876
        %v5885 = vsub.f32 1.0, %v5877
        %v5886 = vsub.f32 1.0, %v5878
        %s5887 = sld [smem:[#allocation10 + $0x200]]
        %v5888 = vstv %s5887
        %v5889 = vmul.f32 %v5888, %v4042
        %v5890 = vmul.f32 %v5888, %v4043
        %v5891 = vmul.f32 %v5888, %v4044
        %v5892 = vmul.f32 %v5888, %v4045
        %v5893 = vmul.f32 %v5888, %v4046
        %v5894 = vmul.f32 %v5888, %v4047
        %v5895 = vmul.f32 %v5888, %v4048
        %v5896 = vmul.f32 %v5888, %v4049
        %s5897 = sld [smem:[#allocation10 + $0x201]]
        %v5898 = vstv %s5897
        %v5899 = vmul.f32 %v5898, %v4213
        %v5900 = vmul.f32 %v5898, %v4214
        %v5901 = vmul.f32 %v5898, %v4215
        %v5902 = vmul.f32 %v5898, %v4216
        %v5903 = vmul.f32 %v5898, %v4217
        %v5904 = vmul.f32 %v5898, %v4218
        %v5905 = vmul.f32 %v5898, %v4219
        %v5906 = vmul.f32 %v5898, %v4220
        %v5907 = vadd.f32 %v5889, %v5899
        %v5908 = vadd.f32 %v5890, %v5900
        %v5909 = vadd.f32 %v5891, %v5901
        %v5910 = vadd.f32 %v5892, %v5902
        %v5911 = vadd.f32 %v5893, %v5903
        %v5912 = vadd.f32 %v5894, %v5904
        %v5913 = vadd.f32 %v5895, %v5905
        %v5914 = vadd.f32 %v5896, %v5906
        %s5915 = sld [smem:[#allocation10 + $0x202]]
        %v5916 = vstv %s5915
        %v5917 = vmul.f32 %v5916, %v4384
        %v5918 = vmul.f32 %v5916, %v4385
        %v5919 = vmul.f32 %v5916, %v4386
        %v5920 = vmul.f32 %v5916, %v4387
        %v5921 = vmul.f32 %v5916, %v4388
        %v5922 = vmul.f32 %v5916, %v4389
        %v5923 = vmul.f32 %v5916, %v4390
        %v5924 = vmul.f32 %v5916, %v4391
        %v5925 = vadd.f32 %v5907, %v5917
        %v5926 = vadd.f32 %v5908, %v5918
        %v5927 = vadd.f32 %v5909, %v5919
        %v5928 = vadd.f32 %v5910, %v5920
        %v5929 = vadd.f32 %v5911, %v5921
        %v5930 = vadd.f32 %v5912, %v5922
        %v5931 = vadd.f32 %v5913, %v5923
        %v5932 = vadd.f32 %v5914, %v5924
        %s5933 = sld [smem:[#allocation10 + $0x203]]
        %v5934 = vstv %s5933
        %v5935 = vmul.f32 %v5934, %v4555
        %v5936 = vmul.f32 %v5934, %v4556
        %v5937 = vmul.f32 %v5934, %v4557
        %v5938 = vmul.f32 %v5934, %v4558
        %v5939 = vmul.f32 %v5934, %v4559
        %v5940 = vmul.f32 %v5934, %v4560
        %v5941 = vmul.f32 %v5934, %v4561
        %v5942 = vmul.f32 %v5934, %v4562
        %v5943 = vadd.f32 %v5925, %v5935
        %v5944 = vadd.f32 %v5926, %v5936
        %v5945 = vadd.f32 %v5927, %v5937
        %v5946 = vadd.f32 %v5928, %v5938
        %v5947 = vadd.f32 %v5929, %v5939
        %v5948 = vadd.f32 %v5930, %v5940
        %v5949 = vadd.f32 %v5931, %v5941
        %v5950 = vadd.f32 %v5932, %v5942
        %s5951 = sld [smem:[#allocation10 + $0x204]]
        %v5952 = vstv %s5951
        %v5953 = vmul.f32 %v5952, %v4726
        %v5954 = vmul.f32 %v5952, %v4727
        %v5955 = vmul.f32 %v5952, %v4728
        %v5956 = vmul.f32 %v5952, %v4729
        %v5957 = vmul.f32 %v5952, %v4730
        %v5958 = vmul.f32 %v5952, %v4731
        %v5959 = vmul.f32 %v5952, %v4732
        %v5960 = vmul.f32 %v5952, %v4733
        %v5961 = vadd.f32 %v5943, %v5953
        %v5962 = vadd.f32 %v5944, %v5954
        %v5963 = vadd.f32 %v5945, %v5955
        %v5964 = vadd.f32 %v5946, %v5956
        %v5965 = vadd.f32 %v5947, %v5957
        %v5966 = vadd.f32 %v5948, %v5958
        %v5967 = vadd.f32 %v5949, %v5959
        %v5968 = vadd.f32 %v5950, %v5960
        %s5969 = sld [smem:[#allocation10 + $0x205]]
        %v5970 = vstv %s5969
        %v5971 = vmul.f32 %v5970, %v4897
        %v5972 = vmul.f32 %v5970, %v4898
        %v5973 = vmul.f32 %v5970, %v4899
        %v5974 = vmul.f32 %v5970, %v4900
        %v5975 = vmul.f32 %v5970, %v4901
        %v5976 = vmul.f32 %v5970, %v4902
        %v5977 = vmul.f32 %v5970, %v4903
        %v5978 = vmul.f32 %v5970, %v4904
        %v5979 = vadd.f32 %v5961, %v5971
        %v5980 = vadd.f32 %v5962, %v5972
        %v5981 = vadd.f32 %v5963, %v5973
        %v5982 = vadd.f32 %v5964, %v5974
        %v5983 = vadd.f32 %v5965, %v5975
        %v5984 = vadd.f32 %v5966, %v5976
        %v5985 = vadd.f32 %v5967, %v5977
        %v5986 = vadd.f32 %v5968, %v5978
        %s5987 = sld [smem:[#allocation10 + $0x206]]
        %v5988 = vstv %s5987
        %v5989 = vmul.f32 %v5988, %v5068
        %v5990 = vmul.f32 %v5988, %v5069
        %v5991 = vmul.f32 %v5988, %v5070
        %v5992 = vmul.f32 %v5988, %v5071
        %v5993 = vmul.f32 %v5988, %v5072
        %v5994 = vmul.f32 %v5988, %v5073
        %v5995 = vmul.f32 %v5988, %v5074
        %v5996 = vmul.f32 %v5988, %v5075
        %v5997 = vadd.f32 %v5979, %v5989
        %v5998 = vadd.f32 %v5980, %v5990
        %v5999 = vadd.f32 %v5981, %v5991
        %v6000 = vadd.f32 %v5982, %v5992
        %v6001 = vadd.f32 %v5983, %v5993
        %v6002 = vadd.f32 %v5984, %v5994
        %v6003 = vadd.f32 %v5985, %v5995
        %v6004 = vadd.f32 %v5986, %v5996
        %s6005 = sld [smem:[#allocation10 + $0x207]]
        %v6006 = vstv %s6005
        %v6007 = vmul.f32 %v6006, %v5239
        %v6008 = vmul.f32 %v6006, %v5240
        %v6009 = vmul.f32 %v6006, %v5241
        %v6010 = vmul.f32 %v6006, %v5242
        %v6011 = vmul.f32 %v6006, %v5243
        %v6012 = vmul.f32 %v6006, %v5244
        %v6013 = vmul.f32 %v6006, %v5245
        %v6014 = vmul.f32 %v6006, %v5246
        %v6015 = vadd.f32 %v5997, %v6007
        %v6016 = vadd.f32 %v5998, %v6008
        %v6017 = vadd.f32 %v5999, %v6009
        %v6018 = vadd.f32 %v6000, %v6010
        %v6019 = vadd.f32 %v6001, %v6011
        %v6020 = vadd.f32 %v6002, %v6012
        %v6021 = vadd.f32 %v6003, %v6013
        %v6022 = vadd.f32 %v6004, %v6014
        %v6023 = vmul.f32 %v6015, %v6015
        %v6024 = vmul.f32 %v6016, %v6016
        %v6025 = vmul.f32 %v6017, %v6017
        %v6026 = vmul.f32 %v6018, %v6018
        %v6027 = vmul.f32 %v6019, %v6019
        %v6028 = vmul.f32 %v6020, %v6020
        %v6029 = vmul.f32 %v6021, %v6021
        %v6030 = vmul.f32 %v6022, %v6022
        %v6031 = vmul.f32 %v6023, 0.5
        %v6032 = vmul.f32 %v6024, 0.5
        %v6033 = vmul.f32 %v6025, 0.5
        %v6034 = vmul.f32 %v6026, 0.5
        %v6035 = vmul.f32 %v6027, 0.5
        %v6036 = vmul.f32 %v6028, 0.5
        %v6037 = vmul.f32 %v6029, 0.5
        %v6038 = vmul.f32 %v6030, 0.5
        %v6039 = vsub.f32 1.0, %v6031
        %v6040 = vsub.f32 1.0, %v6032
        %v6041 = vsub.f32 1.0, %v6033
        %v6042 = vsub.f32 1.0, %v6034
        %v6043 = vsub.f32 1.0, %v6035
        %v6044 = vsub.f32 1.0, %v6036
        %v6045 = vsub.f32 1.0, %v6037
        %v6046 = vsub.f32 1.0, %v6038
        %s6047 = sld [smem:[#allocation10 + $0x280]]
        %v6048 = vstv %s6047
        %v6049 = vmul.f32 %v6048, %v4042
        %v6050 = vmul.f32 %v6048, %v4043
        %v6051 = vmul.f32 %v6048, %v4044
        %v6052 = vmul.f32 %v6048, %v4045
        %v6053 = vmul.f32 %v6048, %v4046
        %v6054 = vmul.f32 %v6048, %v4047
        %v6055 = vmul.f32 %v6048, %v4048
        %v6056 = vmul.f32 %v6048, %v4049
        %s6057 = sld [smem:[#allocation10 + $0x281]]
        %v6058 = vstv %s6057
        %v6059 = vmul.f32 %v6058, %v4213
        %v6060 = vmul.f32 %v6058, %v4214
        %v6061 = vmul.f32 %v6058, %v4215
        %v6062 = vmul.f32 %v6058, %v4216
        %v6063 = vmul.f32 %v6058, %v4217
        %v6064 = vmul.f32 %v6058, %v4218
        %v6065 = vmul.f32 %v6058, %v4219
        %v6066 = vmul.f32 %v6058, %v4220
        %v6067 = vadd.f32 %v6049, %v6059
        %v6068 = vadd.f32 %v6050, %v6060
        %v6069 = vadd.f32 %v6051, %v6061
        %v6070 = vadd.f32 %v6052, %v6062
        %v6071 = vadd.f32 %v6053, %v6063
        %v6072 = vadd.f32 %v6054, %v6064
        %v6073 = vadd.f32 %v6055, %v6065
        %v6074 = vadd.f32 %v6056, %v6066
        %s6075 = sld [smem:[#allocation10 + $0x282]]
        %v6076 = vstv %s6075
        %v6077 = vmul.f32 %v6076, %v4384
        %v6078 = vmul.f32 %v6076, %v4385
        %v6079 = vmul.f32 %v6076, %v4386
        %v6080 = vmul.f32 %v6076, %v4387
        %v6081 = vmul.f32 %v6076, %v4388
        %v6082 = vmul.f32 %v6076, %v4389
        %v6083 = vmul.f32 %v6076, %v4390
        %v6084 = vmul.f32 %v6076, %v4391
        %v6085 = vadd.f32 %v6067, %v6077
        %v6086 = vadd.f32 %v6068, %v6078
        %v6087 = vadd.f32 %v6069, %v6079
        %v6088 = vadd.f32 %v6070, %v6080
        %v6089 = vadd.f32 %v6071, %v6081
        %v6090 = vadd.f32 %v6072, %v6082
        %v6091 = vadd.f32 %v6073, %v6083
        %v6092 = vadd.f32 %v6074, %v6084
        %s6093 = sld [smem:[#allocation10 + $0x283]]
        %v6094 = vstv %s6093
        %v6095 = vmul.f32 %v6094, %v4555
        %v6096 = vmul.f32 %v6094, %v4556
        %v6097 = vmul.f32 %v6094, %v4557
        %v6098 = vmul.f32 %v6094, %v4558
        %v6099 = vmul.f32 %v6094, %v4559
        %v6100 = vmul.f32 %v6094, %v4560
        %v6101 = vmul.f32 %v6094, %v4561
        %v6102 = vmul.f32 %v6094, %v4562
        %v6103 = vadd.f32 %v6085, %v6095
        %v6104 = vadd.f32 %v6086, %v6096
        %v6105 = vadd.f32 %v6087, %v6097
        %v6106 = vadd.f32 %v6088, %v6098
        %v6107 = vadd.f32 %v6089, %v6099
        %v6108 = vadd.f32 %v6090, %v6100
        %v6109 = vadd.f32 %v6091, %v6101
        %v6110 = vadd.f32 %v6092, %v6102
        %s6111 = sld [smem:[#allocation10 + $0x284]]
        %v6112 = vstv %s6111
        %v6113 = vmul.f32 %v6112, %v4726
        %v6114 = vmul.f32 %v6112, %v4727
        %v6115 = vmul.f32 %v6112, %v4728
        %v6116 = vmul.f32 %v6112, %v4729
        %v6117 = vmul.f32 %v6112, %v4730
        %v6118 = vmul.f32 %v6112, %v4731
        %v6119 = vmul.f32 %v6112, %v4732
        %v6120 = vmul.f32 %v6112, %v4733
        %v6121 = vadd.f32 %v6103, %v6113
        %v6122 = vadd.f32 %v6104, %v6114
        %v6123 = vadd.f32 %v6105, %v6115
        %v6124 = vadd.f32 %v6106, %v6116
        %v6125 = vadd.f32 %v6107, %v6117
        %v6126 = vadd.f32 %v6108, %v6118
        %v6127 = vadd.f32 %v6109, %v6119
        %v6128 = vadd.f32 %v6110, %v6120
        %s6129 = sld [smem:[#allocation10 + $0x285]]
        %v6130 = vstv %s6129
        %v6131 = vmul.f32 %v6130, %v4897
        %v6132 = vmul.f32 %v6130, %v4898
        %v6133 = vmul.f32 %v6130, %v4899
        %v6134 = vmul.f32 %v6130, %v4900
        %v6135 = vmul.f32 %v6130, %v4901
        %v6136 = vmul.f32 %v6130, %v4902
        %v6137 = vmul.f32 %v6130, %v4903
        %v6138 = vmul.f32 %v6130, %v4904
        %v6139 = vadd.f32 %v6121, %v6131
        %v6140 = vadd.f32 %v6122, %v6132
        %v6141 = vadd.f32 %v6123, %v6133
        %v6142 = vadd.f32 %v6124, %v6134
        %v6143 = vadd.f32 %v6125, %v6135
        %v6144 = vadd.f32 %v6126, %v6136
        %v6145 = vadd.f32 %v6127, %v6137
        %v6146 = vadd.f32 %v6128, %v6138
        %s6147 = sld [smem:[#allocation10 + $0x286]]
        %v6148 = vstv %s6147
        %v6149 = vmul.f32 %v6148, %v5068
        %v6150 = vmul.f32 %v6148, %v5069
        %v6151 = vmul.f32 %v6148, %v5070
        %v6152 = vmul.f32 %v6148, %v5071
        %v6153 = vmul.f32 %v6148, %v5072
        %v6154 = vmul.f32 %v6148, %v5073
        %v6155 = vmul.f32 %v6148, %v5074
        %v6156 = vmul.f32 %v6148, %v5075
        %v6157 = vadd.f32 %v6139, %v6149
        %v6158 = vadd.f32 %v6140, %v6150
        %v6159 = vadd.f32 %v6141, %v6151
        %v6160 = vadd.f32 %v6142, %v6152
        %v6161 = vadd.f32 %v6143, %v6153
        %v6162 = vadd.f32 %v6144, %v6154
        %v6163 = vadd.f32 %v6145, %v6155
        %v6164 = vadd.f32 %v6146, %v6156
        %s6165 = sld [smem:[#allocation10 + $0x287]]
        %v6166 = vstv %s6165
        %v6167 = vmul.f32 %v6166, %v5239
        %v6168 = vmul.f32 %v6166, %v5240
        %v6169 = vmul.f32 %v6166, %v5241
        %v6170 = vmul.f32 %v6166, %v5242
        %v6171 = vmul.f32 %v6166, %v5243
        %v6172 = vmul.f32 %v6166, %v5244
        %v6173 = vmul.f32 %v6166, %v5245
        %v6174 = vmul.f32 %v6166, %v5246
        %v6175 = vadd.f32 %v6157, %v6167
        %v6176 = vadd.f32 %v6158, %v6168
        %v6177 = vadd.f32 %v6159, %v6169
        %v6178 = vadd.f32 %v6160, %v6170
        %v6179 = vadd.f32 %v6161, %v6171
        %v6180 = vadd.f32 %v6162, %v6172
        %v6181 = vadd.f32 %v6163, %v6173
        %v6182 = vadd.f32 %v6164, %v6174
        %v6183 = vmul.f32 %v6175, %v6175
        %v6184 = vmul.f32 %v6176, %v6176
        %v6185 = vmul.f32 %v6177, %v6177
        %v6186 = vmul.f32 %v6178, %v6178
        %v6187 = vmul.f32 %v6179, %v6179
        %v6188 = vmul.f32 %v6180, %v6180
        %v6189 = vmul.f32 %v6181, %v6181
        %v6190 = vmul.f32 %v6182, %v6182
        %v6191 = vmul.f32 %v6183, 0.5
        %v6192 = vmul.f32 %v6184, 0.5
        %v6193 = vmul.f32 %v6185, 0.5
        %v6194 = vmul.f32 %v6186, 0.5
        %v6195 = vmul.f32 %v6187, 0.5
        %v6196 = vmul.f32 %v6188, 0.5
        %v6197 = vmul.f32 %v6189, 0.5
        %v6198 = vmul.f32 %v6190, 0.5
        %v6199 = vsub.f32 1.0, %v6191
        %v6200 = vsub.f32 1.0, %v6192
        %v6201 = vsub.f32 1.0, %v6193
        %v6202 = vsub.f32 1.0, %v6194
        %v6203 = vsub.f32 1.0, %v6195
        %v6204 = vsub.f32 1.0, %v6196
        %v6205 = vsub.f32 1.0, %v6197
        %v6206 = vsub.f32 1.0, %v6198
        %s6207 = sld [smem:[#allocation10 + $0x300]]
        %v6208 = vstv %s6207
        %v6209 = vmul.f32 %v6208, %v4042
        %v6210 = vmul.f32 %v6208, %v4043
        %v6211 = vmul.f32 %v6208, %v4044
        %v6212 = vmul.f32 %v6208, %v4045
        %v6213 = vmul.f32 %v6208, %v4046
        %v6214 = vmul.f32 %v6208, %v4047
        %v6215 = vmul.f32 %v6208, %v4048
        %v6216 = vmul.f32 %v6208, %v4049
        %s6217 = sld [smem:[#allocation10 + $0x301]]
        %v6218 = vstv %s6217
        %v6219 = vmul.f32 %v6218, %v4213
        %v6220 = vmul.f32 %v6218, %v4214
        %v6221 = vmul.f32 %v6218, %v4215
        %v6222 = vmul.f32 %v6218, %v4216
        %v6223 = vmul.f32 %v6218, %v4217
        %v6224 = vmul.f32 %v6218, %v4218
        %v6225 = vmul.f32 %v6218, %v4219
        %v6226 = vmul.f32 %v6218, %v4220
        %v6227 = vadd.f32 %v6209, %v6219
        %v6228 = vadd.f32 %v6210, %v6220
        %v6229 = vadd.f32 %v6211, %v6221
        %v6230 = vadd.f32 %v6212, %v6222
        %v6231 = vadd.f32 %v6213, %v6223
        %v6232 = vadd.f32 %v6214, %v6224
        %v6233 = vadd.f32 %v6215, %v6225
        %v6234 = vadd.f32 %v6216, %v6226
        %s6235 = sld [smem:[#allocation10 + $0x302]]
        %v6236 = vstv %s6235
        %v6237 = vmul.f32 %v6236, %v4384
        %v6238 = vmul.f32 %v6236, %v4385
        %v6239 = vmul.f32 %v6236, %v4386
        %v6240 = vmul.f32 %v6236, %v4387
        %v6241 = vmul.f32 %v6236, %v4388
        %v6242 = vmul.f32 %v6236, %v4389
        %v6243 = vmul.f32 %v6236, %v4390
        %v6244 = vmul.f32 %v6236, %v4391
        %v6245 = vadd.f32 %v6227, %v6237
        %v6246 = vadd.f32 %v6228, %v6238
        %v6247 = vadd.f32 %v6229, %v6239
        %v6248 = vadd.f32 %v6230, %v6240
        %v6249 = vadd.f32 %v6231, %v6241
        %v6250 = vadd.f32 %v6232, %v6242
        %v6251 = vadd.f32 %v6233, %v6243
        %v6252 = vadd.f32 %v6234, %v6244
        %s6253 = sld [smem:[#allocation10 + $0x303]]
        %v6254 = vstv %s6253
        %v6255 = vmul.f32 %v6254, %v4555
        %v6256 = vmul.f32 %v6254, %v4556
        %v6257 = vmul.f32 %v6254, %v4557
        %v6258 = vmul.f32 %v6254, %v4558
        %v6259 = vmul.f32 %v6254, %v4559
        %v6260 = vmul.f32 %v6254, %v4560
        %v6261 = vmul.f32 %v6254, %v4561
        %v6262 = vmul.f32 %v6254, %v4562
        %v6263 = vadd.f32 %v6245, %v6255
        %v6264 = vadd.f32 %v6246, %v6256
        %v6265 = vadd.f32 %v6247, %v6257
        %v6266 = vadd.f32 %v6248, %v6258
        %v6267 = vadd.f32 %v6249, %v6259
        %v6268 = vadd.f32 %v6250, %v6260
        %v6269 = vadd.f32 %v6251, %v6261
        %v6270 = vadd.f32 %v6252, %v6262
        %s6271 = sld [smem:[#allocation10 + $0x304]]
        %v6272 = vstv %s6271
        %v6273 = vmul.f32 %v6272, %v4726
        %v6274 = vmul.f32 %v6272, %v4727
        %v6275 = vmul.f32 %v6272, %v4728
        %v6276 = vmul.f32 %v6272, %v4729
        %v6277 = vmul.f32 %v6272, %v4730
        %v6278 = vmul.f32 %v6272, %v4731
        %v6279 = vmul.f32 %v6272, %v4732
        %v6280 = vmul.f32 %v6272, %v4733
        %v6281 = vadd.f32 %v6263, %v6273
        %v6282 = vadd.f32 %v6264, %v6274
        %v6283 = vadd.f32 %v6265, %v6275
        %v6284 = vadd.f32 %v6266, %v6276
        %v6285 = vadd.f32 %v6267, %v6277
        %v6286 = vadd.f32 %v6268, %v6278
        %v6287 = vadd.f32 %v6269, %v6279
        %v6288 = vadd.f32 %v6270, %v6280
        %s6289 = sld [smem:[#allocation10 + $0x305]]
        %v6290 = vstv %s6289
        %v6291 = vmul.f32 %v6290, %v4897
        %v6292 = vmul.f32 %v6290, %v4898
        %v6293 = vmul.f32 %v6290, %v4899
        %v6294 = vmul.f32 %v6290, %v4900
        %v6295 = vmul.f32 %v6290, %v4901
        %v6296 = vmul.f32 %v6290, %v4902
        %v6297 = vmul.f32 %v6290, %v4903
        %v6298 = vmul.f32 %v6290, %v4904
        %v6299 = vadd.f32 %v6281, %v6291
        %v6300 = vadd.f32 %v6282, %v6292
        %v6301 = vadd.f32 %v6283, %v6293
        %v6302 = vadd.f32 %v6284, %v6294
        %v6303 = vadd.f32 %v6285, %v6295
        %v6304 = vadd.f32 %v6286, %v6296
        %v6305 = vadd.f32 %v6287, %v6297
        %v6306 = vadd.f32 %v6288, %v6298
        %s6307 = sld [smem:[#allocation10 + $0x306]]
        %v6308 = vstv %s6307
        %v6309 = vmul.f32 %v6308, %v5068
        %v6310 = vmul.f32 %v6308, %v5069
        %v6311 = vmul.f32 %v6308, %v5070
        %v6312 = vmul.f32 %v6308, %v5071
        %v6313 = vmul.f32 %v6308, %v5072
        %v6314 = vmul.f32 %v6308, %v5073
        %v6315 = vmul.f32 %v6308, %v5074
        %v6316 = vmul.f32 %v6308, %v5075
        %v6317 = vadd.f32 %v6299, %v6309
        %v6318 = vadd.f32 %v6300, %v6310
        %v6319 = vadd.f32 %v6301, %v6311
        %v6320 = vadd.f32 %v6302, %v6312
        %v6321 = vadd.f32 %v6303, %v6313
        %v6322 = vadd.f32 %v6304, %v6314
        %v6323 = vadd.f32 %v6305, %v6315
        %v6324 = vadd.f32 %v6306, %v6316
        %s6325 = sld [smem:[#allocation10 + $0x307]]
        %v6326 = vstv %s6325
        %v6327 = vmul.f32 %v6326, %v5239
        %v6328 = vmul.f32 %v6326, %v5240
        %v6329 = vmul.f32 %v6326, %v5241
        %v6330 = vmul.f32 %v6326, %v5242
        %v6331 = vmul.f32 %v6326, %v5243
        %v6332 = vmul.f32 %v6326, %v5244
        %v6333 = vmul.f32 %v6326, %v5245
        %v6334 = vmul.f32 %v6326, %v5246
        %v6335 = vadd.f32 %v6317, %v6327
        %v6336 = vadd.f32 %v6318, %v6328
        %v6337 = vadd.f32 %v6319, %v6329
        %v6338 = vadd.f32 %v6320, %v6330
        %v6339 = vadd.f32 %v6321, %v6331
        %v6340 = vadd.f32 %v6322, %v6332
        %v6341 = vadd.f32 %v6323, %v6333
        %v6342 = vadd.f32 %v6324, %v6334
        %v6343 = vmul.f32 %v6335, %v6335
        %v6344 = vmul.f32 %v6336, %v6336
        %v6345 = vmul.f32 %v6337, %v6337
        %v6346 = vmul.f32 %v6338, %v6338
        %v6347 = vmul.f32 %v6339, %v6339
        %v6348 = vmul.f32 %v6340, %v6340
        %v6349 = vmul.f32 %v6341, %v6341
        %v6350 = vmul.f32 %v6342, %v6342
        %v6351 = vmul.f32 %v6343, 0.5
        %v6352 = vmul.f32 %v6344, 0.5
        %v6353 = vmul.f32 %v6345, 0.5
        %v6354 = vmul.f32 %v6346, 0.5
        %v6355 = vmul.f32 %v6347, 0.5
        %v6356 = vmul.f32 %v6348, 0.5
        %v6357 = vmul.f32 %v6349, 0.5
        %v6358 = vmul.f32 %v6350, 0.5
        %v6359 = vsub.f32 1.0, %v6351
        %v6360 = vsub.f32 1.0, %v6352
        %v6361 = vsub.f32 1.0, %v6353
        %v6362 = vsub.f32 1.0, %v6354
        %v6363 = vsub.f32 1.0, %v6355
        %v6364 = vsub.f32 1.0, %v6356
        %v6365 = vsub.f32 1.0, %v6357
        %v6366 = vsub.f32 1.0, %v6358
        %s6367 = sld [smem:[#allocation10 + $0x380]]
        %v6368 = vstv %s6367
        %v6369 = vmul.f32 %v6368, %v4042
        %v6370 = vmul.f32 %v6368, %v4043
        %v6371 = vmul.f32 %v6368, %v4044
        %v6372 = vmul.f32 %v6368, %v4045
        %v6373 = vmul.f32 %v6368, %v4046
        %v6374 = vmul.f32 %v6368, %v4047
        %v6375 = vmul.f32 %v6368, %v4048
        %v6376 = vmul.f32 %v6368, %v4049
        %s6377 = sld [smem:[#allocation10 + $0x381]]
        %v6378 = vstv %s6377
        %v6379 = vmul.f32 %v6378, %v4213
        %v6380 = vmul.f32 %v6378, %v4214
        %v6381 = vmul.f32 %v6378, %v4215
        %v6382 = vmul.f32 %v6378, %v4216
        %v6383 = vmul.f32 %v6378, %v4217
        %v6384 = vmul.f32 %v6378, %v4218
        %v6385 = vmul.f32 %v6378, %v4219
        %v6386 = vmul.f32 %v6378, %v4220
        %v6387 = vadd.f32 %v6369, %v6379
        %v6388 = vadd.f32 %v6370, %v6380
        %v6389 = vadd.f32 %v6371, %v6381
        %v6390 = vadd.f32 %v6372, %v6382
        %v6391 = vadd.f32 %v6373, %v6383
        %v6392 = vadd.f32 %v6374, %v6384
        %v6393 = vadd.f32 %v6375, %v6385
        %v6394 = vadd.f32 %v6376, %v6386
        %s6395 = sld [smem:[#allocation10 + $0x382]]
        %v6396 = vstv %s6395
        %v6397 = vmul.f32 %v6396, %v4384
        %v6398 = vmul.f32 %v6396, %v4385
        %v6399 = vmul.f32 %v6396, %v4386
        %v6400 = vmul.f32 %v6396, %v4387
        %v6401 = vmul.f32 %v6396, %v4388
        %v6402 = vmul.f32 %v6396, %v4389
        %v6403 = vmul.f32 %v6396, %v4390
        %v6404 = vmul.f32 %v6396, %v4391
        %v6405 = vadd.f32 %v6387, %v6397
        %v6406 = vadd.f32 %v6388, %v6398
        %v6407 = vadd.f32 %v6389, %v6399
        %v6408 = vadd.f32 %v6390, %v6400
        %v6409 = vadd.f32 %v6391, %v6401
        %v6410 = vadd.f32 %v6392, %v6402
        %v6411 = vadd.f32 %v6393, %v6403
        %v6412 = vadd.f32 %v6394, %v6404
        %s6413 = sld [smem:[#allocation10 + $0x383]]
        %v6414 = vstv %s6413
        %v6415 = vmul.f32 %v6414, %v4555
        %v6416 = vmul.f32 %v6414, %v4556
        %v6417 = vmul.f32 %v6414, %v4557
        %v6418 = vmul.f32 %v6414, %v4558
        %v6419 = vmul.f32 %v6414, %v4559
        %v6420 = vmul.f32 %v6414, %v4560
        %v6421 = vmul.f32 %v6414, %v4561
        %v6422 = vmul.f32 %v6414, %v4562
        %v6423 = vadd.f32 %v6405, %v6415
        %v6424 = vadd.f32 %v6406, %v6416
        %v6425 = vadd.f32 %v6407, %v6417
        %v6426 = vadd.f32 %v6408, %v6418
        %v6427 = vadd.f32 %v6409, %v6419
        %v6428 = vadd.f32 %v6410, %v6420
        %v6429 = vadd.f32 %v6411, %v6421
        %v6430 = vadd.f32 %v6412, %v6422
        %s6431 = sld [smem:[#allocation10 + $0x384]]
        %v6432 = vstv %s6431
        %v6433 = vmul.f32 %v6432, %v4726
        %v6434 = vmul.f32 %v6432, %v4727
        %v6435 = vmul.f32 %v6432, %v4728
        %v6436 = vmul.f32 %v6432, %v4729
        %v6437 = vmul.f32 %v6432, %v4730
        %v6438 = vmul.f32 %v6432, %v4731
        %v6439 = vmul.f32 %v6432, %v4732
        %v6440 = vmul.f32 %v6432, %v4733
        %v6441 = vadd.f32 %v6423, %v6433
        %v6442 = vadd.f32 %v6424, %v6434
        %v6443 = vadd.f32 %v6425, %v6435
        %v6444 = vadd.f32 %v6426, %v6436
        %v6445 = vadd.f32 %v6427, %v6437
        %v6446 = vadd.f32 %v6428, %v6438
        %v6447 = vadd.f32 %v6429, %v6439
        %v6448 = vadd.f32 %v6430, %v6440
        %s6449 = sld [smem:[#allocation10 + $0x385]]
        %v6450 = vstv %s6449
        %v6451 = vmul.f32 %v6450, %v4897
        %v6452 = vmul.f32 %v6450, %v4898
        %v6453 = vmul.f32 %v6450, %v4899
        %v6454 = vmul.f32 %v6450, %v4900
        %v6455 = vmul.f32 %v6450, %v4901
        %v6456 = vmul.f32 %v6450, %v4902
        %v6457 = vmul.f32 %v6450, %v4903
        %v6458 = vmul.f32 %v6450, %v4904
        %v6459 = vadd.f32 %v6441, %v6451
        %v6460 = vadd.f32 %v6442, %v6452
        %v6461 = vadd.f32 %v6443, %v6453
        %v6462 = vadd.f32 %v6444, %v6454
        %v6463 = vadd.f32 %v6445, %v6455
        %v6464 = vadd.f32 %v6446, %v6456
        %v6465 = vadd.f32 %v6447, %v6457
        %v6466 = vadd.f32 %v6448, %v6458
        %s6467 = sld [smem:[#allocation10 + $0x386]]
        %v6468 = vstv %s6467
        %v6469 = vmul.f32 %v6468, %v5068
        %v6470 = vmul.f32 %v6468, %v5069
        %v6471 = vmul.f32 %v6468, %v5070
        %v6472 = vmul.f32 %v6468, %v5071
        %v6473 = vmul.f32 %v6468, %v5072
        %v6474 = vmul.f32 %v6468, %v5073
        %v6475 = vmul.f32 %v6468, %v5074
        %v6476 = vmul.f32 %v6468, %v5075
        %v6477 = vadd.f32 %v6459, %v6469
        %v6478 = vadd.f32 %v6460, %v6470
        %v6479 = vadd.f32 %v6461, %v6471
        %v6480 = vadd.f32 %v6462, %v6472
        %v6481 = vadd.f32 %v6463, %v6473
        %v6482 = vadd.f32 %v6464, %v6474
        %v6483 = vadd.f32 %v6465, %v6475
        %v6484 = vadd.f32 %v6466, %v6476
        %s6485 = sld [smem:[#allocation10 + $0x387]]
        %v6486 = vstv %s6485
        %v6487 = vmul.f32 %v6486, %v5239
        %v6488 = vmul.f32 %v6486, %v5240
        %v6489 = vmul.f32 %v6486, %v5241
        %v6490 = vmul.f32 %v6486, %v5242
        %v6491 = vmul.f32 %v6486, %v5243
        %v6492 = vmul.f32 %v6486, %v5244
        %v6493 = vmul.f32 %v6486, %v5245
        %v6494 = vmul.f32 %v6486, %v5246
        %v6495 = vadd.f32 %v6477, %v6487
        %v6496 = vadd.f32 %v6478, %v6488
        %v6497 = vadd.f32 %v6479, %v6489
        %v6498 = vadd.f32 %v6480, %v6490
        %v6499 = vadd.f32 %v6481, %v6491
        %v6500 = vadd.f32 %v6482, %v6492
        %v6501 = vadd.f32 %v6483, %v6493
        %v6502 = vadd.f32 %v6484, %v6494
        %v6503 = vmul.f32 %v6495, %v6495
        %v6504 = vmul.f32 %v6496, %v6496
        %v6505 = vmul.f32 %v6497, %v6497
        %v6506 = vmul.f32 %v6498, %v6498
        %v6507 = vmul.f32 %v6499, %v6499
        %v6508 = vmul.f32 %v6500, %v6500
        %v6509 = vmul.f32 %v6501, %v6501
        %v6510 = vmul.f32 %v6502, %v6502
        %v6511 = vmul.f32 %v6503, 0.5
        %v6512 = vmul.f32 %v6504, 0.5
        %v6513 = vmul.f32 %v6505, 0.5
        %v6514 = vmul.f32 %v6506, 0.5
        %v6515 = vmul.f32 %v6507, 0.5
        %v6516 = vmul.f32 %v6508, 0.5
        %v6517 = vmul.f32 %v6509, 0.5
        %v6518 = vmul.f32 %v6510, 0.5
        %v6519 = vsub.f32 1.0, %v6511
        %v6520 = vsub.f32 1.0, %v6512
        %v6521 = vsub.f32 1.0, %v6513
        %v6522 = vsub.f32 1.0, %v6514
        %v6523 = vsub.f32 1.0, %v6515
        %v6524 = vsub.f32 1.0, %v6516
        %v6525 = vsub.f32 1.0, %v6517
        %v6526 = vsub.f32 1.0, %v6518
        %s6527 = sld [smem:[#allocation10 + $0x400]]
        %v6528 = vstv %s6527
        %v6529 = vmul.f32 %v6528, %v5399
        %v6530 = vmul.f32 %v6528, %v5400
        %v6531 = vmul.f32 %v6528, %v5401
        %v6532 = vmul.f32 %v6528, %v5402
        %v6533 = vmul.f32 %v6528, %v5403
        %v6534 = vmul.f32 %v6528, %v5404
        %v6535 = vmul.f32 %v6528, %v5405
        %v6536 = vmul.f32 %v6528, %v5406
        %s6537 = sld [smem:[#allocation10 + $0x401]]
        %v6538 = vstv %s6537
        %v6539 = vmul.f32 %v6538, %v5559
        %v6540 = vmul.f32 %v6538, %v5560
        %v6541 = vmul.f32 %v6538, %v5561
        %v6542 = vmul.f32 %v6538, %v5562
        %v6543 = vmul.f32 %v6538, %v5563
        %v6544 = vmul.f32 %v6538, %v5564
        %v6545 = vmul.f32 %v6538, %v5565
        %v6546 = vmul.f32 %v6538, %v5566
        %v6547 = vadd.f32 %v6529, %v6539
        %v6548 = vadd.f32 %v6530, %v6540
        %v6549 = vadd.f32 %v6531, %v6541
        %v6550 = vadd.f32 %v6532, %v6542
        %v6551 = vadd.f32 %v6533, %v6543
        %v6552 = vadd.f32 %v6534, %v6544
        %v6553 = vadd.f32 %v6535, %v6545
        %v6554 = vadd.f32 %v6536, %v6546
        %s6555 = sld [smem:[#allocation10 + $0x402]]
        %v6556 = vstv %s6555
        %v6557 = vmul.f32 %v6556, %v5719
        %v6558 = vmul.f32 %v6556, %v5720
        %v6559 = vmul.f32 %v6556, %v5721
        %v6560 = vmul.f32 %v6556, %v5722
        %v6561 = vmul.f32 %v6556, %v5723
        %v6562 = vmul.f32 %v6556, %v5724
        %v6563 = vmul.f32 %v6556, %v5725
        %v6564 = vmul.f32 %v6556, %v5726
        %v6565 = vadd.f32 %v6547, %v6557
        %v6566 = vadd.f32 %v6548, %v6558
        %v6567 = vadd.f32 %v6549, %v6559
        %v6568 = vadd.f32 %v6550, %v6560
        %v6569 = vadd.f32 %v6551, %v6561
        %v6570 = vadd.f32 %v6552, %v6562
        %v6571 = vadd.f32 %v6553, %v6563
        %v6572 = vadd.f32 %v6554, %v6564
        %s6573 = sld [smem:[#allocation10 + $0x403]]
        %v6574 = vstv %s6573
        %v6575 = vmul.f32 %v6574, %v5879
        %v6576 = vmul.f32 %v6574, %v5880
        %v6577 = vmul.f32 %v6574, %v5881
        %v6578 = vmul.f32 %v6574, %v5882
        %v6579 = vmul.f32 %v6574, %v5883
        %v6580 = vmul.f32 %v6574, %v5884
        %v6581 = vmul.f32 %v6574, %v5885
        %v6582 = vmul.f32 %v6574, %v5886
        %v6583 = vadd.f32 %v6565, %v6575
        %v6584 = vadd.f32 %v6566, %v6576
        %v6585 = vadd.f32 %v6567, %v6577
        %v6586 = vadd.f32 %v6568, %v6578
        %v6587 = vadd.f32 %v6569, %v6579
        %v6588 = vadd.f32 %v6570, %v6580
        %v6589 = vadd.f32 %v6571, %v6581
        %v6590 = vadd.f32 %v6572, %v6582
        %s6591 = sld [smem:[#allocation10 + $0x404]]
        %v6592 = vstv %s6591
        %v6593 = vmul.f32 %v6592, %v6039
        %v6594 = vmul.f32 %v6592, %v6040
        %v6595 = vmul.f32 %v6592, %v6041
        %v6596 = vmul.f32 %v6592, %v6042
        %v6597 = vmul.f32 %v6592, %v6043
        %v6598 = vmul.f32 %v6592, %v6044
        %v6599 = vmul.f32 %v6592, %v6045
        %v6600 = vmul.f32 %v6592, %v6046
        %v6601 = vadd.f32 %v6583, %v6593
        %v6602 = vadd.f32 %v6584, %v6594
        %v6603 = vadd.f32 %v6585, %v6595
        %v6604 = vadd.f32 %v6586, %v6596
        %v6605 = vadd.f32 %v6587, %v6597
        %v6606 = vadd.f32 %v6588, %v6598
        %v6607 = vadd.f32 %v6589, %v6599
        %v6608 = vadd.f32 %v6590, %v6600
        %s6609 = sld [smem:[#allocation10 + $0x405]]
        %v6610 = vstv %s6609
        %v6611 = vmul.f32 %v6610, %v6199
        %v6612 = vmul.f32 %v6610, %v6200
        %v6613 = vmul.f32 %v6610, %v6201
        %v6614 = vmul.f32 %v6610, %v6202
        %v6615 = vmul.f32 %v6610, %v6203
        %v6616 = vmul.f32 %v6610, %v6204
        %v6617 = vmul.f32 %v6610, %v6205
        %v6618 = vmul.f32 %v6610, %v6206
        %v6619 = vadd.f32 %v6601, %v6611
        %v6620 = vadd.f32 %v6602, %v6612
        %v6621 = vadd.f32 %v6603, %v6613
        %v6622 = vadd.f32 %v6604, %v6614
        %v6623 = vadd.f32 %v6605, %v6615
        %v6624 = vadd.f32 %v6606, %v6616
        %v6625 = vadd.f32 %v6607, %v6617
        %v6626 = vadd.f32 %v6608, %v6618
        %s6627 = sld [smem:[#allocation10 + $0x406]]
        %v6628 = vstv %s6627
        %v6629 = vmul.f32 %v6628, %v6359
        %v6630 = vmul.f32 %v6628, %v6360
        %v6631 = vmul.f32 %v6628, %v6361
        %v6632 = vmul.f32 %v6628, %v6362
        %v6633 = vmul.f32 %v6628, %v6363
        %v6634 = vmul.f32 %v6628, %v6364
        %v6635 = vmul.f32 %v6628, %v6365
        %v6636 = vmul.f32 %v6628, %v6366
        %v6637 = vadd.f32 %v6619, %v6629
        %v6638 = vadd.f32 %v6620, %v6630
        %v6639 = vadd.f32 %v6621, %v6631
        %v6640 = vadd.f32 %v6622, %v6632
        %v6641 = vadd.f32 %v6623, %v6633
        %v6642 = vadd.f32 %v6624, %v6634
        %v6643 = vadd.f32 %v6625, %v6635
        %v6644 = vadd.f32 %v6626, %v6636
        %s6645 = sld [smem:[#allocation10 + $0x407]]
        %v6646 = vstv %s6645
        %v6647 = vmul.f32 %v6646, %v6519
        %v6648 = vmul.f32 %v6646, %v6520
        %v6649 = vmul.f32 %v6646, %v6521
        %v6650 = vmul.f32 %v6646, %v6522
        %v6651 = vmul.f32 %v6646, %v6523
        %v6652 = vmul.f32 %v6646, %v6524
        %v6653 = vmul.f32 %v6646, %v6525
        %v6654 = vmul.f32 %v6646, %v6526
        %v6655 = vadd.f32 %v6637, %v6647
        %v6656 = vadd.f32 %v6638, %v6648
        %v6657 = vadd.f32 %v6639, %v6649
        %v6658 = vadd.f32 %v6640, %v6650
        %v6659 = vadd.f32 %v6641, %v6651
        %v6660 = vadd.f32 %v6642, %v6652
        %v6661 = vadd.f32 %v6643, %v6653
        %v6662 = vadd.f32 %v6644, %v6654
        %v6663 = vmul.f32 %v6655, %v6655
        %v6664 = vmul.f32 %v6656, %v6656
        %v6665 = vmul.f32 %v6657, %v6657
        %v6666 = vmul.f32 %v6658, %v6658
        %v6667 = vmul.f32 %v6659, %v6659
        %v6668 = vmul.f32 %v6660, %v6660
        %v6669 = vmul.f32 %v6661, %v6661
        %v6670 = vmul.f32 %v6662, %v6662
        %v6671 = vmul.f32 %v6663, 0.5
        %v6672 = vmul.f32 %v6664, 0.5
        %v6673 = vmul.f32 %v6665, 0.5
        %v6674 = vmul.f32 %v6666, 0.5
        %v6675 = vmul.f32 %v6667, 0.5
        %v6676 = vmul.f32 %v6668, 0.5
        %v6677 = vmul.f32 %v6669, 0.5
        %v6678 = vmul.f32 %v6670, 0.5
        %v6679 = vsub.f32 1.0, %v6671
        %v6680 = vsub.f32 1.0, %v6672
        %v6681 = vsub.f32 1.0, %v6673
        %v6682 = vsub.f32 1.0, %v6674
        %v6683 = vsub.f32 1.0, %v6675
        %v6684 = vsub.f32 1.0, %v6676
        %v6685 = vsub.f32 1.0, %v6677
        %v6686 = vsub.f32 1.0, %v6678
        %s6687 = sld [smem:[#allocation10 + $0x480]]
        %v6688 = vstv %s6687
        %v6689 = vmul.f32 %v6688, %v5399
        %v6690 = vmul.f32 %v6688, %v5400
        %v6691 = vmul.f32 %v6688, %v5401
        %v6692 = vmul.f32 %v6688, %v5402
        %v6693 = vmul.f32 %v6688, %v5403
        %v6694 = vmul.f32 %v6688, %v5404
        %v6695 = vmul.f32 %v6688, %v5405
        %v6696 = vmul.f32 %v6688, %v5406
        %s6697 = sld [smem:[#allocation10 + $0x481]]
        %v6698 = vstv %s6697
        %v6699 = vmul.f32 %v6698, %v5559
        %v6700 = vmul.f32 %v6698, %v5560
        %v6701 = vmul.f32 %v6698, %v5561
        %v6702 = vmul.f32 %v6698, %v5562
        %v6703 = vmul.f32 %v6698, %v5563
        %v6704 = vmul.f32 %v6698, %v5564
        %v6705 = vmul.f32 %v6698, %v5565
        %v6706 = vmul.f32 %v6698, %v5566
        %v6707 = vadd.f32 %v6689, %v6699
        %v6708 = vadd.f32 %v6690, %v6700
        %v6709 = vadd.f32 %v6691, %v6701
        %v6710 = vadd.f32 %v6692, %v6702
        %v6711 = vadd.f32 %v6693, %v6703
        %v6712 = vadd.f32 %v6694, %v6704
        %v6713 = vadd.f32 %v6695, %v6705
        %v6714 = vadd.f32 %v6696, %v6706
        %s6715 = sld [smem:[#allocation10 + $0x482]]
        %v6716 = vstv %s6715
        %v6717 = vmul.f32 %v6716, %v5719
        %v6718 = vmul.f32 %v6716, %v5720
        %v6719 = vmul.f32 %v6716, %v5721
        %v6720 = vmul.f32 %v6716, %v5722
        %v6721 = vmul.f32 %v6716, %v5723
        %v6722 = vmul.f32 %v6716, %v5724
        %v6723 = vmul.f32 %v6716, %v5725
        %v6724 = vmul.f32 %v6716, %v5726
        %v6725 = vadd.f32 %v6707, %v6717
        %v6726 = vadd.f32 %v6708, %v6718
        %v6727 = vadd.f32 %v6709, %v6719
        %v6728 = vadd.f32 %v6710, %v6720
        %v6729 = vadd.f32 %v6711, %v6721
        %v6730 = vadd.f32 %v6712, %v6722
        %v6731 = vadd.f32 %v6713, %v6723
        %v6732 = vadd.f32 %v6714, %v6724
        %s6733 = sld [smem:[#allocation10 + $0x483]]
        %v6734 = vstv %s6733
        %v6735 = vmul.f32 %v6734, %v5879
        %v6736 = vmul.f32 %v6734, %v5880
        %v6737 = vmul.f32 %v6734, %v5881
        %v6738 = vmul.f32 %v6734, %v5882
        %v6739 = vmul.f32 %v6734, %v5883
        %v6740 = vmul.f32 %v6734, %v5884
        %v6741 = vmul.f32 %v6734, %v5885
        %v6742 = vmul.f32 %v6734, %v5886
        %v6743 = vadd.f32 %v6725, %v6735
        %v6744 = vadd.f32 %v6726, %v6736
        %v6745 = vadd.f32 %v6727, %v6737
        %v6746 = vadd.f32 %v6728, %v6738
        %v6747 = vadd.f32 %v6729, %v6739
        %v6748 = vadd.f32 %v6730, %v6740
        %v6749 = vadd.f32 %v6731, %v6741
        %v6750 = vadd.f32 %v6732, %v6742
        %s6751 = sld [smem:[#allocation10 + $0x484]]
        %v6752 = vstv %s6751
        %v6753 = vmul.f32 %v6752, %v6039
        %v6754 = vmul.f32 %v6752, %v6040
        %v6755 = vmul.f32 %v6752, %v6041
        %v6756 = vmul.f32 %v6752, %v6042
        %v6757 = vmul.f32 %v6752, %v6043
        %v6758 = vmul.f32 %v6752, %v6044
        %v6759 = vmul.f32 %v6752, %v6045
        %v6760 = vmul.f32 %v6752, %v6046
        %v6761 = vadd.f32 %v6743, %v6753
        %v6762 = vadd.f32 %v6744, %v6754
        %v6763 = vadd.f32 %v6745, %v6755
        %v6764 = vadd.f32 %v6746, %v6756
        %v6765 = vadd.f32 %v6747, %v6757
        %v6766 = vadd.f32 %v6748, %v6758
        %v6767 = vadd.f32 %v6749, %v6759
        %v6768 = vadd.f32 %v6750, %v6760
        %s6769 = sld [smem:[#allocation10 + $0x485]]
        %v6770 = vstv %s6769
        %v6771 = vmul.f32 %v6770, %v6199
        %v6772 = vmul.f32 %v6770, %v6200
        %v6773 = vmul.f32 %v6770, %v6201
        %v6774 = vmul.f32 %v6770, %v6202
        %v6775 = vmul.f32 %v6770, %v6203
        %v6776 = vmul.f32 %v6770, %v6204
        %v6777 = vmul.f32 %v6770, %v6205
        %v6778 = vmul.f32 %v6770, %v6206
        %v6779 = vadd.f32 %v6761, %v6771
        %v6780 = vadd.f32 %v6762, %v6772
        %v6781 = vadd.f32 %v6763, %v6773
        %v6782 = vadd.f32 %v6764, %v6774
        %v6783 = vadd.f32 %v6765, %v6775
        %v6784 = vadd.f32 %v6766, %v6776
        %v6785 = vadd.f32 %v6767, %v6777
        %v6786 = vadd.f32 %v6768, %v6778
        %s6787 = sld [smem:[#allocation10 + $0x486]]
        %v6788 = vstv %s6787
        %v6789 = vmul.f32 %v6788, %v6359
        %v6790 = vmul.f32 %v6788, %v6360
        %v6791 = vmul.f32 %v6788, %v6361
        %v6792 = vmul.f32 %v6788, %v6362
        %v6793 = vmul.f32 %v6788, %v6363
        %v6794 = vmul.f32 %v6788, %v6364
        %v6795 = vmul.f32 %v6788, %v6365
        %v6796 = vmul.f32 %v6788, %v6366
        %v6797 = vadd.f32 %v6779, %v6789
        %v6798 = vadd.f32 %v6780, %v6790
        %v6799 = vadd.f32 %v6781, %v6791
        %v6800 = vadd.f32 %v6782, %v6792
        %v6801 = vadd.f32 %v6783, %v6793
        %v6802 = vadd.f32 %v6784, %v6794
        %v6803 = vadd.f32 %v6785, %v6795
        %v6804 = vadd.f32 %v6786, %v6796
        %s6805 = sld [smem:[#allocation10 + $0x487]]
        %v6806 = vstv %s6805
        %v6807 = vmul.f32 %v6806, %v6519
        %v6808 = vmul.f32 %v6806, %v6520
        %v6809 = vmul.f32 %v6806, %v6521
        %v6810 = vmul.f32 %v6806, %v6522
        %v6811 = vmul.f32 %v6806, %v6523
        %v6812 = vmul.f32 %v6806, %v6524
        %v6813 = vmul.f32 %v6806, %v6525
        %v6814 = vmul.f32 %v6806, %v6526
        %v6815 = vadd.f32 %v6797, %v6807
        %v6816 = vadd.f32 %v6798, %v6808
        %v6817 = vadd.f32 %v6799, %v6809
        %v6818 = vadd.f32 %v6800, %v6810
        %v6819 = vadd.f32 %v6801, %v6811
        %v6820 = vadd.f32 %v6802, %v6812
        %v6821 = vadd.f32 %v6803, %v6813
        %v6822 = vadd.f32 %v6804, %v6814
        %v6823 = vmul.f32 %v6815, %v6815
        %v6824 = vmul.f32 %v6816, %v6816
        %v6825 = vmul.f32 %v6817, %v6817
        %v6826 = vmul.f32 %v6818, %v6818
        %v6827 = vmul.f32 %v6819, %v6819
        %v6828 = vmul.f32 %v6820, %v6820
        %v6829 = vmul.f32 %v6821, %v6821
        %v6830 = vmul.f32 %v6822, %v6822
        %v6831 = vmul.f32 %v6823, 0.5
        %v6832 = vmul.f32 %v6824, 0.5
        %v6833 = vmul.f32 %v6825, 0.5
        %v6834 = vmul.f32 %v6826, 0.5
        %v6835 = vmul.f32 %v6827, 0.5
        %v6836 = vmul.f32 %v6828, 0.5
        %v6837 = vmul.f32 %v6829, 0.5
        %v6838 = vmul.f32 %v6830, 0.5
        %v6839 = vsub.f32 1.0, %v6831
        %v6840 = vsub.f32 1.0, %v6832
        %v6841 = vsub.f32 1.0, %v6833
        %v6842 = vsub.f32 1.0, %v6834
        %v6843 = vsub.f32 1.0, %v6835
        %v6844 = vsub.f32 1.0, %v6836
        %v6845 = vsub.f32 1.0, %v6837
        %v6846 = vsub.f32 1.0, %v6838
        %s6847 = sld [smem:[#allocation10 + $0x500]]
        %v6848 = vstv %s6847
        %v6849 = vmul.f32 %v6848, %v5399
        %v6850 = vmul.f32 %v6848, %v5400
        %v6851 = vmul.f32 %v6848, %v5401
        %v6852 = vmul.f32 %v6848, %v5402
        %v6853 = vmul.f32 %v6848, %v5403
        %v6854 = vmul.f32 %v6848, %v5404
        %v6855 = vmul.f32 %v6848, %v5405
        %v6856 = vmul.f32 %v6848, %v5406
        %s6857 = sld [smem:[#allocation10 + $0x501]]
        %v6858 = vstv %s6857
        %v6859 = vmul.f32 %v6858, %v5559
        %v6860 = vmul.f32 %v6858, %v5560
        %v6861 = vmul.f32 %v6858, %v5561
        %v6862 = vmul.f32 %v6858, %v5562
        %v6863 = vmul.f32 %v6858, %v5563
        %v6864 = vmul.f32 %v6858, %v5564
        %v6865 = vmul.f32 %v6858, %v5565
        %v6866 = vmul.f32 %v6858, %v5566
        %v6867 = vadd.f32 %v6849, %v6859
        %v6868 = vadd.f32 %v6850, %v6860
        %v6869 = vadd.f32 %v6851, %v6861
        %v6870 = vadd.f32 %v6852, %v6862
        %v6871 = vadd.f32 %v6853, %v6863
        %v6872 = vadd.f32 %v6854, %v6864
        %v6873 = vadd.f32 %v6855, %v6865
        %v6874 = vadd.f32 %v6856, %v6866
        %s6875 = sld [smem:[#allocation10 + $0x502]]
        %v6876 = vstv %s6875
        %v6877 = vmul.f32 %v6876, %v5719
        %v6878 = vmul.f32 %v6876, %v5720
        %v6879 = vmul.f32 %v6876, %v5721
        %v6880 = vmul.f32 %v6876, %v5722
        %v6881 = vmul.f32 %v6876, %v5723
        %v6882 = vmul.f32 %v6876, %v5724
        %v6883 = vmul.f32 %v6876, %v5725
        %v6884 = vmul.f32 %v6876, %v5726
        %v6885 = vadd.f32 %v6867, %v6877
        %v6886 = vadd.f32 %v6868, %v6878
        %v6887 = vadd.f32 %v6869, %v6879
        %v6888 = vadd.f32 %v6870, %v6880
        %v6889 = vadd.f32 %v6871, %v6881
        %v6890 = vadd.f32 %v6872, %v6882
        %v6891 = vadd.f32 %v6873, %v6883
        %v6892 = vadd.f32 %v6874, %v6884
        %s6893 = sld [smem:[#allocation10 + $0x503]]
        %v6894 = vstv %s6893
        %v6895 = vmul.f32 %v6894, %v5879
        %v6896 = vmul.f32 %v6894, %v5880
        %v6897 = vmul.f32 %v6894, %v5881
        %v6898 = vmul.f32 %v6894, %v5882
        %v6899 = vmul.f32 %v6894, %v5883
        %v6900 = vmul.f32 %v6894, %v5884
        %v6901 = vmul.f32 %v6894, %v5885
        %v6902 = vmul.f32 %v6894, %v5886
        %v6903 = vadd.f32 %v6885, %v6895
        %v6904 = vadd.f32 %v6886, %v6896
        %v6905 = vadd.f32 %v6887, %v6897
        %v6906 = vadd.f32 %v6888, %v6898
        %v6907 = vadd.f32 %v6889, %v6899
        %v6908 = vadd.f32 %v6890, %v6900
        %v6909 = vadd.f32 %v6891, %v6901
        %v6910 = vadd.f32 %v6892, %v6902
        %s6911 = sld [smem:[#allocation10 + $0x504]]
        %v6912 = vstv %s6911
        %v6913 = vmul.f32 %v6912, %v6039
        %v6914 = vmul.f32 %v6912, %v6040
        %v6915 = vmul.f32 %v6912, %v6041
        %v6916 = vmul.f32 %v6912, %v6042
        %v6917 = vmul.f32 %v6912, %v6043
        %v6918 = vmul.f32 %v6912, %v6044
        %v6919 = vmul.f32 %v6912, %v6045
        %v6920 = vmul.f32 %v6912, %v6046
        %v6921 = vadd.f32 %v6903, %v6913
        %v6922 = vadd.f32 %v6904, %v6914
        %v6923 = vadd.f32 %v6905, %v6915
        %v6924 = vadd.f32 %v6906, %v6916
        %v6925 = vadd.f32 %v6907, %v6917
        %v6926 = vadd.f32 %v6908, %v6918
        %v6927 = vadd.f32 %v6909, %v6919
        %v6928 = vadd.f32 %v6910, %v6920
        %s6929 = sld [smem:[#allocation10 + $0x505]]
        %v6930 = vstv %s6929
        %v6931 = vmul.f32 %v6930, %v6199
        %v6932 = vmul.f32 %v6930, %v6200
        %v6933 = vmul.f32 %v6930, %v6201
        %v6934 = vmul.f32 %v6930, %v6202
        %v6935 = vmul.f32 %v6930, %v6203
        %v6936 = vmul.f32 %v6930, %v6204
        %v6937 = vmul.f32 %v6930, %v6205
        %v6938 = vmul.f32 %v6930, %v6206
        %v6939 = vadd.f32 %v6921, %v6931
        %v6940 = vadd.f32 %v6922, %v6932
        %v6941 = vadd.f32 %v6923, %v6933
        %v6942 = vadd.f32 %v6924, %v6934
        %v6943 = vadd.f32 %v6925, %v6935
        %v6944 = vadd.f32 %v6926, %v6936
        %v6945 = vadd.f32 %v6927, %v6937
        %v6946 = vadd.f32 %v6928, %v6938
        %s6947 = sld [smem:[#allocation10 + $0x506]]
        %v6948 = vstv %s6947
        %v6949 = vmul.f32 %v6948, %v6359
        %v6950 = vmul.f32 %v6948, %v6360
        %v6951 = vmul.f32 %v6948, %v6361
        %v6952 = vmul.f32 %v6948, %v6362
        %v6953 = vmul.f32 %v6948, %v6363
        %v6954 = vmul.f32 %v6948, %v6364
        %v6955 = vmul.f32 %v6948, %v6365
        %v6956 = vmul.f32 %v6948, %v6366
        %v6957 = vadd.f32 %v6939, %v6949
        %v6958 = vadd.f32 %v6940, %v6950
        %v6959 = vadd.f32 %v6941, %v6951
        %v6960 = vadd.f32 %v6942, %v6952
        %v6961 = vadd.f32 %v6943, %v6953
        %v6962 = vadd.f32 %v6944, %v6954
        %v6963 = vadd.f32 %v6945, %v6955
        %v6964 = vadd.f32 %v6946, %v6956
        %s6965 = sld [smem:[#allocation10 + $0x507]]
        %v6966 = vstv %s6965
        %v6967 = vmul.f32 %v6966, %v6519
        %v6968 = vmul.f32 %v6966, %v6520
        %v6969 = vmul.f32 %v6966, %v6521
        %v6970 = vmul.f32 %v6966, %v6522
        %v6971 = vmul.f32 %v6966, %v6523
        %v6972 = vmul.f32 %v6966, %v6524
        %v6973 = vmul.f32 %v6966, %v6525
        %v6974 = vmul.f32 %v6966, %v6526
        %v6975 = vadd.f32 %v6957, %v6967
        %v6976 = vadd.f32 %v6958, %v6968
        %v6977 = vadd.f32 %v6959, %v6969
        %v6978 = vadd.f32 %v6960, %v6970
        %v6979 = vadd.f32 %v6961, %v6971
        %v6980 = vadd.f32 %v6962, %v6972
        %v6981 = vadd.f32 %v6963, %v6973
        %v6982 = vadd.f32 %v6964, %v6974
        %v6983 = vmul.f32 %v6975, %v6975
        %v6984 = vmul.f32 %v6976, %v6976
        %v6985 = vmul.f32 %v6977, %v6977
        %v6986 = vmul.f32 %v6978, %v6978
        %v6987 = vmul.f32 %v6979, %v6979
        %v6988 = vmul.f32 %v6980, %v6980
        %v6989 = vmul.f32 %v6981, %v6981
        %v6990 = vmul.f32 %v6982, %v6982
        %v6991 = vmul.f32 %v6983, 0.5
        %v6992 = vmul.f32 %v6984, 0.5
        %v6993 = vmul.f32 %v6985, 0.5
        %v6994 = vmul.f32 %v6986, 0.5
        %v6995 = vmul.f32 %v6987, 0.5
        %v6996 = vmul.f32 %v6988, 0.5
        %v6997 = vmul.f32 %v6989, 0.5
        %v6998 = vmul.f32 %v6990, 0.5
        %v6999 = vsub.f32 1.0, %v6991
        %v7000 = vsub.f32 1.0, %v6992
        %v7001 = vsub.f32 1.0, %v6993
        %v7002 = vsub.f32 1.0, %v6994
        %v7003 = vsub.f32 1.0, %v6995
        %v7004 = vsub.f32 1.0, %v6996
        %v7005 = vsub.f32 1.0, %v6997
        %v7006 = vsub.f32 1.0, %v6998
        %s7007 = sld [smem:[#allocation10 + $0x580]]
        %v7008 = vstv %s7007
        %v7009 = vmul.f32 %v7008, %v5399
        %v7010 = vmul.f32 %v7008, %v5400
        %v7011 = vmul.f32 %v7008, %v5401
        %v7012 = vmul.f32 %v7008, %v5402
        %v7013 = vmul.f32 %v7008, %v5403
        %v7014 = vmul.f32 %v7008, %v5404
        %v7015 = vmul.f32 %v7008, %v5405
        %v7016 = vmul.f32 %v7008, %v5406
        %s7017 = sld [smem:[#allocation10 + $0x581]]
        %v7018 = vstv %s7017
        %v7019 = vmul.f32 %v7018, %v5559
        %v7020 = vmul.f32 %v7018, %v5560
        %v7021 = vmul.f32 %v7018, %v5561
        %v7022 = vmul.f32 %v7018, %v5562
        %v7023 = vmul.f32 %v7018, %v5563
        %v7024 = vmul.f32 %v7018, %v5564
        %v7025 = vmul.f32 %v7018, %v5565
        %v7026 = vmul.f32 %v7018, %v5566
        %v7027 = vadd.f32 %v7009, %v7019
        %v7028 = vadd.f32 %v7010, %v7020
        %v7029 = vadd.f32 %v7011, %v7021
        %v7030 = vadd.f32 %v7012, %v7022
        %v7031 = vadd.f32 %v7013, %v7023
        %v7032 = vadd.f32 %v7014, %v7024
        %v7033 = vadd.f32 %v7015, %v7025
        %v7034 = vadd.f32 %v7016, %v7026
        %s7035 = sld [smem:[#allocation10 + $0x582]]
        %v7036 = vstv %s7035
        %v7037 = vmul.f32 %v7036, %v5719
        %v7038 = vmul.f32 %v7036, %v5720
        %v7039 = vmul.f32 %v7036, %v5721
        %v7040 = vmul.f32 %v7036, %v5722
        %v7041 = vmul.f32 %v7036, %v5723
        %v7042 = vmul.f32 %v7036, %v5724
        %v7043 = vmul.f32 %v7036, %v5725
        %v7044 = vmul.f32 %v7036, %v5726
        %v7045 = vadd.f32 %v7027, %v7037
        %v7046 = vadd.f32 %v7028, %v7038
        %v7047 = vadd.f32 %v7029, %v7039
        %v7048 = vadd.f32 %v7030, %v7040
        %v7049 = vadd.f32 %v7031, %v7041
        %v7050 = vadd.f32 %v7032, %v7042
        %v7051 = vadd.f32 %v7033, %v7043
        %v7052 = vadd.f32 %v7034, %v7044
        %s7053 = sld [smem:[#allocation10 + $0x583]]
        %v7054 = vstv %s7053
        %v7055 = vmul.f32 %v7054, %v5879
        %v7056 = vmul.f32 %v7054, %v5880
        %v7057 = vmul.f32 %v7054, %v5881
        %v7058 = vmul.f32 %v7054, %v5882
        %v7059 = vmul.f32 %v7054, %v5883
        %v7060 = vmul.f32 %v7054, %v5884
        %v7061 = vmul.f32 %v7054, %v5885
        %v7062 = vmul.f32 %v7054, %v5886
        %v7063 = vadd.f32 %v7045, %v7055
        %v7064 = vadd.f32 %v7046, %v7056
        %v7065 = vadd.f32 %v7047, %v7057
        %v7066 = vadd.f32 %v7048, %v7058
        %v7067 = vadd.f32 %v7049, %v7059
        %v7068 = vadd.f32 %v7050, %v7060
        %v7069 = vadd.f32 %v7051, %v7061
        %v7070 = vadd.f32 %v7052, %v7062
        %s7071 = sld [smem:[#allocation10 + $0x584]]
        %v7072 = vstv %s7071
        %v7073 = vmul.f32 %v7072, %v6039
        %v7074 = vmul.f32 %v7072, %v6040
        %v7075 = vmul.f32 %v7072, %v6041
        %v7076 = vmul.f32 %v7072, %v6042
        %v7077 = vmul.f32 %v7072, %v6043
        %v7078 = vmul.f32 %v7072, %v6044
        %v7079 = vmul.f32 %v7072, %v6045
        %v7080 = vmul.f32 %v7072, %v6046
        %v7081 = vadd.f32 %v7063, %v7073
        %v7082 = vadd.f32 %v7064, %v7074
        %v7083 = vadd.f32 %v7065, %v7075
        %v7084 = vadd.f32 %v7066, %v7076
        %v7085 = vadd.f32 %v7067, %v7077
        %v7086 = vadd.f32 %v7068, %v7078
        %v7087 = vadd.f32 %v7069, %v7079
        %v7088 = vadd.f32 %v7070, %v7080
        %s7089 = sld [smem:[#allocation10 + $0x585]]
        %v7090 = vstv %s7089
        %v7091 = vmul.f32 %v7090, %v6199
        %v7092 = vmul.f32 %v7090, %v6200
        %v7093 = vmul.f32 %v7090, %v6201
        %v7094 = vmul.f32 %v7090, %v6202
        %v7095 = vmul.f32 %v7090, %v6203
        %v7096 = vmul.f32 %v7090, %v6204
        %v7097 = vmul.f32 %v7090, %v6205
        %v7098 = vmul.f32 %v7090, %v6206
        %v7099 = vadd.f32 %v7081, %v7091
        %v7100 = vadd.f32 %v7082, %v7092
        %v7101 = vadd.f32 %v7083, %v7093
        %v7102 = vadd.f32 %v7084, %v7094
        %v7103 = vadd.f32 %v7085, %v7095
        %v7104 = vadd.f32 %v7086, %v7096
        %v7105 = vadd.f32 %v7087, %v7097
        %v7106 = vadd.f32 %v7088, %v7098
        %s7107 = sld [smem:[#allocation10 + $0x586]]
        %v7108 = vstv %s7107
        %v7109 = vmul.f32 %v7108, %v6359
        %v7110 = vmul.f32 %v7108, %v6360
        %v7111 = vmul.f32 %v7108, %v6361
        %v7112 = vmul.f32 %v7108, %v6362
        %v7113 = vmul.f32 %v7108, %v6363
        %v7114 = vmul.f32 %v7108, %v6364
        %v7115 = vmul.f32 %v7108, %v6365
        %v7116 = vmul.f32 %v7108, %v6366
        %v7117 = vadd.f32 %v7099, %v7109
        %v7118 = vadd.f32 %v7100, %v7110
        %v7119 = vadd.f32 %v7101, %v7111
        %v7120 = vadd.f32 %v7102, %v7112
        %v7121 = vadd.f32 %v7103, %v7113
        %v7122 = vadd.f32 %v7104, %v7114
        %v7123 = vadd.f32 %v7105, %v7115
        %v7124 = vadd.f32 %v7106, %v7116
        %s7125 = sld [smem:[#allocation10 + $0x587]]
        %v7126 = vstv %s7125
        %v7127 = vmul.f32 %v7126, %v6519
        %v7128 = vmul.f32 %v7126, %v6520
        %v7129 = vmul.f32 %v7126, %v6521
        %v7130 = vmul.f32 %v7126, %v6522
        %v7131 = vmul.f32 %v7126, %v6523
        %v7132 = vmul.f32 %v7126, %v6524
        %v7133 = vmul.f32 %v7126, %v6525
        %v7134 = vmul.f32 %v7126, %v6526
        %v7135 = vadd.f32 %v7117, %v7127
        %v7136 = vadd.f32 %v7118, %v7128
        %v7137 = vadd.f32 %v7119, %v7129
        %v7138 = vadd.f32 %v7120, %v7130
        %v7139 = vadd.f32 %v7121, %v7131
        %v7140 = vadd.f32 %v7122, %v7132
        %v7141 = vadd.f32 %v7123, %v7133
        %v7142 = vadd.f32 %v7124, %v7134
        %v7143 = vmul.f32 %v7135, %v7135
        %v7144 = vmul.f32 %v7136, %v7136
        %v7145 = vmul.f32 %v7137, %v7137
        %v7146 = vmul.f32 %v7138, %v7138
        %v7147 = vmul.f32 %v7139, %v7139
        %v7148 = vmul.f32 %v7140, %v7140
        %v7149 = vmul.f32 %v7141, %v7141
        %v7150 = vmul.f32 %v7142, %v7142
        %v7151 = vmul.f32 %v7143, 0.5
        %v7152 = vmul.f32 %v7144, 0.5
        %v7153 = vmul.f32 %v7145, 0.5
        %v7154 = vmul.f32 %v7146, 0.5
        %v7155 = vmul.f32 %v7147, 0.5
        %v7156 = vmul.f32 %v7148, 0.5
        %v7157 = vmul.f32 %v7149, 0.5
        %v7158 = vmul.f32 %v7150, 0.5
        %v7159 = vsub.f32 1.0, %v7151
        %v7160 = vsub.f32 1.0, %v7152
        %v7161 = vsub.f32 1.0, %v7153
        %v7162 = vsub.f32 1.0, %v7154
        %v7163 = vsub.f32 1.0, %v7155
        %v7164 = vsub.f32 1.0, %v7156
        %v7165 = vsub.f32 1.0, %v7157
        %v7166 = vsub.f32 1.0, %v7158
        %s7167 = sld [smem:[#allocation10 + $0x600]]
        %v7168 = vstv %s7167
        %v7169 = vmul.f32 %v7168, %v5399
        %v7170 = vmul.f32 %v7168, %v5400
        %v7171 = vmul.f32 %v7168, %v5401
        %v7172 = vmul.f32 %v7168, %v5402
        %v7173 = vmul.f32 %v7168, %v5403
        %v7174 = vmul.f32 %v7168, %v5404
        %v7175 = vmul.f32 %v7168, %v5405
        %v7176 = vmul.f32 %v7168, %v5406
        %s7177 = sld [smem:[#allocation10 + $0x601]]
        %v7178 = vstv %s7177
        %v7179 = vmul.f32 %v7178, %v5559
        %v7180 = vmul.f32 %v7178, %v5560
        %v7181 = vmul.f32 %v7178, %v5561
        %v7182 = vmul.f32 %v7178, %v5562
        %v7183 = vmul.f32 %v7178, %v5563
        %v7184 = vmul.f32 %v7178, %v5564
        %v7185 = vmul.f32 %v7178, %v5565
        %v7186 = vmul.f32 %v7178, %v5566
        %v7187 = vadd.f32 %v7169, %v7179
        %v7188 = vadd.f32 %v7170, %v7180
        %v7189 = vadd.f32 %v7171, %v7181
        %v7190 = vadd.f32 %v7172, %v7182
        %v7191 = vadd.f32 %v7173, %v7183
        %v7192 = vadd.f32 %v7174, %v7184
        %v7193 = vadd.f32 %v7175, %v7185
        %v7194 = vadd.f32 %v7176, %v7186
        %s7195 = sld [smem:[#allocation10 + $0x602]]
        %v7196 = vstv %s7195
        %v7197 = vmul.f32 %v7196, %v5719
        %v7198 = vmul.f32 %v7196, %v5720
        %v7199 = vmul.f32 %v7196, %v5721
        %v7200 = vmul.f32 %v7196, %v5722
        %v7201 = vmul.f32 %v7196, %v5723
        %v7202 = vmul.f32 %v7196, %v5724
        %v7203 = vmul.f32 %v7196, %v5725
        %v7204 = vmul.f32 %v7196, %v5726
        %v7205 = vadd.f32 %v7187, %v7197
        %v7206 = vadd.f32 %v7188, %v7198
        %v7207 = vadd.f32 %v7189, %v7199
        %v7208 = vadd.f32 %v7190, %v7200
        %v7209 = vadd.f32 %v7191, %v7201
        %v7210 = vadd.f32 %v7192, %v7202
        %v7211 = vadd.f32 %v7193, %v7203
        %v7212 = vadd.f32 %v7194, %v7204
        %s7213 = sld [smem:[#allocation10 + $0x603]]
        %v7214 = vstv %s7213
        %v7215 = vmul.f32 %v7214, %v5879
        %v7216 = vmul.f32 %v7214, %v5880
        %v7217 = vmul.f32 %v7214, %v5881
        %v7218 = vmul.f32 %v7214, %v5882
        %v7219 = vmul.f32 %v7214, %v5883
        %v7220 = vmul.f32 %v7214, %v5884
        %v7221 = vmul.f32 %v7214, %v5885
        %v7222 = vmul.f32 %v7214, %v5886
        %v7223 = vadd.f32 %v7205, %v7215
        %v7224 = vadd.f32 %v7206, %v7216
        %v7225 = vadd.f32 %v7207, %v7217
        %v7226 = vadd.f32 %v7208, %v7218
        %v7227 = vadd.f32 %v7209, %v7219
        %v7228 = vadd.f32 %v7210, %v7220
        %v7229 = vadd.f32 %v7211, %v7221
        %v7230 = vadd.f32 %v7212, %v7222
        %s7231 = sld [smem:[#allocation10 + $0x604]]
        %v7232 = vstv %s7231
        %v7233 = vmul.f32 %v7232, %v6039
        %v7234 = vmul.f32 %v7232, %v6040
        %v7235 = vmul.f32 %v7232, %v6041
        %v7236 = vmul.f32 %v7232, %v6042
        %v7237 = vmul.f32 %v7232, %v6043
        %v7238 = vmul.f32 %v7232, %v6044
        %v7239 = vmul.f32 %v7232, %v6045
        %v7240 = vmul.f32 %v7232, %v6046
        %v7241 = vadd.f32 %v7223, %v7233
        %v7242 = vadd.f32 %v7224, %v7234
        %v7243 = vadd.f32 %v7225, %v7235
        %v7244 = vadd.f32 %v7226, %v7236
        %v7245 = vadd.f32 %v7227, %v7237
        %v7246 = vadd.f32 %v7228, %v7238
        %v7247 = vadd.f32 %v7229, %v7239
        %v7248 = vadd.f32 %v7230, %v7240
        %s7249 = sld [smem:[#allocation10 + $0x605]]
        %v7250 = vstv %s7249
        %v7251 = vmul.f32 %v7250, %v6199
        %v7252 = vmul.f32 %v7250, %v6200
        %v7253 = vmul.f32 %v7250, %v6201
        %v7254 = vmul.f32 %v7250, %v6202
        %v7255 = vmul.f32 %v7250, %v6203
        %v7256 = vmul.f32 %v7250, %v6204
        %v7257 = vmul.f32 %v7250, %v6205
        %v7258 = vmul.f32 %v7250, %v6206
        %v7259 = vadd.f32 %v7241, %v7251
        %v7260 = vadd.f32 %v7242, %v7252
        %v7261 = vadd.f32 %v7243, %v7253
        %v7262 = vadd.f32 %v7244, %v7254
        %v7263 = vadd.f32 %v7245, %v7255
        %v7264 = vadd.f32 %v7246, %v7256
        %v7265 = vadd.f32 %v7247, %v7257
        %v7266 = vadd.f32 %v7248, %v7258
        %s7267 = sld [smem:[#allocation10 + $0x606]]
        %v7268 = vstv %s7267
        %v7269 = vmul.f32 %v7268, %v6359
        %v7270 = vmul.f32 %v7268, %v6360
        %v7271 = vmul.f32 %v7268, %v6361
        %v7272 = vmul.f32 %v7268, %v6362
        %v7273 = vmul.f32 %v7268, %v6363
        %v7274 = vmul.f32 %v7268, %v6364
        %v7275 = vmul.f32 %v7268, %v6365
        %v7276 = vmul.f32 %v7268, %v6366
        %v7277 = vadd.f32 %v7259, %v7269
        %v7278 = vadd.f32 %v7260, %v7270
        %v7279 = vadd.f32 %v7261, %v7271
        %v7280 = vadd.f32 %v7262, %v7272
        %v7281 = vadd.f32 %v7263, %v7273
        %v7282 = vadd.f32 %v7264, %v7274
        %v7283 = vadd.f32 %v7265, %v7275
        %v7284 = vadd.f32 %v7266, %v7276
        %s7285 = sld [smem:[#allocation10 + $0x607]]
        %v7286 = vstv %s7285
        %v7287 = vmul.f32 %v7286, %v6519
        %v7288 = vmul.f32 %v7286, %v6520
        %v7289 = vmul.f32 %v7286, %v6521
        %v7290 = vmul.f32 %v7286, %v6522
        %v7291 = vmul.f32 %v7286, %v6523
        %v7292 = vmul.f32 %v7286, %v6524
        %v7293 = vmul.f32 %v7286, %v6525
        %v7294 = vmul.f32 %v7286, %v6526
        %v7295 = vadd.f32 %v7277, %v7287
        %v7296 = vadd.f32 %v7278, %v7288
        %v7297 = vadd.f32 %v7279, %v7289
        %v7298 = vadd.f32 %v7280, %v7290
        %v7299 = vadd.f32 %v7281, %v7291
        %v7300 = vadd.f32 %v7282, %v7292
        %v7301 = vadd.f32 %v7283, %v7293
        %v7302 = vadd.f32 %v7284, %v7294
        %v7303 = vmul.f32 %v7295, %v7295
        %v7304 = vmul.f32 %v7296, %v7296
        %v7305 = vmul.f32 %v7297, %v7297
        %v7306 = vmul.f32 %v7298, %v7298
        %v7307 = vmul.f32 %v7299, %v7299
        %v7308 = vmul.f32 %v7300, %v7300
        %v7309 = vmul.f32 %v7301, %v7301
        %v7310 = vmul.f32 %v7302, %v7302
        %v7311 = vmul.f32 %v7303, 0.5
        %v7312 = vmul.f32 %v7304, 0.5
        %v7313 = vmul.f32 %v7305, 0.5
        %v7314 = vmul.f32 %v7306, 0.5
        %v7315 = vmul.f32 %v7307, 0.5
        %v7316 = vmul.f32 %v7308, 0.5
        %v7317 = vmul.f32 %v7309, 0.5
        %v7318 = vmul.f32 %v7310, 0.5
        %v7319 = vsub.f32 1.0, %v7311
        %v7320 = vsub.f32 1.0, %v7312
        %v7321 = vsub.f32 1.0, %v7313
        %v7322 = vsub.f32 1.0, %v7314
        %v7323 = vsub.f32 1.0, %v7315
        %v7324 = vsub.f32 1.0, %v7316
        %v7325 = vsub.f32 1.0, %v7317
        %v7326 = vsub.f32 1.0, %v7318
        %s7327 = sld [smem:[#allocation10 + $0x680]]
        %v7328 = vstv %s7327
        %v7329 = vmul.f32 %v7328, %v5399
        %v7330 = vmul.f32 %v7328, %v5400
        %v7331 = vmul.f32 %v7328, %v5401
        %v7332 = vmul.f32 %v7328, %v5402
        %v7333 = vmul.f32 %v7328, %v5403
        %v7334 = vmul.f32 %v7328, %v5404
        %v7335 = vmul.f32 %v7328, %v5405
        %v7336 = vmul.f32 %v7328, %v5406
        %s7337 = sld [smem:[#allocation10 + $0x681]]
        %v7338 = vstv %s7337
        %v7339 = vmul.f32 %v7338, %v5559
        %v7340 = vmul.f32 %v7338, %v5560
        %v7341 = vmul.f32 %v7338, %v5561
        %v7342 = vmul.f32 %v7338, %v5562
        %v7343 = vmul.f32 %v7338, %v5563
        %v7344 = vmul.f32 %v7338, %v5564
        %v7345 = vmul.f32 %v7338, %v5565
        %v7346 = vmul.f32 %v7338, %v5566
        %v7347 = vadd.f32 %v7329, %v7339
        %v7348 = vadd.f32 %v7330, %v7340
        %v7349 = vadd.f32 %v7331, %v7341
        %v7350 = vadd.f32 %v7332, %v7342
        %v7351 = vadd.f32 %v7333, %v7343
        %v7352 = vadd.f32 %v7334, %v7344
        %v7353 = vadd.f32 %v7335, %v7345
        %v7354 = vadd.f32 %v7336, %v7346
        %s7355 = sld [smem:[#allocation10 + $0x682]]
        %v7356 = vstv %s7355
        %v7357 = vmul.f32 %v7356, %v5719
        %v7358 = vmul.f32 %v7356, %v5720
        %v7359 = vmul.f32 %v7356, %v5721
        %v7360 = vmul.f32 %v7356, %v5722
        %v7361 = vmul.f32 %v7356, %v5723
        %v7362 = vmul.f32 %v7356, %v5724
        %v7363 = vmul.f32 %v7356, %v5725
        %v7364 = vmul.f32 %v7356, %v5726
        %v7365 = vadd.f32 %v7347, %v7357
        %v7366 = vadd.f32 %v7348, %v7358
        %v7367 = vadd.f32 %v7349, %v7359
        %v7368 = vadd.f32 %v7350, %v7360
        %v7369 = vadd.f32 %v7351, %v7361
        %v7370 = vadd.f32 %v7352, %v7362
        %v7371 = vadd.f32 %v7353, %v7363
        %v7372 = vadd.f32 %v7354, %v7364
        %s7373 = sld [smem:[#allocation10 + $0x683]]
        %v7374 = vstv %s7373
        %v7375 = vmul.f32 %v7374, %v5879
        %v7376 = vmul.f32 %v7374, %v5880
        %v7377 = vmul.f32 %v7374, %v5881
        %v7378 = vmul.f32 %v7374, %v5882
        %v7379 = vmul.f32 %v7374, %v5883
        %v7380 = vmul.f32 %v7374, %v5884
        %v7381 = vmul.f32 %v7374, %v5885
        %v7382 = vmul.f32 %v7374, %v5886
        %v7383 = vadd.f32 %v7365, %v7375
        %v7384 = vadd.f32 %v7366, %v7376
        %v7385 = vadd.f32 %v7367, %v7377
        %v7386 = vadd.f32 %v7368, %v7378
        %v7387 = vadd.f32 %v7369, %v7379
        %v7388 = vadd.f32 %v7370, %v7380
        %v7389 = vadd.f32 %v7371, %v7381
        %v7390 = vadd.f32 %v7372, %v7382
        %s7391 = sld [smem:[#allocation10 + $0x684]]
        %v7392 = vstv %s7391
        %v7393 = vmul.f32 %v7392, %v6039
        %v7394 = vmul.f32 %v7392, %v6040
        %v7395 = vmul.f32 %v7392, %v6041
        %v7396 = vmul.f32 %v7392, %v6042
        %v7397 = vmul.f32 %v7392, %v6043
        %v7398 = vmul.f32 %v7392, %v6044
        %v7399 = vmul.f32 %v7392, %v6045
        %v7400 = vmul.f32 %v7392, %v6046
        %v7401 = vadd.f32 %v7383, %v7393
        %v7402 = vadd.f32 %v7384, %v7394
        %v7403 = vadd.f32 %v7385, %v7395
        %v7404 = vadd.f32 %v7386, %v7396
        %v7405 = vadd.f32 %v7387, %v7397
        %v7406 = vadd.f32 %v7388, %v7398
        %v7407 = vadd.f32 %v7389, %v7399
        %v7408 = vadd.f32 %v7390, %v7400
        %s7409 = sld [smem:[#allocation10 + $0x685]]
        %v7410 = vstv %s7409
        %v7411 = vmul.f32 %v7410, %v6199
        %v7412 = vmul.f32 %v7410, %v6200
        %v7413 = vmul.f32 %v7410, %v6201
        %v7414 = vmul.f32 %v7410, %v6202
        %v7415 = vmul.f32 %v7410, %v6203
        %v7416 = vmul.f32 %v7410, %v6204
        %v7417 = vmul.f32 %v7410, %v6205
        %v7418 = vmul.f32 %v7410, %v6206
        %v7419 = vadd.f32 %v7401, %v7411
        %v7420 = vadd.f32 %v7402, %v7412
        %v7421 = vadd.f32 %v7403, %v7413
        %v7422 = vadd.f32 %v7404, %v7414
        %v7423 = vadd.f32 %v7405, %v7415
        %v7424 = vadd.f32 %v7406, %v7416
        %v7425 = vadd.f32 %v7407, %v7417
        %v7426 = vadd.f32 %v7408, %v7418
        %s7427 = sld [smem:[#allocation10 + $0x686]]
        %v7428 = vstv %s7427
        %v7429 = vmul.f32 %v7428, %v6359
        %v7430 = vmul.f32 %v7428, %v6360
        %v7431 = vmul.f32 %v7428, %v6361
        %v7432 = vmul.f32 %v7428, %v6362
        %v7433 = vmul.f32 %v7428, %v6363
        %v7434 = vmul.f32 %v7428, %v6364
        %v7435 = vmul.f32 %v7428, %v6365
        %v7436 = vmul.f32 %v7428, %v6366
        %v7437 = vadd.f32 %v7419, %v7429
        %v7438 = vadd.f32 %v7420, %v7430
        %v7439 = vadd.f32 %v7421, %v7431
        %v7440 = vadd.f32 %v7422, %v7432
        %v7441 = vadd.f32 %v7423, %v7433
        %v7442 = vadd.f32 %v7424, %v7434
        %v7443 = vadd.f32 %v7425, %v7435
        %v7444 = vadd.f32 %v7426, %v7436
        %s7445 = sld [smem:[#allocation10 + $0x687]]
        %v7446 = vstv %s7445
        %v7447 = vmul.f32 %v7446, %v6519
        %v7448 = vmul.f32 %v7446, %v6520
        %v7449 = vmul.f32 %v7446, %v6521
        %v7450 = vmul.f32 %v7446, %v6522
        %v7451 = vmul.f32 %v7446, %v6523
        %v7452 = vmul.f32 %v7446, %v6524
        %v7453 = vmul.f32 %v7446, %v6525
        %v7454 = vmul.f32 %v7446, %v6526
        %v7455 = vadd.f32 %v7437, %v7447
        %v7456 = vadd.f32 %v7438, %v7448
        %v7457 = vadd.f32 %v7439, %v7449
        %v7458 = vadd.f32 %v7440, %v7450
        %v7459 = vadd.f32 %v7441, %v7451
        %v7460 = vadd.f32 %v7442, %v7452
        %v7461 = vadd.f32 %v7443, %v7453
        %v7462 = vadd.f32 %v7444, %v7454
        %v7463 = vmul.f32 %v7455, %v7455
        %v7464 = vmul.f32 %v7456, %v7456
        %v7465 = vmul.f32 %v7457, %v7457
        %v7466 = vmul.f32 %v7458, %v7458
        %v7467 = vmul.f32 %v7459, %v7459
        %v7468 = vmul.f32 %v7460, %v7460
        %v7469 = vmul.f32 %v7461, %v7461
        %v7470 = vmul.f32 %v7462, %v7462
        %v7471 = vmul.f32 %v7463, 0.5
        %v7472 = vmul.f32 %v7464, 0.5
        %v7473 = vmul.f32 %v7465, 0.5
        %v7474 = vmul.f32 %v7466, 0.5
        %v7475 = vmul.f32 %v7467, 0.5
        %v7476 = vmul.f32 %v7468, 0.5
        %v7477 = vmul.f32 %v7469, 0.5
        %v7478 = vmul.f32 %v7470, 0.5
        %v7479 = vsub.f32 1.0, %v7471
        %v7480 = vsub.f32 1.0, %v7472
        %v7481 = vsub.f32 1.0, %v7473
        %v7482 = vsub.f32 1.0, %v7474
        %v7483 = vsub.f32 1.0, %v7475
        %v7484 = vsub.f32 1.0, %v7476
        %v7485 = vsub.f32 1.0, %v7477
        %v7486 = vsub.f32 1.0, %v7478
        %s7487 = sld [smem:[#allocation10 + $0x700]]
        %v7488 = vstv %s7487
        %v7489 = vmul.f32 %v7488, %v5399
        %v7490 = vmul.f32 %v7488, %v5400
        %v7491 = vmul.f32 %v7488, %v5401
        %v7492 = vmul.f32 %v7488, %v5402
        %v7493 = vmul.f32 %v7488, %v5403
        %v7494 = vmul.f32 %v7488, %v5404
        %v7495 = vmul.f32 %v7488, %v5405
        %v7496 = vmul.f32 %v7488, %v5406
        %s7497 = sld [smem:[#allocation10 + $0x701]]
        %v7498 = vstv %s7497
        %v7499 = vmul.f32 %v7498, %v5559
        %v7500 = vmul.f32 %v7498, %v5560
        %v7501 = vmul.f32 %v7498, %v5561
        %v7502 = vmul.f32 %v7498, %v5562
        %v7503 = vmul.f32 %v7498, %v5563
        %v7504 = vmul.f32 %v7498, %v5564
        %v7505 = vmul.f32 %v7498, %v5565
        %v7506 = vmul.f32 %v7498, %v5566
        %v7507 = vadd.f32 %v7489, %v7499
        %v7508 = vadd.f32 %v7490, %v7500
        %v7509 = vadd.f32 %v7491, %v7501
        %v7510 = vadd.f32 %v7492, %v7502
        %v7511 = vadd.f32 %v7493, %v7503
        %v7512 = vadd.f32 %v7494, %v7504
        %v7513 = vadd.f32 %v7495, %v7505
        %v7514 = vadd.f32 %v7496, %v7506
        %s7515 = sld [smem:[#allocation10 + $0x702]]
        %v7516 = vstv %s7515
        %v7517 = vmul.f32 %v7516, %v5719
        %v7518 = vmul.f32 %v7516, %v5720
        %v7519 = vmul.f32 %v7516, %v5721
        %v7520 = vmul.f32 %v7516, %v5722
        %v7521 = vmul.f32 %v7516, %v5723
        %v7522 = vmul.f32 %v7516, %v5724
        %v7523 = vmul.f32 %v7516, %v5725
        %v7524 = vmul.f32 %v7516, %v5726
        %v7525 = vadd.f32 %v7507, %v7517
        %v7526 = vadd.f32 %v7508, %v7518
        %v7527 = vadd.f32 %v7509, %v7519
        %v7528 = vadd.f32 %v7510, %v7520
        %v7529 = vadd.f32 %v7511, %v7521
        %v7530 = vadd.f32 %v7512, %v7522
        %v7531 = vadd.f32 %v7513, %v7523
        %v7532 = vadd.f32 %v7514, %v7524
        %s7533 = sld [smem:[#allocation10 + $0x703]]
        %v7534 = vstv %s7533
        %v7535 = vmul.f32 %v7534, %v5879
        %v7536 = vmul.f32 %v7534, %v5880
        %v7537 = vmul.f32 %v7534, %v5881
        %v7538 = vmul.f32 %v7534, %v5882
        %v7539 = vmul.f32 %v7534, %v5883
        %v7540 = vmul.f32 %v7534, %v5884
        %v7541 = vmul.f32 %v7534, %v5885
        %v7542 = vmul.f32 %v7534, %v5886
        %v7543 = vadd.f32 %v7525, %v7535
        %v7544 = vadd.f32 %v7526, %v7536
        %v7545 = vadd.f32 %v7527, %v7537
        %v7546 = vadd.f32 %v7528, %v7538
        %v7547 = vadd.f32 %v7529, %v7539
        %v7548 = vadd.f32 %v7530, %v7540
        %v7549 = vadd.f32 %v7531, %v7541
        %v7550 = vadd.f32 %v7532, %v7542
        %s7551 = sld [smem:[#allocation10 + $0x704]]
        %v7552 = vstv %s7551
        %v7553 = vmul.f32 %v7552, %v6039
        %v7554 = vmul.f32 %v7552, %v6040
        %v7555 = vmul.f32 %v7552, %v6041
        %v7556 = vmul.f32 %v7552, %v6042
        %v7557 = vmul.f32 %v7552, %v6043
        %v7558 = vmul.f32 %v7552, %v6044
        %v7559 = vmul.f32 %v7552, %v6045
        %v7560 = vmul.f32 %v7552, %v6046
        %v7561 = vadd.f32 %v7543, %v7553
        %v7562 = vadd.f32 %v7544, %v7554
        %v7563 = vadd.f32 %v7545, %v7555
        %v7564 = vadd.f32 %v7546, %v7556
        %v7565 = vadd.f32 %v7547, %v7557
        %v7566 = vadd.f32 %v7548, %v7558
        %v7567 = vadd.f32 %v7549, %v7559
        %v7568 = vadd.f32 %v7550, %v7560
        %s7569 = sld [smem:[#allocation10 + $0x705]]
        %v7570 = vstv %s7569
        %v7571 = vmul.f32 %v7570, %v6199
        %v7572 = vmul.f32 %v7570, %v6200
        %v7573 = vmul.f32 %v7570, %v6201
        %v7574 = vmul.f32 %v7570, %v6202
        %v7575 = vmul.f32 %v7570, %v6203
        %v7576 = vmul.f32 %v7570, %v6204
        %v7577 = vmul.f32 %v7570, %v6205
        %v7578 = vmul.f32 %v7570, %v6206
        %v7579 = vadd.f32 %v7561, %v7571
        %v7580 = vadd.f32 %v7562, %v7572
        %v7581 = vadd.f32 %v7563, %v7573
        %v7582 = vadd.f32 %v7564, %v7574
        %v7583 = vadd.f32 %v7565, %v7575
        %v7584 = vadd.f32 %v7566, %v7576
        %v7585 = vadd.f32 %v7567, %v7577
        %v7586 = vadd.f32 %v7568, %v7578
        %s7587 = sld [smem:[#allocation10 + $0x706]]
        %v7588 = vstv %s7587
        %v7589 = vmul.f32 %v7588, %v6359
        %v7590 = vmul.f32 %v7588, %v6360
        %v7591 = vmul.f32 %v7588, %v6361
        %v7592 = vmul.f32 %v7588, %v6362
        %v7593 = vmul.f32 %v7588, %v6363
        %v7594 = vmul.f32 %v7588, %v6364
        %v7595 = vmul.f32 %v7588, %v6365
        %v7596 = vmul.f32 %v7588, %v6366
        %v7597 = vadd.f32 %v7579, %v7589
        %v7598 = vadd.f32 %v7580, %v7590
        %v7599 = vadd.f32 %v7581, %v7591
        %v7600 = vadd.f32 %v7582, %v7592
        %v7601 = vadd.f32 %v7583, %v7593
        %v7602 = vadd.f32 %v7584, %v7594
        %v7603 = vadd.f32 %v7585, %v7595
        %v7604 = vadd.f32 %v7586, %v7596
        %s7605 = sld [smem:[#allocation10 + $0x707]]
        %v7606 = vstv %s7605
        %v7607 = vmul.f32 %v7606, %v6519
        %v7608 = vmul.f32 %v7606, %v6520
        %v7609 = vmul.f32 %v7606, %v6521
        %v7610 = vmul.f32 %v7606, %v6522
        %v7611 = vmul.f32 %v7606, %v6523
        %v7612 = vmul.f32 %v7606, %v6524
        %v7613 = vmul.f32 %v7606, %v6525
        %v7614 = vmul.f32 %v7606, %v6526
        %v7615 = vadd.f32 %v7597, %v7607
        %v7616 = vadd.f32 %v7598, %v7608
        %v7617 = vadd.f32 %v7599, %v7609
        %v7618 = vadd.f32 %v7600, %v7610
        %v7619 = vadd.f32 %v7601, %v7611
        %v7620 = vadd.f32 %v7602, %v7612
        %v7621 = vadd.f32 %v7603, %v7613
        %v7622 = vadd.f32 %v7604, %v7614
        %v7623 = vmul.f32 %v7615, %v7615
        %v7624 = vmul.f32 %v7616, %v7616
        %v7625 = vmul.f32 %v7617, %v7617
        %v7626 = vmul.f32 %v7618, %v7618
        %v7627 = vmul.f32 %v7619, %v7619
        %v7628 = vmul.f32 %v7620, %v7620
        %v7629 = vmul.f32 %v7621, %v7621
        %v7630 = vmul.f32 %v7622, %v7622
        %v7631 = vmul.f32 %v7623, 0.5
        %v7632 = vmul.f32 %v7624, 0.5
        %v7633 = vmul.f32 %v7625, 0.5
        %v7634 = vmul.f32 %v7626, 0.5
        %v7635 = vmul.f32 %v7627, 0.5
        %v7636 = vmul.f32 %v7628, 0.5
        %v7637 = vmul.f32 %v7629, 0.5
        %v7638 = vmul.f32 %v7630, 0.5
        %v7639 = vsub.f32 1.0, %v7631
        %v7640 = vsub.f32 1.0, %v7632
        %v7641 = vsub.f32 1.0, %v7633
        %v7642 = vsub.f32 1.0, %v7634
        %v7643 = vsub.f32 1.0, %v7635
        %v7644 = vsub.f32 1.0, %v7636
        %v7645 = vsub.f32 1.0, %v7637
        %v7646 = vsub.f32 1.0, %v7638
        %s7647 = sld [smem:[#allocation10 + $0x780]]
        %v7648 = vstv %s7647
        %v7649 = vmul.f32 %v7648, %v5399
        %v7650 = vmul.f32 %v7648, %v5400
        %v7651 = vmul.f32 %v7648, %v5401
        %v7652 = vmul.f32 %v7648, %v5402
        %v7653 = vmul.f32 %v7648, %v5403
        %v7654 = vmul.f32 %v7648, %v5404
        %v7655 = vmul.f32 %v7648, %v5405
        %v7656 = vmul.f32 %v7648, %v5406
        %s7657 = sld [smem:[#allocation10 + $0x781]]
        %v7658 = vstv %s7657
        %v7659 = vmul.f32 %v7658, %v5559
        %v7660 = vmul.f32 %v7658, %v5560
        %v7661 = vmul.f32 %v7658, %v5561
        %v7662 = vmul.f32 %v7658, %v5562
        %v7663 = vmul.f32 %v7658, %v5563
        %v7664 = vmul.f32 %v7658, %v5564
        %v7665 = vmul.f32 %v7658, %v5565
        %v7666 = vmul.f32 %v7658, %v5566
        %v7667 = vadd.f32 %v7649, %v7659
        %v7668 = vadd.f32 %v7650, %v7660
        %v7669 = vadd.f32 %v7651, %v7661
        %v7670 = vadd.f32 %v7652, %v7662
        %v7671 = vadd.f32 %v7653, %v7663
        %v7672 = vadd.f32 %v7654, %v7664
        %v7673 = vadd.f32 %v7655, %v7665
        %v7674 = vadd.f32 %v7656, %v7666
        %s7675 = sld [smem:[#allocation10 + $0x782]]
        %v7676 = vstv %s7675
        %v7677 = vmul.f32 %v7676, %v5719
        %v7678 = vmul.f32 %v7676, %v5720
        %v7679 = vmul.f32 %v7676, %v5721
        %v7680 = vmul.f32 %v7676, %v5722
        %v7681 = vmul.f32 %v7676, %v5723
        %v7682 = vmul.f32 %v7676, %v5724
        %v7683 = vmul.f32 %v7676, %v5725
        %v7684 = vmul.f32 %v7676, %v5726
        %v7685 = vadd.f32 %v7667, %v7677
        %v7686 = vadd.f32 %v7668, %v7678
        %v7687 = vadd.f32 %v7669, %v7679
        %v7688 = vadd.f32 %v7670, %v7680
        %v7689 = vadd.f32 %v7671, %v7681
        %v7690 = vadd.f32 %v7672, %v7682
        %v7691 = vadd.f32 %v7673, %v7683
        %v7692 = vadd.f32 %v7674, %v7684
        %s7693 = sld [smem:[#allocation10 + $0x783]]
        %v7694 = vstv %s7693
        %v7695 = vmul.f32 %v7694, %v5879
        %v7696 = vmul.f32 %v7694, %v5880
        %v7697 = vmul.f32 %v7694, %v5881
        %v7698 = vmul.f32 %v7694, %v5882
        %v7699 = vmul.f32 %v7694, %v5883
        %v7700 = vmul.f32 %v7694, %v5884
        %v7701 = vmul.f32 %v7694, %v5885
        %v7702 = vmul.f32 %v7694, %v5886
        %v7703 = vadd.f32 %v7685, %v7695
        %v7704 = vadd.f32 %v7686, %v7696
        %v7705 = vadd.f32 %v7687, %v7697
        %v7706 = vadd.f32 %v7688, %v7698
        %v7707 = vadd.f32 %v7689, %v7699
        %v7708 = vadd.f32 %v7690, %v7700
        %v7709 = vadd.f32 %v7691, %v7701
        %v7710 = vadd.f32 %v7692, %v7702
        %s7711 = sld [smem:[#allocation10 + $0x784]]
        %v7712 = vstv %s7711
        %v7713 = vmul.f32 %v7712, %v6039
        %v7714 = vmul.f32 %v7712, %v6040
        %v7715 = vmul.f32 %v7712, %v6041
        %v7716 = vmul.f32 %v7712, %v6042
        %v7717 = vmul.f32 %v7712, %v6043
        %v7718 = vmul.f32 %v7712, %v6044
        %v7719 = vmul.f32 %v7712, %v6045
        %v7720 = vmul.f32 %v7712, %v6046
        %v7721 = vadd.f32 %v7703, %v7713
        %v7722 = vadd.f32 %v7704, %v7714
        %v7723 = vadd.f32 %v7705, %v7715
        %v7724 = vadd.f32 %v7706, %v7716
        %v7725 = vadd.f32 %v7707, %v7717
        %v7726 = vadd.f32 %v7708, %v7718
        %v7727 = vadd.f32 %v7709, %v7719
        %v7728 = vadd.f32 %v7710, %v7720
        %s7729 = sld [smem:[#allocation10 + $0x785]]
        %v7730 = vstv %s7729
        %v7731 = vmul.f32 %v7730, %v6199
        %v7732 = vmul.f32 %v7730, %v6200
        %v7733 = vmul.f32 %v7730, %v6201
        %v7734 = vmul.f32 %v7730, %v6202
        %v7735 = vmul.f32 %v7730, %v6203
        %v7736 = vmul.f32 %v7730, %v6204
        %v7737 = vmul.f32 %v7730, %v6205
        %v7738 = vmul.f32 %v7730, %v6206
        %v7739 = vadd.f32 %v7721, %v7731
        %v7740 = vadd.f32 %v7722, %v7732
        %v7741 = vadd.f32 %v7723, %v7733
        %v7742 = vadd.f32 %v7724, %v7734
        %v7743 = vadd.f32 %v7725, %v7735
        %v7744 = vadd.f32 %v7726, %v7736
        %v7745 = vadd.f32 %v7727, %v7737
        %v7746 = vadd.f32 %v7728, %v7738
        %s7747 = sld [smem:[#allocation10 + $0x786]]
        %v7748 = vstv %s7747
        %v7749 = vmul.f32 %v7748, %v6359
        %v7750 = vmul.f32 %v7748, %v6360
        %v7751 = vmul.f32 %v7748, %v6361
        %v7752 = vmul.f32 %v7748, %v6362
        %v7753 = vmul.f32 %v7748, %v6363
        %v7754 = vmul.f32 %v7748, %v6364
        %v7755 = vmul.f32 %v7748, %v6365
        %v7756 = vmul.f32 %v7748, %v6366
        %v7757 = vadd.f32 %v7739, %v7749
        %v7758 = vadd.f32 %v7740, %v7750
        %v7759 = vadd.f32 %v7741, %v7751
        %v7760 = vadd.f32 %v7742, %v7752
        %v7761 = vadd.f32 %v7743, %v7753
        %v7762 = vadd.f32 %v7744, %v7754
        %v7763 = vadd.f32 %v7745, %v7755
        %v7764 = vadd.f32 %v7746, %v7756
        %s7765 = sld [smem:[#allocation10 + $0x787]]
        %v7766 = vstv %s7765
        %v7767 = vmul.f32 %v7766, %v6519
        %v7768 = vmul.f32 %v7766, %v6520
        %v7769 = vmul.f32 %v7766, %v6521
        %v7770 = vmul.f32 %v7766, %v6522
        %v7771 = vmul.f32 %v7766, %v6523
        %v7772 = vmul.f32 %v7766, %v6524
        %v7773 = vmul.f32 %v7766, %v6525
        %v7774 = vmul.f32 %v7766, %v6526
        %v7775 = vadd.f32 %v7757, %v7767
        %v7776 = vadd.f32 %v7758, %v7768
        %v7777 = vadd.f32 %v7759, %v7769
        %v7778 = vadd.f32 %v7760, %v7770
        %v7779 = vadd.f32 %v7761, %v7771
        %v7780 = vadd.f32 %v7762, %v7772
        %v7781 = vadd.f32 %v7763, %v7773
        %v7782 = vadd.f32 %v7764, %v7774
        %v7783 = vmul.f32 %v7775, %v7775
        %v7784 = vmul.f32 %v7776, %v7776
        %v7785 = vmul.f32 %v7777, %v7777
        %v7786 = vmul.f32 %v7778, %v7778
        %v7787 = vmul.f32 %v7779, %v7779
        %v7788 = vmul.f32 %v7780, %v7780
        %v7789 = vmul.f32 %v7781, %v7781
        %v7790 = vmul.f32 %v7782, %v7782
        %v7791 = vmul.f32 %v7783, 0.5
        %v7792 = vmul.f32 %v7784, 0.5
        %v7793 = vmul.f32 %v7785, 0.5
        %v7794 = vmul.f32 %v7786, 0.5
        %v7795 = vmul.f32 %v7787, 0.5
        %v7796 = vmul.f32 %v7788, 0.5
        %v7797 = vmul.f32 %v7789, 0.5
        %v7798 = vmul.f32 %v7790, 0.5
        %v7799 = vsub.f32 1.0, %v7791
        %v7800 = vsub.f32 1.0, %v7792
        %v7801 = vsub.f32 1.0, %v7793
        %v7802 = vsub.f32 1.0, %v7794
        %v7803 = vsub.f32 1.0, %v7795
        %v7804 = vsub.f32 1.0, %v7796
        %v7805 = vsub.f32 1.0, %v7797
        %v7806 = vsub.f32 1.0, %v7798
        %s7807 = sld [smem:[#allocation12]]
        %v7808 = vstv %s7807
        %v7809 = vmul.f32 %v7808, %v6679
        %v7810 = vmul.f32 %v7808, %v6680
        %v7811 = vmul.f32 %v7808, %v6681
        %v7812 = vmul.f32 %v7808, %v6682
        %v7813 = vmul.f32 %v7808, %v6683
        %v7814 = vmul.f32 %v7808, %v6684
        %v7815 = vmul.f32 %v7808, %v6685
        %v7816 = vmul.f32 %v7808, %v6686
        %s7817 = sld [smem:[#allocation12 + $0x1]]
        %v7818 = vstv %s7817
        %v7819 = vmul.f32 %v7818, %v6839
        %v7820 = vmul.f32 %v7818, %v6840
        %v7821 = vmul.f32 %v7818, %v6841
        %v7822 = vmul.f32 %v7818, %v6842
        %v7823 = vmul.f32 %v7818, %v6843
        %v7824 = vmul.f32 %v7818, %v6844
        %v7825 = vmul.f32 %v7818, %v6845
        %v7826 = vmul.f32 %v7818, %v6846
        %v7827 = vadd.f32 %v7809, %v7819
        %v7828 = vadd.f32 %v7810, %v7820
        %v7829 = vadd.f32 %v7811, %v7821
        %v7830 = vadd.f32 %v7812, %v7822
        %v7831 = vadd.f32 %v7813, %v7823
        %v7832 = vadd.f32 %v7814, %v7824
        %v7833 = vadd.f32 %v7815, %v7825
        %v7834 = vadd.f32 %v7816, %v7826
        %s7835 = sld [smem:[#allocation12 + $0x2]]
        %v7836 = vstv %s7835
        %v7837 = vmul.f32 %v7836, %v6999
        %v7838 = vmul.f32 %v7836, %v7000
        %v7839 = vmul.f32 %v7836, %v7001
        %v7840 = vmul.f32 %v7836, %v7002
        %v7841 = vmul.f32 %v7836, %v7003
        %v7842 = vmul.f32 %v7836, %v7004
        %v7843 = vmul.f32 %v7836, %v7005
        %v7844 = vmul.f32 %v7836, %v7006
        %v7845 = vadd.f32 %v7827, %v7837
        %v7846 = vadd.f32 %v7828, %v7838
        %v7847 = vadd.f32 %v7829, %v7839
        %v7848 = vadd.f32 %v7830, %v7840
        %v7849 = vadd.f32 %v7831, %v7841
        %v7850 = vadd.f32 %v7832, %v7842
        %v7851 = vadd.f32 %v7833, %v7843
        %v7852 = vadd.f32 %v7834, %v7844
        %s7853 = sld [smem:[#allocation12 + $0x3]]
        %v7854 = vstv %s7853
        %v7855 = vmul.f32 %v7854, %v7159
        %v7856 = vmul.f32 %v7854, %v7160
        %v7857 = vmul.f32 %v7854, %v7161
        %v7858 = vmul.f32 %v7854, %v7162
        %v7859 = vmul.f32 %v7854, %v7163
        %v7860 = vmul.f32 %v7854, %v7164
        %v7861 = vmul.f32 %v7854, %v7165
        %v7862 = vmul.f32 %v7854, %v7166
        %v7863 = vadd.f32 %v7845, %v7855
        %v7864 = vadd.f32 %v7846, %v7856
        %v7865 = vadd.f32 %v7847, %v7857
        %v7866 = vadd.f32 %v7848, %v7858
        %v7867 = vadd.f32 %v7849, %v7859
        %v7868 = vadd.f32 %v7850, %v7860
        %v7869 = vadd.f32 %v7851, %v7861
        %v7870 = vadd.f32 %v7852, %v7862
        %s7871 = sld [smem:[#allocation12 + $0x4]]
        %v7872 = vstv %s7871
        %v7873 = vmul.f32 %v7872, %v7319
        %v7874 = vmul.f32 %v7872, %v7320
        %v7875 = vmul.f32 %v7872, %v7321
        %v7876 = vmul.f32 %v7872, %v7322
        %v7877 = vmul.f32 %v7872, %v7323
        %v7878 = vmul.f32 %v7872, %v7324
        %v7879 = vmul.f32 %v7872, %v7325
        %v7880 = vmul.f32 %v7872, %v7326
        %v7881 = vadd.f32 %v7863, %v7873
        %v7882 = vadd.f32 %v7864, %v7874
        %v7883 = vadd.f32 %v7865, %v7875
        %v7884 = vadd.f32 %v7866, %v7876
        %v7885 = vadd.f32 %v7867, %v7877
        %v7886 = vadd.f32 %v7868, %v7878
        %v7887 = vadd.f32 %v7869, %v7879
        %v7888 = vadd.f32 %v7870, %v7880
        %s7889 = sld [smem:[#allocation12 + $0x5]]
        %v7890 = vstv %s7889
        %v7891 = vmul.f32 %v7890, %v7479
        %v7892 = vmul.f32 %v7890, %v7480
        %v7893 = vmul.f32 %v7890, %v7481
        %v7894 = vmul.f32 %v7890, %v7482
        %v7895 = vmul.f32 %v7890, %v7483
        %v7896 = vmul.f32 %v7890, %v7484
        %v7897 = vmul.f32 %v7890, %v7485
        %v7898 = vmul.f32 %v7890, %v7486
        %v7899 = vadd.f32 %v7881, %v7891
        %v7900 = vadd.f32 %v7882, %v7892
        %v7901 = vadd.f32 %v7883, %v7893
        %v7902 = vadd.f32 %v7884, %v7894
        %v7903 = vadd.f32 %v7885, %v7895
        %v7904 = vadd.f32 %v7886, %v7896
        %v7905 = vadd.f32 %v7887, %v7897
        %v7906 = vadd.f32 %v7888, %v7898
        %s7907 = sld [smem:[#allocation12 + $0x6]]
        %v7908 = vstv %s7907
        %v7909 = vmul.f32 %v7908, %v7639
        %v7910 = vmul.f32 %v7908, %v7640
        %v7911 = vmul.f32 %v7908, %v7641
        %v7912 = vmul.f32 %v7908, %v7642
        %v7913 = vmul.f32 %v7908, %v7643
        %v7914 = vmul.f32 %v7908, %v7644
        %v7915 = vmul.f32 %v7908, %v7645
        %v7916 = vmul.f32 %v7908, %v7646
        %v7917 = vadd.f32 %v7899, %v7909
        %v7918 = vadd.f32 %v7900, %v7910
        %v7919 = vadd.f32 %v7901, %v7911
        %v7920 = vadd.f32 %v7902, %v7912
        %v7921 = vadd.f32 %v7903, %v7913
        %v7922 = vadd.f32 %v7904, %v7914
        %v7923 = vadd.f32 %v7905, %v7915
        %v7924 = vadd.f32 %v7906, %v7916
        %s7925 = sld [smem:[#allocation12 + $0x7]]
        %v7926 = vstv %s7925
        %v7927 = vmul.f32 %v7926, %v7799
        %v7928 = vmul.f32 %v7926, %v7800
        %v7929 = vmul.f32 %v7926, %v7801
        %v7930 = vmul.f32 %v7926, %v7802
        %v7931 = vmul.f32 %v7926, %v7803
        %v7932 = vmul.f32 %v7926, %v7804
        %v7933 = vmul.f32 %v7926, %v7805
        %v7934 = vmul.f32 %v7926, %v7806
        %v7935 = vadd.f32 %v7917, %v7927
        %v7936 = vadd.f32 %v7918, %v7928
        %v7937 = vadd.f32 %v7919, %v7929
        %v7938 = vadd.f32 %v7920, %v7930
        %v7939 = vadd.f32 %v7921, %v7931
        %v7940 = vadd.f32 %v7922, %v7932
        %v7941 = vadd.f32 %v7923, %v7933
        %v7942 = vadd.f32 %v7924, %v7934
        %s7943 = sld [smem:[#allocation2]]
        %v7944 = vstv %s7943
        %v7945 = vadd.f32 %v7935, %v7944
        %v7946 = vadd.f32 %v7936, %v7944
        %v7947 = vadd.f32 %v7937, %v7944
        %v7948 = vadd.f32 %v7938, %v7944
        %v7949 = vadd.f32 %v7939, %v7944
        %v7950 = vadd.f32 %v7940, %v7944
        %v7951 = vadd.f32 %v7941, %v7944
        %v7952 = vadd.f32 %v7942, %v7944
        %7953 = vst [vmem:[%s355] sm:$0xff] %v7945
        %7954 = vst [vmem:[%s355 + $0x8] sm:$0xff] %v7946
        %7955 = vst [vmem:[%s355 + $0x10] sm:$0xff] %v7947
        %7956 = vst [vmem:[%s355 + $0x18] sm:$0xff] %v7948
        %7957 = vst [vmem:[%s355 + $0x20] sm:$0xff] %v7949
        %7958 = vst [vmem:[%s355 + $0x28] sm:$0xff] %v7950
        %7959 = vst [vmem:[%s355 + $0x30] sm:$0xff] %v7951
        %7960 = vst [vmem:[%s355 + $0x38] sm:$0xff] %v7952
        %s7961 = sand.u32 %s173, 1
        %s7962 = scalar_lea.sflag [#allocation5], %s7961
        %s7963 = sand.u32 %s173, 1
        %s7964 = smul.addr %s7963, 64
        %s7965 = scalar_lea.vmem [#allocation13], %s7964
        // Predicated region
        $region65: #{tpu_custom_call.1} parent=43 // pred_check
          %p7966 = pneg %p183
        $region66: #{tpu_custom_call.1} parent=43 // pred_check_branch
          %7968 = sbr.rel (%p7966) target = $region68
        $region67: #{tpu_custom_call.1} parent=43 // pred_region
          %s7969 = smul.u32 2, %s29
          %s7971 = ssub.s32 1024, 1024
          %7972 = vsyncadd %s7962, %s7971
          %s7973 = smul.addr %s7969, 4
          %s7974 = smul.addr %s7973, 128
          %s7975 = scalar_lea.hbm %s6, %s7974
          %s7976 = sshll.u32 %s7965, 4
          %s7977 = int_to_ptr.vmem [resolvable:$true] %s7976
          %7982 = dma.vmem_to_hbm [thread:$0]  %s7977, 1024, %s7975, %s7962, 512, 512, 32
        $region68: #{tpu_custom_call.1} parent=43 // pred_fallthru
          _
      $region44: #{tpu_custom_call.1} parent=5 // pred_fallthru
        _
      %p7983 = scmp.le.s32.totalorder 2, %s24
      // Predicated region
      $region69: #{tpu_custom_call.1} parent=5 // pred_check
        %p7984 = pneg %p7983
      $region70: #{tpu_custom_call.1} parent=5 // pred_check_branch
        %7986 = sbr.rel (%p7984) target = $region72
      $region71: #{tpu_custom_call.1} parent=5 // pred_region
        %s7987 = ssub.s32 %s24, 2
        // Predicated region
        $region73: #{tpu_custom_call.1} parent=71 // pred_check
          %p7988 = pneg %p189
        $region74: #{tpu_custom_call.1} parent=71 // pred_check_branch
          %7990 = sbr.rel (%p7988) target = $region76
        $region75: #{tpu_custom_call.1} parent=71 // pred_region
          %s7991 = sand.u32 %s174, 1
          %s7992 = scalar_lea.sflag [#allocation5], %s7991
          %s7993 = sand.u32 %s174, 1
          %s7994 = smul.addr %s7993, 64
          %s7995 = scalar_lea.vmem [#allocation13], %s7994
          %7996 = dma.done %s7992, 1024
        $region76: #{tpu_custom_call.1} parent=71 // pred_fallthru
          _
      $region72: #{tpu_custom_call.1} parent=5 // pred_fallthru
        _
    $region6: #{tpu_custom_call.1} parent=1 // loop_footer
      %s28 = sadd.s32 1, %s24
    $region7: #{tpu_custom_call.1} parent=1 // loop_footer_branch
      %23 = sbr.rel target = $region3
    $region8: #{tpu_custom_call.1} parent=1 // loop_exit
      _
    %7997 = vsyncpa [#allocation4], 1
    %s7998 = scalar_lea.sflag [#allocation4], 1
    %7999 = vsyncpa %s7998, 1
    %8000 = vsyncpa [#allocation8], 1
    %s8001 = scalar_lea.sflag [#allocation8], 1
    %8002 = vsyncpa %s8001, 1
    %8003 = vsyncpa [#allocation5], 1
    %s8004 = scalar_lea.sflag [#allocation5], 1
    %8005 = vsyncpa %s8004, 1
    %8006 = vsyncpa [#allocation6], 1
    %s8007 = scalar_lea.sflag [#allocation6], 1
    %8008 = vsyncpa %s8007, 1
    %8009 = vsyncpa [#allocation11], 1

</llo_original>
